<compile_context>
chip_gen: v7x
topology: tpu7x:2x2x1
jax: 0.10.0
libtpu: 0.0.40
codegen_flags: <defaults>
</compile_context>

<pallas_src>
import functools

import numpy as np
import jax
import jax.numpy as jnp
from jax.experimental import pallas as pl
from jax.experimental.pallas import tpu as pltpu


# ----------------------------------------------------------------------------
# Fused kernel: grid axis = encoder layer.
# ----------------------------------------------------------------------------
def _fused_kernel(emb_ref, pe_ref, wqkv_ref, bqkv_ref, wo_ref, bo_ref,
                  g1_ref, be1_ref, w1_ref, b1_ref, w2_ref, b2_ref,
                  g2_ref, be2_ref, fcw_ref, fcb_ref,
                  out_ref, x_scr, *, num_heads):
    layer = pl.program_id(0)
    B, S, E = emb_ref.shape
    BS = B * S
    H = num_heads
    dh = E // H
    scale = 1.0 / float(np.sqrt(dh))

    # Layer 0: initialize the VMEM-resident activation = embedding + PE.
    @pl.when(layer == 0)
    def _():
        x_scr[...] = (emb_ref[...] + pe_ref[...][None, :, :]).reshape(BS, E)

    x = x_scr[...]                                   # (BS, E) f32
    x_bf = x.astype(jnp.bfloat16)

    # Fused QKV projection: one (BS,E) x (E,3E) matmul.
    qkv = jnp.dot(x_bf, wqkv_ref[0],
                  preferred_element_type=jnp.float32) + bqkv_ref[0]
    q = qkv[:, :E].reshape(B, S, E)
    k = qkv[:, E:2 * E].reshape(B, S, E)
    v = qkv[:, 2 * E:].reshape(B, S, E)

    # Multi-head attention: batched-over-B einsums per head (lane-aligned
    # dh-wide slices, no transposes / concat churn).
    heads = []
    for h in range(H):
        lo = h * dh
        qh = q[:, :, lo:lo + dh].astype(jnp.bfloat16)    # (B, S, dh)
        kh = k[:, :, lo:lo + dh].astype(jnp.bfloat16)
        vh = v[:, :, lo:lo + dh].astype(jnp.bfloat16)
        s = jnp.einsum('bqd,bkd->bqk', qh, kh,
                       preferred_element_type=jnp.float32) * scale
        m = jnp.max(s, axis=-1, keepdims=True)
        p = jnp.exp(s - m)
        denom = jnp.sum(p, axis=-1, keepdims=True)
        o = jnp.einsum('bqk,bkd->bqd', p.astype(jnp.bfloat16), vh,
                       preferred_element_type=jnp.float32)
        heads.append(o * pl.reciprocal(denom, approx=True))
    attn = jnp.concatenate(heads, axis=-1).reshape(BS, E)

    attn = jnp.dot(attn.astype(jnp.bfloat16), wo_ref[0],
                   preferred_element_type=jnp.float32) + bo_ref[0]

    # Residual + LayerNorm 1 (post-norm, eps=1e-5, PyTorch default).
    h1 = x + attn
    mu = jnp.mean(h1, axis=-1, keepdims=True)
    var = jnp.mean((h1 - mu) ** 2, axis=-1, keepdims=True)
    h1 = (h1 - mu) * jax.lax.rsqrt(var + 1e-5) * g1_ref[0] + be1_ref[0]

    # Feed-forward (ReLU) + residual + LayerNorm 2.
    f = jnp.dot(h1.astype(jnp.bfloat16), w1_ref[0],
                preferred_element_type=jnp.float32) + b1_ref[0]
    f = jnp.maximum(f, 0.0)
    f = jnp.dot(f.astype(jnp.bfloat16), w2_ref[0],
                preferred_element_type=jnp.float32) + b2_ref[0]
    h2 = h1 + f
    mu2 = jnp.mean(h2, axis=-1, keepdims=True)
    var2 = jnp.mean((h2 - mu2) ** 2, axis=-1, keepdims=True)
    h2 = (h2 - mu2) * jax.lax.rsqrt(var2 + 1e-5) * g2_ref[0] + be2_ref[0]

    x_scr[...] = h2                                  # stays in VMEM

    # Last layer: mean-pool over seq + final Linear(E, 1).
    @pl.when(layer == pl.num_programs(0) - 1)
    def _():
        pooled = jnp.mean(h2.reshape(B, S, E), axis=1)           # (B, E)
        out_ref[...] = (jnp.sum(pooled * fcw_ref[...], axis=-1, keepdims=True)
                        + fcb_ref[...])


def _fused_forward(emb, pe, stacked, fc_w, fc_b, num_heads):
    B, S, E = emb.shape
    L = stacked["wqkv"].shape[0]
    HID = stacked["w1"].shape[-1]

    def const_spec(shape):
        nd = len(shape)
        return pl.BlockSpec(shape, lambda l, _nd=nd: (0,) * _nd)

    def layer_spec(shape):                      # shape excludes leading L dim
        nd = len(shape)
        return pl.BlockSpec((1,) + shape, lambda l, _nd=nd: (l,) + (0,) * _nd)

    in_specs = [
        const_spec((B, S, E)),        # emb
        const_spec((S, E)),           # pe
        layer_spec((E, 3 * E)),       # wqkv
        layer_spec((1, 3 * E)),       # bqkv
        layer_spec((E, E)),           # wo
        layer_spec((1, E)),           # bo
        layer_spec((1, E)),           # ln1_g
        layer_spec((1, E)),           # ln1_b
        layer_spec((E, HID)),         # w1
        layer_spec((1, HID)),         # b1
        layer_spec((HID, E)),         # w2
        layer_spec((1, E)),           # b2
        layer_spec((1, E)),           # ln2_g
        layer_spec((1, E)),           # ln2_b
        const_spec((1, E)),           # fc_w  (out_features=1, in_features=E)
        const_spec((1, 1)),           # fc_b
    ]

    kernel = functools.partial(_fused_kernel, num_heads=num_heads)
    out = pl.pallas_call(
        kernel,
        grid=(L,),
        in_specs=in_specs,
        out_specs=pl.BlockSpec((B, 1), lambda l: (0, 0)),
        out_shape=jax.ShapeDtypeStruct((B, 1), jnp.float32),
        scratch_shapes=[pltpu.VMEM((B * S, E), jnp.float32)],
        compiler_params=pltpu.CompilerParams(
            dimension_semantics=("arbitrary",)),
    )(emb, pe,
      stacked["wqkv"], stacked["bqkv"], stacked["wo"], stacked["bo"],
      stacked["ln1_g"], stacked["ln1_b"], stacked["w1"], stacked["b1"],
      stacked["w2"], stacked["b2"], stacked["ln2_g"], stacked["ln2_b"],
      fc_w, fc_b)
    return out[:, 0]                                  # squeeze(1) -> (B,)


# ----------------------------------------------------------------------------
# Glue: positional encoding table, embedding gather, parameter init.
# ----------------------------------------------------------------------------
def positional_encoding(seq_len, d_model):
    position = np.arange(seq_len, dtype=np.float32)[:, None]
    div_term = np.exp(np.arange(0, d_model, 2, dtype=np.float32)
                      * (-np.log(10000.0) / d_model))
    pe = np.zeros((seq_len, d_model), dtype=np.float32)
    pe[:, 0::2] = np.sin(position * div_term)
    pe[:, 1::2] = np.cos(position * div_term)
    return jnp.asarray(pe)


@functools.partial(jax.jit, static_argnames=("num_heads",))
def transformer_classifier(tokens, emb_table, stacked, fc_w, fc_b, num_heads):
    B, S = tokens.shape
    E = emb_table.shape[1]
    emb = emb_table[tokens]                 # embedding gather stays in XLA
    pe = positional_encoding(S, E)          # static table (numpy, trace-time)
    return _fused_forward(emb, pe, stacked, fc_w, fc_b, num_heads)


def init_stacked_layers(keys, E, HID):
    s = 0.05

    def one(k):
        ks = jax.random.split(k, 4)
        return {
            "wqkv": jax.random.normal(ks[0], (E, 3 * E), jnp.float32) * s,
            "bqkv": jnp.zeros((1, 3 * E), jnp.float32),
            "wo":   jax.random.normal(ks[1], (E, E), jnp.float32) * s,
            "bo":   jnp.zeros((1, E), jnp.float32),
            "ln1_g": jnp.ones((1, E), jnp.float32),
            "ln1_b": jnp.zeros((1, E), jnp.float32),
            "w1":   jax.random.normal(ks[2], (E, HID), jnp.float32) * s,
            "b1":   jnp.zeros((1, HID), jnp.float32),
            "w2":   jax.random.normal(ks[3], (HID, E), jnp.float32) * s,
            "b2":   jnp.zeros((1, E), jnp.float32),
            "ln2_g": jnp.ones((1, E), jnp.float32),
            "ln2_b": jnp.zeros((1, E), jnp.float32),
        }

    per = [one(k) for k in keys]
    stacked = {name: jnp.stack([p[name] for p in per], axis=0) for name in per[0]}
    # Matmul operands in bf16; accumulation / elementwise stay f32 in-kernel.
    for name in ("wqkv", "wo", "w1", "w2"):
        stacked[name] = stacked[name].astype(jnp.bfloat16)
    return stacked


if __name__ == "__main__":
    # Module constants: embed_dim=512, hidden_dim=512, num_heads=4, num_layers=4.
    B, S = 2, 8
    E, HID = 512, 512
    NUM_HEADS, NUM_LAYERS = 4, 4
    VOCAB = 100

    key = jax.random.PRNGKey(0)
    k_tok, k_emb, k_fc, k_layers = jax.random.split(key, 4)

    tokens = jax.random.randint(k_tok, (B, S), 0, VOCAB, dtype=jnp.int32)
    emb_table = jax.random.normal(k_emb, (VOCAB, E), jnp.float32) * 0.1
    fc_w = jax.random.normal(k_fc, (1, E), jnp.float32) * 0.05   # (out=1, in=E)
    fc_b = jnp.zeros((1, 1), jnp.float32)
    stacked = init_stacked_layers(jax.random.split(k_layers, NUM_LAYERS), E, HID)

    out = transformer_classifier(tokens, emb_table, stacked, fc_w, fc_b, NUM_HEADS)
    out = jax.block_until_ready(out)
    assert out.shape == (B,) and out.dtype == jnp.float32
    print("KERNEL_OK")
</pallas_src>

<mosaic_0001>
module attributes {stable_mosaic.version = 11 : i64} {
  func.func @_fused_kernel(%arg0: i32, %arg1: memref<2x8x512xf32, #tpu.memory_space<vmem>>, %arg2: memref<8x512xf32, #tpu.memory_space<vmem>>, %arg3: memref<1x512x1536xbf16, #tpu.memory_space<vmem>>, %arg4: memref<1x1x1536xf32, #tpu.memory_space<vmem>>, %arg5: memref<1x512x512xbf16, #tpu.memory_space<vmem>>, %arg6: memref<1x1x512xf32, #tpu.memory_space<vmem>>, %arg7: memref<1x1x512xf32, #tpu.memory_space<vmem>>, %arg8: memref<1x1x512xf32, #tpu.memory_space<vmem>>, %arg9: memref<1x512x512xbf16, #tpu.memory_space<vmem>>, %arg10: memref<1x1x512xf32, #tpu.memory_space<vmem>>, %arg11: memref<1x512x512xbf16, #tpu.memory_space<vmem>>, %arg12: memref<1x1x512xf32, #tpu.memory_space<vmem>>, %arg13: memref<1x1x512xf32, #tpu.memory_space<vmem>>, %arg14: memref<1x1x512xf32, #tpu.memory_space<vmem>>, %arg15: memref<1x512xf32, #tpu.memory_space<vmem>>, %arg16: memref<1x1xf32, #tpu.memory_space<vmem>>, %arg17: memref<2x1xf32, #tpu.memory_space<vmem>>, %arg18: memref<16x512xf32, #tpu.memory_space<vmem>>) attributes {dimension_semantics = [#tpu.dimension_semantics<arbitrary>], iteration_bounds = array<i64: 4>, scalar_prefetch = 0 : i64, scratch_operands = 1 : i64, tpu.core_type = #tpu.core_type<tc>, window_params = [{pipeline_mode = #tpu.pipeline_mode<synchronous>, transform_indices = @transform_0, window_bounds = array<i64: 2, 8, 512>}, {pipeline_mode = #tpu.pipeline_mode<synchronous>, transform_indices = @transform_1, window_bounds = array<i64: 8, 512>}, {transform_indices = @transform_2, window_bounds = array<i64: 1, 512, 1536>}, {transform_indices = @transform_3, window_bounds = array<i64: 1, 1, 1536>}, {transform_indices = @transform_4, window_bounds = array<i64: 1, 512, 512>}, {transform_indices = @transform_5, window_bounds = array<i64: 1, 1, 512>}, {transform_indices = @transform_6, window_bounds = array<i64: 1, 1, 512>}, {transform_indices = @transform_7, window_bounds = array<i64: 1, 1, 512>}, {transform_indices = @transform_8, window_bounds = array<i64: 1, 512, 512>}, {transform_indices = @transform_9, window_bounds = array<i64: 1, 1, 512>}, {transform_indices = @transform_10, window_bounds = array<i64: 1, 512, 512>}, {transform_indices = @transform_11, window_bounds = array<i64: 1, 1, 512>}, {transform_indices = @transform_12, window_bounds = array<i64: 1, 1, 512>}, {transform_indices = @transform_13, window_bounds = array<i64: 1, 1, 512>}, {pipeline_mode = #tpu.pipeline_mode<synchronous>, transform_indices = @transform_14, window_bounds = array<i64: 1, 512>}, {pipeline_mode = #tpu.pipeline_mode<synchronous>, transform_indices = @transform_15, window_bounds = array<i64: 1, 1>}, {pipeline_mode = #tpu.pipeline_mode<synchronous>, transform_indices = @transform_16, window_bounds = array<i64: 2, 1>}]} {
    %c0_i32 = arith.constant 0 : i32
    %0 = arith.cmpi eq, %arg0, %c0_i32 : i32
    %1 = arith.extui %0 : i1 to i32
    %c0_i32_0 = arith.constant 0 : i32
    %2 = arith.cmpi ne, %1, %c0_i32_0 : i32
    scf.if %2 {
      %c0_75 = arith.constant 0 : index
      %c0_76 = arith.constant 0 : index
      %c0_77 = arith.constant 0 : index
      %188 = vector.load %arg1[%c0_75, %c0_76, %c0_77] : memref<2x8x512xf32, #tpu.memory_space<vmem>>, vector<2x8x512xf32>
      %c0_78 = arith.constant 0 : index
      %c0_79 = arith.constant 0 : index
      %189 = vector.load %arg2[%c0_78, %c0_79] : memref<8x512xf32, #tpu.memory_space<vmem>>, vector<8x512xf32>
      %190 = vector.shape_cast %189 : vector<8x512xf32> to vector<1x8x512xf32>
      %191 = vector.broadcast %190 : vector<1x8x512xf32> to vector<2x8x512xf32>
      %192 = arith.addf %188, %191 : vector<2x8x512xf32>
      %193 = vector.shape_cast %192 : vector<2x8x512xf32> to vector<16x512xf32>
      %c0_80 = arith.constant 0 : index
      %c0_81 = arith.constant 0 : index
      %194 = vector.load %arg18[%c0_80, %c0_81] : memref<16x512xf32, #tpu.memory_space<vmem>>, vector<16x512xf32>
      tpu.vector_store %arg18[%c0_80, %c0_81], %193 {strides = array<i32>} : memref<16x512xf32, #tpu.memory_space<vmem>>, vector<16x512xf32>,
    } else {
    }
    %c0 = arith.constant 0 : index
    %c0_1 = arith.constant 0 : index
    %3 = vector.load %arg18[%c0, %c0_1] : memref<16x512xf32, #tpu.memory_space<vmem>>, vector<16x512xf32>
    %4 = arith.truncf %3 : vector<16x512xf32> to vector<16x512xbf16>
    %c0_2 = arith.constant 0 : index
    %c0_3 = arith.constant 0 : index
    %c0_4 = arith.constant 0 : index
    %5 = vector.load %arg3[%c0_2, %c0_3, %c0_4] : memref<1x512x1536xbf16, #tpu.memory_space<vmem>>, vector<1x512x1536xbf16>
    %6 = vector.shape_cast %5 : vector<1x512x1536xbf16> to vector<512x1536xbf16>
    %cst = arith.constant dense<0.000000e+00> : vector<16x1536xf32>
    %7 = tpu.matmul %4, %6, %cst {dimension_numbers = #tpu.dot_dimension_numbers<[1], [0], [0], [1], [0, 0, 1, 1], [], []>} : vector<16x512xbf16>, vector<512x1536xbf16>, vector<16x1536xf32> -> vector<16x1536xf32>
    %c0_5 = arith.constant 0 : index
    %c0_6 = arith.constant 0 : index
    %c0_7 = arith.constant 0 : index
    %8 = vector.load %arg4[%c0_5, %c0_6, %c0_7] : memref<1x1x1536xf32, #tpu.memory_space<vmem>>, vector<1x1x1536xf32>
    %9 = vector.shape_cast %8 : vector<1x1x1536xf32> to vector<1x1536xf32>
    %10 = vector.broadcast %9 : vector<1x1536xf32> to vector<16x1536xf32>
    %11 = arith.addf %7, %10 : vector<16x1536xf32>
    %12 = vector.extract_strided_slice %11 {offsets = [0, 0], sizes = [16, 512], strides = [1, 1]} : vector<16x1536xf32> to vector<16x512xf32>
    %13 = vector.shape_cast %12 : vector<16x512xf32> to vector<2x8x512xf32>
    %14 = vector.extract_strided_slice %11 {offsets = [0, 512], sizes = [16, 512], strides = [1, 1]} : vector<16x1536xf32> to vector<16x512xf32>
    %15 = vector.shape_cast %14 : vector<16x512xf32> to vector<2x8x512xf32>
    %16 = vector.extract_strided_slice %11 {offsets = [0, 1024], sizes = [16, 512], strides = [1, 1]} : vector<16x1536xf32> to vector<16x512xf32>
    %17 = vector.shape_cast %16 : vector<16x512xf32> to vector<2x8x512xf32>
    %18 = vector.extract_strided_slice %13 {offsets = [0, 0, 0], sizes = [2, 8, 128], strides = [1, 1, 1]} : vector<2x8x512xf32> to vector<2x8x128xf32>
    %19 = arith.truncf %18 : vector<2x8x128xf32> to vector<2x8x128xbf16>
    %20 = vector.extract_strided_slice %15 {offsets = [0, 0, 0], sizes = [2, 8, 128], strides = [1, 1, 1]} : vector<2x8x512xf32> to vector<2x8x128xf32>
    %21 = arith.truncf %20 : vector<2x8x128xf32> to vector<2x8x128xbf16>
    %22 = vector.extract_strided_slice %17 {offsets = [0, 0, 0], sizes = [2, 8, 128], strides = [1, 1, 1]} : vector<2x8x512xf32> to vector<2x8x128xf32>
    %23 = arith.truncf %22 : vector<2x8x128xf32> to vector<2x8x128xbf16>
    "tpu.trace_start"() <{level = 10 : i32, message = "bqd,bkd->bqk"}> : () -> ()
    %cst_8 = arith.constant dense<0.000000e+00> : vector<2x8x8xf32>
    %24 = tpu.matmul %19, %21, %cst_8 {dimension_numbers = #tpu.dot_dimension_numbers<[2], [2], [1], [1], [0, 0, 0, 1, 1, 1], [0], [0]>} : vector<2x8x128xbf16>, vector<2x8x128xbf16>, vector<2x8x8xf32> -> vector<2x8x8xf32>
    "tpu.trace_stop"() : () -> ()
    %cst_9 = arith.constant 0.0883883461 : f32
    %25 = vector.broadcast %cst_9 : f32 to vector<2x8x8xf32>
    %26 = arith.mulf %24, %25 : vector<2x8x8xf32>
    %cst_10 = arith.constant dense<0xFF800000> : vector<2x8xf32>
    %27 = vector.multi_reduction <maximumf>, %26, %cst_10 [2] : vector<2x8x8xf32> to vector<2x8xf32>
    %28 = vector.shape_cast %27 : vector<2x8xf32> to vector<2x8x1xf32>
    %29 = vector.broadcast %28 : vector<2x8x1xf32> to vector<2x8x8xf32>
    %30 = arith.subf %26, %29 : vector<2x8x8xf32>
    %31 = math.exp %30 : vector<2x8x8xf32>
    %cst_11 = arith.constant dense<0.000000e+00> : vector<2x8xf32>
    %32 = vector.multi_reduction <add>, %31, %cst_11 [2] : vector<2x8x8xf32> to vector<2x8xf32>
    %33 = vector.shape_cast %32 : vector<2x8xf32> to vector<2x8x1xf32>
    %34 = arith.truncf %31 : vector<2x8x8xf32> to vector<2x8x8xbf16>
    "tpu.trace_start"() <{level = 10 : i32, message = "bqk,bkd->bqd"}> : () -> ()
    %cst_12 = arith.constant dense<0.000000e+00> : vector<2x8x128xf32>
    %35 = tpu.matmul %34, %23, %cst_12 {dimension_numbers = #tpu.dot_dimension_numbers<[2], [1], [1], [2], [0, 0, 0, 1, 1, 2], [0], [0]>} : vector<2x8x8xbf16>, vector<2x8x128xbf16>, vector<2x8x128xf32> -> vector<2x8x128xf32>
    "tpu.trace_stop"() : () -> ()
    %36 = tpu.reciprocal %33 {approx = true} : vector<2x8x1xf32> -> vector<2x8x1xf32>
    %37 = vector.broadcast %36 : vector<2x8x1xf32> to vector<2x8x128xf32>
    %38 = arith.mulf %35, %37 : vector<2x8x128xf32>
    %39 = vector.extract_strided_slice %13 {offsets = [0, 0, 128], sizes = [2, 8, 128], strides = [1, 1, 1]} : vector<2x8x512xf32> to vector<2x8x128xf32>
    %40 = arith.truncf %39 : vector<2x8x128xf32> to vector<2x8x128xbf16>
    %41 = vector.extract_strided_slice %15 {offsets = [0, 0, 128], sizes = [2, 8, 128], strides = [1, 1, 1]} : vector<2x8x512xf32> to vector<2x8x128xf32>
    %42 = arith.truncf %41 : vector<2x8x128xf32> to vector<2x8x128xbf16>
    %43 = vector.extract_strided_slice %17 {offsets = [0, 0, 128], sizes = [2, 8, 128], strides = [1, 1, 1]} : vector<2x8x512xf32> to vector<2x8x128xf32>
    %44 = arith.truncf %43 : vector<2x8x128xf32> to vector<2x8x128xbf16>
    "tpu.trace_start"() <{level = 10 : i32, message = "bqd,bkd->bqk"}> : () -> ()
    %cst_13 = arith.constant dense<0.000000e+00> : vector<2x8x8xf32>
    %45 = tpu.matmul %40, %42, %cst_13 {dimension_numbers = #tpu.dot_dimension_numbers<[2], [2], [1], [1], [0, 0, 0, 1, 1, 1], [0], [0]>} : vector<2x8x128xbf16>, vector<2x8x128xbf16>, vector<2x8x8xf32> -> vector<2x8x8xf32>
    "tpu.trace_stop"() : () -> ()
    %cst_14 = arith.constant 0.0883883461 : f32
    %46 = vector.broadcast %cst_14 : f32 to vector<2x8x8xf32>
    %47 = arith.mulf %45, %46 : vector<2x8x8xf32>
    %cst_15 = arith.constant dense<0xFF800000> : vector<2x8xf32>
    %48 = vector.multi_reduction <maximumf>, %47, %cst_15 [2] : vector<2x8x8xf32> to vector<2x8xf32>
    %49 = vector.shape_cast %48 : vector<2x8xf32> to vector<2x8x1xf32>
    %50 = vector.broadcast %49 : vector<2x8x1xf32> to vector<2x8x8xf32>
    %51 = arith.subf %47, %50 : vector<2x8x8xf32>
    %52 = math.exp %51 : vector<2x8x8xf32>
    %cst_16 = arith.constant dense<0.000000e+00> : vector<2x8xf32>
    %53 = vector.multi_reduction <add>, %52, %cst_16 [2] : vector<2x8x8xf32> to vector<2x8xf32>
    %54 = vector.shape_cast %53 : vector<2x8xf32> to vector<2x8x1xf32>
    %55 = arith.truncf %52 : vector<2x8x8xf32> to vector<2x8x8xbf16>
    "tpu.trace_start"() <{level = 10 : i32, message = "bqk,bkd->bqd"}> : () -> ()
    %cst_17 = arith.constant dense<0.000000e+00> : vector<2x8x128xf32>
    %56 = tpu.matmul %55, %44, %cst_17 {dimension_numbers = #tpu.dot_dimension_numbers<[2], [1], [1], [2], [0, 0, 0, 1, 1, 2], [0], [0]>} : vector<2x8x8xbf16>, vector<2x8x128xbf16>, vector<2x8x128xf32> -> vector<2x8x128xf32>
    "tpu.trace_stop"() : () -> ()
    %57 = tpu.reciprocal %54 {approx = true} : vector<2x8x1xf32> -> vector<2x8x1xf32>
    %58 = vector.broadcast %57 : vector<2x8x1xf32> to vector<2x8x128xf32>
    %59 = arith.mulf %56, %58 : vector<2x8x128xf32>
    %60 = vector.extract_strided_slice %13 {offsets = [0, 0, 256], sizes = [2, 8, 128], strides = [1, 1, 1]} : vector<2x8x512xf32> to vector<2x8x128xf32>
    %61 = arith.truncf %60 : vector<2x8x128xf32> to vector<2x8x128xbf16>
    %62 = vector.extract_strided_slice %15 {offsets = [0, 0, 256], sizes = [2, 8, 128], strides = [1, 1, 1]} : vector<2x8x512xf32> to vector<2x8x128xf32>
    %63 = arith.truncf %62 : vector<2x8x128xf32> to vector<2x8x128xbf16>
    %64 = vector.extract_strided_slice %17 {offsets = [0, 0, 256], sizes = [2, 8, 128], strides = [1, 1, 1]} : vector<2x8x512xf32> to vector<2x8x128xf32>
    %65 = arith.truncf %64 : vector<2x8x128xf32> to vector<2x8x128xbf16>
    "tpu.trace_start"() <{level = 10 : i32, message = "bqd,bkd->bqk"}> : () -> ()
    %cst_18 = arith.constant dense<0.000000e+00> : vector<2x8x8xf32>
    %66 = tpu.matmul %61, %63, %cst_18 {dimension_numbers = #tpu.dot_dimension_numbers<[2], [2], [1], [1], [0, 0, 0, 1, 1, 1], [0], [0]>} : vector<2x8x128xbf16>, vector<2x8x128xbf16>, vector<2x8x8xf32> -> vector<2x8x8xf32>
    "tpu.trace_stop"() : () -> ()
    %cst_19 = arith.constant 0.0883883461 : f32
    %67 = vector.broadcast %cst_19 : f32 to vector<2x8x8xf32>
    %68 = arith.mulf %66, %67 : vector<2x8x8xf32>
    %cst_20 = arith.constant dense<0xFF800000> : vector<2x8xf32>
    %69 = vector.multi_reduction <maximumf>, %68, %cst_20 [2] : vector<2x8x8xf32> to vector<2x8xf32>
    %70 = vector.shape_cast %69 : vector<2x8xf32> to vector<2x8x1xf32>
    %71 = vector.broadcast %70 : vector<2x8x1xf32> to vector<2x8x8xf32>
    %72 = arith.subf %68, %71 : vector<2x8x8xf32>
    %73 = math.exp %72 : vector<2x8x8xf32>
    %cst_21 = arith.constant dense<0.000000e+00> : vector<2x8xf32>
    %74 = vector.multi_reduction <add>, %73, %cst_21 [2] : vector<2x8x8xf32> to vector<2x8xf32>
    %75 = vector.shape_cast %74 : vector<2x8xf32> to vector<2x8x1xf32>
    %76 = arith.truncf %73 : vector<2x8x8xf32> to vector<2x8x8xbf16>
    "tpu.trace_start"() <{level = 10 : i32, message = "bqk,bkd->bqd"}> : () -> ()
    %cst_22 = arith.constant dense<0.000000e+00> : vector<2x8x128xf32>
    %77 = tpu.matmul %76, %65, %cst_22 {dimension_numbers = #tpu.dot_dimension_numbers<[2], [1], [1], [2], [0, 0, 0, 1, 1, 2], [0], [0]>} : vector<2x8x8xbf16>, vector<2x8x128xbf16>, vector<2x8x128xf32> -> vector<2x8x128xf32>
    "tpu.trace_stop"() : () -> ()
    %78 = tpu.reciprocal %75 {approx = true} : vector<2x8x1xf32> -> vector<2x8x1xf32>
    %79 = vector.broadcast %78 : vector<2x8x1xf32> to vector<2x8x128xf32>
    %80 = arith.mulf %77, %79 : vector<2x8x128xf32>
    %81 = vector.extract_strided_slice %13 {offsets = [0, 0, 384], sizes = [2, 8, 128], strides = [1, 1, 1]} : vector<2x8x512xf32> to vector<2x8x128xf32>
    %82 = arith.truncf %81 : vector<2x8x128xf32> to vector<2x8x128xbf16>
    %83 = vector.extract_strided_slice %15 {offsets = [0, 0, 384], sizes = [2, 8, 128], strides = [1, 1, 1]} : vector<2x8x512xf32> to vector<2x8x128xf32>
    %84 = arith.truncf %83 : vector<2x8x128xf32> to vector<2x8x128xbf16>
    %85 = vector.extract_strided_slice %17 {offsets = [0, 0, 384], sizes = [2, 8, 128], strides = [1, 1, 1]} : vector<2x8x512xf32> to vector<2x8x128xf32>
    %86 = arith.truncf %85 : vector<2x8x128xf32> to vector<2x8x128xbf16>
    "tpu.trace_start"() <{level = 10 : i32, message = "bqd,bkd->bqk"}> : () -> ()
    %cst_23 = arith.constant dense<0.000000e+00> : vector<2x8x8xf32>
    %87 = tpu.matmul %82, %84, %cst_23 {dimension_numbers = #tpu.dot_dimension_numbers<[2], [2], [1], [1], [0, 0, 0, 1, 1, 1], [0], [0]>} : vector<2x8x128xbf16>, vector<2x8x128xbf16>, vector<2x8x8xf32> -> vector<2x8x8xf32>
    "tpu.trace_stop"() : () -> ()
    %cst_24 = arith.constant 0.0883883461 : f32
    %88 = vector.broadcast %cst_24 : f32 to vector<2x8x8xf32>
    %89 = arith.mulf %87, %88 : vector<2x8x8xf32>
    %cst_25 = arith.constant dense<0xFF800000> : vector<2x8xf32>
    %90 = vector.multi_reduction <maximumf>, %89, %cst_25 [2] : vector<2x8x8xf32> to vector<2x8xf32>
    %91 = vector.shape_cast %90 : vector<2x8xf32> to vector<2x8x1xf32>
    %92 = vector.broadcast %91 : vector<2x8x1xf32> to vector<2x8x8xf32>
    %93 = arith.subf %89, %92 : vector<2x8x8xf32>
    %94 = math.exp %93 : vector<2x8x8xf32>
    %cst_26 = arith.constant dense<0.000000e+00> : vector<2x8xf32>
    %95 = vector.multi_reduction <add>, %94, %cst_26 [2] : vector<2x8x8xf32> to vector<2x8xf32>
    %96 = vector.shape_cast %95 : vector<2x8xf32> to vector<2x8x1xf32>
    %97 = arith.truncf %94 : vector<2x8x8xf32> to vector<2x8x8xbf16>
    "tpu.trace_start"() <{level = 10 : i32, message = "bqk,bkd->bqd"}> : () -> ()
    %cst_27 = arith.constant dense<0.000000e+00> : vector<2x8x128xf32>
    %98 = tpu.matmul %97, %86, %cst_27 {dimension_numbers = #tpu.dot_dimension_numbers<[2], [1], [1], [2], [0, 0, 0, 1, 1, 2], [0], [0]>} : vector<2x8x8xbf16>, vector<2x8x128xbf16>, vector<2x8x128xf32> -> vector<2x8x128xf32>
    "tpu.trace_stop"() : () -> ()
    %99 = tpu.reciprocal %96 {approx = true} : vector<2x8x1xf32> -> vector<2x8x1xf32>
    %100 = vector.broadcast %99 : vector<2x8x1xf32> to vector<2x8x128xf32>
    %101 = arith.mulf %98, %100 : vector<2x8x128xf32>
    %102 = tpu.concatenate %38, %59, %80, %101 in 2 : vector<2x8x128xf32>, vector<2x8x128xf32>, vector<2x8x128xf32>, vector<2x8x128xf32> -> vector<2x8x512xf32>
    %103 = vector.shape_cast %102 : vector<2x8x512xf32> to vector<16x512xf32>
    %104 = arith.truncf %103 : vector<16x512xf32> to vector<16x512xbf16>
    %c0_28 = arith.constant 0 : index
    %c0_29 = arith.constant 0 : index
    %c0_30 = arith.constant 0 : index
    %105 = vector.load %arg5[%c0_28, %c0_29, %c0_30] : memref<1x512x512xbf16, #tpu.memory_space<vmem>>, vector<1x512x512xbf16>
    %106 = vector.shape_cast %105 : vector<1x512x512xbf16> to vector<512x512xbf16>
    %cst_31 = arith.constant dense<0.000000e+00> : vector<16x512xf32>
    %107 = tpu.matmul %104, %106, %cst_31 {dimension_numbers = #tpu.dot_dimension_numbers<[1], [0], [0], [1], [0, 0, 1, 1], [], []>} : vector<16x512xbf16>, vector<512x512xbf16>, vector<16x512xf32> -> vector<16x512xf32>
    %c0_32 = arith.constant 0 : index
    %c0_33 = arith.constant 0 : index
    %c0_34 = arith.constant 0 : index
    %108 = vector.load %arg6[%c0_32, %c0_33, %c0_34] : memref<1x1x512xf32, #tpu.memory_space<vmem>>, vector<1x1x512xf32>
    %109 = vector.shape_cast %108 : vector<1x1x512xf32> to vector<1x512xf32>
    %110 = vector.broadcast %109 : vector<1x512xf32> to vector<16x512xf32>
    %111 = arith.addf %107, %110 : vector<16x512xf32>
    %112 = arith.addf %3, %111 : vector<16x512xf32>
    %cst_35 = arith.constant dense<0.000000e+00> : vector<16xf32>
    %113 = vector.multi_reduction <add>, %112, %cst_35 [1] : vector<16x512xf32> to vector<16xf32>
    %114 = vector.shape_cast %113 : vector<16xf32> to vector<16x1xf32>
    %cst_36 = arith.constant 5.120000e+02 : f32
    %115 = vector.broadcast %cst_36 : f32 to vector<16x1xf32>
    %116 = arith.divf %114, %115 : vector<16x1xf32>
    %117 = vector.broadcast %116 : vector<16x1xf32> to vector<16x512xf32>
    %118 = arith.subf %112, %117 : vector<16x512xf32>
    %119 = arith.mulf %118, %118 : vector<16x512xf32>
    %cst_37 = arith.constant dense<0.000000e+00> : vector<16xf32>
    %120 = vector.multi_reduction <add>, %119, %cst_37 [1] : vector<16x512xf32> to vector<16xf32>
    %121 = vector.shape_cast %120 : vector<16xf32> to vector<16x1xf32>
    %cst_38 = arith.constant 5.120000e+02 : f32
    %122 = vector.broadcast %cst_38 : f32 to vector<16x1xf32>
    %123 = arith.divf %121, %122 : vector<16x1xf32>
    %124 = vector.broadcast %116 : vector<16x1xf32> to vector<16x512xf32>
    %125 = arith.subf %112, %124 : vector<16x512xf32>
    %cst_39 = arith.constant 9.99999974E-6 : f32
    %126 = vector.broadcast %cst_39 : f32 to vector<16x1xf32>
    %127 = arith.addf %123, %126 : vector<16x1xf32>
    %128 = math.rsqrt %127 : vector<16x1xf32>
    %129 = vector.broadcast %128 : vector<16x1xf32> to vector<16x512xf32>
    %130 = arith.mulf %125, %129 : vector<16x512xf32>
    %c0_40 = arith.constant 0 : index
    %c0_41 = arith.constant 0 : index
    %c0_42 = arith.constant 0 : index
    %131 = vector.load %arg7[%c0_40, %c0_41, %c0_42] : memref<1x1x512xf32, #tpu.memory_space<vmem>>, vector<1x1x512xf32>
    %132 = vector.shape_cast %131 : vector<1x1x512xf32> to vector<1x512xf32>
    %133 = vector.broadcast %132 : vector<1x512xf32> to vector<16x512xf32>
    %134 = arith.mulf %130, %133 : vector<16x512xf32>
    %c0_43 = arith.constant 0 : index
    %c0_44 = arith.constant 0 : index
    %c0_45 = arith.constant 0 : index
    %135 = vector.load %arg8[%c0_43, %c0_44, %c0_45] : memref<1x1x512xf32, #tpu.memory_space<vmem>>, vector<1x1x512xf32>
    %136 = vector.shape_cast %135 : vector<1x1x512xf32> to vector<1x512xf32>
    %137 = vector.broadcast %136 : vector<1x512xf32> to vector<16x512xf32>
    %138 = arith.addf %134, %137 : vector<16x512xf32>
    %139 = arith.truncf %138 : vector<16x512xf32> to vector<16x512xbf16>
    %c0_46 = arith.constant 0 : index
    %c0_47 = arith.constant 0 : index
    %c0_48 = arith.constant 0 : index
    %140 = vector.load %arg9[%c0_46, %c0_47, %c0_48] : memref<1x512x512xbf16, #tpu.memory_space<vmem>>, vector<1x512x512xbf16>
    %141 = vector.shape_cast %140 : vector<1x512x512xbf16> to vector<512x512xbf16>
    %cst_49 = arith.constant dense<0.000000e+00> : vector<16x512xf32>
    %142 = tpu.matmul %139, %141, %cst_49 {dimension_numbers = #tpu.dot_dimension_numbers<[1], [0], [0], [1], [0, 0, 1, 1], [], []>} : vector<16x512xbf16>, vector<512x512xbf16>, vector<16x512xf32> -> vector<16x512xf32>
    %c0_50 = arith.constant 0 : index
    %c0_51 = arith.constant 0 : index
    %c0_52 = arith.constant 0 : index
    %143 = vector.load %arg10[%c0_50, %c0_51, %c0_52] : memref<1x1x512xf32, #tpu.memory_space<vmem>>, vector<1x1x512xf32>
    %144 = vector.shape_cast %143 : vector<1x1x512xf32> to vector<1x512xf32>
    %145 = vector.broadcast %144 : vector<1x512xf32> to vector<16x512xf32>
    %146 = arith.addf %142, %145 : vector<16x512xf32>
    %cst_53 = arith.constant 0.000000e+00 : f32
    %147 = vector.broadcast %cst_53 : f32 to vector<16x512xf32>
    %148 = arith.maximumf %146, %147 : vector<16x512xf32>
    %149 = arith.truncf %148 : vector<16x512xf32> to vector<16x512xbf16>
    %c0_54 = arith.constant 0 : index
    %c0_55 = arith.constant 0 : index
    %c0_56 = arith.constant 0 : index
    %150 = vector.load %arg11[%c0_54, %c0_55, %c0_56] : memref<1x512x512xbf16, #tpu.memory_space<vmem>>, vector<1x512x512xbf16>
    %151 = vector.shape_cast %150 : vector<1x512x512xbf16> to vector<512x512xbf16>
    %cst_57 = arith.constant dense<0.000000e+00> : vector<16x512xf32>
    %152 = tpu.matmul %149, %151, %cst_57 {dimension_numbers = #tpu.dot_dimension_numbers<[1], [0], [0], [1], [0, 0, 1, 1], [], []>} : vector<16x512xbf16>, vector<512x512xbf16>, vector<16x512xf32> -> vector<16x512xf32>
    %c0_58 = arith.constant 0 : index
    %c0_59 = arith.constant 0 : index
    %c0_60 = arith.constant 0 : index
    %153 = vector.load %arg12[%c0_58, %c0_59, %c0_60] : memref<1x1x512xf32, #tpu.memory_space<vmem>>, vector<1x1x512xf32>
    %154 = vector.shape_cast %153 : vector<1x1x512xf32> to vector<1x512xf32>
    %155 = vector.broadcast %154 : vector<1x512xf32> to vector<16x512xf32>
    %156 = arith.addf %152, %155 : vector<16x512xf32>
    %157 = arith.addf %138, %156 : vector<16x512xf32>
    %cst_61 = arith.constant dense<0.000000e+00> : vector<16xf32>
    %158 = vector.multi_reduction <add>, %157, %cst_61 [1] : vector<16x512xf32> to vector<16xf32>
    %159 = vector.shape_cast %158 : vector<16xf32> to vector<16x1xf32>
    %cst_62 = arith.constant 5.120000e+02 : f32
    %160 = vector.broadcast %cst_62 : f32 to vector<16x1xf32>
    %161 = arith.divf %159, %160 : vector<16x1xf32>
    %162 = vector.broadcast %161 : vector<16x1xf32> to vector<16x512xf32>
    %163 = arith.subf %157, %162 : vector<16x512xf32>
    %164 = arith.mulf %163, %163 : vector<16x512xf32>
    %cst_63 = arith.constant dense<0.000000e+00> : vector<16xf32>
    %165 = vector.multi_reduction <add>, %164, %cst_63 [1] : vector<16x512xf32> to vector<16xf32>
    %166 = vector.shape_cast %165 : vector<16xf32> to vector<16x1xf32>
    %cst_64 = arith.constant 5.120000e+02 : f32
    %167 = vector.broadcast %cst_64 : f32 to vector<16x1xf32>
    %168 = arith.divf %166, %167 : vector<16x1xf32>
    %169 = vector.broadcast %161 : vector<16x1xf32> to vector<16x512xf32>
    %170 = arith.subf %157, %169 : vector<16x512xf32>
    %cst_65 = arith.constant 9.99999974E-6 : f32
    %171 = vector.broadcast %cst_65 : f32 to vector<16x1xf32>
    %172 = arith.addf %168, %171 : vector<16x1xf32>
    %173 = math.rsqrt %172 : vector<16x1xf32>
    %174 = vector.broadcast %173 : vector<16x1xf32> to vector<16x512xf32>
    %175 = arith.mulf %170, %174 : vector<16x512xf32>
    %c0_66 = arith.constant 0 : index
    %c0_67 = arith.constant 0 : index
    %c0_68 = arith.constant 0 : index
    %176 = vector.load %arg13[%c0_66, %c0_67, %c0_68] : memref<1x1x512xf32, #tpu.memory_space<vmem>>, vector<1x1x512xf32>
    %177 = vector.shape_cast %176 : vector<1x1x512xf32> to vector<1x512xf32>
    %178 = vector.broadcast %177 : vector<1x512xf32> to vector<16x512xf32>
    %179 = arith.mulf %175, %178 : vector<16x512xf32>
    %c0_69 = arith.constant 0 : index
    %c0_70 = arith.constant 0 : index
    %c0_71 = arith.constant 0 : index
    %180 = vector.load %arg14[%c0_69, %c0_70, %c0_71] : memref<1x1x512xf32, #tpu.memory_space<vmem>>, vector<1x1x512xf32>
    %181 = vector.shape_cast %180 : vector<1x1x512xf32> to vector<1x512xf32>
    %182 = vector.broadcast %181 : vector<1x512xf32> to vector<16x512xf32>
    %183 = arith.addf %179, %182 : vector<16x512xf32>
    %c0_72 = arith.constant 0 : index
    %c0_73 = arith.constant 0 : index
    %184 = vector.load %arg18[%c0_72, %c0_73] : memref<16x512xf32, #tpu.memory_space<vmem>>, vector<16x512xf32>
    tpu.vector_store %arg18[%c0_72, %c0_73], %183 {strides = array<i32>} : memref<16x512xf32, #tpu.memory_space<vmem>>, vector<16x512xf32>,
    %c3_i32 = arith.constant 3 : i32
    %185 = arith.cmpi eq, %arg0, %c3_i32 : i32
    %186 = arith.extui %185 : i1 to i32
    %c0_i32_74 = arith.constant 0 : i32
    %187 = arith.cmpi ne, %186, %c0_i32_74 : i32
    scf.if %187 {
      %188 = vector.shape_cast %183 : vector<16x512xf32> to vector<2x8x512xf32>
      %cst_75 = arith.constant dense<0.000000e+00> : vector<2x512xf32>
      %189 = vector.multi_reduction <add>, %188, %cst_75 [1] : vector<2x8x512xf32> to vector<2x512xf32>
      %cst_76 = arith.constant 8.000000e+00 : f32
      %190 = vector.broadcast %cst_76 : f32 to vector<2x512xf32>
      %191 = arith.divf %189, %190 : vector<2x512xf32>
      %c0_77 = arith.constant 0 : index
      %c0_78 = arith.constant 0 : index
      %192 = vector.load %arg15[%c0_77, %c0_78] : memref<1x512xf32, #tpu.memory_space<vmem>>, vector<1x512xf32>
      %193 = vector.broadcast %192 : vector<1x512xf32> to vector<2x512xf32>
      %194 = arith.mulf %191, %193 : vector<2x512xf32>
      %cst_79 = arith.constant dense<0.000000e+00> : vector<2xf32>
      %195 = vector.multi_reduction <add>, %194, %cst_79 [1] : vector<2x512xf32> to vector<2xf32>
      %196 = vector.shape_cast %195 : vector<2xf32> to vector<2x1xf32>
      %c0_80 = arith.constant 0 : index
      %c0_81 = arith.constant 0 : index
      %197 = vector.load %arg16[%c0_80, %c0_81] : memref<1x1xf32, #tpu.memory_space<vmem>>, vector<1x1xf32>
      %198 = vector.broadcast %197 : vector<1x1xf32> to vector<2x1xf32>
      %199 = arith.addf %196, %198 : vector<2x1xf32>
      %c0_82 = arith.constant 0 : index
      %c0_83 = arith.constant 0 : index
      %200 = vector.load %arg17[%c0_82, %c0_83] : memref<2x1xf32, #tpu.memory_space<vmem>>, vector<2x1xf32>
      tpu.vector_store %arg17[%c0_82, %c0_83], %199 {strides = array<i32>} : memref<2x1xf32, #tpu.memory_space<vmem>>, vector<2x1xf32>,
    } else {
    }
    return
  }
  func.func @transform_0(%arg0: i32) -> (i32, i32, i32) {
    %c0_i32 = arith.constant 0 : i32
    %c0_i32_0 = arith.constant 0 : i32
    %c0_i32_1 = arith.constant 0 : i32
    %c0_i32_2 = arith.constant 0 : i32
    return %c0_i32, %c0_i32_0, %c0_i32_1 : i32, i32, i32
  }
  func.func @transform_1(%arg0: i32) -> (i32, i32) {
    %c0_i32 = arith.constant 0 : i32
    %c0_i32_0 = arith.constant 0 : i32
    %c0_i32_1 = arith.constant 0 : i32
    return %c0_i32, %c0_i32_0 : i32, i32
  }
  func.func @transform_2(%arg0: i32) -> (i32, i32, i32) {
    %c0_i32 = arith.constant 0 : i32
    %c0_i32_0 = arith.constant 0 : i32
    %c0_i32_1 = arith.constant 0 : i32
    return %arg0, %c0_i32, %c0_i32_0 : i32, i32, i32
  }
  func.func @transform_3(%arg0: i32) -> (i32, i32, i32) {
    %c0_i32 = arith.constant 0 : i32
    %c0_i32_0 = arith.constant 0 : i32
    %c0_i32_1 = arith.constant 0 : i32
    return %arg0, %c0_i32, %c0_i32_0 : i32, i32, i32
  }
  func.func @transform_4(%arg0: i32) -> (i32, i32, i32) {
    %c0_i32 = arith.constant 0 : i32
    %c0_i32_0 = arith.constant 0 : i32
    %c0_i32_1 = arith.constant 0 : i32
    return %arg0, %c0_i32, %c0_i32_0 : i32, i32, i32
  }
  func.func @transform_5(%arg0: i32) -> (i32, i32, i32) {
    %c0_i32 = arith.constant 0 : i32
    %c0_i32_0 = arith.constant 0 : i32
    %c0_i32_1 = arith.constant 0 : i32
    return %arg0, %c0_i32, %c0_i32_0 : i32, i32, i32
  }
  func.func @transform_6(%arg0: i32) -> (i32, i32, i32) {
    %c0_i32 = arith.constant 0 : i32
    %c0_i32_0 = arith.constant 0 : i32
    %c0_i32_1 = arith.constant 0 : i32
    return %arg0, %c0_i32, %c0_i32_0 : i32, i32, i32
  }
  func.func @transform_7(%arg0: i32) -> (i32, i32, i32) {
    %c0_i32 = arith.constant 0 : i32
    %c0_i32_0 = arith.constant 0 : i32
    %c0_i32_1 = arith.constant 0 : i32
    return %arg0, %c0_i32, %c0_i32_0 : i32, i32, i32
  }
  func.func @transform_8(%arg0: i32) -> (i32, i32, i32) {
    %c0_i32 = arith.constant 0 : i32
    %c0_i32_0 = arith.constant 0 : i32
    %c0_i32_1 = arith.constant 0 : i32
    return %arg0, %c0_i32, %c0_i32_0 : i32, i32, i32
  }
  func.func @transform_9(%arg0: i32) -> (i32, i32, i32) {
    %c0_i32 = arith.constant 0 : i32
    %c0_i32_0 = arith.constant 0 : i32
    %c0_i32_1 = arith.constant 0 : i32
    return %arg0, %c0_i32, %c0_i32_0 : i32, i32, i32
  }
  func.func @transform_10(%arg0: i32) -> (i32, i32, i32) {
    %c0_i32 = arith.constant 0 : i32
    %c0_i32_0 = arith.constant 0 : i32
    %c0_i32_1 = arith.constant 0 : i32
    return %arg0, %c0_i32, %c0_i32_0 : i32, i32, i32
  }
  func.func @transform_11(%arg0: i32) -> (i32, i32, i32) {
    %c0_i32 = arith.constant 0 : i32
    %c0_i32_0 = arith.constant 0 : i32
    %c0_i32_1 = arith.constant 0 : i32
    return %arg0, %c0_i32, %c0_i32_0 : i32, i32, i32
  }
  func.func @transform_12(%arg0: i32) -> (i32, i32, i32) {
    %c0_i32 = arith.constant 0 : i32
    %c0_i32_0 = arith.constant 0 : i32
    %c0_i32_1 = arith.constant 0 : i32
    return %arg0, %c0_i32, %c0_i32_0 : i32, i32, i32
  }
  func.func @transform_13(%arg0: i32) -> (i32, i32, i32) {
    %c0_i32 = arith.constant 0 : i32
    %c0_i32_0 = arith.constant 0 : i32
    %c0_i32_1 = arith.constant 0 : i32
    return %arg0, %c0_i32, %c0_i32_0 : i32, i32, i32
  }
  func.func @transform_14(%arg0: i32) -> (i32, i32) {
    %c0_i32 = arith.constant 0 : i32
    %c0_i32_0 = arith.constant 0 : i32
    %c0_i32_1 = arith.constant 0 : i32
    return %c0_i32, %c0_i32_0 : i32, i32
  }
  func.func @transform_15(%arg0: i32) -> (i32, i32) {
    %c0_i32 = arith.constant 0 : i32
    %c0_i32_0 = arith.constant 0 : i32
    %c0_i32_1 = arith.constant 0 : i32
    return %c0_i32, %c0_i32_0 : i32, i32
  }
  func.func @transform_16(%arg0: i32) -> (i32, i32) {
    %c0_i32 = arith.constant 0 : i32
    %c0_i32_0 = arith.constant 0 : i32
    %c0_i32_1 = arith.constant 0 : i32
    return %c0_i32, %c0_i32_0 : i32, i32
  }
}

</mosaic_0001>

<llo_original>
// kernel: transformer_classifier.1
$region0: #{transformer_classifier.1}
  #allocation0 [shape = 'u32[]', space=smem, size = 0x4, offset = 0x4, fixed_abs, tag = 'smem constant byte address 0x4 - core index']
  #allocation1 [shape = 'u32[144,128]{1,0:T(1,128)}', space=vmem, size = 0x12000, scoped, tag = 'internal scratch']
  #allocation2 [shape = 'f32[16,512]{1,0:T(8,128)}', space=vmem, size = 0x8000, scoped, tag = 'scratch operand']
  #allocation3 [shape = 'f32[1,1]{1,0:T(1,128)S(1)}', space=vmem, size = 0x200, scoped, tag = 'scoped memory for transformer_classifier.1']
  %s0 = inlined_call_operand.vmem [shape: f32[2,8,512], index: 0, kind: input, shape index: {}]
  %s1 = inlined_call_operand.hbm [shape: f32[8,512], index: 1, kind: input, shape index: {}]
  %s2 = inlined_call_operand.hbm [shape: bf16[4,512,1536], index: 2, kind: input, shape index: {}]
  %s3 = inlined_call_operand.hbm [shape: f32[4,1,1536], index: 3, kind: input, shape index: {}]
  %s4 = inlined_call_operand.hbm [shape: bf16[4,512,512], index: 4, kind: input, shape index: {}]
  %s5 = inlined_call_operand.hbm [shape: f32[4,1,512], index: 5, kind: input, shape index: {}]
  %s6 = inlined_call_operand.hbm [shape: f32[4,1,512], index: 6, kind: input, shape index: {}]
  %s7 = inlined_call_operand.hbm [shape: f32[4,1,512], index: 7, kind: input, shape index: {}]
  %s8 = inlined_call_operand.hbm [shape: bf16[4,512,512], index: 8, kind: input, shape index: {}]
  %s9 = inlined_call_operand.hbm [shape: f32[4,1,512], index: 9, kind: input, shape index: {}]
  %s10 = inlined_call_operand.hbm [shape: bf16[4,512,512], index: 10, kind: input, shape index: {}]
  %s11 = inlined_call_operand.hbm [shape: f32[4,1,512], index: 11, kind: input, shape index: {}]
  %s12 = inlined_call_operand.hbm [shape: f32[4,1,512], index: 12, kind: input, shape index: {}]
  %s13 = inlined_call_operand.hbm [shape: f32[4,1,512], index: 13, kind: input, shape index: {}]
  %s14 = inlined_call_operand.hbm [shape: f32[1,512], index: 14, kind: input, shape index: {}]
  %s15 = inlined_call_operand.<no memory space> [shape: f32[1,1], index: 15, kind: input, shape index: {}]
  %s16 = inlined_call_operand.vmem [shape: f32[2,1], index: 16, kind: output, shape index: {}]
  %s17 = sld [smem:[#allocation0]]
  $region161: #{transformer_classifier.1} parent=0
    _
  %s19 = ssub.s32 1, %s17
  %s20 = scalar_select 0, %s19, %s17
  %v21 = vstv %s15
  %22 = vst [vmem:[#allocation3] sm:$0x1] %v21
  $region1: #{transformer_classifier.1} parent=0
    #allocation4 [shape = 'u8[16384]{0}', space=vmem, size = 0x4000, scoped, tag = 'input window, operand 1, single buffered']
    #allocation5 [shape = 's32[2]{0}', space=sflag, size = 0x8, scoped, tag = 'scoped memory for transformer_classifier.1']
    #allocation6 [shape = 'u8[3145728]{0}', space=vmem, size = 0x300000, scoped, tag = 'input window, operand 2']
    #allocation7 [shape = 's32[2]{0}', space=sflag, size = 0x8, scoped, tag = 'scoped memory for transformer_classifier.1']
    #allocation8 [shape = 'u8[12288]{0}', space=vmem, size = 0x3000, scoped, tag = 'input window, operand 3']
    #allocation9 [shape = 'u8[1048576]{0}', space=vmem, size = 0x100000, scoped, tag = 'input window, operand 4']
    #allocation10 [shape = 's32[2]{0}', space=sflag, size = 0x8, scoped, tag = 'scoped memory for transformer_classifier.1']
    #allocation11 [shape = 'u8[4096]{0}', space=vmem, size = 0x1000, scoped, tag = 'input window, operand 5']
    #allocation12 [shape = 'u8[4096]{0}', space=vmem, size = 0x1000, scoped, tag = 'input window, operand 6']
    #allocation13 [shape = 's32[2]{0}', space=sflag, size = 0x8, scoped, tag = 'scoped memory for transformer_classifier.1']
    #allocation14 [shape = 'u8[4096]{0}', space=vmem, size = 0x1000, scoped, tag = 'input window, operand 7']
    #allocation15 [shape = 'u8[1048576]{0}', space=vmem, size = 0x100000, scoped, tag = 'input window, operand 8']
    #allocation16 [shape = 's32[2]{0}', space=sflag, size = 0x8, scoped, tag = 'scoped memory for transformer_classifier.1']
    #allocation17 [shape = 'u8[4096]{0}', space=vmem, size = 0x1000, scoped, tag = 'input window, operand 9']
    #allocation18 [shape = 'u8[1048576]{0}', space=vmem, size = 0x100000, scoped, tag = 'input window, operand 10']
    #allocation19 [shape = 's32[2]{0}', space=sflag, size = 0x8, scoped, tag = 'scoped memory for transformer_classifier.1']
    #allocation20 [shape = 'u8[4096]{0}', space=vmem, size = 0x1000, scoped, tag = 'input window, operand 11']
    #allocation21 [shape = 'u8[4096]{0}', space=vmem, size = 0x1000, scoped, tag = 'input window, operand 12']
    #allocation22 [shape = 's32[2]{0}', space=sflag, size = 0x8, scoped, tag = 'scoped memory for transformer_classifier.1']
    #allocation23 [shape = 'u8[4096]{0}', space=vmem, size = 0x1000, scoped, tag = 'input window, operand 13']
    #allocation24 [shape = 'u8[2048]{0}', space=vmem, size = 0x800, scoped, tag = 'input window, operand 14, single buffered']
    #allocation25 [shape = 's32[1]{0}', space=sflag, size = 0x4, scoped, tag = 'scoped memory for transformer_classifier.1']
    %23 = vsyncpa [#allocation5], 0
    %24 = vsyncpa [#allocation7], 0
    %s25 = scalar_lea.sflag [#allocation7], 1
    %26 = vsyncpa %s25, 0
    %27 = vsyncpa [#allocation10], 0
    %s28 = scalar_lea.sflag [#allocation10], 1
    %29 = vsyncpa %s28, 0
    %30 = vsyncpa [#allocation13], 0
    %s31 = scalar_lea.sflag [#allocation13], 1
    %32 = vsyncpa %s31, 0
    %33 = vsyncpa [#allocation16], 0
    %s34 = scalar_lea.sflag [#allocation16], 1
    %35 = vsyncpa %s34, 0
    %36 = vsyncpa [#allocation19], 0
    %s37 = scalar_lea.sflag [#allocation19], 1
    %38 = vsyncpa %s37, 0
    %39 = vsyncpa [#allocation22], 0
    %s40 = scalar_lea.sflag [#allocation22], 1
    %41 = vsyncpa %s40, 0
    %42 = vsyncpa [#allocation25], 0
    loop: start=0, step=1, limit=6
    $region2: #{transformer_classifier.1} parent=1 // loop_pre_header
      _
    $region3: #{transformer_classifier.1} parent=1 // loop_header
      %s44 = sphi 0, %s48
      %p45 = scmp.ge.s32.totalorder %s44, 6
      %s52 = sphi 0, %s52
      %s54 = sphi 0, %s52
      %s55 = sphi 0, %s54
      %s69 = sphi 0, %s55
      %s73 = sphi 0, %s73
      %s75 = sphi 0, %s73
      %s76 = sphi 0, %s75
      %s90 = sphi 0, %s76
      %s96 = sphi 0, %s98
      %s99 = sphi 0, %s96
      %s100 = sphi 0, %s99
      %s116 = sphi 0, %s100
      %s122 = sphi 0, %s124
      %s125 = sphi 0, %s122
      %s126 = sphi 0, %s125
      %s142 = sphi 0, %s126
      %s148 = sphi 0, %s150
      %s151 = sphi 0, %s148
      %s152 = sphi 0, %s151
      %s168 = sphi 0, %s152
      %s174 = sphi 0, %s176
      %s177 = sphi 0, %s174
      %s178 = sphi 0, %s177
      %s194 = sphi 0, %s178
      %s200 = sphi 0, %s202
      %s203 = sphi 0, %s200
      %s204 = sphi 0, %s203
      %s220 = sphi 0, %s204
      %s226 = sphi 0, %s228
      %s229 = sphi 0, %s226
      %s230 = sphi 0, %s229
      %s246 = sphi 0, %s230
      %s252 = sphi 0, %s254
      %s255 = sphi 0, %s252
      %s256 = sphi 0, %s255
      %s272 = sphi 0, %s256
      %s278 = sphi 0, %s280
      %s281 = sphi 0, %s278
      %s282 = sphi 0, %s281
      %s298 = sphi 0, %s282
      %s304 = sphi 0, %s306
      %s307 = sphi 0, %s304
      %s308 = sphi 0, %s307
      %s324 = sphi 0, %s308
      %s330 = sphi 0, %s332
      %s333 = sphi 0, %s330
      %s334 = sphi 0, %s333
      %s350 = sphi 0, %s334
      %s356 = sphi 0, %s358
      %s359 = sphi 0, %s356
      %s360 = sphi 0, %s359
      %s376 = sphi 0, %s360
      %s382 = sphi 0, %s384
      %s385 = sphi 0, %s382
      %s386 = sphi 0, %s385
      %s402 = sphi 0, %s386
      %s406 = sphi 0, %s406
      %s408 = sphi 0, %s406
      %s409 = sphi 0, %s408
      %s423 = sphi 0, %s409
      %s427 = sphi 0, %s427
      %s429 = sphi 0, %s427
      %s430 = sphi 0, %s429
      %s444 = sphi 0, %s430
      %s448 = sphi 0, %s448
      %s450 = sphi 0, %s448
      %s451 = sphi 0, %s450
      %s465 = sphi 0, %s451
    $region4: #{transformer_classifier.1} parent=1 // loop_header_branch
      %47 = sbr.rel (%p45) target = $region8
    $region5: #{transformer_classifier.1} parent=1 // loop_body
      %s49 = ssub.s32 %s44, 1
      %s50 = ssub.s32 %s44, 2
      %s51 = sadd.s32 %s44, 1
      %s53 = sadd.s32 %s52, 1
      %p56 = scmp.eq.s32.totalorder %s44, 3
      %p57 = scmp.ne.s32.totalorder %s52, %s54
      %p58 = scmp.eq.s32.totalorder %s44, 0
      %p59 = por %p57, %p58
      %p60 = scmp.ne.s32.totalorder %s52, %s54
      %p61 = scmp.eq.s32.totalorder %s49, 3
      %p62 = por %p60, %p61
      %p63 = scmp.ne.s32.totalorder %s54, %s55
      %p64 = scmp.eq.s32.totalorder %s49, 0
      %p65 = por %p63, %p64
      %p66 = scmp.ne.s32.totalorder %s54, %s55
      %p67 = scmp.eq.s32.totalorder %s50, 3
      %p68 = por %p66, %p67
      %p70 = scmp.ne.s32.totalorder %s55, %s69
      %p71 = scmp.eq.s32.totalorder %s50, 0
      %p72 = por %p70, %p71
      %s74 = sadd.s32 %s73, 1
      %p77 = scmp.eq.s32.totalorder %s44, 3
      %p78 = scmp.ne.s32.totalorder %s73, %s75
      %p79 = scmp.eq.s32.totalorder %s44, 0
      %p80 = por %p78, %p79
      %p81 = scmp.ne.s32.totalorder %s73, %s75
      %p82 = scmp.eq.s32.totalorder %s49, 3
      %p83 = por %p81, %p82
      %p84 = scmp.ne.s32.totalorder %s75, %s76
      %p85 = scmp.eq.s32.totalorder %s49, 0
      %p86 = por %p84, %p85
      %p87 = scmp.ne.s32.totalorder %s75, %s76
      %p88 = scmp.eq.s32.totalorder %s50, 3
      %p89 = por %p87, %p88
      %p91 = scmp.ne.s32.totalorder %s76, %s90
      %p92 = scmp.eq.s32.totalorder %s50, 0
      %p93 = por %p91, %p92
      %s94 = ssub.s32 %s44, %s51
      %p95 = scmp.eq.s32.totalorder %s94, 0
      %s97 = sadd.s32 %s96, 1
      %s98 = scalar_select %p95, %s96, %s97
      %p101 = pneg %p95
      %p102 = scmp.eq.s32.totalorder %s44, 3
      %p103 = por %p101, %p102
      %p104 = scmp.ne.s32.totalorder %s96, %s99
      %p105 = scmp.eq.s32.totalorder %s44, 0
      %p106 = por %p104, %p105
      %p107 = scmp.ne.s32.totalorder %s96, %s99
      %p108 = scmp.eq.s32.totalorder %s49, 3
      %p109 = por %p107, %p108
      %p110 = scmp.ne.s32.totalorder %s99, %s100
      %p111 = scmp.eq.s32.totalorder %s49, 0
      %p112 = por %p110, %p111
      %p113 = scmp.ne.s32.totalorder %s99, %s100
      %p114 = scmp.eq.s32.totalorder %s50, 3
      %p115 = por %p113, %p114
      %p117 = scmp.ne.s32.totalorder %s100, %s116
      %p118 = scmp.eq.s32.totalorder %s50, 0
      %p119 = por %p117, %p118
      %s120 = ssub.s32 %s44, %s51
      %p121 = scmp.eq.s32.totalorder %s120, 0
      %s123 = sadd.s32 %s122, 1
      %s124 = scalar_select %p121, %s122, %s123
      %p127 = pneg %p121
      %p128 = scmp.eq.s32.totalorder %s44, 3
      %p129 = por %p127, %p128
      %p130 = scmp.ne.s32.totalorder %s122, %s125
      %p131 = scmp.eq.s32.totalorder %s44, 0
      %p132 = por %p130, %p131
      %p133 = scmp.ne.s32.totalorder %s122, %s125
      %p134 = scmp.eq.s32.totalorder %s49, 3
      %p135 = por %p133, %p134
      %p136 = scmp.ne.s32.totalorder %s125, %s126
      %p137 = scmp.eq.s32.totalorder %s49, 0
      %p138 = por %p136, %p137
      %p139 = scmp.ne.s32.totalorder %s125, %s126
      %p140 = scmp.eq.s32.totalorder %s50, 3
      %p141 = por %p139, %p140
      %p143 = scmp.ne.s32.totalorder %s126, %s142
      %p144 = scmp.eq.s32.totalorder %s50, 0
      %p145 = por %p143, %p144
      %s146 = ssub.s32 %s44, %s51
      %p147 = scmp.eq.s32.totalorder %s146, 0
      %s149 = sadd.s32 %s148, 1
      %s150 = scalar_select %p147, %s148, %s149
      %p153 = pneg %p147
      %p154 = scmp.eq.s32.totalorder %s44, 3
      %p155 = por %p153, %p154
      %p156 = scmp.ne.s32.totalorder %s148, %s151
      %p157 = scmp.eq.s32.totalorder %s44, 0
      %p158 = por %p156, %p157
      %p159 = scmp.ne.s32.totalorder %s148, %s151
      %p160 = scmp.eq.s32.totalorder %s49, 3
      %p161 = por %p159, %p160
      %p162 = scmp.ne.s32.totalorder %s151, %s152
      %p163 = scmp.eq.s32.totalorder %s49, 0
      %p164 = por %p162, %p163
      %p165 = scmp.ne.s32.totalorder %s151, %s152
      %p166 = scmp.eq.s32.totalorder %s50, 3
      %p167 = por %p165, %p166
      %p169 = scmp.ne.s32.totalorder %s152, %s168
      %p170 = scmp.eq.s32.totalorder %s50, 0
      %p171 = por %p169, %p170
      %s172 = ssub.s32 %s44, %s51
      %p173 = scmp.eq.s32.totalorder %s172, 0
      %s175 = sadd.s32 %s174, 1
      %s176 = scalar_select %p173, %s174, %s175
      %p179 = pneg %p173
      %p180 = scmp.eq.s32.totalorder %s44, 3
      %p181 = por %p179, %p180
      %p182 = scmp.ne.s32.totalorder %s174, %s177
      %p183 = scmp.eq.s32.totalorder %s44, 0
      %p184 = por %p182, %p183
      %p185 = scmp.ne.s32.totalorder %s174, %s177
      %p186 = scmp.eq.s32.totalorder %s49, 3
      %p187 = por %p185, %p186
      %p188 = scmp.ne.s32.totalorder %s177, %s178
      %p189 = scmp.eq.s32.totalorder %s49, 0
      %p190 = por %p188, %p189
      %p191 = scmp.ne.s32.totalorder %s177, %s178
      %p192 = scmp.eq.s32.totalorder %s50, 3
      %p193 = por %p191, %p192
      %p195 = scmp.ne.s32.totalorder %s178, %s194
      %p196 = scmp.eq.s32.totalorder %s50, 0
      %p197 = por %p195, %p196
      %s198 = ssub.s32 %s44, %s51
      %p199 = scmp.eq.s32.totalorder %s198, 0
      %s201 = sadd.s32 %s200, 1
      %s202 = scalar_select %p199, %s200, %s201
      %p205 = pneg %p199
      %p206 = scmp.eq.s32.totalorder %s44, 3
      %p207 = por %p205, %p206
      %p208 = scmp.ne.s32.totalorder %s200, %s203
      %p209 = scmp.eq.s32.totalorder %s44, 0
      %p210 = por %p208, %p209
      %p211 = scmp.ne.s32.totalorder %s200, %s203
      %p212 = scmp.eq.s32.totalorder %s49, 3
      %p213 = por %p211, %p212
      %p214 = scmp.ne.s32.totalorder %s203, %s204
      %p215 = scmp.eq.s32.totalorder %s49, 0
      %p216 = por %p214, %p215
      %p217 = scmp.ne.s32.totalorder %s203, %s204
      %p218 = scmp.eq.s32.totalorder %s50, 3
      %p219 = por %p217, %p218
      %p221 = scmp.ne.s32.totalorder %s204, %s220
      %p222 = scmp.eq.s32.totalorder %s50, 0
      %p223 = por %p221, %p222
      %s224 = ssub.s32 %s44, %s51
      %p225 = scmp.eq.s32.totalorder %s224, 0
      %s227 = sadd.s32 %s226, 1
      %s228 = scalar_select %p225, %s226, %s227
      %p231 = pneg %p225
      %p232 = scmp.eq.s32.totalorder %s44, 3
      %p233 = por %p231, %p232
      %p234 = scmp.ne.s32.totalorder %s226, %s229
      %p235 = scmp.eq.s32.totalorder %s44, 0
      %p236 = por %p234, %p235
      %p237 = scmp.ne.s32.totalorder %s226, %s229
      %p238 = scmp.eq.s32.totalorder %s49, 3
      %p239 = por %p237, %p238
      %p240 = scmp.ne.s32.totalorder %s229, %s230
      %p241 = scmp.eq.s32.totalorder %s49, 0
      %p242 = por %p240, %p241
      %p243 = scmp.ne.s32.totalorder %s229, %s230
      %p244 = scmp.eq.s32.totalorder %s50, 3
      %p245 = por %p243, %p244
      %p247 = scmp.ne.s32.totalorder %s230, %s246
      %p248 = scmp.eq.s32.totalorder %s50, 0
      %p249 = por %p247, %p248
      %s250 = ssub.s32 %s44, %s51
      %p251 = scmp.eq.s32.totalorder %s250, 0
      %s253 = sadd.s32 %s252, 1
      %s254 = scalar_select %p251, %s252, %s253
      %p257 = pneg %p251
      %p258 = scmp.eq.s32.totalorder %s44, 3
      %p259 = por %p257, %p258
      %p260 = scmp.ne.s32.totalorder %s252, %s255
      %p261 = scmp.eq.s32.totalorder %s44, 0
      %p262 = por %p260, %p261
      %p263 = scmp.ne.s32.totalorder %s252, %s255
      %p264 = scmp.eq.s32.totalorder %s49, 3
      %p265 = por %p263, %p264
      %p266 = scmp.ne.s32.totalorder %s255, %s256
      %p267 = scmp.eq.s32.totalorder %s49, 0
      %p268 = por %p266, %p267
      %p269 = scmp.ne.s32.totalorder %s255, %s256
      %p270 = scmp.eq.s32.totalorder %s50, 3
      %p271 = por %p269, %p270
      %p273 = scmp.ne.s32.totalorder %s256, %s272
      %p274 = scmp.eq.s32.totalorder %s50, 0
      %p275 = por %p273, %p274
      %s276 = ssub.s32 %s44, %s51
      %p277 = scmp.eq.s32.totalorder %s276, 0
      %s279 = sadd.s32 %s278, 1
      %s280 = scalar_select %p277, %s278, %s279
      %p283 = pneg %p277
      %p284 = scmp.eq.s32.totalorder %s44, 3
      %p285 = por %p283, %p284
      %p286 = scmp.ne.s32.totalorder %s278, %s281
      %p287 = scmp.eq.s32.totalorder %s44, 0
      %p288 = por %p286, %p287
      %p289 = scmp.ne.s32.totalorder %s278, %s281
      %p290 = scmp.eq.s32.totalorder %s49, 3
      %p291 = por %p289, %p290
      %p292 = scmp.ne.s32.totalorder %s281, %s282
      %p293 = scmp.eq.s32.totalorder %s49, 0
      %p294 = por %p292, %p293
      %p295 = scmp.ne.s32.totalorder %s281, %s282
      %p296 = scmp.eq.s32.totalorder %s50, 3
      %p297 = por %p295, %p296
      %p299 = scmp.ne.s32.totalorder %s282, %s298
      %p300 = scmp.eq.s32.totalorder %s50, 0
      %p301 = por %p299, %p300
      %s302 = ssub.s32 %s44, %s51
      %p303 = scmp.eq.s32.totalorder %s302, 0
      %s305 = sadd.s32 %s304, 1
      %s306 = scalar_select %p303, %s304, %s305
      %p309 = pneg %p303
      %p310 = scmp.eq.s32.totalorder %s44, 3
      %p311 = por %p309, %p310
      %p312 = scmp.ne.s32.totalorder %s304, %s307
      %p313 = scmp.eq.s32.totalorder %s44, 0
      %p314 = por %p312, %p313
      %p315 = scmp.ne.s32.totalorder %s304, %s307
      %p316 = scmp.eq.s32.totalorder %s49, 3
      %p317 = por %p315, %p316
      %p318 = scmp.ne.s32.totalorder %s307, %s308
      %p319 = scmp.eq.s32.totalorder %s49, 0
      %p320 = por %p318, %p319
      %p321 = scmp.ne.s32.totalorder %s307, %s308
      %p322 = scmp.eq.s32.totalorder %s50, 3
      %p323 = por %p321, %p322
      %p325 = scmp.ne.s32.totalorder %s308, %s324
      %p326 = scmp.eq.s32.totalorder %s50, 0
      %p327 = por %p325, %p326
      %s328 = ssub.s32 %s44, %s51
      %p329 = scmp.eq.s32.totalorder %s328, 0
      %s331 = sadd.s32 %s330, 1
      %s332 = scalar_select %p329, %s330, %s331
      %p335 = pneg %p329
      %p336 = scmp.eq.s32.totalorder %s44, 3
      %p337 = por %p335, %p336
      %p338 = scmp.ne.s32.totalorder %s330, %s333
      %p339 = scmp.eq.s32.totalorder %s44, 0
      %p340 = por %p338, %p339
      %p341 = scmp.ne.s32.totalorder %s330, %s333
      %p342 = scmp.eq.s32.totalorder %s49, 3
      %p343 = por %p341, %p342
      %p344 = scmp.ne.s32.totalorder %s333, %s334
      %p345 = scmp.eq.s32.totalorder %s49, 0
      %p346 = por %p344, %p345
      %p347 = scmp.ne.s32.totalorder %s333, %s334
      %p348 = scmp.eq.s32.totalorder %s50, 3
      %p349 = por %p347, %p348
      %p351 = scmp.ne.s32.totalorder %s334, %s350
      %p352 = scmp.eq.s32.totalorder %s50, 0
      %p353 = por %p351, %p352
      %s354 = ssub.s32 %s44, %s51
      %p355 = scmp.eq.s32.totalorder %s354, 0
      %s357 = sadd.s32 %s356, 1
      %s358 = scalar_select %p355, %s356, %s357
      %p361 = pneg %p355
      %p362 = scmp.eq.s32.totalorder %s44, 3
      %p363 = por %p361, %p362
      %p364 = scmp.ne.s32.totalorder %s356, %s359
      %p365 = scmp.eq.s32.totalorder %s44, 0
      %p366 = por %p364, %p365
      %p367 = scmp.ne.s32.totalorder %s356, %s359
      %p368 = scmp.eq.s32.totalorder %s49, 3
      %p369 = por %p367, %p368
      %p370 = scmp.ne.s32.totalorder %s359, %s360
      %p371 = scmp.eq.s32.totalorder %s49, 0
      %p372 = por %p370, %p371
      %p373 = scmp.ne.s32.totalorder %s359, %s360
      %p374 = scmp.eq.s32.totalorder %s50, 3
      %p375 = por %p373, %p374
      %p377 = scmp.ne.s32.totalorder %s360, %s376
      %p378 = scmp.eq.s32.totalorder %s50, 0
      %p379 = por %p377, %p378
      %s380 = ssub.s32 %s44, %s51
      %p381 = scmp.eq.s32.totalorder %s380, 0
      %s383 = sadd.s32 %s382, 1
      %s384 = scalar_select %p381, %s382, %s383
      %p387 = pneg %p381
      %p388 = scmp.eq.s32.totalorder %s44, 3
      %p389 = por %p387, %p388
      %p390 = scmp.ne.s32.totalorder %s382, %s385
      %p391 = scmp.eq.s32.totalorder %s44, 0
      %p392 = por %p390, %p391
      %p393 = scmp.ne.s32.totalorder %s382, %s385
      %p394 = scmp.eq.s32.totalorder %s49, 3
      %p395 = por %p393, %p394
      %p396 = scmp.ne.s32.totalorder %s385, %s386
      %p397 = scmp.eq.s32.totalorder %s49, 0
      %p398 = por %p396, %p397
      %p399 = scmp.ne.s32.totalorder %s385, %s386
      %p400 = scmp.eq.s32.totalorder %s50, 3
      %p401 = por %p399, %p400
      %p403 = scmp.ne.s32.totalorder %s386, %s402
      %p404 = scmp.eq.s32.totalorder %s50, 0
      %p405 = por %p403, %p404
      %s407 = sadd.s32 %s406, 1
      %p410 = scmp.eq.s32.totalorder %s44, 3
      %p411 = scmp.ne.s32.totalorder %s406, %s408
      %p412 = scmp.eq.s32.totalorder %s44, 0
      %p413 = por %p411, %p412
      %p414 = scmp.ne.s32.totalorder %s406, %s408
      %p415 = scmp.eq.s32.totalorder %s49, 3
      %p416 = por %p414, %p415
      %p417 = scmp.ne.s32.totalorder %s408, %s409
      %p418 = scmp.eq.s32.totalorder %s49, 0
      %p419 = por %p417, %p418
      %p420 = scmp.ne.s32.totalorder %s408, %s409
      %p421 = scmp.eq.s32.totalorder %s50, 3
      %p422 = por %p420, %p421
      %p424 = scmp.ne.s32.totalorder %s409, %s423
      %p425 = scmp.eq.s32.totalorder %s50, 0
      %p426 = por %p424, %p425
      %s428 = sadd.s32 %s427, 1
      %p431 = scmp.eq.s32.totalorder %s44, 3
      %p432 = scmp.ne.s32.totalorder %s427, %s429
      %p433 = scmp.eq.s32.totalorder %s44, 0
      %p434 = por %p432, %p433
      %p435 = scmp.ne.s32.totalorder %s427, %s429
      %p436 = scmp.eq.s32.totalorder %s49, 3
      %p437 = por %p435, %p436
      %p438 = scmp.ne.s32.totalorder %s429, %s430
      %p439 = scmp.eq.s32.totalorder %s49, 0
      %p440 = por %p438, %p439
      %p441 = scmp.ne.s32.totalorder %s429, %s430
      %p442 = scmp.eq.s32.totalorder %s50, 3
      %p443 = por %p441, %p442
      %p445 = scmp.ne.s32.totalorder %s430, %s444
      %p446 = scmp.eq.s32.totalorder %s50, 0
      %p447 = por %p445, %p446
      %s449 = sadd.s32 %s448, 1
      %p452 = scmp.eq.s32.totalorder %s44, 3
      %p453 = scmp.ne.s32.totalorder %s448, %s450
      %p454 = scmp.eq.s32.totalorder %s44, 0
      %p455 = por %p453, %p454
      %p456 = scmp.ne.s32.totalorder %s448, %s450
      %p457 = scmp.eq.s32.totalorder %s49, 3
      %p458 = por %p456, %p457
      %p459 = scmp.ne.s32.totalorder %s450, %s451
      %p460 = scmp.eq.s32.totalorder %s49, 0
      %p461 = por %p459, %p460
      %p462 = scmp.ne.s32.totalorder %s450, %s451
      %p463 = scmp.eq.s32.totalorder %s50, 3
      %p464 = por %p462, %p463
      %p466 = scmp.ne.s32.totalorder %s451, %s465
      %p467 = scmp.eq.s32.totalorder %s50, 0
      %p468 = por %p466, %p467
      %p469 = scmp.le.s32.totalorder 1, %s44
      %p470 = scmp.lt.s32.totalorder %s44, 5
      %p471 = pnand %p469, %p470
      %p472 = pneg %p471
      // Predicated region
      $region9: #{transformer_classifier.1} parent=5 // pred_check
        _
      $region10: #{transformer_classifier.1} parent=5 // pred_check_branch
        %474 = sbr.rel (%p471) target = $region12
      $region11: #{transformer_classifier.1} parent=5 // pred_region
        %s475 = ssub.s32 %s44, 1
        // Predicated region
        $region13: #{transformer_classifier.1} parent=11 // pred_check
          %p476 = pneg %p65
        $region14: #{transformer_classifier.1} parent=11 // pred_check_branch
          %478 = sbr.rel (%p476) target = $region16
        $region15: #{transformer_classifier.1} parent=11 // pred_region
          _
        $region16: #{transformer_classifier.1} parent=11 // pred_fallthru
          _
        // Predicated region
        $region17: #{transformer_classifier.1} parent=11 // pred_check
          %p479 = pneg %p86
        $region18: #{transformer_classifier.1} parent=11 // pred_check_branch
          %481 = sbr.rel (%p479) target = $region20
        $region19: #{transformer_classifier.1} parent=11 // pred_region
          %s483 = ssub.s32 512, 512
          %484 = vsyncadd [#allocation5], %s483
          %s486 = sshll.u32 [#allocation4], 4
          %s487 = int_to_ptr.vmem [resolvable:$true] %s486
          %489 = dma.hbm_to_vmem [thread:$0]  %s1, 512, %s487, [#allocation5]
        $region20: #{transformer_classifier.1} parent=11 // pred_fallthru
          _
        // Predicated region
        $region21: #{transformer_classifier.1} parent=11 // pred_check
          %p490 = pneg %p419
        $region22: #{transformer_classifier.1} parent=11 // pred_check_branch
          %492 = sbr.rel (%p490) target = $region24
        $region23: #{transformer_classifier.1} parent=11 // pred_region
          %s494 = ssub.s32 64, 64
          %495 = vsyncadd [#allocation25], %s494
          %s497 = sshll.u32 [#allocation24], 4
          %s498 = int_to_ptr.vmem [resolvable:$true] %s497
          %500 = dma.hbm_to_vmem [thread:$0]  %s14, 64, %s498, [#allocation25]
        $region24: #{transformer_classifier.1} parent=11 // pred_fallthru
          _
        // Predicated region
        $region25: #{transformer_classifier.1} parent=11 // pred_check
          %p501 = pneg %p440
        $region26: #{transformer_classifier.1} parent=11 // pred_check_branch
          %503 = sbr.rel (%p501) target = $region28
        $region27: #{transformer_classifier.1} parent=11 // pred_region
          _
        $region28: #{transformer_classifier.1} parent=11 // pred_fallthru
          _
      $region12: #{transformer_classifier.1} parent=5 // pred_fallthru
        _
      %p504 = scmp.lt.s32.totalorder %s44, 4
      // Predicated region
      $region29: #{transformer_classifier.1} parent=5 // pred_check
        %p505 = pneg %p504
      $region30: #{transformer_classifier.1} parent=5 // pred_check_branch
        %507 = sbr.rel (%p505) target = $region32
      $region31: #{transformer_classifier.1} parent=5 // pred_region
        // Predicated region
        $region33: #{transformer_classifier.1} parent=31 // pred_check
          %p508 = pneg %p106
        $region34: #{transformer_classifier.1} parent=31 // pred_check_branch
          %510 = sbr.rel (%p508) target = $region36
        $region35: #{transformer_classifier.1} parent=31 // pred_region
          %s511 = sand.u32 %s44, 1
          %s512 = scalar_lea.sflag [#allocation7], %s511
          %s513 = sand.u32 %s96, 1
          %s514 = smul.addr %s513, 3072
          %s515 = scalar_lea.vmem [#allocation6], %s514
          %s517 = ssub.s32 49152, 49152
          %518 = vsyncadd %s512, %s517
          %s519 = smul.addr %s44, 768
          %s520 = smul.addr %s519, 64
          %s521 = scalar_lea.hbm %s2, %s520
          %s522 = sshll.u32 %s515, 4
          %s523 = int_to_ptr.vmem [resolvable:$true] %s522
          %528 = dma.hbm_to_vmem [thread:$0]  %s521, 49152, %s523, %s512, 768, 768, 48
        $region36: #{transformer_classifier.1} parent=31 // pred_fallthru
          _
        // Predicated region
        $region37: #{transformer_classifier.1} parent=31 // pred_check
          %p529 = pneg %p132
        $region38: #{transformer_classifier.1} parent=31 // pred_check_branch
          %531 = sbr.rel (%p529) target = $region40
        $region39: #{transformer_classifier.1} parent=31 // pred_region
          %s532 = sand.u32 %s44, 1
          %s533 = scalar_lea.sflag [#allocation7], %s532
          %s534 = sand.u32 %s122, 1
          %s535 = smul.addr %s534, 12
          %s536 = scalar_lea.vmem [#allocation8], %s535
          %s538 = ssub.s32 192, 192
          %539 = vsyncadd %s533, %s538
          %s540 = smul.addr %s44, 12
          %s541 = smul.addr %s540, 16
          %s542 = scalar_lea.hbm %s3, %s541
          %s544 = sshll.u32 %s536, 4
          %s545 = int_to_ptr.vmem [resolvable:$true] %s544
          %547 = dma.hbm_to_vmem [thread:$0]  %s542, 192, %s545, %s533
        $region40: #{transformer_classifier.1} parent=31 // pred_fallthru
          _
        // Predicated region
        $region41: #{transformer_classifier.1} parent=31 // pred_check
          %p548 = pneg %p158
        $region42: #{transformer_classifier.1} parent=31 // pred_check_branch
          %550 = sbr.rel (%p548) target = $region44
        $region43: #{transformer_classifier.1} parent=31 // pred_region
          %s551 = sand.u32 %s44, 1
          %s552 = scalar_lea.sflag [#allocation10], %s551
          %s553 = sand.u32 %s148, 1
          %s554 = smul.addr %s553, 1024
          %s555 = scalar_lea.vmem [#allocation9], %s554
          %s557 = ssub.s32 16384, 16384
          %558 = vsyncadd %s552, %s557
          %s559 = smul.addr %s44, 256
          %s560 = smul.addr %s559, 64
          %s561 = scalar_lea.hbm %s4, %s560
          %s562 = sshll.u32 %s555, 4
          %s563 = int_to_ptr.vmem [resolvable:$true] %s562
          %568 = dma.hbm_to_vmem [thread:$0]  %s561, 16384, %s563, %s552, 256, 256, 16
        $region44: #{transformer_classifier.1} parent=31 // pred_fallthru
          _
        // Predicated region
        $region45: #{transformer_classifier.1} parent=31 // pred_check
          %p569 = pneg %p184
        $region46: #{transformer_classifier.1} parent=31 // pred_check_branch
          %571 = sbr.rel (%p569) target = $region48
        $region47: #{transformer_classifier.1} parent=31 // pred_region
          %s572 = sand.u32 %s44, 1
          %s573 = scalar_lea.sflag [#allocation10], %s572
          %s574 = sand.u32 %s174, 1
          %s575 = smul.addr %s574, 4
          %s576 = scalar_lea.vmem [#allocation11], %s575
          %s578 = ssub.s32 64, 64
          %579 = vsyncadd %s573, %s578
          %s580 = smul.addr %s44, 4
          %s581 = smul.addr %s580, 16
          %s582 = scalar_lea.hbm %s5, %s581
          %s584 = sshll.u32 %s576, 4
          %s585 = int_to_ptr.vmem [resolvable:$true] %s584
          %587 = dma.hbm_to_vmem [thread:$0]  %s582, 64, %s585, %s573
        $region48: #{transformer_classifier.1} parent=31 // pred_fallthru
          _
        // Predicated region
        $region49: #{transformer_classifier.1} parent=31 // pred_check
          %p588 = pneg %p210
        $region50: #{transformer_classifier.1} parent=31 // pred_check_branch
          %590 = sbr.rel (%p588) target = $region52
        $region51: #{transformer_classifier.1} parent=31 // pred_region
          %s591 = sand.u32 %s44, 1
          %s592 = scalar_lea.sflag [#allocation13], %s591
          %s593 = sand.u32 %s200, 1
          %s594 = smul.addr %s593, 4
          %s595 = scalar_lea.vmem [#allocation12], %s594
          %s597 = ssub.s32 64, 64
          %598 = vsyncadd %s592, %s597
          %s599 = smul.addr %s44, 4
          %s600 = smul.addr %s599, 16
          %s601 = scalar_lea.hbm %s6, %s600
          %s603 = sshll.u32 %s595, 4
          %s604 = int_to_ptr.vmem [resolvable:$true] %s603
          %606 = dma.hbm_to_vmem [thread:$0]  %s601, 64, %s604, %s592
        $region52: #{transformer_classifier.1} parent=31 // pred_fallthru
          _
        // Predicated region
        $region53: #{transformer_classifier.1} parent=31 // pred_check
          %p607 = pneg %p236
        $region54: #{transformer_classifier.1} parent=31 // pred_check_branch
          %609 = sbr.rel (%p607) target = $region56
        $region55: #{transformer_classifier.1} parent=31 // pred_region
          %s610 = sand.u32 %s44, 1
          %s611 = scalar_lea.sflag [#allocation13], %s610
          %s612 = sand.u32 %s226, 1
          %s613 = smul.addr %s612, 4
          %s614 = scalar_lea.vmem [#allocation14], %s613
          %s616 = ssub.s32 64, 64
          %617 = vsyncadd %s611, %s616
          %s618 = smul.addr %s44, 4
          %s619 = smul.addr %s618, 16
          %s620 = scalar_lea.hbm %s7, %s619
          %s622 = sshll.u32 %s614, 4
          %s623 = int_to_ptr.vmem [resolvable:$true] %s622
          %625 = dma.hbm_to_vmem [thread:$0]  %s620, 64, %s623, %s611
        $region56: #{transformer_classifier.1} parent=31 // pred_fallthru
          _
        // Predicated region
        $region57: #{transformer_classifier.1} parent=31 // pred_check
          %p626 = pneg %p262
        $region58: #{transformer_classifier.1} parent=31 // pred_check_branch
          %628 = sbr.rel (%p626) target = $region60
        $region59: #{transformer_classifier.1} parent=31 // pred_region
          %s629 = sand.u32 %s44, 1
          %s630 = scalar_lea.sflag [#allocation16], %s629
          %s631 = sand.u32 %s252, 1
          %s632 = smul.addr %s631, 1024
          %s633 = scalar_lea.vmem [#allocation15], %s632
          %s635 = ssub.s32 16384, 16384
          %636 = vsyncadd %s630, %s635
          %s637 = smul.addr %s44, 256
          %s638 = smul.addr %s637, 64
          %s639 = scalar_lea.hbm %s8, %s638
          %s640 = sshll.u32 %s633, 4
          %s641 = int_to_ptr.vmem [resolvable:$true] %s640
          %646 = dma.hbm_to_vmem [thread:$0]  %s639, 16384, %s641, %s630, 256, 256, 16
        $region60: #{transformer_classifier.1} parent=31 // pred_fallthru
          _
        // Predicated region
        $region61: #{transformer_classifier.1} parent=31 // pred_check
          %p647 = pneg %p288
        $region62: #{transformer_classifier.1} parent=31 // pred_check_branch
          %649 = sbr.rel (%p647) target = $region64
        $region63: #{transformer_classifier.1} parent=31 // pred_region
          %s650 = sand.u32 %s44, 1
          %s651 = scalar_lea.sflag [#allocation16], %s650
          %s652 = sand.u32 %s278, 1
          %s653 = smul.addr %s652, 4
          %s654 = scalar_lea.vmem [#allocation17], %s653
          %s656 = ssub.s32 64, 64
          %657 = vsyncadd %s651, %s656
          %s658 = smul.addr %s44, 4
          %s659 = smul.addr %s658, 16
          %s660 = scalar_lea.hbm %s9, %s659
          %s662 = sshll.u32 %s654, 4
          %s663 = int_to_ptr.vmem [resolvable:$true] %s662
          %665 = dma.hbm_to_vmem [thread:$0]  %s660, 64, %s663, %s651
        $region64: #{transformer_classifier.1} parent=31 // pred_fallthru
          _
        // Predicated region
        $region65: #{transformer_classifier.1} parent=31 // pred_check
          %p666 = pneg %p314
        $region66: #{transformer_classifier.1} parent=31 // pred_check_branch
          %668 = sbr.rel (%p666) target = $region68
        $region67: #{transformer_classifier.1} parent=31 // pred_region
          %s669 = sand.u32 %s44, 1
          %s670 = scalar_lea.sflag [#allocation19], %s669
          %s671 = sand.u32 %s304, 1
          %s672 = smul.addr %s671, 1024
          %s673 = scalar_lea.vmem [#allocation18], %s672
          %s675 = ssub.s32 16384, 16384
          %676 = vsyncadd %s670, %s675
          %s677 = smul.addr %s44, 256
          %s678 = smul.addr %s677, 64
          %s679 = scalar_lea.hbm %s10, %s678
          %s680 = sshll.u32 %s673, 4
          %s681 = int_to_ptr.vmem [resolvable:$true] %s680
          %686 = dma.hbm_to_vmem [thread:$0]  %s679, 16384, %s681, %s670, 256, 256, 16
        $region68: #{transformer_classifier.1} parent=31 // pred_fallthru
          _
        // Predicated region
        $region69: #{transformer_classifier.1} parent=31 // pred_check
          %p687 = pneg %p340
        $region70: #{transformer_classifier.1} parent=31 // pred_check_branch
          %689 = sbr.rel (%p687) target = $region72
        $region71: #{transformer_classifier.1} parent=31 // pred_region
          %s690 = sand.u32 %s44, 1
          %s691 = scalar_lea.sflag [#allocation19], %s690
          %s692 = sand.u32 %s330, 1
          %s693 = smul.addr %s692, 4
          %s694 = scalar_lea.vmem [#allocation20], %s693
          %s696 = ssub.s32 64, 64
          %697 = vsyncadd %s691, %s696
          %s698 = smul.addr %s44, 4
          %s699 = smul.addr %s698, 16
          %s700 = scalar_lea.hbm %s11, %s699
          %s702 = sshll.u32 %s694, 4
          %s703 = int_to_ptr.vmem [resolvable:$true] %s702
          %705 = dma.hbm_to_vmem [thread:$0]  %s700, 64, %s703, %s691
        $region72: #{transformer_classifier.1} parent=31 // pred_fallthru
          _
        // Predicated region
        $region73: #{transformer_classifier.1} parent=31 // pred_check
          %p706 = pneg %p366
        $region74: #{transformer_classifier.1} parent=31 // pred_check_branch
          %708 = sbr.rel (%p706) target = $region76
        $region75: #{transformer_classifier.1} parent=31 // pred_region
          %s709 = sand.u32 %s44, 1
          %s710 = scalar_lea.sflag [#allocation22], %s709
          %s711 = sand.u32 %s356, 1
          %s712 = smul.addr %s711, 4
          %s713 = scalar_lea.vmem [#allocation21], %s712
          %s715 = ssub.s32 64, 64
          %716 = vsyncadd %s710, %s715
          %s717 = smul.addr %s44, 4
          %s718 = smul.addr %s717, 16
          %s719 = scalar_lea.hbm %s12, %s718
          %s721 = sshll.u32 %s713, 4
          %s722 = int_to_ptr.vmem [resolvable:$true] %s721
          %724 = dma.hbm_to_vmem [thread:$0]  %s719, 64, %s722, %s710
        $region76: #{transformer_classifier.1} parent=31 // pred_fallthru
          _
        // Predicated region
        $region77: #{transformer_classifier.1} parent=31 // pred_check
          %p725 = pneg %p392
        $region78: #{transformer_classifier.1} parent=31 // pred_check_branch
          %727 = sbr.rel (%p725) target = $region80
        $region79: #{transformer_classifier.1} parent=31 // pred_region
          %s728 = sand.u32 %s44, 1
          %s729 = scalar_lea.sflag [#allocation22], %s728
          %s730 = sand.u32 %s382, 1
          %s731 = smul.addr %s730, 4
          %s732 = scalar_lea.vmem [#allocation23], %s731
          %s734 = ssub.s32 64, 64
          %735 = vsyncadd %s729, %s734
          %s736 = smul.addr %s44, 4
          %s737 = smul.addr %s736, 16
          %s738 = scalar_lea.hbm %s13, %s737
          %s740 = sshll.u32 %s732, 4
          %s741 = int_to_ptr.vmem [resolvable:$true] %s740
          %743 = dma.hbm_to_vmem [thread:$0]  %s738, 64, %s741, %s729
        $region80: #{transformer_classifier.1} parent=31 // pred_fallthru
          _
      $region32: #{transformer_classifier.1} parent=5 // pred_fallthru
        _
      %p744 = scmp.le.s32.totalorder 1, %s44
      %p745 = scmp.lt.s32.totalorder %s44, 5
      %p746 = pnand %p744, %p745
      %p747 = pneg %p746
      // Predicated region
      $region81: #{transformer_classifier.1} parent=5 // pred_check
        _
      $region82: #{transformer_classifier.1} parent=5 // pred_check_branch
        %749 = sbr.rel (%p746) target = $region84
      $region83: #{transformer_classifier.1} parent=5 // pred_region
        %s750 = ssub.s32 %s44, 1
        // Predicated region
        $region85: #{transformer_classifier.1} parent=83 // pred_check
          %p751 = pneg %p86
        $region86: #{transformer_classifier.1} parent=83 // pred_check_branch
          %753 = sbr.rel (%p751) target = $region88
        $region87: #{transformer_classifier.1} parent=83 // pred_region
          %754 = dma.done [#allocation5], 512
        $region88: #{transformer_classifier.1} parent=83 // pred_fallthru
          _
        %s755 = sand.u32 %s49, 1
        %s756 = scalar_lea.sflag [#allocation7], %s755
        %s757 = sand.u32 %s99, 1
        %s758 = smul.addr %s757, 3072
        %s759 = scalar_lea.vmem [#allocation6], %s758
        // Predicated region
        $region89: #{transformer_classifier.1} parent=83 // pred_check
          %p760 = pneg %p112
        $region90: #{transformer_classifier.1} parent=83 // pred_check_branch
          %762 = sbr.rel (%p760) target = $region92
        $region91: #{transformer_classifier.1} parent=83 // pred_region
          %763 = dma.done %s756, 49152
        $region92: #{transformer_classifier.1} parent=83 // pred_fallthru
          _
        %s764 = sand.u32 %s49, 1
        %s765 = scalar_lea.sflag [#allocation7], %s764
        %s766 = sand.u32 %s125, 1
        %s767 = smul.addr %s766, 12
        %s768 = scalar_lea.vmem [#allocation8], %s767
        // Predicated region
        $region93: #{transformer_classifier.1} parent=83 // pred_check
          %p769 = pneg %p138
        $region94: #{transformer_classifier.1} parent=83 // pred_check_branch
          %771 = sbr.rel (%p769) target = $region96
        $region95: #{transformer_classifier.1} parent=83 // pred_region
          %772 = dma.done %s765, 192
        $region96: #{transformer_classifier.1} parent=83 // pred_fallthru
          _
        %s773 = sand.u32 %s49, 1
        %s774 = scalar_lea.sflag [#allocation10], %s773
        %s775 = sand.u32 %s151, 1
        %s776 = smul.addr %s775, 1024
        %s777 = scalar_lea.vmem [#allocation9], %s776
        // Predicated region
        $region97: #{transformer_classifier.1} parent=83 // pred_check
          %p778 = pneg %p164
        $region98: #{transformer_classifier.1} parent=83 // pred_check_branch
          %780 = sbr.rel (%p778) target = $region100
        $region99: #{transformer_classifier.1} parent=83 // pred_region
          %781 = dma.done %s774, 16384
        $region100: #{transformer_classifier.1} parent=83 // pred_fallthru
          _
        %s782 = sand.u32 %s49, 1
        %s783 = scalar_lea.sflag [#allocation10], %s782
        %s784 = sand.u32 %s177, 1
        %s785 = smul.addr %s784, 4
        %s786 = scalar_lea.vmem [#allocation11], %s785
        // Predicated region
        $region101: #{transformer_classifier.1} parent=83 // pred_check
          %p787 = pneg %p190
        $region102: #{transformer_classifier.1} parent=83 // pred_check_branch
          %789 = sbr.rel (%p787) target = $region104
        $region103: #{transformer_classifier.1} parent=83 // pred_region
          %790 = dma.done %s783, 64
        $region104: #{transformer_classifier.1} parent=83 // pred_fallthru
          _
        %s791 = sand.u32 %s49, 1
        %s792 = scalar_lea.sflag [#allocation13], %s791
        %s793 = sand.u32 %s203, 1
        %s794 = smul.addr %s793, 4
        %s795 = scalar_lea.vmem [#allocation12], %s794
        // Predicated region
        $region105: #{transformer_classifier.1} parent=83 // pred_check
          %p796 = pneg %p216
        $region106: #{transformer_classifier.1} parent=83 // pred_check_branch
          %798 = sbr.rel (%p796) target = $region108
        $region107: #{transformer_classifier.1} parent=83 // pred_region
          %799 = dma.done %s792, 64
        $region108: #{transformer_classifier.1} parent=83 // pred_fallthru
          _
        %s800 = sand.u32 %s49, 1
        %s801 = scalar_lea.sflag [#allocation13], %s800
        %s802 = sand.u32 %s229, 1
        %s803 = smul.addr %s802, 4
        %s804 = scalar_lea.vmem [#allocation14], %s803
        // Predicated region
        $region109: #{transformer_classifier.1} parent=83 // pred_check
          %p805 = pneg %p242
        $region110: #{transformer_classifier.1} parent=83 // pred_check_branch
          %807 = sbr.rel (%p805) target = $region112
        $region111: #{transformer_classifier.1} parent=83 // pred_region
          %808 = dma.done %s801, 64
        $region112: #{transformer_classifier.1} parent=83 // pred_fallthru
          _
        %s809 = sand.u32 %s49, 1
        %s810 = scalar_lea.sflag [#allocation16], %s809
        %s811 = sand.u32 %s255, 1
        %s812 = smul.addr %s811, 1024
        %s813 = scalar_lea.vmem [#allocation15], %s812
        // Predicated region
        $region113: #{transformer_classifier.1} parent=83 // pred_check
          %p814 = pneg %p268
        $region114: #{transformer_classifier.1} parent=83 // pred_check_branch
          %816 = sbr.rel (%p814) target = $region116
        $region115: #{transformer_classifier.1} parent=83 // pred_region
          %817 = dma.done %s810, 16384
        $region116: #{transformer_classifier.1} parent=83 // pred_fallthru
          _
        %s818 = sand.u32 %s49, 1
        %s819 = scalar_lea.sflag [#allocation16], %s818
        %s820 = sand.u32 %s281, 1
        %s821 = smul.addr %s820, 4
        %s822 = scalar_lea.vmem [#allocation17], %s821
        // Predicated region
        $region117: #{transformer_classifier.1} parent=83 // pred_check
          %p823 = pneg %p294
        $region118: #{transformer_classifier.1} parent=83 // pred_check_branch
          %825 = sbr.rel (%p823) target = $region120
        $region119: #{transformer_classifier.1} parent=83 // pred_region
          %826 = dma.done %s819, 64
        $region120: #{transformer_classifier.1} parent=83 // pred_fallthru
          _
        %s827 = sand.u32 %s49, 1
        %s828 = scalar_lea.sflag [#allocation19], %s827
        %s829 = sand.u32 %s307, 1
        %s830 = smul.addr %s829, 1024
        %s831 = scalar_lea.vmem [#allocation18], %s830
        // Predicated region
        $region121: #{transformer_classifier.1} parent=83 // pred_check
          %p832 = pneg %p320
        $region122: #{transformer_classifier.1} parent=83 // pred_check_branch
          %834 = sbr.rel (%p832) target = $region124
        $region123: #{transformer_classifier.1} parent=83 // pred_region
          %835 = dma.done %s828, 16384
        $region124: #{transformer_classifier.1} parent=83 // pred_fallthru
          _
        %s836 = sand.u32 %s49, 1
        %s837 = scalar_lea.sflag [#allocation19], %s836
        %s838 = sand.u32 %s333, 1
        %s839 = smul.addr %s838, 4
        %s840 = scalar_lea.vmem [#allocation20], %s839
        // Predicated region
        $region125: #{transformer_classifier.1} parent=83 // pred_check
          %p841 = pneg %p346
        $region126: #{transformer_classifier.1} parent=83 // pred_check_branch
          %843 = sbr.rel (%p841) target = $region128
        $region127: #{transformer_classifier.1} parent=83 // pred_region
          %844 = dma.done %s837, 64
        $region128: #{transformer_classifier.1} parent=83 // pred_fallthru
          _
        %s845 = sand.u32 %s49, 1
        %s846 = scalar_lea.sflag [#allocation22], %s845
        %s847 = sand.u32 %s359, 1
        %s848 = smul.addr %s847, 4
        %s849 = scalar_lea.vmem [#allocation21], %s848
        // Predicated region
        $region129: #{transformer_classifier.1} parent=83 // pred_check
          %p850 = pneg %p372
        $region130: #{transformer_classifier.1} parent=83 // pred_check_branch
          %852 = sbr.rel (%p850) target = $region132
        $region131: #{transformer_classifier.1} parent=83 // pred_region
          %853 = dma.done %s846, 64
        $region132: #{transformer_classifier.1} parent=83 // pred_fallthru
          _
        %s854 = sand.u32 %s49, 1
        %s855 = scalar_lea.sflag [#allocation22], %s854
        %s856 = sand.u32 %s385, 1
        %s857 = smul.addr %s856, 4
        %s858 = scalar_lea.vmem [#allocation23], %s857
        // Predicated region
        $region133: #{transformer_classifier.1} parent=83 // pred_check
          %p859 = pneg %p398
        $region134: #{transformer_classifier.1} parent=83 // pred_check_branch
          %861 = sbr.rel (%p859) target = $region136
        $region135: #{transformer_classifier.1} parent=83 // pred_region
          %862 = dma.done %s855, 64
        $region136: #{transformer_classifier.1} parent=83 // pred_fallthru
          _
        // Predicated region
        $region137: #{transformer_classifier.1} parent=83 // pred_check
          %p863 = pneg %p419
        $region138: #{transformer_classifier.1} parent=83 // pred_check_branch
          %865 = sbr.rel (%p863) target = $region140
        $region139: #{transformer_classifier.1} parent=83 // pred_region
          %866 = dma.done [#allocation25], 64
        $region140: #{transformer_classifier.1} parent=83 // pred_fallthru
          _
        %p867 = pneg %p65
        %p868 = pneg %p62
        %p869 = pneg %p86
        %p870 = pneg %p83
        %s871 = sand.u32 %s49, 1
        %s872 = scalar_lea.sflag [#allocation7], %s871
        %s873 = sand.u32 %s99, 1
        %s874 = smul.addr %s873, 3072
        %s875 = scalar_lea.vmem [#allocation6], %s874
        %p876 = pneg %p112
        %p877 = pneg %p109
        %s878 = sand.u32 %s49, 1
        %s879 = scalar_lea.sflag [#allocation7], %s878
        %s880 = sand.u32 %s125, 1
        %s881 = smul.addr %s880, 12
        %s882 = scalar_lea.vmem [#allocation8], %s881
        %p883 = pneg %p138
        %p884 = pneg %p135
        %s885 = sand.u32 %s49, 1
        %s886 = scalar_lea.sflag [#allocation10], %s885
        %s887 = sand.u32 %s151, 1
        %s888 = smul.addr %s887, 1024
        %s889 = scalar_lea.vmem [#allocation9], %s888
        %p890 = pneg %p164
        %p891 = pneg %p161
        %s892 = sand.u32 %s49, 1
        %s893 = scalar_lea.sflag [#allocation10], %s892
        %s894 = sand.u32 %s177, 1
        %s895 = smul.addr %s894, 4
        %s896 = scalar_lea.vmem [#allocation11], %s895
        %p897 = pneg %p190
        %p898 = pneg %p187
        %s899 = sand.u32 %s49, 1
        %s900 = scalar_lea.sflag [#allocation13], %s899
        %s901 = sand.u32 %s203, 1
        %s902 = smul.addr %s901, 4
        %s903 = scalar_lea.vmem [#allocation12], %s902
        %p904 = pneg %p216
        %p905 = pneg %p213
        %s906 = sand.u32 %s49, 1
        %s907 = scalar_lea.sflag [#allocation13], %s906
        %s908 = sand.u32 %s229, 1
        %s909 = smul.addr %s908, 4
        %s910 = scalar_lea.vmem [#allocation14], %s909
        %p911 = pneg %p242
        %p912 = pneg %p239
        %s913 = sand.u32 %s49, 1
        %s914 = scalar_lea.sflag [#allocation16], %s913
        %s915 = sand.u32 %s255, 1
        %s916 = smul.addr %s915, 1024
        %s917 = scalar_lea.vmem [#allocation15], %s916
        %p918 = pneg %p268
        %p919 = pneg %p265
        %s920 = sand.u32 %s49, 1
        %s921 = scalar_lea.sflag [#allocation16], %s920
        %s922 = sand.u32 %s281, 1
        %s923 = smul.addr %s922, 4
        %s924 = scalar_lea.vmem [#allocation17], %s923
        %p925 = pneg %p294
        %p926 = pneg %p291
        %s927 = sand.u32 %s49, 1
        %s928 = scalar_lea.sflag [#allocation19], %s927
        %s929 = sand.u32 %s307, 1
        %s930 = smul.addr %s929, 1024
        %s931 = scalar_lea.vmem [#allocation18], %s930
        %p932 = pneg %p320
        %p933 = pneg %p317
        %s934 = sand.u32 %s49, 1
        %s935 = scalar_lea.sflag [#allocation19], %s934
        %s936 = sand.u32 %s333, 1
        %s937 = smul.addr %s936, 4
        %s938 = scalar_lea.vmem [#allocation20], %s937
        %p939 = pneg %p346
        %p940 = pneg %p343
        %s941 = sand.u32 %s49, 1
        %s942 = scalar_lea.sflag [#allocation22], %s941
        %s943 = sand.u32 %s359, 1
        %s944 = smul.addr %s943, 4
        %s945 = scalar_lea.vmem [#allocation21], %s944
        %p946 = pneg %p372
        %p947 = pneg %p369
        %s948 = sand.u32 %s49, 1
        %s949 = scalar_lea.sflag [#allocation22], %s948
        %s950 = sand.u32 %s385, 1
        %s951 = smul.addr %s950, 4
        %s952 = scalar_lea.vmem [#allocation23], %s951
        %p953 = pneg %p398
        %p954 = pneg %p395
        %p955 = pneg %p419
        %p956 = pneg %p416
        %p957 = pneg %p440
        %p958 = pneg %p437
        %p959 = pneg %p461
        %p960 = pneg %p458
        %p962 = scmp.eq.s32.totalorder %s49, 0
        // Predicated region
        $region141: #{transformer_classifier.1} parent=83 // pred_check
          %p963 = pneg %p962
        $region142: #{transformer_classifier.1} parent=83 // pred_check_branch
          %965 = sbr.rel (%p963) target = $region144
        $region143: #{transformer_classifier.1} parent=83 // pred_region
          %v966 = vld [vmem:[%s0] sm:$0xff]
          %v967 = vld [vmem:[%s0 + $0x8] sm:$0xff]
          %v968 = vld [vmem:[%s0 + $0x10] sm:$0xff]
          %v969 = vld [vmem:[%s0 + $0x18] sm:$0xff]
          %v970 = vld [vmem:[%s0 + $0x20] sm:$0xff]
          %v971 = vld [vmem:[%s0 + $0x28] sm:$0xff]
          %v972 = vld [vmem:[%s0 + $0x30] sm:$0xff]
          %v973 = vld [vmem:[%s0 + $0x38] sm:$0xff]
          %v974 = vld [vmem:[#allocation4] sm:$0xff]
          %v975 = vld [vmem:[#allocation4 + $0x8] sm:$0xff]
          %v976 = vld [vmem:[#allocation4 + $0x10] sm:$0xff]
          %v977 = vld [vmem:[#allocation4 + $0x18] sm:$0xff]
          %v978 = vadd.f32 %v966, %v974
          %v979 = vadd.f32 %v967, %v975
          %v980 = vadd.f32 %v968, %v976
          %v981 = vadd.f32 %v969, %v977
          %v982 = vadd.f32 %v970, %v974
          %v983 = vadd.f32 %v971, %v975
          %v984 = vadd.f32 %v972, %v976
          %v985 = vadd.f32 %v973, %v977
          %986 = vst [vmem:[#allocation2] sm:$0xff] %v978
          %987 = vst [vmem:[#allocation2 + $0x8] sm:$0xff] %v979
          %988 = vst [vmem:[#allocation2 + $0x10] sm:$0xff] %v980
          %989 = vst [vmem:[#allocation2 + $0x18] sm:$0xff] %v981
          %990 = vst [vmem:[#allocation2 + $0x20] sm:$0xff] %v982
          %991 = vst [vmem:[#allocation2 + $0x28] sm:$0xff] %v983
          %992 = vst [vmem:[#allocation2 + $0x30] sm:$0xff] %v984
          %993 = vst [vmem:[#allocation2 + $0x38] sm:$0xff] %v985
        $region144: #{transformer_classifier.1} parent=83 // pred_fallthru
          _
        %v994 = vld [vmem:[#allocation2] sm:$0xff]
        %v995 = vld [vmem:[#allocation2 + $0x8] sm:$0xff]
        %v996 = vld [vmem:[#allocation2 + $0x10] sm:$0xff]
        %v997 = vld [vmem:[#allocation2 + $0x18] sm:$0xff]
        %v998 = vld [vmem:[#allocation2 + $0x20] sm:$0xff]
        %v999 = vld [vmem:[#allocation2 + $0x28] sm:$0xff]
        %v1000 = vld [vmem:[#allocation2 + $0x30] sm:$0xff]
        %v1001 = vld [vmem:[#allocation2 + $0x38] sm:$0xff]
        %v1002 = vpack.c.bf16 %v998, %v994
        %v1003 = vpack.c.bf16 %v999, %v995
        %v1004 = vpack.c.bf16 %v1000, %v996
        %v1005 = vpack.c.bf16 %v1001, %v997
        %v1006 = vld [vmem:[%s759] sm:$0xff]
        %v1007 = vld [vmem:[%s759 + $0x8] sm:$0xff]
        %v1008 = vld [vmem:[%s759 + $0x10] sm:$0xff]
        %v1009 = vld [vmem:[%s759 + $0x18] sm:$0xff]
        %v1010 = vld [vmem:[%s759 + $0x20] sm:$0xff]
        %v1011 = vld [vmem:[%s759 + $0x28] sm:$0xff]
        %v1012 = vld [vmem:[%s759 + $0x30] sm:$0xff]
        %v1013 = vld [vmem:[%s759 + $0x38] sm:$0xff]
        %v1014 = vld [vmem:[%s759 + $0x40] sm:$0xff]
        %v1015 = vld [vmem:[%s759 + $0x48] sm:$0xff]
        %v1016 = vld [vmem:[%s759 + $0x50] sm:$0xff]
        %v1017 = vld [vmem:[%s759 + $0x58] sm:$0xff]
        %v1018 = vld [vmem:[%s759 + $0x60] sm:$0xff]
        %v1019 = vld [vmem:[%s759 + $0x68] sm:$0xff]
        %v1020 = vld [vmem:[%s759 + $0x70] sm:$0xff]
        %v1021 = vld [vmem:[%s759 + $0x78] sm:$0xff]
        %v1022 = vld [vmem:[%s759 + $0x80] sm:$0xff]
        %v1023 = vld [vmem:[%s759 + $0x88] sm:$0xff]
        %v1024 = vld [vmem:[%s759 + $0x90] sm:$0xff]
        %v1025 = vld [vmem:[%s759 + $0x98] sm:$0xff]
        %v1026 = vld [vmem:[%s759 + $0xa0] sm:$0xff]
        %v1027 = vld [vmem:[%s759 + $0xa8] sm:$0xff]
        %v1028 = vld [vmem:[%s759 + $0xb0] sm:$0xff]
        %v1029 = vld [vmem:[%s759 + $0xb8] sm:$0xff]
        %v1030 = vld [vmem:[%s759 + $0xc0] sm:$0xff]
        %v1031 = vld [vmem:[%s759 + $0xc8] sm:$0xff]
        %v1032 = vld [vmem:[%s759 + $0xd0] sm:$0xff]
        %v1033 = vld [vmem:[%s759 + $0xd8] sm:$0xff]
        %v1034 = vld [vmem:[%s759 + $0xe0] sm:$0xff]
        %v1035 = vld [vmem:[%s759 + $0xe8] sm:$0xff]
        %v1036 = vld [vmem:[%s759 + $0xf0] sm:$0xff]
        %v1037 = vld [vmem:[%s759 + $0xf8] sm:$0xff]
        %v1038 = vld [vmem:[%s759 + $0x100] sm:$0xff]
        %v1039 = vld [vmem:[%s759 + $0x108] sm:$0xff]
        %v1040 = vld [vmem:[%s759 + $0x110] sm:$0xff]
        %v1041 = vld [vmem:[%s759 + $0x118] sm:$0xff]
        %v1042 = vld [vmem:[%s759 + $0x120] sm:$0xff]
        %v1043 = vld [vmem:[%s759 + $0x128] sm:$0xff]
        %v1044 = vld [vmem:[%s759 + $0x130] sm:$0xff]
        %v1045 = vld [vmem:[%s759 + $0x138] sm:$0xff]
        %v1046 = vld [vmem:[%s759 + $0x140] sm:$0xff]
        %v1047 = vld [vmem:[%s759 + $0x148] sm:$0xff]
        %v1048 = vld [vmem:[%s759 + $0x150] sm:$0xff]
        %v1049 = vld [vmem:[%s759 + $0x158] sm:$0xff]
        %v1050 = vld [vmem:[%s759 + $0x160] sm:$0xff]
        %v1051 = vld [vmem:[%s759 + $0x168] sm:$0xff]
        %v1052 = vld [vmem:[%s759 + $0x170] sm:$0xff]
        %v1053 = vld [vmem:[%s759 + $0x178] sm:$0xff]
        %v1054 = vld [vmem:[%s759 + $0x180] sm:$0xff]
        %v1055 = vld [vmem:[%s759 + $0x188] sm:$0xff]
        %v1056 = vld [vmem:[%s759 + $0x190] sm:$0xff]
        %v1057 = vld [vmem:[%s759 + $0x198] sm:$0xff]
        %v1058 = vld [vmem:[%s759 + $0x1a0] sm:$0xff]
        %v1059 = vld [vmem:[%s759 + $0x1a8] sm:$0xff]
        %v1060 = vld [vmem:[%s759 + $0x1b0] sm:$0xff]
        %v1061 = vld [vmem:[%s759 + $0x1b8] sm:$0xff]
        %v1062 = vld [vmem:[%s759 + $0x1c0] sm:$0xff]
        %v1063 = vld [vmem:[%s759 + $0x1c8] sm:$0xff]
        %v1064 = vld [vmem:[%s759 + $0x1d0] sm:$0xff]
        %v1065 = vld [vmem:[%s759 + $0x1d8] sm:$0xff]
        %v1066 = vld [vmem:[%s759 + $0x1e0] sm:$0xff]
        %v1067 = vld [vmem:[%s759 + $0x1e8] sm:$0xff]
        %v1068 = vld [vmem:[%s759 + $0x1f0] sm:$0xff]
        %v1069 = vld [vmem:[%s759 + $0x1f8] sm:$0xff]
        %v1070 = vld [vmem:[%s759 + $0x200] sm:$0xff]
        %v1071 = vld [vmem:[%s759 + $0x208] sm:$0xff]
        %v1072 = vld [vmem:[%s759 + $0x210] sm:$0xff]
        %v1073 = vld [vmem:[%s759 + $0x218] sm:$0xff]
        %v1074 = vld [vmem:[%s759 + $0x220] sm:$0xff]
        %v1075 = vld [vmem:[%s759 + $0x228] sm:$0xff]
        %v1076 = vld [vmem:[%s759 + $0x230] sm:$0xff]
        %v1077 = vld [vmem:[%s759 + $0x238] sm:$0xff]
        %v1078 = vld [vmem:[%s759 + $0x240] sm:$0xff]
        %v1079 = vld [vmem:[%s759 + $0x248] sm:$0xff]
        %v1080 = vld [vmem:[%s759 + $0x250] sm:$0xff]
        %v1081 = vld [vmem:[%s759 + $0x258] sm:$0xff]
        %v1082 = vld [vmem:[%s759 + $0x260] sm:$0xff]
        %v1083 = vld [vmem:[%s759 + $0x268] sm:$0xff]
        %v1084 = vld [vmem:[%s759 + $0x270] sm:$0xff]
        %v1085 = vld [vmem:[%s759 + $0x278] sm:$0xff]
        %v1086 = vld [vmem:[%s759 + $0x280] sm:$0xff]
        %v1087 = vld [vmem:[%s759 + $0x288] sm:$0xff]
        %v1088 = vld [vmem:[%s759 + $0x290] sm:$0xff]
        %v1089 = vld [vmem:[%s759 + $0x298] sm:$0xff]
        %v1090 = vld [vmem:[%s759 + $0x2a0] sm:$0xff]
        %v1091 = vld [vmem:[%s759 + $0x2a8] sm:$0xff]
        %v1092 = vld [vmem:[%s759 + $0x2b0] sm:$0xff]
        %v1093 = vld [vmem:[%s759 + $0x2b8] sm:$0xff]
        %v1094 = vld [vmem:[%s759 + $0x2c0] sm:$0xff]
        %v1095 = vld [vmem:[%s759 + $0x2c8] sm:$0xff]
        %v1096 = vld [vmem:[%s759 + $0x2d0] sm:$0xff]
        %v1097 = vld [vmem:[%s759 + $0x2d8] sm:$0xff]
        %v1098 = vld [vmem:[%s759 + $0x2e0] sm:$0xff]
        %v1099 = vld [vmem:[%s759 + $0x2e8] sm:$0xff]
        %v1100 = vld [vmem:[%s759 + $0x2f0] sm:$0xff]
        %v1101 = vld [vmem:[%s759 + $0x2f8] sm:$0xff]
        %v1102 = vld [vmem:[%s759 + $0x300] sm:$0xff]
        %v1103 = vld [vmem:[%s759 + $0x308] sm:$0xff]
        %v1104 = vld [vmem:[%s759 + $0x310] sm:$0xff]
        %v1105 = vld [vmem:[%s759 + $0x318] sm:$0xff]
        %v1106 = vld [vmem:[%s759 + $0x320] sm:$0xff]
        %v1107 = vld [vmem:[%s759 + $0x328] sm:$0xff]
        %v1108 = vld [vmem:[%s759 + $0x330] sm:$0xff]
        %v1109 = vld [vmem:[%s759 + $0x338] sm:$0xff]
        %v1110 = vld [vmem:[%s759 + $0x340] sm:$0xff]
        %v1111 = vld [vmem:[%s759 + $0x348] sm:$0xff]
        %v1112 = vld [vmem:[%s759 + $0x350] sm:$0xff]
        %v1113 = vld [vmem:[%s759 + $0x358] sm:$0xff]
        %v1114 = vld [vmem:[%s759 + $0x360] sm:$0xff]
        %v1115 = vld [vmem:[%s759 + $0x368] sm:$0xff]
        %v1116 = vld [vmem:[%s759 + $0x370] sm:$0xff]
        %v1117 = vld [vmem:[%s759 + $0x378] sm:$0xff]
        %v1118 = vld [vmem:[%s759 + $0x380] sm:$0xff]
        %v1119 = vld [vmem:[%s759 + $0x388] sm:$0xff]
        %v1120 = vld [vmem:[%s759 + $0x390] sm:$0xff]
        %v1121 = vld [vmem:[%s759 + $0x398] sm:$0xff]
        %v1122 = vld [vmem:[%s759 + $0x3a0] sm:$0xff]
        %v1123 = vld [vmem:[%s759 + $0x3a8] sm:$0xff]
        %v1124 = vld [vmem:[%s759 + $0x3b0] sm:$0xff]
        %v1125 = vld [vmem:[%s759 + $0x3b8] sm:$0xff]
        %v1126 = vld [vmem:[%s759 + $0x3c0] sm:$0xff]
        %v1127 = vld [vmem:[%s759 + $0x3c8] sm:$0xff]
        %v1128 = vld [vmem:[%s759 + $0x3d0] sm:$0xff]
        %v1129 = vld [vmem:[%s759 + $0x3d8] sm:$0xff]
        %v1130 = vld [vmem:[%s759 + $0x3e0] sm:$0xff]
        %v1131 = vld [vmem:[%s759 + $0x3e8] sm:$0xff]
        %v1132 = vld [vmem:[%s759 + $0x3f0] sm:$0xff]
        %v1133 = vld [vmem:[%s759 + $0x3f8] sm:$0xff]
        %v1134 = vld [vmem:[%s759 + $0x400] sm:$0xff]
        %v1135 = vld [vmem:[%s759 + $0x408] sm:$0xff]
        %v1136 = vld [vmem:[%s759 + $0x410] sm:$0xff]
        %v1137 = vld [vmem:[%s759 + $0x418] sm:$0xff]
        %v1138 = vld [vmem:[%s759 + $0x420] sm:$0xff]
        %v1139 = vld [vmem:[%s759 + $0x428] sm:$0xff]
        %v1140 = vld [vmem:[%s759 + $0x430] sm:$0xff]
        %v1141 = vld [vmem:[%s759 + $0x438] sm:$0xff]
        %v1142 = vld [vmem:[%s759 + $0x440] sm:$0xff]
        %v1143 = vld [vmem:[%s759 + $0x448] sm:$0xff]
        %v1144 = vld [vmem:[%s759 + $0x450] sm:$0xff]
        %v1145 = vld [vmem:[%s759 + $0x458] sm:$0xff]
        %v1146 = vld [vmem:[%s759 + $0x460] sm:$0xff]
        %v1147 = vld [vmem:[%s759 + $0x468] sm:$0xff]
        %v1148 = vld [vmem:[%s759 + $0x470] sm:$0xff]
        %v1149 = vld [vmem:[%s759 + $0x478] sm:$0xff]
        %v1150 = vld [vmem:[%s759 + $0x480] sm:$0xff]
        %v1151 = vld [vmem:[%s759 + $0x488] sm:$0xff]
        %v1152 = vld [vmem:[%s759 + $0x490] sm:$0xff]
        %v1153 = vld [vmem:[%s759 + $0x498] sm:$0xff]
        %v1154 = vld [vmem:[%s759 + $0x4a0] sm:$0xff]
        %v1155 = vld [vmem:[%s759 + $0x4a8] sm:$0xff]
        %v1156 = vld [vmem:[%s759 + $0x4b0] sm:$0xff]
        %v1157 = vld [vmem:[%s759 + $0x4b8] sm:$0xff]
        %v1158 = vld [vmem:[%s759 + $0x4c0] sm:$0xff]
        %v1159 = vld [vmem:[%s759 + $0x4c8] sm:$0xff]
        %v1160 = vld [vmem:[%s759 + $0x4d0] sm:$0xff]
        %v1161 = vld [vmem:[%s759 + $0x4d8] sm:$0xff]
        %v1162 = vld [vmem:[%s759 + $0x4e0] sm:$0xff]
        %v1163 = vld [vmem:[%s759 + $0x4e8] sm:$0xff]
        %v1164 = vld [vmem:[%s759 + $0x4f0] sm:$0xff]
        %v1165 = vld [vmem:[%s759 + $0x4f8] sm:$0xff]
        %v1166 = vld [vmem:[%s759 + $0x500] sm:$0xff]
        %v1167 = vld [vmem:[%s759 + $0x508] sm:$0xff]
        %v1168 = vld [vmem:[%s759 + $0x510] sm:$0xff]
        %v1169 = vld [vmem:[%s759 + $0x518] sm:$0xff]
        %v1170 = vld [vmem:[%s759 + $0x520] sm:$0xff]
        %v1171 = vld [vmem:[%s759 + $0x528] sm:$0xff]
        %v1172 = vld [vmem:[%s759 + $0x530] sm:$0xff]
        %v1173 = vld [vmem:[%s759 + $0x538] sm:$0xff]
        %v1174 = vld [vmem:[%s759 + $0x540] sm:$0xff]
        %v1175 = vld [vmem:[%s759 + $0x548] sm:$0xff]
        %v1176 = vld [vmem:[%s759 + $0x550] sm:$0xff]
        %v1177 = vld [vmem:[%s759 + $0x558] sm:$0xff]
        %v1178 = vld [vmem:[%s759 + $0x560] sm:$0xff]
        %v1179 = vld [vmem:[%s759 + $0x568] sm:$0xff]
        %v1180 = vld [vmem:[%s759 + $0x570] sm:$0xff]
        %v1181 = vld [vmem:[%s759 + $0x578] sm:$0xff]
        %v1182 = vld [vmem:[%s759 + $0x580] sm:$0xff]
        %v1183 = vld [vmem:[%s759 + $0x588] sm:$0xff]
        %v1184 = vld [vmem:[%s759 + $0x590] sm:$0xff]
        %v1185 = vld [vmem:[%s759 + $0x598] sm:$0xff]
        %v1186 = vld [vmem:[%s759 + $0x5a0] sm:$0xff]
        %v1187 = vld [vmem:[%s759 + $0x5a8] sm:$0xff]
        %v1188 = vld [vmem:[%s759 + $0x5b0] sm:$0xff]
        %v1189 = vld [vmem:[%s759 + $0x5b8] sm:$0xff]
        %v1190 = vld [vmem:[%s759 + $0x5c0] sm:$0xff]
        %v1191 = vld [vmem:[%s759 + $0x5c8] sm:$0xff]
        %v1192 = vld [vmem:[%s759 + $0x5d0] sm:$0xff]
        %v1193 = vld [vmem:[%s759 + $0x5d8] sm:$0xff]
        %v1194 = vld [vmem:[%s759 + $0x5e0] sm:$0xff]
        %v1195 = vld [vmem:[%s759 + $0x5e8] sm:$0xff]
        %v1196 = vld [vmem:[%s759 + $0x5f0] sm:$0xff]
        %v1197 = vld [vmem:[%s759 + $0x5f8] sm:$0xff]
        %v1198 = vld [vmem:[%s759 + $0x600] sm:$0xff]
        %v1199 = vld [vmem:[%s759 + $0x608] sm:$0xff]
        %v1200 = vld [vmem:[%s759 + $0x610] sm:$0xff]
        %v1201 = vld [vmem:[%s759 + $0x618] sm:$0xff]
        %v1202 = vld [vmem:[%s759 + $0x620] sm:$0xff]
        %v1203 = vld [vmem:[%s759 + $0x628] sm:$0xff]
        %v1204 = vld [vmem:[%s759 + $0x630] sm:$0xff]
        %v1205 = vld [vmem:[%s759 + $0x638] sm:$0xff]
        %v1206 = vld [vmem:[%s759 + $0x640] sm:$0xff]
        %v1207 = vld [vmem:[%s759 + $0x648] sm:$0xff]
        %v1208 = vld [vmem:[%s759 + $0x650] sm:$0xff]
        %v1209 = vld [vmem:[%s759 + $0x658] sm:$0xff]
        %v1210 = vld [vmem:[%s759 + $0x660] sm:$0xff]
        %v1211 = vld [vmem:[%s759 + $0x668] sm:$0xff]
        %v1212 = vld [vmem:[%s759 + $0x670] sm:$0xff]
        %v1213 = vld [vmem:[%s759 + $0x678] sm:$0xff]
        %v1214 = vld [vmem:[%s759 + $0x680] sm:$0xff]
        %v1215 = vld [vmem:[%s759 + $0x688] sm:$0xff]
        %v1216 = vld [vmem:[%s759 + $0x690] sm:$0xff]
        %v1217 = vld [vmem:[%s759 + $0x698] sm:$0xff]
        %v1218 = vld [vmem:[%s759 + $0x6a0] sm:$0xff]
        %v1219 = vld [vmem:[%s759 + $0x6a8] sm:$0xff]
        %v1220 = vld [vmem:[%s759 + $0x6b0] sm:$0xff]
        %v1221 = vld [vmem:[%s759 + $0x6b8] sm:$0xff]
        %v1222 = vld [vmem:[%s759 + $0x6c0] sm:$0xff]
        %v1223 = vld [vmem:[%s759 + $0x6c8] sm:$0xff]
        %v1224 = vld [vmem:[%s759 + $0x6d0] sm:$0xff]
        %v1225 = vld [vmem:[%s759 + $0x6d8] sm:$0xff]
        %v1226 = vld [vmem:[%s759 + $0x6e0] sm:$0xff]
        %v1227 = vld [vmem:[%s759 + $0x6e8] sm:$0xff]
        %v1228 = vld [vmem:[%s759 + $0x6f0] sm:$0xff]
        %v1229 = vld [vmem:[%s759 + $0x6f8] sm:$0xff]
        %v1230 = vld [vmem:[%s759 + $0x700] sm:$0xff]
        %v1231 = vld [vmem:[%s759 + $0x708] sm:$0xff]
        %v1232 = vld [vmem:[%s759 + $0x710] sm:$0xff]
        %v1233 = vld [vmem:[%s759 + $0x718] sm:$0xff]
        %v1234 = vld [vmem:[%s759 + $0x720] sm:$0xff]
        %v1235 = vld [vmem:[%s759 + $0x728] sm:$0xff]
        %v1236 = vld [vmem:[%s759 + $0x730] sm:$0xff]
        %v1237 = vld [vmem:[%s759 + $0x738] sm:$0xff]
        %v1238 = vld [vmem:[%s759 + $0x740] sm:$0xff]
        %v1239 = vld [vmem:[%s759 + $0x748] sm:$0xff]
        %v1240 = vld [vmem:[%s759 + $0x750] sm:$0xff]
        %v1241 = vld [vmem:[%s759 + $0x758] sm:$0xff]
        %v1242 = vld [vmem:[%s759 + $0x760] sm:$0xff]
        %v1243 = vld [vmem:[%s759 + $0x768] sm:$0xff]
        %v1244 = vld [vmem:[%s759 + $0x770] sm:$0xff]
        %v1245 = vld [vmem:[%s759 + $0x778] sm:$0xff]
        %v1246 = vld [vmem:[%s759 + $0x780] sm:$0xff]
        %v1247 = vld [vmem:[%s759 + $0x788] sm:$0xff]
        %v1248 = vld [vmem:[%s759 + $0x790] sm:$0xff]
        %v1249 = vld [vmem:[%s759 + $0x798] sm:$0xff]
        %v1250 = vld [vmem:[%s759 + $0x7a0] sm:$0xff]
        %v1251 = vld [vmem:[%s759 + $0x7a8] sm:$0xff]
        %v1252 = vld [vmem:[%s759 + $0x7b0] sm:$0xff]
        %v1253 = vld [vmem:[%s759 + $0x7b8] sm:$0xff]
        %v1254 = vld [vmem:[%s759 + $0x7c0] sm:$0xff]
        %v1255 = vld [vmem:[%s759 + $0x7c8] sm:$0xff]
        %v1256 = vld [vmem:[%s759 + $0x7d0] sm:$0xff]
        %v1257 = vld [vmem:[%s759 + $0x7d8] sm:$0xff]
        %v1258 = vld [vmem:[%s759 + $0x7e0] sm:$0xff]
        %v1259 = vld [vmem:[%s759 + $0x7e8] sm:$0xff]
        %v1260 = vld [vmem:[%s759 + $0x7f0] sm:$0xff]
        %v1261 = vld [vmem:[%s759 + $0x7f8] sm:$0xff]
        %v1262 = vld [vmem:[%s759 + $0x800] sm:$0xff]
        %v1263 = vld [vmem:[%s759 + $0x808] sm:$0xff]
        %v1264 = vld [vmem:[%s759 + $0x810] sm:$0xff]
        %v1265 = vld [vmem:[%s759 + $0x818] sm:$0xff]
        %v1266 = vld [vmem:[%s759 + $0x820] sm:$0xff]
        %v1267 = vld [vmem:[%s759 + $0x828] sm:$0xff]
        %v1268 = vld [vmem:[%s759 + $0x830] sm:$0xff]
        %v1269 = vld [vmem:[%s759 + $0x838] sm:$0xff]
        %v1270 = vld [vmem:[%s759 + $0x840] sm:$0xff]
        %v1271 = vld [vmem:[%s759 + $0x848] sm:$0xff]
        %v1272 = vld [vmem:[%s759 + $0x850] sm:$0xff]
        %v1273 = vld [vmem:[%s759 + $0x858] sm:$0xff]
        %v1274 = vld [vmem:[%s759 + $0x860] sm:$0xff]
        %v1275 = vld [vmem:[%s759 + $0x868] sm:$0xff]
        %v1276 = vld [vmem:[%s759 + $0x870] sm:$0xff]
        %v1277 = vld [vmem:[%s759 + $0x878] sm:$0xff]
        %v1278 = vld [vmem:[%s759 + $0x880] sm:$0xff]
        %v1279 = vld [vmem:[%s759 + $0x888] sm:$0xff]
        %v1280 = vld [vmem:[%s759 + $0x890] sm:$0xff]
        %v1281 = vld [vmem:[%s759 + $0x898] sm:$0xff]
        %v1282 = vld [vmem:[%s759 + $0x8a0] sm:$0xff]
        %v1283 = vld [vmem:[%s759 + $0x8a8] sm:$0xff]
        %v1284 = vld [vmem:[%s759 + $0x8b0] sm:$0xff]
        %v1285 = vld [vmem:[%s759 + $0x8b8] sm:$0xff]
        %v1286 = vld [vmem:[%s759 + $0x8c0] sm:$0xff]
        %v1287 = vld [vmem:[%s759 + $0x8c8] sm:$0xff]
        %v1288 = vld [vmem:[%s759 + $0x8d0] sm:$0xff]
        %v1289 = vld [vmem:[%s759 + $0x8d8] sm:$0xff]
        %v1290 = vld [vmem:[%s759 + $0x8e0] sm:$0xff]
        %v1291 = vld [vmem:[%s759 + $0x8e8] sm:$0xff]
        %v1292 = vld [vmem:[%s759 + $0x8f0] sm:$0xff]
        %v1293 = vld [vmem:[%s759 + $0x8f8] sm:$0xff]
        %v1294 = vld [vmem:[%s759 + $0x900] sm:$0xff]
        %v1295 = vld [vmem:[%s759 + $0x908] sm:$0xff]
        %v1296 = vld [vmem:[%s759 + $0x910] sm:$0xff]
        %v1297 = vld [vmem:[%s759 + $0x918] sm:$0xff]
        %v1298 = vld [vmem:[%s759 + $0x920] sm:$0xff]
        %v1299 = vld [vmem:[%s759 + $0x928] sm:$0xff]
        %v1300 = vld [vmem:[%s759 + $0x930] sm:$0xff]
        %v1301 = vld [vmem:[%s759 + $0x938] sm:$0xff]
        %v1302 = vld [vmem:[%s759 + $0x940] sm:$0xff]
        %v1303 = vld [vmem:[%s759 + $0x948] sm:$0xff]
        %v1304 = vld [vmem:[%s759 + $0x950] sm:$0xff]
        %v1305 = vld [vmem:[%s759 + $0x958] sm:$0xff]
        %v1306 = vld [vmem:[%s759 + $0x960] sm:$0xff]
        %v1307 = vld [vmem:[%s759 + $0x968] sm:$0xff]
        %v1308 = vld [vmem:[%s759 + $0x970] sm:$0xff]
        %v1309 = vld [vmem:[%s759 + $0x978] sm:$0xff]
        %v1310 = vld [vmem:[%s759 + $0x980] sm:$0xff]
        %v1311 = vld [vmem:[%s759 + $0x988] sm:$0xff]
        %v1312 = vld [vmem:[%s759 + $0x990] sm:$0xff]
        %v1313 = vld [vmem:[%s759 + $0x998] sm:$0xff]
        %v1314 = vld [vmem:[%s759 + $0x9a0] sm:$0xff]
        %v1315 = vld [vmem:[%s759 + $0x9a8] sm:$0xff]
        %v1316 = vld [vmem:[%s759 + $0x9b0] sm:$0xff]
        %v1317 = vld [vmem:[%s759 + $0x9b8] sm:$0xff]
        %v1318 = vld [vmem:[%s759 + $0x9c0] sm:$0xff]
        %v1319 = vld [vmem:[%s759 + $0x9c8] sm:$0xff]
        %v1320 = vld [vmem:[%s759 + $0x9d0] sm:$0xff]
        %v1321 = vld [vmem:[%s759 + $0x9d8] sm:$0xff]
        %v1322 = vld [vmem:[%s759 + $0x9e0] sm:$0xff]
        %v1323 = vld [vmem:[%s759 + $0x9e8] sm:$0xff]
        %v1324 = vld [vmem:[%s759 + $0x9f0] sm:$0xff]
        %v1325 = vld [vmem:[%s759 + $0x9f8] sm:$0xff]
        %v1326 = vld [vmem:[%s759 + $0xa00] sm:$0xff]
        %v1327 = vld [vmem:[%s759 + $0xa08] sm:$0xff]
        %v1328 = vld [vmem:[%s759 + $0xa10] sm:$0xff]
        %v1329 = vld [vmem:[%s759 + $0xa18] sm:$0xff]
        %v1330 = vld [vmem:[%s759 + $0xa20] sm:$0xff]
        %v1331 = vld [vmem:[%s759 + $0xa28] sm:$0xff]
        %v1332 = vld [vmem:[%s759 + $0xa30] sm:$0xff]
        %v1333 = vld [vmem:[%s759 + $0xa38] sm:$0xff]
        %v1334 = vld [vmem:[%s759 + $0xa40] sm:$0xff]
        %v1335 = vld [vmem:[%s759 + $0xa48] sm:$0xff]
        %v1336 = vld [vmem:[%s759 + $0xa50] sm:$0xff]
        %v1337 = vld [vmem:[%s759 + $0xa58] sm:$0xff]
        %v1338 = vld [vmem:[%s759 + $0xa60] sm:$0xff]
        %v1339 = vld [vmem:[%s759 + $0xa68] sm:$0xff]
        %v1340 = vld [vmem:[%s759 + $0xa70] sm:$0xff]
        %v1341 = vld [vmem:[%s759 + $0xa78] sm:$0xff]
        %v1342 = vld [vmem:[%s759 + $0xa80] sm:$0xff]
        %v1343 = vld [vmem:[%s759 + $0xa88] sm:$0xff]
        %v1344 = vld [vmem:[%s759 + $0xa90] sm:$0xff]
        %v1345 = vld [vmem:[%s759 + $0xa98] sm:$0xff]
        %v1346 = vld [vmem:[%s759 + $0xaa0] sm:$0xff]
        %v1347 = vld [vmem:[%s759 + $0xaa8] sm:$0xff]
        %v1348 = vld [vmem:[%s759 + $0xab0] sm:$0xff]
        %v1349 = vld [vmem:[%s759 + $0xab8] sm:$0xff]
        %v1350 = vld [vmem:[%s759 + $0xac0] sm:$0xff]
        %v1351 = vld [vmem:[%s759 + $0xac8] sm:$0xff]
        %v1352 = vld [vmem:[%s759 + $0xad0] sm:$0xff]
        %v1353 = vld [vmem:[%s759 + $0xad8] sm:$0xff]
        %v1354 = vld [vmem:[%s759 + $0xae0] sm:$0xff]
        %v1355 = vld [vmem:[%s759 + $0xae8] sm:$0xff]
        %v1356 = vld [vmem:[%s759 + $0xaf0] sm:$0xff]
        %v1357 = vld [vmem:[%s759 + $0xaf8] sm:$0xff]
        %v1358 = vld [vmem:[%s759 + $0xb00] sm:$0xff]
        %v1359 = vld [vmem:[%s759 + $0xb08] sm:$0xff]
        %v1360 = vld [vmem:[%s759 + $0xb10] sm:$0xff]
        %v1361 = vld [vmem:[%s759 + $0xb18] sm:$0xff]
        %v1362 = vld [vmem:[%s759 + $0xb20] sm:$0xff]
        %v1363 = vld [vmem:[%s759 + $0xb28] sm:$0xff]
        %v1364 = vld [vmem:[%s759 + $0xb30] sm:$0xff]
        %v1365 = vld [vmem:[%s759 + $0xb38] sm:$0xff]
        %v1366 = vld [vmem:[%s759 + $0xb40] sm:$0xff]
        %v1367 = vld [vmem:[%s759 + $0xb48] sm:$0xff]
        %v1368 = vld [vmem:[%s759 + $0xb50] sm:$0xff]
        %v1369 = vld [vmem:[%s759 + $0xb58] sm:$0xff]
        %v1370 = vld [vmem:[%s759 + $0xb60] sm:$0xff]
        %v1371 = vld [vmem:[%s759 + $0xb68] sm:$0xff]
        %v1372 = vld [vmem:[%s759 + $0xb70] sm:$0xff]
        %v1373 = vld [vmem:[%s759 + $0xb78] sm:$0xff]
        %v1374 = vld [vmem:[%s759 + $0xb80] sm:$0xff]
        %v1375 = vld [vmem:[%s759 + $0xb88] sm:$0xff]
        %v1376 = vld [vmem:[%s759 + $0xb90] sm:$0xff]
        %v1377 = vld [vmem:[%s759 + $0xb98] sm:$0xff]
        %v1378 = vld [vmem:[%s759 + $0xba0] sm:$0xff]
        %v1379 = vld [vmem:[%s759 + $0xba8] sm:$0xff]
        %v1380 = vld [vmem:[%s759 + $0xbb0] sm:$0xff]
        %v1381 = vld [vmem:[%s759 + $0xbb8] sm:$0xff]
        %v1382 = vld [vmem:[%s759 + $0xbc0] sm:$0xff]
        %v1383 = vld [vmem:[%s759 + $0xbc8] sm:$0xff]
        %v1384 = vld [vmem:[%s759 + $0xbd0] sm:$0xff]
        %v1385 = vld [vmem:[%s759 + $0xbd8] sm:$0xff]
        %v1386 = vld [vmem:[%s759 + $0xbe0] sm:$0xff]
        %v1387 = vld [vmem:[%s759 + $0xbe8] sm:$0xff]
        %v1388 = vld [vmem:[%s759 + $0xbf0] sm:$0xff]
        %v1389 = vld [vmem:[%s759 + $0xbf8] sm:$0xff]
        %v1390 = vld [vmem:[%s768] sm:$0xff]
        %v1391 = vld [vmem:[%s768 + $0x8] sm:$0xf]
        %v1394 = vlaneseq
        %v1395 = vshrl.u32 %v1394, 7
        %v1396 = vsub.s32 0, %v1395
        %v1397 = vrot.slane %v1390, %v1396
        %v1398 = vlaneseq
        %v1399 = vshrl.u32 %v1398, 7
        %v1400 = vsub.s32 1, %v1399
        %v1401 = vrot.slane %v1390, %v1400
        %v1402 = vlaneseq
        %v1403 = vshrl.u32 %v1402, 7
        %v1404 = vsub.s32 2, %v1403
        %v1405 = vrot.slane %v1390, %v1404
        %v1406 = vlaneseq
        %v1407 = vshrl.u32 %v1406, 7
        %v1408 = vsub.s32 3, %v1407
        %v1409 = vrot.slane %v1390, %v1408
        %v1410 = vlaneseq
        %v1411 = vshrl.u32 %v1410, 7
        %v1412 = vsub.s32 4, %v1411
        %v1413 = vrot.slane %v1390, %v1412
        %v1414 = vlaneseq
        %v1415 = vshrl.u32 %v1414, 7
        %v1416 = vsub.s32 5, %v1415
        %v1417 = vrot.slane %v1390, %v1416
        %v1418 = vlaneseq
        %v1419 = vshrl.u32 %v1418, 7
        %v1420 = vsub.s32 6, %v1419
        %v1421 = vrot.slane %v1390, %v1420
        %v1422 = vlaneseq
        %v1423 = vshrl.u32 %v1422, 7
        %v1424 = vsub.s32 7, %v1423
        %v1425 = vrot.slane %v1390, %v1424
        %v1426 = vlaneseq
        %v1427 = vshrl.u32 %v1426, 7
        %v1428 = vsub.s32 0, %v1427
        %v1429 = vrot.slane %v1391, %v1428
        %v1430 = vlaneseq
        %v1431 = vshrl.u32 %v1430, 7
        %v1432 = vsub.s32 1, %v1431
        %v1433 = vrot.slane %v1391, %v1432
        %v1434 = vlaneseq
        %v1435 = vshrl.u32 %v1434, 7
        %v1436 = vsub.s32 2, %v1435
        %v1437 = vrot.slane %v1391, %v1436
        %v1438 = vlaneseq
        %v1439 = vshrl.u32 %v1438, 7
        %v1440 = vsub.s32 3, %v1439
        %v1441 = vrot.slane %v1391, %v1440
        %v1838 = vunpack.c.l.b16 %v1006
        %v1839 = vunpack.c.h.b16 %v1006
        %v1840 = vunpack.c.l.b16 %v1007
        %v1841 = vunpack.c.h.b16 %v1007
        %v1842 = vunpack.c.l.b16 %v1008
        %v1843 = vunpack.c.h.b16 %v1008
        %v1844 = vunpack.c.l.b16 %v1009
        %v1845 = vunpack.c.h.b16 %v1009
        %v1846 = vunpack.c.l.b16 %v1010
        %v1847 = vunpack.c.h.b16 %v1010
        %v1848 = vunpack.c.l.b16 %v1011
        %v1849 = vunpack.c.h.b16 %v1011
        %v1850 = vunpack.c.l.b16 %v1012
        %v1851 = vunpack.c.h.b16 %v1012
        %v1852 = vunpack.c.l.b16 %v1013
        %v1853 = vunpack.c.h.b16 %v1013
        %v1854 = vunpack.c.l.b16 %v1014
        %v1855 = vunpack.c.h.b16 %v1014
        %v1856 = vunpack.c.l.b16 %v1015
        %v1857 = vunpack.c.h.b16 %v1015
        %v1858 = vunpack.c.l.b16 %v1016
        %v1859 = vunpack.c.h.b16 %v1016
        %v1860 = vunpack.c.l.b16 %v1017
        %v1861 = vunpack.c.h.b16 %v1017
        %v1862 = vunpack.c.l.b16 %v1018
        %v1863 = vunpack.c.h.b16 %v1018
        %v1864 = vunpack.c.l.b16 %v1019
        %v1865 = vunpack.c.h.b16 %v1019
        %v1866 = vunpack.c.l.b16 %v1020
        %v1867 = vunpack.c.h.b16 %v1020
        %v1868 = vunpack.c.l.b16 %v1021
        %v1869 = vunpack.c.h.b16 %v1021
        %v1870 = vunpack.c.l.b16 %v1022
        %v1871 = vunpack.c.h.b16 %v1022
        %v1872 = vunpack.c.l.b16 %v1023
        %v1873 = vunpack.c.h.b16 %v1023
        %v1874 = vunpack.c.l.b16 %v1024
        %v1875 = vunpack.c.h.b16 %v1024
        %v1876 = vunpack.c.l.b16 %v1025
        %v1877 = vunpack.c.h.b16 %v1025
        %v1878 = vunpack.c.l.b16 %v1026
        %v1879 = vunpack.c.h.b16 %v1026
        %v1880 = vunpack.c.l.b16 %v1027
        %v1881 = vunpack.c.h.b16 %v1027
        %v1882 = vunpack.c.l.b16 %v1028
        %v1883 = vunpack.c.h.b16 %v1028
        %v1884 = vunpack.c.l.b16 %v1029
        %v1885 = vunpack.c.h.b16 %v1029
        %v1886 = vunpack.c.l.b16 %v1030
        %v1887 = vunpack.c.h.b16 %v1030
        %v1888 = vunpack.c.l.b16 %v1031
        %v1889 = vunpack.c.h.b16 %v1031
        %v1890 = vunpack.c.l.b16 %v1032
        %v1891 = vunpack.c.h.b16 %v1032
        %v1892 = vunpack.c.l.b16 %v1033
        %v1893 = vunpack.c.h.b16 %v1033
        %v1894 = vunpack.c.l.b16 %v1034
        %v1895 = vunpack.c.h.b16 %v1034
        %v1896 = vunpack.c.l.b16 %v1035
        %v1897 = vunpack.c.h.b16 %v1035
        %v1898 = vunpack.c.l.b16 %v1036
        %v1899 = vunpack.c.h.b16 %v1036
        %v1900 = vunpack.c.l.b16 %v1037
        %v1901 = vunpack.c.h.b16 %v1037
        %v1902 = vunpack.c.l.b16 %v1038
        %v1903 = vunpack.c.h.b16 %v1038
        %v1904 = vunpack.c.l.b16 %v1039
        %v1905 = vunpack.c.h.b16 %v1039
        %v1906 = vunpack.c.l.b16 %v1040
        %v1907 = vunpack.c.h.b16 %v1040
        %v1908 = vunpack.c.l.b16 %v1041
        %v1909 = vunpack.c.h.b16 %v1041
        %v1910 = vunpack.c.l.b16 %v1042
        %v1911 = vunpack.c.h.b16 %v1042
        %v1912 = vunpack.c.l.b16 %v1043
        %v1913 = vunpack.c.h.b16 %v1043
        %v1914 = vunpack.c.l.b16 %v1044
        %v1915 = vunpack.c.h.b16 %v1044
        %v1916 = vunpack.c.l.b16 %v1045
        %v1917 = vunpack.c.h.b16 %v1045
        %v1918 = vunpack.c.l.b16 %v1046
        %v1919 = vunpack.c.h.b16 %v1046
        %v1920 = vunpack.c.l.b16 %v1047
        %v1921 = vunpack.c.h.b16 %v1047
        %v1922 = vunpack.c.l.b16 %v1048
        %v1923 = vunpack.c.h.b16 %v1048
        %v1924 = vunpack.c.l.b16 %v1049
        %v1925 = vunpack.c.h.b16 %v1049
        %v1926 = vunpack.c.l.b16 %v1050
        %v1927 = vunpack.c.h.b16 %v1050
        %v1928 = vunpack.c.l.b16 %v1051
        %v1929 = vunpack.c.h.b16 %v1051
        %v1930 = vunpack.c.l.b16 %v1052
        %v1931 = vunpack.c.h.b16 %v1052
        %v1932 = vunpack.c.l.b16 %v1053
        %v1933 = vunpack.c.h.b16 %v1053
        %v1934 = vunpack.c.l.b16 %v1054
        %v1935 = vunpack.c.h.b16 %v1054
        %v1936 = vunpack.c.l.b16 %v1055
        %v1937 = vunpack.c.h.b16 %v1055
        %v1938 = vunpack.c.l.b16 %v1056
        %v1939 = vunpack.c.h.b16 %v1056
        %v1940 = vunpack.c.l.b16 %v1057
        %v1941 = vunpack.c.h.b16 %v1057
        %v1942 = vunpack.c.l.b16 %v1058
        %v1943 = vunpack.c.h.b16 %v1058
        %v1944 = vunpack.c.l.b16 %v1059
        %v1945 = vunpack.c.h.b16 %v1059
        %v1946 = vunpack.c.l.b16 %v1060
        %v1947 = vunpack.c.h.b16 %v1060
        %v1948 = vunpack.c.l.b16 %v1061
        %v1949 = vunpack.c.h.b16 %v1061
        %v1950 = vunpack.c.l.b16 %v1062
        %v1951 = vunpack.c.h.b16 %v1062
        %v1952 = vunpack.c.l.b16 %v1063
        %v1953 = vunpack.c.h.b16 %v1063
        %v1954 = vunpack.c.l.b16 %v1064
        %v1955 = vunpack.c.h.b16 %v1064
        %v1956 = vunpack.c.l.b16 %v1065
        %v1957 = vunpack.c.h.b16 %v1065
        %v1958 = vunpack.c.l.b16 %v1066
        %v1959 = vunpack.c.h.b16 %v1066
        %v1960 = vunpack.c.l.b16 %v1067
        %v1961 = vunpack.c.h.b16 %v1067
        %v1962 = vunpack.c.l.b16 %v1068
        %v1963 = vunpack.c.h.b16 %v1068
        %v1964 = vunpack.c.l.b16 %v1069
        %v1965 = vunpack.c.h.b16 %v1069
        %v1966 = vunpack.c.l.b16 %v1070
        %v1967 = vunpack.c.h.b16 %v1070
        %v1968 = vunpack.c.l.b16 %v1071
        %v1969 = vunpack.c.h.b16 %v1071
        %v1970 = vunpack.c.l.b16 %v1072
        %v1971 = vunpack.c.h.b16 %v1072
        %v1972 = vunpack.c.l.b16 %v1073
        %v1973 = vunpack.c.h.b16 %v1073
        %v1974 = vunpack.c.l.b16 %v1074
        %v1975 = vunpack.c.h.b16 %v1074
        %v1976 = vunpack.c.l.b16 %v1075
        %v1977 = vunpack.c.h.b16 %v1075
        %v1978 = vunpack.c.l.b16 %v1076
        %v1979 = vunpack.c.h.b16 %v1076
        %v1980 = vunpack.c.l.b16 %v1077
        %v1981 = vunpack.c.h.b16 %v1077
        %v1982 = vunpack.c.l.b16 %v1078
        %v1983 = vunpack.c.h.b16 %v1078
        %v1984 = vunpack.c.l.b16 %v1079
        %v1985 = vunpack.c.h.b16 %v1079
        %v1986 = vunpack.c.l.b16 %v1080
        %v1987 = vunpack.c.h.b16 %v1080
        %v1988 = vunpack.c.l.b16 %v1081
        %v1989 = vunpack.c.h.b16 %v1081
        %v1990 = vunpack.c.l.b16 %v1082
        %v1991 = vunpack.c.h.b16 %v1082
        %v1992 = vunpack.c.l.b16 %v1083
        %v1993 = vunpack.c.h.b16 %v1083
        %v1994 = vunpack.c.l.b16 %v1084
        %v1995 = vunpack.c.h.b16 %v1084
        %v1996 = vunpack.c.l.b16 %v1085
        %v1997 = vunpack.c.h.b16 %v1085
        %v1998 = vunpack.c.l.b16 %v1086
        %v1999 = vunpack.c.h.b16 %v1086
        %v2000 = vunpack.c.l.b16 %v1087
        %v2001 = vunpack.c.h.b16 %v1087
        %v2002 = vunpack.c.l.b16 %v1088
        %v2003 = vunpack.c.h.b16 %v1088
        %v2004 = vunpack.c.l.b16 %v1089
        %v2005 = vunpack.c.h.b16 %v1089
        %v2006 = vunpack.c.l.b16 %v1090
        %v2007 = vunpack.c.h.b16 %v1090
        %v2008 = vunpack.c.l.b16 %v1091
        %v2009 = vunpack.c.h.b16 %v1091
        %v2010 = vunpack.c.l.b16 %v1092
        %v2011 = vunpack.c.h.b16 %v1092
        %v2012 = vunpack.c.l.b16 %v1093
        %v2013 = vunpack.c.h.b16 %v1093
        %v2014 = vunpack.c.l.b16 %v1094
        %v2015 = vunpack.c.h.b16 %v1094
        %v2016 = vunpack.c.l.b16 %v1095
        %v2017 = vunpack.c.h.b16 %v1095
        %v2018 = vunpack.c.l.b16 %v1096
        %v2019 = vunpack.c.h.b16 %v1096
        %v2020 = vunpack.c.l.b16 %v1097
        %v2021 = vunpack.c.h.b16 %v1097
        %v2022 = vunpack.c.l.b16 %v1098
        %v2023 = vunpack.c.h.b16 %v1098
        %v2024 = vunpack.c.l.b16 %v1099
        %v2025 = vunpack.c.h.b16 %v1099
        %v2026 = vunpack.c.l.b16 %v1100
        %v2027 = vunpack.c.h.b16 %v1100
        %v2028 = vunpack.c.l.b16 %v1101
        %v2029 = vunpack.c.h.b16 %v1101
        %v2030 = vunpack.c.l.b16 %v1102
        %v2031 = vunpack.c.h.b16 %v1102
        %v2032 = vunpack.c.l.b16 %v1103
        %v2033 = vunpack.c.h.b16 %v1103
        %v2034 = vunpack.c.l.b16 %v1104
        %v2035 = vunpack.c.h.b16 %v1104
        %v2036 = vunpack.c.l.b16 %v1105
        %v2037 = vunpack.c.h.b16 %v1105
        %v2038 = vunpack.c.l.b16 %v1106
        %v2039 = vunpack.c.h.b16 %v1106
        %v2040 = vunpack.c.l.b16 %v1107
        %v2041 = vunpack.c.h.b16 %v1107
        %v2042 = vunpack.c.l.b16 %v1108
        %v2043 = vunpack.c.h.b16 %v1108
        %v2044 = vunpack.c.l.b16 %v1109
        %v2045 = vunpack.c.h.b16 %v1109
        %v2046 = vunpack.c.l.b16 %v1110
        %v2047 = vunpack.c.h.b16 %v1110
        %v2048 = vunpack.c.l.b16 %v1111
        %v2049 = vunpack.c.h.b16 %v1111
        %v2050 = vunpack.c.l.b16 %v1112
        %v2051 = vunpack.c.h.b16 %v1112
        %v2052 = vunpack.c.l.b16 %v1113
        %v2053 = vunpack.c.h.b16 %v1113
        %v2054 = vunpack.c.l.b16 %v1114
        %v2055 = vunpack.c.h.b16 %v1114
        %v2056 = vunpack.c.l.b16 %v1115
        %v2057 = vunpack.c.h.b16 %v1115
        %v2058 = vunpack.c.l.b16 %v1116
        %v2059 = vunpack.c.h.b16 %v1116
        %v2060 = vunpack.c.l.b16 %v1117
        %v2061 = vunpack.c.h.b16 %v1117
        %v2062 = vunpack.c.l.b16 %v1118
        %v2063 = vunpack.c.h.b16 %v1118
        %v2064 = vunpack.c.l.b16 %v1119
        %v2065 = vunpack.c.h.b16 %v1119
        %v2066 = vunpack.c.l.b16 %v1120
        %v2067 = vunpack.c.h.b16 %v1120
        %v2068 = vunpack.c.l.b16 %v1121
        %v2069 = vunpack.c.h.b16 %v1121
        %v2070 = vunpack.c.l.b16 %v1122
        %v2071 = vunpack.c.h.b16 %v1122
        %v2072 = vunpack.c.l.b16 %v1123
        %v2073 = vunpack.c.h.b16 %v1123
        %v2074 = vunpack.c.l.b16 %v1124
        %v2075 = vunpack.c.h.b16 %v1124
        %v2076 = vunpack.c.l.b16 %v1125
        %v2077 = vunpack.c.h.b16 %v1125
        %v2078 = vunpack.c.l.b16 %v1126
        %v2079 = vunpack.c.h.b16 %v1126
        %v2080 = vunpack.c.l.b16 %v1127
        %v2081 = vunpack.c.h.b16 %v1127
        %v2082 = vunpack.c.l.b16 %v1128
        %v2083 = vunpack.c.h.b16 %v1128
        %v2084 = vunpack.c.l.b16 %v1129
        %v2085 = vunpack.c.h.b16 %v1129
        %v2086 = vunpack.c.l.b16 %v1130
        %v2087 = vunpack.c.h.b16 %v1130
        %v2088 = vunpack.c.l.b16 %v1131
        %v2089 = vunpack.c.h.b16 %v1131
        %v2090 = vunpack.c.l.b16 %v1132
        %v2091 = vunpack.c.h.b16 %v1132
        %v2092 = vunpack.c.l.b16 %v1133
        %v2093 = vunpack.c.h.b16 %v1133
        %v2094 = vunpack.c.l.b16 %v1134
        %v2095 = vunpack.c.h.b16 %v1134
        %v2096 = vunpack.c.l.b16 %v1135
        %v2097 = vunpack.c.h.b16 %v1135
        %v2098 = vunpack.c.l.b16 %v1136
        %v2099 = vunpack.c.h.b16 %v1136
        %v2100 = vunpack.c.l.b16 %v1137
        %v2101 = vunpack.c.h.b16 %v1137
        %v2102 = vunpack.c.l.b16 %v1138
        %v2103 = vunpack.c.h.b16 %v1138
        %v2104 = vunpack.c.l.b16 %v1139
        %v2105 = vunpack.c.h.b16 %v1139
        %v2106 = vunpack.c.l.b16 %v1140
        %v2107 = vunpack.c.h.b16 %v1140
        %v2108 = vunpack.c.l.b16 %v1141
        %v2109 = vunpack.c.h.b16 %v1141
        %v2110 = vunpack.c.l.b16 %v1142
        %v2111 = vunpack.c.h.b16 %v1142
        %v2112 = vunpack.c.l.b16 %v1143
        %v2113 = vunpack.c.h.b16 %v1143
        %v2114 = vunpack.c.l.b16 %v1144
        %v2115 = vunpack.c.h.b16 %v1144
        %v2116 = vunpack.c.l.b16 %v1145
        %v2117 = vunpack.c.h.b16 %v1145
        %v2118 = vunpack.c.l.b16 %v1146
        %v2119 = vunpack.c.h.b16 %v1146
        %v2120 = vunpack.c.l.b16 %v1147
        %v2121 = vunpack.c.h.b16 %v1147
        %v2122 = vunpack.c.l.b16 %v1148
        %v2123 = vunpack.c.h.b16 %v1148
        %v2124 = vunpack.c.l.b16 %v1149
        %v2125 = vunpack.c.h.b16 %v1149
        %v2126 = vunpack.c.l.b16 %v1150
        %v2127 = vunpack.c.h.b16 %v1150
        %v2128 = vunpack.c.l.b16 %v1151
        %v2129 = vunpack.c.h.b16 %v1151
        %v2130 = vunpack.c.l.b16 %v1152
        %v2131 = vunpack.c.h.b16 %v1152
        %v2132 = vunpack.c.l.b16 %v1153
        %v2133 = vunpack.c.h.b16 %v1153
        %v2134 = vunpack.c.l.b16 %v1154
        %v2135 = vunpack.c.h.b16 %v1154
        %v2136 = vunpack.c.l.b16 %v1155
        %v2137 = vunpack.c.h.b16 %v1155
        %v2138 = vunpack.c.l.b16 %v1156
        %v2139 = vunpack.c.h.b16 %v1156
        %v2140 = vunpack.c.l.b16 %v1157
        %v2141 = vunpack.c.h.b16 %v1157
        %v2142 = vunpack.c.l.b16 %v1158
        %v2143 = vunpack.c.h.b16 %v1158
        %v2144 = vunpack.c.l.b16 %v1159
        %v2145 = vunpack.c.h.b16 %v1159
        %v2146 = vunpack.c.l.b16 %v1160
        %v2147 = vunpack.c.h.b16 %v1160
        %v2148 = vunpack.c.l.b16 %v1161
        %v2149 = vunpack.c.h.b16 %v1161
        %v2150 = vunpack.c.l.b16 %v1162
        %v2151 = vunpack.c.h.b16 %v1162
        %v2152 = vunpack.c.l.b16 %v1163
        %v2153 = vunpack.c.h.b16 %v1163
        %v2154 = vunpack.c.l.b16 %v1164
        %v2155 = vunpack.c.h.b16 %v1164
        %v2156 = vunpack.c.l.b16 %v1165
        %v2157 = vunpack.c.h.b16 %v1165
        %v2158 = vunpack.c.l.b16 %v1166
        %v2159 = vunpack.c.h.b16 %v1166
        %v2160 = vunpack.c.l.b16 %v1167
        %v2161 = vunpack.c.h.b16 %v1167
        %v2162 = vunpack.c.l.b16 %v1168
        %v2163 = vunpack.c.h.b16 %v1168
        %v2164 = vunpack.c.l.b16 %v1169
        %v2165 = vunpack.c.h.b16 %v1169
        %v2166 = vunpack.c.l.b16 %v1170
        %v2167 = vunpack.c.h.b16 %v1170
        %v2168 = vunpack.c.l.b16 %v1171
        %v2169 = vunpack.c.h.b16 %v1171
        %v2170 = vunpack.c.l.b16 %v1172
        %v2171 = vunpack.c.h.b16 %v1172
        %v2172 = vunpack.c.l.b16 %v1173
        %v2173 = vunpack.c.h.b16 %v1173
        %v2174 = vunpack.c.l.b16 %v1174
        %v2175 = vunpack.c.h.b16 %v1174
        %v2176 = vunpack.c.l.b16 %v1175
        %v2177 = vunpack.c.h.b16 %v1175
        %v2178 = vunpack.c.l.b16 %v1176
        %v2179 = vunpack.c.h.b16 %v1176
        %v2180 = vunpack.c.l.b16 %v1177
        %v2181 = vunpack.c.h.b16 %v1177
        %v2182 = vunpack.c.l.b16 %v1178
        %v2183 = vunpack.c.h.b16 %v1178
        %v2184 = vunpack.c.l.b16 %v1179
        %v2185 = vunpack.c.h.b16 %v1179
        %v2186 = vunpack.c.l.b16 %v1180
        %v2187 = vunpack.c.h.b16 %v1180
        %v2188 = vunpack.c.l.b16 %v1181
        %v2189 = vunpack.c.h.b16 %v1181
        %v2190 = vunpack.c.l.b16 %v1182
        %v2191 = vunpack.c.h.b16 %v1182
        %v2192 = vunpack.c.l.b16 %v1183
        %v2193 = vunpack.c.h.b16 %v1183
        %v2194 = vunpack.c.l.b16 %v1184
        %v2195 = vunpack.c.h.b16 %v1184
        %v2196 = vunpack.c.l.b16 %v1185
        %v2197 = vunpack.c.h.b16 %v1185
        %v2198 = vunpack.c.l.b16 %v1186
        %v2199 = vunpack.c.h.b16 %v1186
        %v2200 = vunpack.c.l.b16 %v1187
        %v2201 = vunpack.c.h.b16 %v1187
        %v2202 = vunpack.c.l.b16 %v1188
        %v2203 = vunpack.c.h.b16 %v1188
        %v2204 = vunpack.c.l.b16 %v1189
        %v2205 = vunpack.c.h.b16 %v1189
        %v2206 = vunpack.c.l.b16 %v1190
        %v2207 = vunpack.c.h.b16 %v1190
        %v2208 = vunpack.c.l.b16 %v1191
        %v2209 = vunpack.c.h.b16 %v1191
        %v2210 = vunpack.c.l.b16 %v1192
        %v2211 = vunpack.c.h.b16 %v1192
        %v2212 = vunpack.c.l.b16 %v1193
        %v2213 = vunpack.c.h.b16 %v1193
        %v2214 = vunpack.c.l.b16 %v1194
        %v2215 = vunpack.c.h.b16 %v1194
        %v2216 = vunpack.c.l.b16 %v1195
        %v2217 = vunpack.c.h.b16 %v1195
        %v2218 = vunpack.c.l.b16 %v1196
        %v2219 = vunpack.c.h.b16 %v1196
        %v2220 = vunpack.c.l.b16 %v1197
        %v2221 = vunpack.c.h.b16 %v1197
        %v2222 = vunpack.c.l.b16 %v1198
        %v2223 = vunpack.c.h.b16 %v1198
        %v2224 = vunpack.c.l.b16 %v1199
        %v2225 = vunpack.c.h.b16 %v1199
        %v2226 = vunpack.c.l.b16 %v1200
        %v2227 = vunpack.c.h.b16 %v1200
        %v2228 = vunpack.c.l.b16 %v1201
        %v2229 = vunpack.c.h.b16 %v1201
        %v2230 = vunpack.c.l.b16 %v1202
        %v2231 = vunpack.c.h.b16 %v1202
        %v2232 = vunpack.c.l.b16 %v1203
        %v2233 = vunpack.c.h.b16 %v1203
        %v2234 = vunpack.c.l.b16 %v1204
        %v2235 = vunpack.c.h.b16 %v1204
        %v2236 = vunpack.c.l.b16 %v1205
        %v2237 = vunpack.c.h.b16 %v1205
        %v2238 = vunpack.c.l.b16 %v1206
        %v2239 = vunpack.c.h.b16 %v1206
        %v2240 = vunpack.c.l.b16 %v1207
        %v2241 = vunpack.c.h.b16 %v1207
        %v2242 = vunpack.c.l.b16 %v1208
        %v2243 = vunpack.c.h.b16 %v1208
        %v2244 = vunpack.c.l.b16 %v1209
        %v2245 = vunpack.c.h.b16 %v1209
        %v2246 = vunpack.c.l.b16 %v1210
        %v2247 = vunpack.c.h.b16 %v1210
        %v2248 = vunpack.c.l.b16 %v1211
        %v2249 = vunpack.c.h.b16 %v1211
        %v2250 = vunpack.c.l.b16 %v1212
        %v2251 = vunpack.c.h.b16 %v1212
        %v2252 = vunpack.c.l.b16 %v1213
        %v2253 = vunpack.c.h.b16 %v1213
        %v2254 = vunpack.c.l.b16 %v1214
        %v2255 = vunpack.c.h.b16 %v1214
        %v2256 = vunpack.c.l.b16 %v1215
        %v2257 = vunpack.c.h.b16 %v1215
        %v2258 = vunpack.c.l.b16 %v1216
        %v2259 = vunpack.c.h.b16 %v1216
        %v2260 = vunpack.c.l.b16 %v1217
        %v2261 = vunpack.c.h.b16 %v1217
        %v2262 = vunpack.c.l.b16 %v1218
        %v2263 = vunpack.c.h.b16 %v1218
        %v2264 = vunpack.c.l.b16 %v1219
        %v2265 = vunpack.c.h.b16 %v1219
        %v2266 = vunpack.c.l.b16 %v1220
        %v2267 = vunpack.c.h.b16 %v1220
        %v2268 = vunpack.c.l.b16 %v1221
        %v2269 = vunpack.c.h.b16 %v1221
        %v2270 = vunpack.c.l.b16 %v1222
        %v2271 = vunpack.c.h.b16 %v1222
        %v2272 = vunpack.c.l.b16 %v1223
        %v2273 = vunpack.c.h.b16 %v1223
        %v2274 = vunpack.c.l.b16 %v1224
        %v2275 = vunpack.c.h.b16 %v1224
        %v2276 = vunpack.c.l.b16 %v1225
        %v2277 = vunpack.c.h.b16 %v1225
        %v2278 = vunpack.c.l.b16 %v1226
        %v2279 = vunpack.c.h.b16 %v1226
        %v2280 = vunpack.c.l.b16 %v1227
        %v2281 = vunpack.c.h.b16 %v1227
        %v2282 = vunpack.c.l.b16 %v1228
        %v2283 = vunpack.c.h.b16 %v1228
        %v2284 = vunpack.c.l.b16 %v1229
        %v2285 = vunpack.c.h.b16 %v1229
        %v2286 = vunpack.c.l.b16 %v1230
        %v2287 = vunpack.c.h.b16 %v1230
        %v2288 = vunpack.c.l.b16 %v1231
        %v2289 = vunpack.c.h.b16 %v1231
        %v2290 = vunpack.c.l.b16 %v1232
        %v2291 = vunpack.c.h.b16 %v1232
        %v2292 = vunpack.c.l.b16 %v1233
        %v2293 = vunpack.c.h.b16 %v1233
        %v2294 = vunpack.c.l.b16 %v1234
        %v2295 = vunpack.c.h.b16 %v1234
        %v2296 = vunpack.c.l.b16 %v1235
        %v2297 = vunpack.c.h.b16 %v1235
        %v2298 = vunpack.c.l.b16 %v1236
        %v2299 = vunpack.c.h.b16 %v1236
        %v2300 = vunpack.c.l.b16 %v1237
        %v2301 = vunpack.c.h.b16 %v1237
        %v2302 = vunpack.c.l.b16 %v1238
        %v2303 = vunpack.c.h.b16 %v1238
        %v2304 = vunpack.c.l.b16 %v1239
        %v2305 = vunpack.c.h.b16 %v1239
        %v2306 = vunpack.c.l.b16 %v1240
        %v2307 = vunpack.c.h.b16 %v1240
        %v2308 = vunpack.c.l.b16 %v1241
        %v2309 = vunpack.c.h.b16 %v1241
        %v2310 = vunpack.c.l.b16 %v1242
        %v2311 = vunpack.c.h.b16 %v1242
        %v2312 = vunpack.c.l.b16 %v1243
        %v2313 = vunpack.c.h.b16 %v1243
        %v2314 = vunpack.c.l.b16 %v1244
        %v2315 = vunpack.c.h.b16 %v1244
        %v2316 = vunpack.c.l.b16 %v1245
        %v2317 = vunpack.c.h.b16 %v1245
        %v2318 = vunpack.c.l.b16 %v1246
        %v2319 = vunpack.c.h.b16 %v1246
        %v2320 = vunpack.c.l.b16 %v1247
        %v2321 = vunpack.c.h.b16 %v1247
        %v2322 = vunpack.c.l.b16 %v1248
        %v2323 = vunpack.c.h.b16 %v1248
        %v2324 = vunpack.c.l.b16 %v1249
        %v2325 = vunpack.c.h.b16 %v1249
        %v2326 = vunpack.c.l.b16 %v1250
        %v2327 = vunpack.c.h.b16 %v1250
        %v2328 = vunpack.c.l.b16 %v1251
        %v2329 = vunpack.c.h.b16 %v1251
        %v2330 = vunpack.c.l.b16 %v1252
        %v2331 = vunpack.c.h.b16 %v1252
        %v2332 = vunpack.c.l.b16 %v1253
        %v2333 = vunpack.c.h.b16 %v1253
        %v2334 = vunpack.c.l.b16 %v1254
        %v2335 = vunpack.c.h.b16 %v1254
        %v2336 = vunpack.c.l.b16 %v1255
        %v2337 = vunpack.c.h.b16 %v1255
        %v2338 = vunpack.c.l.b16 %v1256
        %v2339 = vunpack.c.h.b16 %v1256
        %v2340 = vunpack.c.l.b16 %v1257
        %v2341 = vunpack.c.h.b16 %v1257
        %v2342 = vunpack.c.l.b16 %v1258
        %v2343 = vunpack.c.h.b16 %v1258
        %v2344 = vunpack.c.l.b16 %v1259
        %v2345 = vunpack.c.h.b16 %v1259
        %v2346 = vunpack.c.l.b16 %v1260
        %v2347 = vunpack.c.h.b16 %v1260
        %v2348 = vunpack.c.l.b16 %v1261
        %v2349 = vunpack.c.h.b16 %v1261
        %v2350 = vunpack.c.l.b16 %v1262
        %v2351 = vunpack.c.h.b16 %v1262
        %v2352 = vunpack.c.l.b16 %v1263
        %v2353 = vunpack.c.h.b16 %v1263
        %v2354 = vunpack.c.l.b16 %v1264
        %v2355 = vunpack.c.h.b16 %v1264
        %v2356 = vunpack.c.l.b16 %v1265
        %v2357 = vunpack.c.h.b16 %v1265
        %v2358 = vunpack.c.l.b16 %v1266
        %v2359 = vunpack.c.h.b16 %v1266
        %v2360 = vunpack.c.l.b16 %v1267
        %v2361 = vunpack.c.h.b16 %v1267
        %v2362 = vunpack.c.l.b16 %v1268
        %v2363 = vunpack.c.h.b16 %v1268
        %v2364 = vunpack.c.l.b16 %v1269
        %v2365 = vunpack.c.h.b16 %v1269
        %v2366 = vunpack.c.l.b16 %v1270
        %v2367 = vunpack.c.h.b16 %v1270
        %v2368 = vunpack.c.l.b16 %v1271
        %v2369 = vunpack.c.h.b16 %v1271
        %v2370 = vunpack.c.l.b16 %v1272
        %v2371 = vunpack.c.h.b16 %v1272
        %v2372 = vunpack.c.l.b16 %v1273
        %v2373 = vunpack.c.h.b16 %v1273
        %v2374 = vunpack.c.l.b16 %v1274
        %v2375 = vunpack.c.h.b16 %v1274
        %v2376 = vunpack.c.l.b16 %v1275
        %v2377 = vunpack.c.h.b16 %v1275
        %v2378 = vunpack.c.l.b16 %v1276
        %v2379 = vunpack.c.h.b16 %v1276
        %v2380 = vunpack.c.l.b16 %v1277
        %v2381 = vunpack.c.h.b16 %v1277
        %v2382 = vunpack.c.l.b16 %v1278
        %v2383 = vunpack.c.h.b16 %v1278
        %v2384 = vunpack.c.l.b16 %v1279
        %v2385 = vunpack.c.h.b16 %v1279
        %v2386 = vunpack.c.l.b16 %v1280
        %v2387 = vunpack.c.h.b16 %v1280
        %v2388 = vunpack.c.l.b16 %v1281
        %v2389 = vunpack.c.h.b16 %v1281
        %v2390 = vunpack.c.l.b16 %v1282
        %v2391 = vunpack.c.h.b16 %v1282
        %v2392 = vunpack.c.l.b16 %v1283
        %v2393 = vunpack.c.h.b16 %v1283
        %v2394 = vunpack.c.l.b16 %v1284
        %v2395 = vunpack.c.h.b16 %v1284
        %v2396 = vunpack.c.l.b16 %v1285
        %v2397 = vunpack.c.h.b16 %v1285
        %v2398 = vunpack.c.l.b16 %v1286
        %v2399 = vunpack.c.h.b16 %v1286
        %v2400 = vunpack.c.l.b16 %v1287
        %v2401 = vunpack.c.h.b16 %v1287
        %v2402 = vunpack.c.l.b16 %v1288
        %v2403 = vunpack.c.h.b16 %v1288
        %v2404 = vunpack.c.l.b16 %v1289
        %v2405 = vunpack.c.h.b16 %v1289
        %v2406 = vunpack.c.l.b16 %v1290
        %v2407 = vunpack.c.h.b16 %v1290
        %v2408 = vunpack.c.l.b16 %v1291
        %v2409 = vunpack.c.h.b16 %v1291
        %v2410 = vunpack.c.l.b16 %v1292
        %v2411 = vunpack.c.h.b16 %v1292
        %v2412 = vunpack.c.l.b16 %v1293
        %v2413 = vunpack.c.h.b16 %v1293
        %v2414 = vunpack.c.l.b16 %v1294
        %v2415 = vunpack.c.h.b16 %v1294
        %v2416 = vunpack.c.l.b16 %v1295
        %v2417 = vunpack.c.h.b16 %v1295
        %v2418 = vunpack.c.l.b16 %v1296
        %v2419 = vunpack.c.h.b16 %v1296
        %v2420 = vunpack.c.l.b16 %v1297
        %v2421 = vunpack.c.h.b16 %v1297
        %v2422 = vunpack.c.l.b16 %v1298
        %v2423 = vunpack.c.h.b16 %v1298
        %v2424 = vunpack.c.l.b16 %v1299
        %v2425 = vunpack.c.h.b16 %v1299
        %v2426 = vunpack.c.l.b16 %v1300
        %v2427 = vunpack.c.h.b16 %v1300
        %v2428 = vunpack.c.l.b16 %v1301
        %v2429 = vunpack.c.h.b16 %v1301
        %v2430 = vunpack.c.l.b16 %v1302
        %v2431 = vunpack.c.h.b16 %v1302
        %v2432 = vunpack.c.l.b16 %v1303
        %v2433 = vunpack.c.h.b16 %v1303
        %v2434 = vunpack.c.l.b16 %v1304
        %v2435 = vunpack.c.h.b16 %v1304
        %v2436 = vunpack.c.l.b16 %v1305
        %v2437 = vunpack.c.h.b16 %v1305
        %v2438 = vunpack.c.l.b16 %v1306
        %v2439 = vunpack.c.h.b16 %v1306
        %v2440 = vunpack.c.l.b16 %v1307
        %v2441 = vunpack.c.h.b16 %v1307
        %v2442 = vunpack.c.l.b16 %v1308
        %v2443 = vunpack.c.h.b16 %v1308
        %v2444 = vunpack.c.l.b16 %v1309
        %v2445 = vunpack.c.h.b16 %v1309
        %v2446 = vunpack.c.l.b16 %v1310
        %v2447 = vunpack.c.h.b16 %v1310
        %v2448 = vunpack.c.l.b16 %v1311
        %v2449 = vunpack.c.h.b16 %v1311
        %v2450 = vunpack.c.l.b16 %v1312
        %v2451 = vunpack.c.h.b16 %v1312
        %v2452 = vunpack.c.l.b16 %v1313
        %v2453 = vunpack.c.h.b16 %v1313
        %v2454 = vunpack.c.l.b16 %v1314
        %v2455 = vunpack.c.h.b16 %v1314
        %v2456 = vunpack.c.l.b16 %v1315
        %v2457 = vunpack.c.h.b16 %v1315
        %v2458 = vunpack.c.l.b16 %v1316
        %v2459 = vunpack.c.h.b16 %v1316
        %v2460 = vunpack.c.l.b16 %v1317
        %v2461 = vunpack.c.h.b16 %v1317
        %v2462 = vunpack.c.l.b16 %v1318
        %v2463 = vunpack.c.h.b16 %v1318
        %v2464 = vunpack.c.l.b16 %v1319
        %v2465 = vunpack.c.h.b16 %v1319
        %v2466 = vunpack.c.l.b16 %v1320
        %v2467 = vunpack.c.h.b16 %v1320
        %v2468 = vunpack.c.l.b16 %v1321
        %v2469 = vunpack.c.h.b16 %v1321
        %v2470 = vunpack.c.l.b16 %v1322
        %v2471 = vunpack.c.h.b16 %v1322
        %v2472 = vunpack.c.l.b16 %v1323
        %v2473 = vunpack.c.h.b16 %v1323
        %v2474 = vunpack.c.l.b16 %v1324
        %v2475 = vunpack.c.h.b16 %v1324
        %v2476 = vunpack.c.l.b16 %v1325
        %v2477 = vunpack.c.h.b16 %v1325
        %v2478 = vunpack.c.l.b16 %v1326
        %v2479 = vunpack.c.h.b16 %v1326
        %v2480 = vunpack.c.l.b16 %v1327
        %v2481 = vunpack.c.h.b16 %v1327
        %v2482 = vunpack.c.l.b16 %v1328
        %v2483 = vunpack.c.h.b16 %v1328
        %v2484 = vunpack.c.l.b16 %v1329
        %v2485 = vunpack.c.h.b16 %v1329
        %v2486 = vunpack.c.l.b16 %v1330
        %v2487 = vunpack.c.h.b16 %v1330
        %v2488 = vunpack.c.l.b16 %v1331
        %v2489 = vunpack.c.h.b16 %v1331
        %v2490 = vunpack.c.l.b16 %v1332
        %v2491 = vunpack.c.h.b16 %v1332
        %v2492 = vunpack.c.l.b16 %v1333
        %v2493 = vunpack.c.h.b16 %v1333
        %v2494 = vunpack.c.l.b16 %v1334
        %v2495 = vunpack.c.h.b16 %v1334
        %v2496 = vunpack.c.l.b16 %v1335
        %v2497 = vunpack.c.h.b16 %v1335
        %v2498 = vunpack.c.l.b16 %v1336
        %v2499 = vunpack.c.h.b16 %v1336
        %v2500 = vunpack.c.l.b16 %v1337
        %v2501 = vunpack.c.h.b16 %v1337
        %v2502 = vunpack.c.l.b16 %v1338
        %v2503 = vunpack.c.h.b16 %v1338
        %v2504 = vunpack.c.l.b16 %v1339
        %v2505 = vunpack.c.h.b16 %v1339
        %v2506 = vunpack.c.l.b16 %v1340
        %v2507 = vunpack.c.h.b16 %v1340
        %v2508 = vunpack.c.l.b16 %v1341
        %v2509 = vunpack.c.h.b16 %v1341
        %v2510 = vunpack.c.l.b16 %v1342
        %v2511 = vunpack.c.h.b16 %v1342
        %v2512 = vunpack.c.l.b16 %v1343
        %v2513 = vunpack.c.h.b16 %v1343
        %v2514 = vunpack.c.l.b16 %v1344
        %v2515 = vunpack.c.h.b16 %v1344
        %v2516 = vunpack.c.l.b16 %v1345
        %v2517 = vunpack.c.h.b16 %v1345
        %v2518 = vunpack.c.l.b16 %v1346
        %v2519 = vunpack.c.h.b16 %v1346
        %v2520 = vunpack.c.l.b16 %v1347
        %v2521 = vunpack.c.h.b16 %v1347
        %v2522 = vunpack.c.l.b16 %v1348
        %v2523 = vunpack.c.h.b16 %v1348
        %v2524 = vunpack.c.l.b16 %v1349
        %v2525 = vunpack.c.h.b16 %v1349
        %v2526 = vunpack.c.l.b16 %v1350
        %v2527 = vunpack.c.h.b16 %v1350
        %v2528 = vunpack.c.l.b16 %v1351
        %v2529 = vunpack.c.h.b16 %v1351
        %v2530 = vunpack.c.l.b16 %v1352
        %v2531 = vunpack.c.h.b16 %v1352
        %v2532 = vunpack.c.l.b16 %v1353
        %v2533 = vunpack.c.h.b16 %v1353
        %v2534 = vunpack.c.l.b16 %v1354
        %v2535 = vunpack.c.h.b16 %v1354
        %v2536 = vunpack.c.l.b16 %v1355
        %v2537 = vunpack.c.h.b16 %v1355
        %v2538 = vunpack.c.l.b16 %v1356
        %v2539 = vunpack.c.h.b16 %v1356
        %v2540 = vunpack.c.l.b16 %v1357
        %v2541 = vunpack.c.h.b16 %v1357
        %v2542 = vunpack.c.l.b16 %v1358
        %v2543 = vunpack.c.h.b16 %v1358
        %v2544 = vunpack.c.l.b16 %v1359
        %v2545 = vunpack.c.h.b16 %v1359
        %v2546 = vunpack.c.l.b16 %v1360
        %v2547 = vunpack.c.h.b16 %v1360
        %v2548 = vunpack.c.l.b16 %v1361
        %v2549 = vunpack.c.h.b16 %v1361
        %v2550 = vunpack.c.l.b16 %v1362
        %v2551 = vunpack.c.h.b16 %v1362
        %v2552 = vunpack.c.l.b16 %v1363
        %v2553 = vunpack.c.h.b16 %v1363
        %v2554 = vunpack.c.l.b16 %v1364
        %v2555 = vunpack.c.h.b16 %v1364
        %v2556 = vunpack.c.l.b16 %v1365
        %v2557 = vunpack.c.h.b16 %v1365
        %v2558 = vunpack.c.l.b16 %v1366
        %v2559 = vunpack.c.h.b16 %v1366
        %v2560 = vunpack.c.l.b16 %v1367
        %v2561 = vunpack.c.h.b16 %v1367
        %v2562 = vunpack.c.l.b16 %v1368
        %v2563 = vunpack.c.h.b16 %v1368
        %v2564 = vunpack.c.l.b16 %v1369
        %v2565 = vunpack.c.h.b16 %v1369
        %v2566 = vunpack.c.l.b16 %v1370
        %v2567 = vunpack.c.h.b16 %v1370
        %v2568 = vunpack.c.l.b16 %v1371
        %v2569 = vunpack.c.h.b16 %v1371
        %v2570 = vunpack.c.l.b16 %v1372
        %v2571 = vunpack.c.h.b16 %v1372
        %v2572 = vunpack.c.l.b16 %v1373
        %v2573 = vunpack.c.h.b16 %v1373
        %v2574 = vunpack.c.l.b16 %v1374
        %v2575 = vunpack.c.h.b16 %v1374
        %v2576 = vunpack.c.l.b16 %v1375
        %v2577 = vunpack.c.h.b16 %v1375
        %v2578 = vunpack.c.l.b16 %v1376
        %v2579 = vunpack.c.h.b16 %v1376
        %v2580 = vunpack.c.l.b16 %v1377
        %v2581 = vunpack.c.h.b16 %v1377
        %v2582 = vunpack.c.l.b16 %v1378
        %v2583 = vunpack.c.h.b16 %v1378
        %v2584 = vunpack.c.l.b16 %v1379
        %v2585 = vunpack.c.h.b16 %v1379
        %v2586 = vunpack.c.l.b16 %v1380
        %v2587 = vunpack.c.h.b16 %v1380
        %v2588 = vunpack.c.l.b16 %v1381
        %v2589 = vunpack.c.h.b16 %v1381
        %v2590 = vunpack.c.l.b16 %v1382
        %v2591 = vunpack.c.h.b16 %v1382
        %v2592 = vunpack.c.l.b16 %v1383
        %v2593 = vunpack.c.h.b16 %v1383
        %v2594 = vunpack.c.l.b16 %v1384
        %v2595 = vunpack.c.h.b16 %v1384
        %v2596 = vunpack.c.l.b16 %v1385
        %v2597 = vunpack.c.h.b16 %v1385
        %v2598 = vunpack.c.l.b16 %v1386
        %v2599 = vunpack.c.h.b16 %v1386
        %v2600 = vunpack.c.l.b16 %v1387
        %v2601 = vunpack.c.h.b16 %v1387
        %v2602 = vunpack.c.l.b16 %v1388
        %v2603 = vunpack.c.h.b16 %v1388
        %v2604 = vunpack.c.l.b16 %v1389
        %v2605 = vunpack.c.h.b16 %v1389
        %v2606 = vpack.c.b16 %v1850, %v1838
        %v2607 = vpack.c.b16 %v1851, %v1839
        %v2608 = vpack.c.b16 %v1852, %v1840
        %v2609 = vpack.c.b16 %v1853, %v1841
        %v2610 = vpack.c.b16 %v1854, %v1842
        %v2611 = vpack.c.b16 %v1855, %v1843
        %v2612 = vpack.c.b16 %v1856, %v1844
        %v2613 = vpack.c.b16 %v1857, %v1845
        %v2614 = vpack.c.b16 %v1858, %v1846
        %v2615 = vpack.c.b16 %v1859, %v1847
        %v2616 = vpack.c.b16 %v1860, %v1848
        %v2617 = vpack.c.b16 %v1861, %v1849
        %v2618 = vpack.c.b16 %v1874, %v1862
        %v2619 = vpack.c.b16 %v1875, %v1863
        %v2620 = vpack.c.b16 %v1876, %v1864
        %v2621 = vpack.c.b16 %v1877, %v1865
        %v2622 = vpack.c.b16 %v1878, %v1866
        %v2623 = vpack.c.b16 %v1879, %v1867
        %v2624 = vpack.c.b16 %v1880, %v1868
        %v2625 = vpack.c.b16 %v1881, %v1869
        %v2626 = vpack.c.b16 %v1882, %v1870
        %v2627 = vpack.c.b16 %v1883, %v1871
        %v2628 = vpack.c.b16 %v1884, %v1872
        %v2629 = vpack.c.b16 %v1885, %v1873
        %v2630 = vpack.c.b16 %v1898, %v1886
        %v2631 = vpack.c.b16 %v1899, %v1887
        %v2632 = vpack.c.b16 %v1900, %v1888
        %v2633 = vpack.c.b16 %v1901, %v1889
        %v2634 = vpack.c.b16 %v1902, %v1890
        %v2635 = vpack.c.b16 %v1903, %v1891
        %v2636 = vpack.c.b16 %v1904, %v1892
        %v2637 = vpack.c.b16 %v1905, %v1893
        %v2638 = vpack.c.b16 %v1906, %v1894
        %v2639 = vpack.c.b16 %v1907, %v1895
        %v2640 = vpack.c.b16 %v1908, %v1896
        %v2641 = vpack.c.b16 %v1909, %v1897
        %v2642 = vpack.c.b16 %v1922, %v1910
        %v2643 = vpack.c.b16 %v1923, %v1911
        %v2644 = vpack.c.b16 %v1924, %v1912
        %v2645 = vpack.c.b16 %v1925, %v1913
        %v2646 = vpack.c.b16 %v1926, %v1914
        %v2647 = vpack.c.b16 %v1927, %v1915
        %v2648 = vpack.c.b16 %v1928, %v1916
        %v2649 = vpack.c.b16 %v1929, %v1917
        %v2650 = vpack.c.b16 %v1930, %v1918
        %v2651 = vpack.c.b16 %v1931, %v1919
        %v2652 = vpack.c.b16 %v1932, %v1920
        %v2653 = vpack.c.b16 %v1933, %v1921
        %v2654 = vpack.c.b16 %v1946, %v1934
        %v2655 = vpack.c.b16 %v1947, %v1935
        %v2656 = vpack.c.b16 %v1948, %v1936
        %v2657 = vpack.c.b16 %v1949, %v1937
        %v2658 = vpack.c.b16 %v1950, %v1938
        %v2659 = vpack.c.b16 %v1951, %v1939
        %v2660 = vpack.c.b16 %v1952, %v1940
        %v2661 = vpack.c.b16 %v1953, %v1941
        %v2662 = vpack.c.b16 %v1954, %v1942
        %v2663 = vpack.c.b16 %v1955, %v1943
        %v2664 = vpack.c.b16 %v1956, %v1944
        %v2665 = vpack.c.b16 %v1957, %v1945
        %v2666 = vpack.c.b16 %v1970, %v1958
        %v2667 = vpack.c.b16 %v1971, %v1959
        %v2668 = vpack.c.b16 %v1972, %v1960
        %v2669 = vpack.c.b16 %v1973, %v1961
        %v2670 = vpack.c.b16 %v1974, %v1962
        %v2671 = vpack.c.b16 %v1975, %v1963
        %v2672 = vpack.c.b16 %v1976, %v1964
        %v2673 = vpack.c.b16 %v1977, %v1965
        %v2674 = vpack.c.b16 %v1978, %v1966
        %v2675 = vpack.c.b16 %v1979, %v1967
        %v2676 = vpack.c.b16 %v1980, %v1968
        %v2677 = vpack.c.b16 %v1981, %v1969
        %v2678 = vpack.c.b16 %v1994, %v1982
        %v2679 = vpack.c.b16 %v1995, %v1983
        %v2680 = vpack.c.b16 %v1996, %v1984
        %v2681 = vpack.c.b16 %v1997, %v1985
        %v2682 = vpack.c.b16 %v1998, %v1986
        %v2683 = vpack.c.b16 %v1999, %v1987
        %v2684 = vpack.c.b16 %v2000, %v1988
        %v2685 = vpack.c.b16 %v2001, %v1989
        %v2686 = vpack.c.b16 %v2002, %v1990
        %v2687 = vpack.c.b16 %v2003, %v1991
        %v2688 = vpack.c.b16 %v2004, %v1992
        %v2689 = vpack.c.b16 %v2005, %v1993
        %v2690 = vpack.c.b16 %v2018, %v2006
        %v2691 = vpack.c.b16 %v2019, %v2007
        %v2692 = vpack.c.b16 %v2020, %v2008
        %v2693 = vpack.c.b16 %v2021, %v2009
        %v2694 = vpack.c.b16 %v2022, %v2010
        %v2695 = vpack.c.b16 %v2023, %v2011
        %v2696 = vpack.c.b16 %v2024, %v2012
        %v2697 = vpack.c.b16 %v2025, %v2013
        %v2698 = vpack.c.b16 %v2026, %v2014
        %v2699 = vpack.c.b16 %v2027, %v2015
        %v2700 = vpack.c.b16 %v2028, %v2016
        %v2701 = vpack.c.b16 %v2029, %v2017
        %v2702 = vpack.c.b16 %v2042, %v2030
        %v2703 = vpack.c.b16 %v2043, %v2031
        %v2704 = vpack.c.b16 %v2044, %v2032
        %v2705 = vpack.c.b16 %v2045, %v2033
        %v2706 = vpack.c.b16 %v2046, %v2034
        %v2707 = vpack.c.b16 %v2047, %v2035
        %v2708 = vpack.c.b16 %v2048, %v2036
        %v2709 = vpack.c.b16 %v2049, %v2037
        %v2710 = vpack.c.b16 %v2050, %v2038
        %v2711 = vpack.c.b16 %v2051, %v2039
        %v2712 = vpack.c.b16 %v2052, %v2040
        %v2713 = vpack.c.b16 %v2053, %v2041
        %v2714 = vpack.c.b16 %v2066, %v2054
        %v2715 = vpack.c.b16 %v2067, %v2055
        %v2716 = vpack.c.b16 %v2068, %v2056
        %v2717 = vpack.c.b16 %v2069, %v2057
        %v2718 = vpack.c.b16 %v2070, %v2058
        %v2719 = vpack.c.b16 %v2071, %v2059
        %v2720 = vpack.c.b16 %v2072, %v2060
        %v2721 = vpack.c.b16 %v2073, %v2061
        %v2722 = vpack.c.b16 %v2074, %v2062
        %v2723 = vpack.c.b16 %v2075, %v2063
        %v2724 = vpack.c.b16 %v2076, %v2064
        %v2725 = vpack.c.b16 %v2077, %v2065
        %v2726 = vpack.c.b16 %v2090, %v2078
        %v2727 = vpack.c.b16 %v2091, %v2079
        %v2728 = vpack.c.b16 %v2092, %v2080
        %v2729 = vpack.c.b16 %v2093, %v2081
        %v2730 = vpack.c.b16 %v2094, %v2082
        %v2731 = vpack.c.b16 %v2095, %v2083
        %v2732 = vpack.c.b16 %v2096, %v2084
        %v2733 = vpack.c.b16 %v2097, %v2085
        %v2734 = vpack.c.b16 %v2098, %v2086
        %v2735 = vpack.c.b16 %v2099, %v2087
        %v2736 = vpack.c.b16 %v2100, %v2088
        %v2737 = vpack.c.b16 %v2101, %v2089
        %v2738 = vpack.c.b16 %v2114, %v2102
        %v2739 = vpack.c.b16 %v2115, %v2103
        %v2740 = vpack.c.b16 %v2116, %v2104
        %v2741 = vpack.c.b16 %v2117, %v2105
        %v2742 = vpack.c.b16 %v2118, %v2106
        %v2743 = vpack.c.b16 %v2119, %v2107
        %v2744 = vpack.c.b16 %v2120, %v2108
        %v2745 = vpack.c.b16 %v2121, %v2109
        %v2746 = vpack.c.b16 %v2122, %v2110
        %v2747 = vpack.c.b16 %v2123, %v2111
        %v2748 = vpack.c.b16 %v2124, %v2112
        %v2749 = vpack.c.b16 %v2125, %v2113
        %v2750 = vpack.c.b16 %v2138, %v2126
        %v2751 = vpack.c.b16 %v2139, %v2127
        %v2752 = vpack.c.b16 %v2140, %v2128
        %v2753 = vpack.c.b16 %v2141, %v2129
        %v2754 = vpack.c.b16 %v2142, %v2130
        %v2755 = vpack.c.b16 %v2143, %v2131
        %v2756 = vpack.c.b16 %v2144, %v2132
        %v2757 = vpack.c.b16 %v2145, %v2133
        %v2758 = vpack.c.b16 %v2146, %v2134
        %v2759 = vpack.c.b16 %v2147, %v2135
        %v2760 = vpack.c.b16 %v2148, %v2136
        %v2761 = vpack.c.b16 %v2149, %v2137
        %v2762 = vpack.c.b16 %v2162, %v2150
        %v2763 = vpack.c.b16 %v2163, %v2151
        %v2764 = vpack.c.b16 %v2164, %v2152
        %v2765 = vpack.c.b16 %v2165, %v2153
        %v2766 = vpack.c.b16 %v2166, %v2154
        %v2767 = vpack.c.b16 %v2167, %v2155
        %v2768 = vpack.c.b16 %v2168, %v2156
        %v2769 = vpack.c.b16 %v2169, %v2157
        %v2770 = vpack.c.b16 %v2170, %v2158
        %v2771 = vpack.c.b16 %v2171, %v2159
        %v2772 = vpack.c.b16 %v2172, %v2160
        %v2773 = vpack.c.b16 %v2173, %v2161
        %v2774 = vpack.c.b16 %v2186, %v2174
        %v2775 = vpack.c.b16 %v2187, %v2175
        %v2776 = vpack.c.b16 %v2188, %v2176
        %v2777 = vpack.c.b16 %v2189, %v2177
        %v2778 = vpack.c.b16 %v2190, %v2178
        %v2779 = vpack.c.b16 %v2191, %v2179
        %v2780 = vpack.c.b16 %v2192, %v2180
        %v2781 = vpack.c.b16 %v2193, %v2181
        %v2782 = vpack.c.b16 %v2194, %v2182
        %v2783 = vpack.c.b16 %v2195, %v2183
        %v2784 = vpack.c.b16 %v2196, %v2184
        %v2785 = vpack.c.b16 %v2197, %v2185
        %v2786 = vpack.c.b16 %v2210, %v2198
        %v2787 = vpack.c.b16 %v2211, %v2199
        %v2788 = vpack.c.b16 %v2212, %v2200
        %v2789 = vpack.c.b16 %v2213, %v2201
        %v2790 = vpack.c.b16 %v2214, %v2202
        %v2791 = vpack.c.b16 %v2215, %v2203
        %v2792 = vpack.c.b16 %v2216, %v2204
        %v2793 = vpack.c.b16 %v2217, %v2205
        %v2794 = vpack.c.b16 %v2218, %v2206
        %v2795 = vpack.c.b16 %v2219, %v2207
        %v2796 = vpack.c.b16 %v2220, %v2208
        %v2797 = vpack.c.b16 %v2221, %v2209
        %v2798 = vpack.c.b16 %v2234, %v2222
        %v2799 = vpack.c.b16 %v2235, %v2223
        %v2800 = vpack.c.b16 %v2236, %v2224
        %v2801 = vpack.c.b16 %v2237, %v2225
        %v2802 = vpack.c.b16 %v2238, %v2226
        %v2803 = vpack.c.b16 %v2239, %v2227
        %v2804 = vpack.c.b16 %v2240, %v2228
        %v2805 = vpack.c.b16 %v2241, %v2229
        %v2806 = vpack.c.b16 %v2242, %v2230
        %v2807 = vpack.c.b16 %v2243, %v2231
        %v2808 = vpack.c.b16 %v2244, %v2232
        %v2809 = vpack.c.b16 %v2245, %v2233
        %v2810 = vpack.c.b16 %v2258, %v2246
        %v2811 = vpack.c.b16 %v2259, %v2247
        %v2812 = vpack.c.b16 %v2260, %v2248
        %v2813 = vpack.c.b16 %v2261, %v2249
        %v2814 = vpack.c.b16 %v2262, %v2250
        %v2815 = vpack.c.b16 %v2263, %v2251
        %v2816 = vpack.c.b16 %v2264, %v2252
        %v2817 = vpack.c.b16 %v2265, %v2253
        %v2818 = vpack.c.b16 %v2266, %v2254
        %v2819 = vpack.c.b16 %v2267, %v2255
        %v2820 = vpack.c.b16 %v2268, %v2256
        %v2821 = vpack.c.b16 %v2269, %v2257
        %v2822 = vpack.c.b16 %v2282, %v2270
        %v2823 = vpack.c.b16 %v2283, %v2271
        %v2824 = vpack.c.b16 %v2284, %v2272
        %v2825 = vpack.c.b16 %v2285, %v2273
        %v2826 = vpack.c.b16 %v2286, %v2274
        %v2827 = vpack.c.b16 %v2287, %v2275
        %v2828 = vpack.c.b16 %v2288, %v2276
        %v2829 = vpack.c.b16 %v2289, %v2277
        %v2830 = vpack.c.b16 %v2290, %v2278
        %v2831 = vpack.c.b16 %v2291, %v2279
        %v2832 = vpack.c.b16 %v2292, %v2280
        %v2833 = vpack.c.b16 %v2293, %v2281
        %v2834 = vpack.c.b16 %v2306, %v2294
        %v2835 = vpack.c.b16 %v2307, %v2295
        %v2836 = vpack.c.b16 %v2308, %v2296
        %v2837 = vpack.c.b16 %v2309, %v2297
        %v2838 = vpack.c.b16 %v2310, %v2298
        %v2839 = vpack.c.b16 %v2311, %v2299
        %v2840 = vpack.c.b16 %v2312, %v2300
        %v2841 = vpack.c.b16 %v2313, %v2301
        %v2842 = vpack.c.b16 %v2314, %v2302
        %v2843 = vpack.c.b16 %v2315, %v2303
        %v2844 = vpack.c.b16 %v2316, %v2304
        %v2845 = vpack.c.b16 %v2317, %v2305
        %v2846 = vpack.c.b16 %v2330, %v2318
        %v2847 = vpack.c.b16 %v2331, %v2319
        %v2848 = vpack.c.b16 %v2332, %v2320
        %v2849 = vpack.c.b16 %v2333, %v2321
        %v2850 = vpack.c.b16 %v2334, %v2322
        %v2851 = vpack.c.b16 %v2335, %v2323
        %v2852 = vpack.c.b16 %v2336, %v2324
        %v2853 = vpack.c.b16 %v2337, %v2325
        %v2854 = vpack.c.b16 %v2338, %v2326
        %v2855 = vpack.c.b16 %v2339, %v2327
        %v2856 = vpack.c.b16 %v2340, %v2328
        %v2857 = vpack.c.b16 %v2341, %v2329
        %v2858 = vpack.c.b16 %v2354, %v2342
        %v2859 = vpack.c.b16 %v2355, %v2343
        %v2860 = vpack.c.b16 %v2356, %v2344
        %v2861 = vpack.c.b16 %v2357, %v2345
        %v2862 = vpack.c.b16 %v2358, %v2346
        %v2863 = vpack.c.b16 %v2359, %v2347
        %v2864 = vpack.c.b16 %v2360, %v2348
        %v2865 = vpack.c.b16 %v2361, %v2349
        %v2866 = vpack.c.b16 %v2362, %v2350
        %v2867 = vpack.c.b16 %v2363, %v2351
        %v2868 = vpack.c.b16 %v2364, %v2352
        %v2869 = vpack.c.b16 %v2365, %v2353
        %v2870 = vpack.c.b16 %v2378, %v2366
        %v2871 = vpack.c.b16 %v2379, %v2367
        %v2872 = vpack.c.b16 %v2380, %v2368
        %v2873 = vpack.c.b16 %v2381, %v2369
        %v2874 = vpack.c.b16 %v2382, %v2370
        %v2875 = vpack.c.b16 %v2383, %v2371
        %v2876 = vpack.c.b16 %v2384, %v2372
        %v2877 = vpack.c.b16 %v2385, %v2373
        %v2878 = vpack.c.b16 %v2386, %v2374
        %v2879 = vpack.c.b16 %v2387, %v2375
        %v2880 = vpack.c.b16 %v2388, %v2376
        %v2881 = vpack.c.b16 %v2389, %v2377
        %v2882 = vpack.c.b16 %v2402, %v2390
        %v2883 = vpack.c.b16 %v2403, %v2391
        %v2884 = vpack.c.b16 %v2404, %v2392
        %v2885 = vpack.c.b16 %v2405, %v2393
        %v2886 = vpack.c.b16 %v2406, %v2394
        %v2887 = vpack.c.b16 %v2407, %v2395
        %v2888 = vpack.c.b16 %v2408, %v2396
        %v2889 = vpack.c.b16 %v2409, %v2397
        %v2890 = vpack.c.b16 %v2410, %v2398
        %v2891 = vpack.c.b16 %v2411, %v2399
        %v2892 = vpack.c.b16 %v2412, %v2400
        %v2893 = vpack.c.b16 %v2413, %v2401
        %v2894 = vpack.c.b16 %v2426, %v2414
        %v2895 = vpack.c.b16 %v2427, %v2415
        %v2896 = vpack.c.b16 %v2428, %v2416
        %v2897 = vpack.c.b16 %v2429, %v2417
        %v2898 = vpack.c.b16 %v2430, %v2418
        %v2899 = vpack.c.b16 %v2431, %v2419
        %v2900 = vpack.c.b16 %v2432, %v2420
        %v2901 = vpack.c.b16 %v2433, %v2421
        %v2902 = vpack.c.b16 %v2434, %v2422
        %v2903 = vpack.c.b16 %v2435, %v2423
        %v2904 = vpack.c.b16 %v2436, %v2424
        %v2905 = vpack.c.b16 %v2437, %v2425
        %v2906 = vpack.c.b16 %v2450, %v2438
        %v2907 = vpack.c.b16 %v2451, %v2439
        %v2908 = vpack.c.b16 %v2452, %v2440
        %v2909 = vpack.c.b16 %v2453, %v2441
        %v2910 = vpack.c.b16 %v2454, %v2442
        %v2911 = vpack.c.b16 %v2455, %v2443
        %v2912 = vpack.c.b16 %v2456, %v2444
        %v2913 = vpack.c.b16 %v2457, %v2445
        %v2914 = vpack.c.b16 %v2458, %v2446
        %v2915 = vpack.c.b16 %v2459, %v2447
        %v2916 = vpack.c.b16 %v2460, %v2448
        %v2917 = vpack.c.b16 %v2461, %v2449
        %v2918 = vpack.c.b16 %v2474, %v2462
        %v2919 = vpack.c.b16 %v2475, %v2463
        %v2920 = vpack.c.b16 %v2476, %v2464
        %v2921 = vpack.c.b16 %v2477, %v2465
        %v2922 = vpack.c.b16 %v2478, %v2466
        %v2923 = vpack.c.b16 %v2479, %v2467
        %v2924 = vpack.c.b16 %v2480, %v2468
        %v2925 = vpack.c.b16 %v2481, %v2469
        %v2926 = vpack.c.b16 %v2482, %v2470
        %v2927 = vpack.c.b16 %v2483, %v2471
        %v2928 = vpack.c.b16 %v2484, %v2472
        %v2929 = vpack.c.b16 %v2485, %v2473
        %v2930 = vpack.c.b16 %v2498, %v2486
        %v2931 = vpack.c.b16 %v2499, %v2487
        %v2932 = vpack.c.b16 %v2500, %v2488
        %v2933 = vpack.c.b16 %v2501, %v2489
        %v2934 = vpack.c.b16 %v2502, %v2490
        %v2935 = vpack.c.b16 %v2503, %v2491
        %v2936 = vpack.c.b16 %v2504, %v2492
        %v2937 = vpack.c.b16 %v2505, %v2493
        %v2938 = vpack.c.b16 %v2506, %v2494
        %v2939 = vpack.c.b16 %v2507, %v2495
        %v2940 = vpack.c.b16 %v2508, %v2496
        %v2941 = vpack.c.b16 %v2509, %v2497
        %v2942 = vpack.c.b16 %v2522, %v2510
        %v2943 = vpack.c.b16 %v2523, %v2511
        %v2944 = vpack.c.b16 %v2524, %v2512
        %v2945 = vpack.c.b16 %v2525, %v2513
        %v2946 = vpack.c.b16 %v2526, %v2514
        %v2947 = vpack.c.b16 %v2527, %v2515
        %v2948 = vpack.c.b16 %v2528, %v2516
        %v2949 = vpack.c.b16 %v2529, %v2517
        %v2950 = vpack.c.b16 %v2530, %v2518
        %v2951 = vpack.c.b16 %v2531, %v2519
        %v2952 = vpack.c.b16 %v2532, %v2520
        %v2953 = vpack.c.b16 %v2533, %v2521
        %v2954 = vpack.c.b16 %v2546, %v2534
        %v2955 = vpack.c.b16 %v2547, %v2535
        %v2956 = vpack.c.b16 %v2548, %v2536
        %v2957 = vpack.c.b16 %v2549, %v2537
        %v2958 = vpack.c.b16 %v2550, %v2538
        %v2959 = vpack.c.b16 %v2551, %v2539
        %v2960 = vpack.c.b16 %v2552, %v2540
        %v2961 = vpack.c.b16 %v2553, %v2541
        %v2962 = vpack.c.b16 %v2554, %v2542
        %v2963 = vpack.c.b16 %v2555, %v2543
        %v2964 = vpack.c.b16 %v2556, %v2544
        %v2965 = vpack.c.b16 %v2557, %v2545
        %v2966 = vpack.c.b16 %v2570, %v2558
        %v2967 = vpack.c.b16 %v2571, %v2559
        %v2968 = vpack.c.b16 %v2572, %v2560
        %v2969 = vpack.c.b16 %v2573, %v2561
        %v2970 = vpack.c.b16 %v2574, %v2562
        %v2971 = vpack.c.b16 %v2575, %v2563
        %v2972 = vpack.c.b16 %v2576, %v2564
        %v2973 = vpack.c.b16 %v2577, %v2565
        %v2974 = vpack.c.b16 %v2578, %v2566
        %v2975 = vpack.c.b16 %v2579, %v2567
        %v2976 = vpack.c.b16 %v2580, %v2568
        %v2977 = vpack.c.b16 %v2581, %v2569
        %v2978 = vpack.c.b16 %v2594, %v2582
        %v2979 = vpack.c.b16 %v2595, %v2583
        %v2980 = vpack.c.b16 %v2596, %v2584
        %v2981 = vpack.c.b16 %v2597, %v2585
        %v2982 = vpack.c.b16 %v2598, %v2586
        %v2983 = vpack.c.b16 %v2599, %v2587
        %v2984 = vpack.c.b16 %v2600, %v2588
        %v2985 = vpack.c.b16 %v2601, %v2589
        %v2986 = vpack.c.b16 %v2602, %v2590
        %v2987 = vpack.c.b16 %v2603, %v2591
        %v2988 = vpack.c.b16 %v2604, %v2592
        %v2989 = vpack.c.b16 %v2605, %v2593
        %3374 = vmatprep.subr.bf16.mxu0 %v2607
        %3375 = vmatpush1.bf16.msra.mxu0 %v2606
        %3376 = vmatprep.subr.bf16.mxu0 %v2619
        %3377 = vmatpush1.bf16.msra.mxu0 %v2618
        %3378 = vmatprep.subr.bf16.mxu0 %v2631
        %3379 = vmatpush1.bf16.msra.mxu0 %v2630
        %3380 = vmatprep.subr.bf16.mxu0 %v2643
        %3381 = vmatpush1.bf16.msra.mxu0 %v2642
        %3382 = vmatprep.subr.bf16.mxu0 %v2655
        %3383 = vmatpush1.bf16.msra.mxu0 %v2654
        %3384 = vmatprep.subr.bf16.mxu0 %v2667
        %3385 = vmatpush1.bf16.msra.mxu0 %v2666
        %3386 = vmatprep.subr.bf16.mxu0 %v2679
        %3387 = vmatpush1.bf16.msra.mxu0 %v2678
        %3388 = vmatprep.subr.bf16.mxu0 %v2691
        %3389 = vmatpush1.bf16.msra.mxu0 %v2690
        %3390 = vmatprep.subr.bf16.mxu0 %v2703
        %3391 = vmatpush1.bf16.msra.mxu0 %v2702
        %3392 = vmatprep.subr.bf16.mxu0 %v2715
        %3393 = vmatpush1.bf16.msra.mxu0 %v2714
        %3394 = vmatprep.subr.bf16.mxu0 %v2727
        %3395 = vmatpush1.bf16.msra.mxu0 %v2726
        %3396 = vmatprep.subr.bf16.mxu0 %v2739
        %3397 = vmatpush1.bf16.msra.mxu0 %v2738
        %3398 = vmatprep.subr.bf16.mxu0 %v2751
        %3399 = vmatpush1.bf16.msra.mxu0 %v2750
        %3400 = vmatprep.subr.bf16.mxu0 %v2763
        %3401 = vmatpush1.bf16.msra.mxu0 %v2762
        %3402 = vmatprep.subr.bf16.mxu0 %v2775
        %3403 = vmatpush1.bf16.msra.mxu0 %v2774
        %3404 = vmatprep.subr.bf16.mxu0 %v2787
        %3405 = vmatpush1.bf16.msra.mxu0 %v2786
        %3406 = vmatprep.mubr.bf16.mxu0 %v1003
        %3407 = vmatmul.mubr.bf16.gmra.mrb[0].mxu0 %v1002
        %v3408 = vpop.f32.mrb[0].mxu0
        %v3409 = vadd.f32 %v1397, %v3408
        %v3410 = vpop.f32.mrb[0].mxu0
        %v3411 = vadd.f32 %v1401, %v3410
        %v3412 = vpop.f32.mrb[0].mxu0
        %v3413 = vadd.f32 %v1397, %v3412
        %v3414 = vpop.f32.mrb[0].mxu0
        %v3415 = vadd.f32 %v1401, %v3414
        %3416 = vdwg.mxu0
        %3417 = vmatprep.subr.bf16.mxu0 %v2799
        %3418 = vmatpush1.bf16.msra.mxu0 %v2798
        %3419 = vmatprep.subr.bf16.mxu0 %v2811
        %3420 = vmatpush1.bf16.msra.mxu0 %v2810
        %3421 = vmatprep.subr.bf16.mxu0 %v2823
        %3422 = vmatpush1.bf16.msra.mxu0 %v2822
        %3423 = vmatprep.subr.bf16.mxu0 %v2835
        %3424 = vmatpush1.bf16.msra.mxu0 %v2834
        %3425 = vmatprep.subr.bf16.mxu0 %v2847
        %3426 = vmatpush1.bf16.msra.mxu0 %v2846
        %3427 = vmatprep.subr.bf16.mxu0 %v2859
        %3428 = vmatpush1.bf16.msra.mxu0 %v2858
        %3429 = vmatprep.subr.bf16.mxu0 %v2871
        %3430 = vmatpush1.bf16.msra.mxu0 %v2870
        %3431 = vmatprep.subr.bf16.mxu0 %v2883
        %3432 = vmatpush1.bf16.msra.mxu0 %v2882
        %3433 = vmatprep.subr.bf16.mxu0 %v2895
        %3434 = vmatpush1.bf16.msra.mxu0 %v2894
        %3435 = vmatprep.subr.bf16.mxu0 %v2907
        %3436 = vmatpush1.bf16.msra.mxu0 %v2906
        %3437 = vmatprep.subr.bf16.mxu0 %v2919
        %3438 = vmatpush1.bf16.msra.mxu0 %v2918
        %3439 = vmatprep.subr.bf16.mxu0 %v2931
        %3440 = vmatpush1.bf16.msra.mxu0 %v2930
        %3441 = vmatprep.subr.bf16.mxu0 %v2943
        %3442 = vmatpush1.bf16.msra.mxu0 %v2942
        %3443 = vmatprep.subr.bf16.mxu0 %v2955
        %3444 = vmatpush1.bf16.msra.mxu0 %v2954
        %3445 = vmatprep.subr.bf16.mxu0 %v2967
        %3446 = vmatpush1.bf16.msra.mxu0 %v2966
        %3447 = vmatprep.subr.bf16.mxu0 %v2979
        %3448 = vmatpush1.bf16.msra.mxu0 %v2978
        %3449 = vmatprep.mubr.bf16.mxu0 %v1005
        %3450 = vmatmul.mubr.bf16.gmra.mrb[0].mxu0 %v1004
        %v3451 = vpop.f32.mrb[0].mxu0
        %v3452 = vadd.f32 %v3409, %v3451
        %v3453 = vpop.f32.mrb[0].mxu0
        %v3454 = vadd.f32 %v3411, %v3453
        %v3455 = vpop.f32.mrb[0].mxu0
        %v3456 = vadd.f32 %v3413, %v3455
        %v3457 = vpop.f32.mrb[0].mxu0
        %v3458 = vadd.f32 %v3415, %v3457
        %3459 = vdwg.mxu0
        %3460 = vmatprep.subr.bf16.mxu0 %v2609
        %3461 = vmatpush1.bf16.msra.mxu0 %v2608
        %3462 = vmatprep.subr.bf16.mxu0 %v2621
        %3463 = vmatpush1.bf16.msra.mxu0 %v2620
        %3464 = vmatprep.subr.bf16.mxu0 %v2633
        %3465 = vmatpush1.bf16.msra.mxu0 %v2632
        %3466 = vmatprep.subr.bf16.mxu0 %v2645
        %3467 = vmatpush1.bf16.msra.mxu0 %v2644
        %3468 = vmatprep.subr.bf16.mxu0 %v2657
        %3469 = vmatpush1.bf16.msra.mxu0 %v2656
        %3470 = vmatprep.subr.bf16.mxu0 %v2669
        %3471 = vmatpush1.bf16.msra.mxu0 %v2668
        %3472 = vmatprep.subr.bf16.mxu0 %v2681
        %3473 = vmatpush1.bf16.msra.mxu0 %v2680
        %3474 = vmatprep.subr.bf16.mxu0 %v2693
        %3475 = vmatpush1.bf16.msra.mxu0 %v2692
        %3476 = vmatprep.subr.bf16.mxu0 %v2705
        %3477 = vmatpush1.bf16.msra.mxu0 %v2704
        %3478 = vmatprep.subr.bf16.mxu0 %v2717
        %3479 = vmatpush1.bf16.msra.mxu0 %v2716
        %3480 = vmatprep.subr.bf16.mxu0 %v2729
        %3481 = vmatpush1.bf16.msra.mxu0 %v2728
        %3482 = vmatprep.subr.bf16.mxu0 %v2741
        %3483 = vmatpush1.bf16.msra.mxu0 %v2740
        %3484 = vmatprep.subr.bf16.mxu0 %v2753
        %3485 = vmatpush1.bf16.msra.mxu0 %v2752
        %3486 = vmatprep.subr.bf16.mxu0 %v2765
        %3487 = vmatpush1.bf16.msra.mxu0 %v2764
        %3488 = vmatprep.subr.bf16.mxu0 %v2777
        %3489 = vmatpush1.bf16.msra.mxu0 %v2776
        %3490 = vmatprep.subr.bf16.mxu0 %v2789
        %3491 = vmatpush1.bf16.msra.mxu0 %v2788
        %3492 = vmatprep.mubr.bf16.mxu0 %v1003
        %3493 = vmatmul.mubr.bf16.gmra.mrb[0].mxu0 %v1002
        %v3494 = vpop.f32.mrb[0].mxu0
        %v3495 = vadd.f32 %v1405, %v3494
        %v3496 = vpop.f32.mrb[0].mxu0
        %v3497 = vadd.f32 %v1409, %v3496
        %v3498 = vpop.f32.mrb[0].mxu0
        %v3499 = vadd.f32 %v1405, %v3498
        %v3500 = vpop.f32.mrb[0].mxu0
        %v3501 = vadd.f32 %v1409, %v3500
        %3502 = vdwg.mxu0
        %3503 = vmatprep.subr.bf16.mxu0 %v2801
        %3504 = vmatpush1.bf16.msra.mxu0 %v2800
        %3505 = vmatprep.subr.bf16.mxu0 %v2813
        %3506 = vmatpush1.bf16.msra.mxu0 %v2812
        %3507 = vmatprep.subr.bf16.mxu0 %v2825
        %3508 = vmatpush1.bf16.msra.mxu0 %v2824
        %3509 = vmatprep.subr.bf16.mxu0 %v2837
        %3510 = vmatpush1.bf16.msra.mxu0 %v2836
        %3511 = vmatprep.subr.bf16.mxu0 %v2849
        %3512 = vmatpush1.bf16.msra.mxu0 %v2848
        %3513 = vmatprep.subr.bf16.mxu0 %v2861
        %3514 = vmatpush1.bf16.msra.mxu0 %v2860
        %3515 = vmatprep.subr.bf16.mxu0 %v2873
        %3516 = vmatpush1.bf16.msra.mxu0 %v2872
        %3517 = vmatprep.subr.bf16.mxu0 %v2885
        %3518 = vmatpush1.bf16.msra.mxu0 %v2884
        %3519 = vmatprep.subr.bf16.mxu0 %v2897
        %3520 = vmatpush1.bf16.msra.mxu0 %v2896
        %3521 = vmatprep.subr.bf16.mxu0 %v2909
        %3522 = vmatpush1.bf16.msra.mxu0 %v2908
        %3523 = vmatprep.subr.bf16.mxu0 %v2921
        %3524 = vmatpush1.bf16.msra.mxu0 %v2920
        %3525 = vmatprep.subr.bf16.mxu0 %v2933
        %3526 = vmatpush1.bf16.msra.mxu0 %v2932
        %3527 = vmatprep.subr.bf16.mxu0 %v2945
        %3528 = vmatpush1.bf16.msra.mxu0 %v2944
        %3529 = vmatprep.subr.bf16.mxu0 %v2957
        %3530 = vmatpush1.bf16.msra.mxu0 %v2956
        %3531 = vmatprep.subr.bf16.mxu0 %v2969
        %3532 = vmatpush1.bf16.msra.mxu0 %v2968
        %3533 = vmatprep.subr.bf16.mxu0 %v2981
        %3534 = vmatpush1.bf16.msra.mxu0 %v2980
        %3535 = vmatprep.mubr.bf16.mxu0 %v1005
        %3536 = vmatmul.mubr.bf16.gmra.mrb[0].mxu0 %v1004
        %v3537 = vpop.f32.mrb[0].mxu0
        %v3538 = vadd.f32 %v3495, %v3537
        %v3539 = vpop.f32.mrb[0].mxu0
        %v3540 = vadd.f32 %v3497, %v3539
        %v3541 = vpop.f32.mrb[0].mxu0
        %v3542 = vadd.f32 %v3499, %v3541
        %v3543 = vpop.f32.mrb[0].mxu0
        %v3544 = vadd.f32 %v3501, %v3543
        %3545 = vdwg.mxu0
        %3546 = vmatprep.subr.bf16.mxu0 %v2611
        %3547 = vmatpush1.bf16.msra.mxu0 %v2610
        %3548 = vmatprep.subr.bf16.mxu0 %v2623
        %3549 = vmatpush1.bf16.msra.mxu0 %v2622
        %3550 = vmatprep.subr.bf16.mxu0 %v2635
        %3551 = vmatpush1.bf16.msra.mxu0 %v2634
        %3552 = vmatprep.subr.bf16.mxu0 %v2647
        %3553 = vmatpush1.bf16.msra.mxu0 %v2646
        %3554 = vmatprep.subr.bf16.mxu0 %v2659
        %3555 = vmatpush1.bf16.msra.mxu0 %v2658
        %3556 = vmatprep.subr.bf16.mxu0 %v2671
        %3557 = vmatpush1.bf16.msra.mxu0 %v2670
        %3558 = vmatprep.subr.bf16.mxu0 %v2683
        %3559 = vmatpush1.bf16.msra.mxu0 %v2682
        %3560 = vmatprep.subr.bf16.mxu0 %v2695
        %3561 = vmatpush1.bf16.msra.mxu0 %v2694
        %3562 = vmatprep.subr.bf16.mxu0 %v2707
        %3563 = vmatpush1.bf16.msra.mxu0 %v2706
        %3564 = vmatprep.subr.bf16.mxu0 %v2719
        %3565 = vmatpush1.bf16.msra.mxu0 %v2718
        %3566 = vmatprep.subr.bf16.mxu0 %v2731
        %3567 = vmatpush1.bf16.msra.mxu0 %v2730
        %3568 = vmatprep.subr.bf16.mxu0 %v2743
        %3569 = vmatpush1.bf16.msra.mxu0 %v2742
        %3570 = vmatprep.subr.bf16.mxu0 %v2755
        %3571 = vmatpush1.bf16.msra.mxu0 %v2754
        %3572 = vmatprep.subr.bf16.mxu0 %v2767
        %3573 = vmatpush1.bf16.msra.mxu0 %v2766
        %3574 = vmatprep.subr.bf16.mxu0 %v2779
        %3575 = vmatpush1.bf16.msra.mxu0 %v2778
        %3576 = vmatprep.subr.bf16.mxu0 %v2791
        %3577 = vmatpush1.bf16.msra.mxu0 %v2790
        %3578 = vmatprep.mubr.bf16.mxu0 %v1003
        %3579 = vmatmul.mubr.bf16.gmra.mrb[0].mxu0 %v1002
        %v3580 = vpop.f32.mrb[0].mxu0
        %v3581 = vadd.f32 %v1413, %v3580
        %v3582 = vpop.f32.mrb[0].mxu0
        %v3583 = vadd.f32 %v1417, %v3582
        %v3584 = vpop.f32.mrb[0].mxu0
        %v3585 = vadd.f32 %v1413, %v3584
        %v3586 = vpop.f32.mrb[0].mxu0
        %v3587 = vadd.f32 %v1417, %v3586
        %3588 = vdwg.mxu0
        %3589 = vmatprep.subr.bf16.mxu0 %v2803
        %3590 = vmatpush1.bf16.msra.mxu0 %v2802
        %3591 = vmatprep.subr.bf16.mxu0 %v2815
        %3592 = vmatpush1.bf16.msra.mxu0 %v2814
        %3593 = vmatprep.subr.bf16.mxu0 %v2827
        %3594 = vmatpush1.bf16.msra.mxu0 %v2826
        %3595 = vmatprep.subr.bf16.mxu0 %v2839
        %3596 = vmatpush1.bf16.msra.mxu0 %v2838
        %3597 = vmatprep.subr.bf16.mxu0 %v2851
        %3598 = vmatpush1.bf16.msra.mxu0 %v2850
        %3599 = vmatprep.subr.bf16.mxu0 %v2863
        %3600 = vmatpush1.bf16.msra.mxu0 %v2862
        %3601 = vmatprep.subr.bf16.mxu0 %v2875
        %3602 = vmatpush1.bf16.msra.mxu0 %v2874
        %3603 = vmatprep.subr.bf16.mxu0 %v2887
        %3604 = vmatpush1.bf16.msra.mxu0 %v2886
        %3605 = vmatprep.subr.bf16.mxu0 %v2899
        %3606 = vmatpush1.bf16.msra.mxu0 %v2898
        %3607 = vmatprep.subr.bf16.mxu0 %v2911
        %3608 = vmatpush1.bf16.msra.mxu0 %v2910
        %3609 = vmatprep.subr.bf16.mxu0 %v2923
        %3610 = vmatpush1.bf16.msra.mxu0 %v2922
        %3611 = vmatprep.subr.bf16.mxu0 %v2935
        %3612 = vmatpush1.bf16.msra.mxu0 %v2934
        %3613 = vmatprep.subr.bf16.mxu0 %v2947
        %3614 = vmatpush1.bf16.msra.mxu0 %v2946
        %3615 = vmatprep.subr.bf16.mxu0 %v2959
        %3616 = vmatpush1.bf16.msra.mxu0 %v2958
        %3617 = vmatprep.subr.bf16.mxu0 %v2971
        %3618 = vmatpush1.bf16.msra.mxu0 %v2970
        %3619 = vmatprep.subr.bf16.mxu0 %v2983
        %3620 = vmatpush1.bf16.msra.mxu0 %v2982
        %3621 = vmatprep.mubr.bf16.mxu0 %v1005
        %3622 = vmatmul.mubr.bf16.gmra.mrb[0].mxu0 %v1004
        %v3623 = vpop.f32.mrb[0].mxu0
        %v3624 = vadd.f32 %v3581, %v3623
        %v3625 = vpop.f32.mrb[0].mxu0
        %v3626 = vadd.f32 %v3583, %v3625
        %v3627 = vpop.f32.mrb[0].mxu0
        %v3628 = vadd.f32 %v3585, %v3627
        %v3629 = vpop.f32.mrb[0].mxu0
        %v3630 = vadd.f32 %v3587, %v3629
        %3631 = vdwg.mxu0
        %3632 = vmatprep.subr.bf16.mxu0 %v2613
        %3633 = vmatpush1.bf16.msra.mxu0 %v2612
        %3634 = vmatprep.subr.bf16.mxu0 %v2625
        %3635 = vmatpush1.bf16.msra.mxu0 %v2624
        %3636 = vmatprep.subr.bf16.mxu0 %v2637
        %3637 = vmatpush1.bf16.msra.mxu0 %v2636
        %3638 = vmatprep.subr.bf16.mxu0 %v2649
        %3639 = vmatpush1.bf16.msra.mxu0 %v2648
        %3640 = vmatprep.subr.bf16.mxu0 %v2661
        %3641 = vmatpush1.bf16.msra.mxu0 %v2660
        %3642 = vmatprep.subr.bf16.mxu0 %v2673
        %3643 = vmatpush1.bf16.msra.mxu0 %v2672
        %3644 = vmatprep.subr.bf16.mxu0 %v2685
        %3645 = vmatpush1.bf16.msra.mxu0 %v2684
        %3646 = vmatprep.subr.bf16.mxu0 %v2697
        %3647 = vmatpush1.bf16.msra.mxu0 %v2696
        %3648 = vmatprep.subr.bf16.mxu0 %v2709
        %3649 = vmatpush1.bf16.msra.mxu0 %v2708
        %3650 = vmatprep.subr.bf16.mxu0 %v2721
        %3651 = vmatpush1.bf16.msra.mxu0 %v2720
        %3652 = vmatprep.subr.bf16.mxu0 %v2733
        %3653 = vmatpush1.bf16.msra.mxu0 %v2732
        %3654 = vmatprep.subr.bf16.mxu0 %v2745
        %3655 = vmatpush1.bf16.msra.mxu0 %v2744
        %3656 = vmatprep.subr.bf16.mxu0 %v2757
        %3657 = vmatpush1.bf16.msra.mxu0 %v2756
        %3658 = vmatprep.subr.bf16.mxu0 %v2769
        %3659 = vmatpush1.bf16.msra.mxu0 %v2768
        %3660 = vmatprep.subr.bf16.mxu0 %v2781
        %3661 = vmatpush1.bf16.msra.mxu0 %v2780
        %3662 = vmatprep.subr.bf16.mxu0 %v2793
        %3663 = vmatpush1.bf16.msra.mxu0 %v2792
        %3664 = vmatprep.mubr.bf16.mxu0 %v1003
        %3665 = vmatmul.mubr.bf16.gmra.mrb[0].mxu0 %v1002
        %v3666 = vpop.f32.mrb[0].mxu0
        %v3667 = vadd.f32 %v1421, %v3666
        %v3668 = vpop.f32.mrb[0].mxu0
        %v3669 = vadd.f32 %v1425, %v3668
        %v3670 = vpop.f32.mrb[0].mxu0
        %v3671 = vadd.f32 %v1421, %v3670
        %v3672 = vpop.f32.mrb[0].mxu0
        %v3673 = vadd.f32 %v1425, %v3672
        %3674 = vdwg.mxu0
        %3675 = vmatprep.subr.bf16.mxu0 %v2805
        %3676 = vmatpush1.bf16.msra.mxu0 %v2804
        %3677 = vmatprep.subr.bf16.mxu0 %v2817
        %3678 = vmatpush1.bf16.msra.mxu0 %v2816
        %3679 = vmatprep.subr.bf16.mxu0 %v2829
        %3680 = vmatpush1.bf16.msra.mxu0 %v2828
        %3681 = vmatprep.subr.bf16.mxu0 %v2841
        %3682 = vmatpush1.bf16.msra.mxu0 %v2840
        %3683 = vmatprep.subr.bf16.mxu0 %v2853
        %3684 = vmatpush1.bf16.msra.mxu0 %v2852
        %3685 = vmatprep.subr.bf16.mxu0 %v2865
        %3686 = vmatpush1.bf16.msra.mxu0 %v2864
        %3687 = vmatprep.subr.bf16.mxu0 %v2877
        %3688 = vmatpush1.bf16.msra.mxu0 %v2876
        %3689 = vmatprep.subr.bf16.mxu0 %v2889
        %3690 = vmatpush1.bf16.msra.mxu0 %v2888
        %3691 = vmatprep.subr.bf16.mxu0 %v2901
        %3692 = vmatpush1.bf16.msra.mxu0 %v2900
        %3693 = vmatprep.subr.bf16.mxu0 %v2913
        %3694 = vmatpush1.bf16.msra.mxu0 %v2912
        %3695 = vmatprep.subr.bf16.mxu0 %v2925
        %3696 = vmatpush1.bf16.msra.mxu0 %v2924
        %3697 = vmatprep.subr.bf16.mxu0 %v2937
        %3698 = vmatpush1.bf16.msra.mxu0 %v2936
        %3699 = vmatprep.subr.bf16.mxu0 %v2949
        %3700 = vmatpush1.bf16.msra.mxu0 %v2948
        %3701 = vmatprep.subr.bf16.mxu0 %v2961
        %3702 = vmatpush1.bf16.msra.mxu0 %v2960
        %3703 = vmatprep.subr.bf16.mxu0 %v2973
        %3704 = vmatpush1.bf16.msra.mxu0 %v2972
        %3705 = vmatprep.subr.bf16.mxu0 %v2985
        %3706 = vmatpush1.bf16.msra.mxu0 %v2984
        %3707 = vmatprep.mubr.bf16.mxu0 %v1005
        %3708 = vmatmul.mubr.bf16.gmra.mrb[0].mxu0 %v1004
        %v3709 = vpop.f32.mrb[0].mxu0
        %v3710 = vadd.f32 %v3667, %v3709
        %v3711 = vpop.f32.mrb[0].mxu0
        %v3712 = vadd.f32 %v3669, %v3711
        %v3713 = vpop.f32.mrb[0].mxu0
        %v3714 = vadd.f32 %v3671, %v3713
        %v3715 = vpop.f32.mrb[0].mxu0
        %v3716 = vadd.f32 %v3673, %v3715
        %3717 = vdwg.mxu0
        %3718 = vmatprep.subr.bf16.mxu0 %v2615
        %3719 = vmatpush1.bf16.msra.mxu0 %v2614
        %3720 = vmatprep.subr.bf16.mxu0 %v2627
        %3721 = vmatpush1.bf16.msra.mxu0 %v2626
        %3722 = vmatprep.subr.bf16.mxu0 %v2639
        %3723 = vmatpush1.bf16.msra.mxu0 %v2638
        %3724 = vmatprep.subr.bf16.mxu0 %v2651
        %3725 = vmatpush1.bf16.msra.mxu0 %v2650
        %3726 = vmatprep.subr.bf16.mxu0 %v2663
        %3727 = vmatpush1.bf16.msra.mxu0 %v2662
        %3728 = vmatprep.subr.bf16.mxu0 %v2675
        %3729 = vmatpush1.bf16.msra.mxu0 %v2674
        %3730 = vmatprep.subr.bf16.mxu0 %v2687
        %3731 = vmatpush1.bf16.msra.mxu0 %v2686
        %3732 = vmatprep.subr.bf16.mxu0 %v2699
        %3733 = vmatpush1.bf16.msra.mxu0 %v2698
        %3734 = vmatprep.subr.bf16.mxu0 %v2711
        %3735 = vmatpush1.bf16.msra.mxu0 %v2710
        %3736 = vmatprep.subr.bf16.mxu0 %v2723
        %3737 = vmatpush1.bf16.msra.mxu0 %v2722
        %3738 = vmatprep.subr.bf16.mxu0 %v2735
        %3739 = vmatpush1.bf16.msra.mxu0 %v2734
        %3740 = vmatprep.subr.bf16.mxu0 %v2747
        %3741 = vmatpush1.bf16.msra.mxu0 %v2746
        %3742 = vmatprep.subr.bf16.mxu0 %v2759
        %3743 = vmatpush1.bf16.msra.mxu0 %v2758
        %3744 = vmatprep.subr.bf16.mxu0 %v2771
        %3745 = vmatpush1.bf16.msra.mxu0 %v2770
        %3746 = vmatprep.subr.bf16.mxu0 %v2783
        %3747 = vmatpush1.bf16.msra.mxu0 %v2782
        %3748 = vmatprep.subr.bf16.mxu0 %v2795
        %3749 = vmatpush1.bf16.msra.mxu0 %v2794
        %3750 = vmatprep.mubr.bf16.mxu0 %v1003
        %3751 = vmatmul.mubr.bf16.gmra.mrb[0].mxu0 %v1002
        %v3752 = vpop.f32.mrb[0].mxu0
        %v3753 = vadd.f32 %v1429, %v3752
        %v3754 = vpop.f32.mrb[0].mxu0
        %v3755 = vadd.f32 %v1433, %v3754
        %v3756 = vpop.f32.mrb[0].mxu0
        %v3757 = vadd.f32 %v1429, %v3756
        %v3758 = vpop.f32.mrb[0].mxu0
        %v3759 = vadd.f32 %v1433, %v3758
        %3760 = vdwg.mxu0
        %3761 = vmatprep.subr.bf16.mxu0 %v2807
        %3762 = vmatpush1.bf16.msra.mxu0 %v2806
        %3763 = vmatprep.subr.bf16.mxu0 %v2819
        %3764 = vmatpush1.bf16.msra.mxu0 %v2818
        %3765 = vmatprep.subr.bf16.mxu0 %v2831
        %3766 = vmatpush1.bf16.msra.mxu0 %v2830
        %3767 = vmatprep.subr.bf16.mxu0 %v2843
        %3768 = vmatpush1.bf16.msra.mxu0 %v2842
        %3769 = vmatprep.subr.bf16.mxu0 %v2855
        %3770 = vmatpush1.bf16.msra.mxu0 %v2854
        %3771 = vmatprep.subr.bf16.mxu0 %v2867
        %3772 = vmatpush1.bf16.msra.mxu0 %v2866
        %3773 = vmatprep.subr.bf16.mxu0 %v2879
        %3774 = vmatpush1.bf16.msra.mxu0 %v2878
        %3775 = vmatprep.subr.bf16.mxu0 %v2891
        %3776 = vmatpush1.bf16.msra.mxu0 %v2890
        %3777 = vmatprep.subr.bf16.mxu0 %v2903
        %3778 = vmatpush1.bf16.msra.mxu0 %v2902
        %3779 = vmatprep.subr.bf16.mxu0 %v2915
        %3780 = vmatpush1.bf16.msra.mxu0 %v2914
        %3781 = vmatprep.subr.bf16.mxu0 %v2927
        %3782 = vmatpush1.bf16.msra.mxu0 %v2926
        %3783 = vmatprep.subr.bf16.mxu0 %v2939
        %3784 = vmatpush1.bf16.msra.mxu0 %v2938
        %3785 = vmatprep.subr.bf16.mxu0 %v2951
        %3786 = vmatpush1.bf16.msra.mxu0 %v2950
        %3787 = vmatprep.subr.bf16.mxu0 %v2963
        %3788 = vmatpush1.bf16.msra.mxu0 %v2962
        %3789 = vmatprep.subr.bf16.mxu0 %v2975
        %3790 = vmatpush1.bf16.msra.mxu0 %v2974
        %3791 = vmatprep.subr.bf16.mxu0 %v2987
        %3792 = vmatpush1.bf16.msra.mxu0 %v2986
        %3793 = vmatprep.mubr.bf16.mxu0 %v1005
        %3794 = vmatmul.mubr.bf16.gmra.mrb[0].mxu0 %v1004
        %v3795 = vpop.f32.mrb[0].mxu0
        %v3796 = vadd.f32 %v3753, %v3795
        %v3797 = vpop.f32.mrb[0].mxu0
        %v3798 = vadd.f32 %v3755, %v3797
        %v3799 = vpop.f32.mrb[0].mxu0
        %v3800 = vadd.f32 %v3757, %v3799
        %v3801 = vpop.f32.mrb[0].mxu0
        %v3802 = vadd.f32 %v3759, %v3801
        %3803 = vdwg.mxu0
        %3804 = vmatprep.subr.bf16.mxu0 %v2617
        %3805 = vmatpush1.bf16.msra.mxu0 %v2616
        %3806 = vmatprep.subr.bf16.mxu0 %v2629
        %3807 = vmatpush1.bf16.msra.mxu0 %v2628
        %3808 = vmatprep.subr.bf16.mxu0 %v2641
        %3809 = vmatpush1.bf16.msra.mxu0 %v2640
        %3810 = vmatprep.subr.bf16.mxu0 %v2653
        %3811 = vmatpush1.bf16.msra.mxu0 %v2652
        %3812 = vmatprep.subr.bf16.mxu0 %v2665
        %3813 = vmatpush1.bf16.msra.mxu0 %v2664
        %3814 = vmatprep.subr.bf16.mxu0 %v2677
        %3815 = vmatpush1.bf16.msra.mxu0 %v2676
        %3816 = vmatprep.subr.bf16.mxu0 %v2689
        %3817 = vmatpush1.bf16.msra.mxu0 %v2688
        %3818 = vmatprep.subr.bf16.mxu0 %v2701
        %3819 = vmatpush1.bf16.msra.mxu0 %v2700
        %3820 = vmatprep.subr.bf16.mxu0 %v2713
        %3821 = vmatpush1.bf16.msra.mxu0 %v2712
        %3822 = vmatprep.subr.bf16.mxu0 %v2725
        %3823 = vmatpush1.bf16.msra.mxu0 %v2724
        %3824 = vmatprep.subr.bf16.mxu0 %v2737
        %3825 = vmatpush1.bf16.msra.mxu0 %v2736
        %3826 = vmatprep.subr.bf16.mxu0 %v2749
        %3827 = vmatpush1.bf16.msra.mxu0 %v2748
        %3828 = vmatprep.subr.bf16.mxu0 %v2761
        %3829 = vmatpush1.bf16.msra.mxu0 %v2760
        %3830 = vmatprep.subr.bf16.mxu0 %v2773
        %3831 = vmatpush1.bf16.msra.mxu0 %v2772
        %3832 = vmatprep.subr.bf16.mxu0 %v2785
        %3833 = vmatpush1.bf16.msra.mxu0 %v2784
        %3834 = vmatprep.subr.bf16.mxu0 %v2797
        %3835 = vmatpush1.bf16.msra.mxu0 %v2796
        %3836 = vmatprep.mubr.bf16.mxu0 %v1003
        %3837 = vmatmul.mubr.bf16.gmra.mrb[0].mxu0 %v1002
        %v3838 = vpop.f32.mrb[0].mxu0
        %v3839 = vadd.f32 %v1437, %v3838
        %v3840 = vpop.f32.mrb[0].mxu0
        %v3841 = vadd.f32 %v1441, %v3840
        %v3842 = vpop.f32.mrb[0].mxu0
        %v3843 = vadd.f32 %v1437, %v3842
        %v3844 = vpop.f32.mrb[0].mxu0
        %v3845 = vadd.f32 %v1441, %v3844
        %3846 = vdwg.mxu0
        %3847 = vmatprep.subr.bf16.mxu0 %v2809
        %3848 = vmatpush1.bf16.msra.mxu0 %v2808
        %3849 = vmatprep.subr.bf16.mxu0 %v2821
        %3850 = vmatpush1.bf16.msra.mxu0 %v2820
        %3851 = vmatprep.subr.bf16.mxu0 %v2833
        %3852 = vmatpush1.bf16.msra.mxu0 %v2832
        %3853 = vmatprep.subr.bf16.mxu0 %v2845
        %3854 = vmatpush1.bf16.msra.mxu0 %v2844
        %3855 = vmatprep.subr.bf16.mxu0 %v2857
        %3856 = vmatpush1.bf16.msra.mxu0 %v2856
        %3857 = vmatprep.subr.bf16.mxu0 %v2869
        %3858 = vmatpush1.bf16.msra.mxu0 %v2868
        %3859 = vmatprep.subr.bf16.mxu0 %v2881
        %3860 = vmatpush1.bf16.msra.mxu0 %v2880
        %3861 = vmatprep.subr.bf16.mxu0 %v2893
        %3862 = vmatpush1.bf16.msra.mxu0 %v2892
        %3863 = vmatprep.subr.bf16.mxu0 %v2905
        %3864 = vmatpush1.bf16.msra.mxu0 %v2904
        %3865 = vmatprep.subr.bf16.mxu0 %v2917
        %3866 = vmatpush1.bf16.msra.mxu0 %v2916
        %3867 = vmatprep.subr.bf16.mxu0 %v2929
        %3868 = vmatpush1.bf16.msra.mxu0 %v2928
        %3869 = vmatprep.subr.bf16.mxu0 %v2941
        %3870 = vmatpush1.bf16.msra.mxu0 %v2940
        %3871 = vmatprep.subr.bf16.mxu0 %v2953
        %3872 = vmatpush1.bf16.msra.mxu0 %v2952
        %3873 = vmatprep.subr.bf16.mxu0 %v2965
        %3874 = vmatpush1.bf16.msra.mxu0 %v2964
        %3875 = vmatprep.subr.bf16.mxu0 %v2977
        %3876 = vmatpush1.bf16.msra.mxu0 %v2976
        %3877 = vmatprep.subr.bf16.mxu0 %v2989
        %3878 = vmatpush1.bf16.msra.mxu0 %v2988
        %3879 = vmatprep.mubr.bf16.mxu0 %v1005
        %3880 = vmatmul.mubr.bf16.gmra.mrb[0].mxu0 %v1004
        %v3881 = vpop.f32.mrb[0].mxu0
        %v3882 = vadd.f32 %v3839, %v3881
        %v3883 = vpop.f32.mrb[0].mxu0
        %v3884 = vadd.f32 %v3841, %v3883
        %v3885 = vpop.f32.mrb[0].mxu0
        %v3886 = vadd.f32 %v3843, %v3885
        %v3887 = vpop.f32.mrb[0].mxu0
        %v3888 = vadd.f32 %v3845, %v3887
        %3889 = vdwg.mxu0
        %v3890 = vpack.c.bf16 %v3452, %v3452
        %v3891 = vpack.c.bf16 %v3456, %v3456
        %v3892 = vpack.c.bf16 %v3624, %v3624
        %v3893 = vpack.c.bf16 %v3628, %v3628
        %v3894 = vpack.c.bf16 %v3796, %v3796
        %v3895 = vpack.c.bf16 %v3800, %v3800
        %3896 = vmatprep.subr.bf16.mxu0 0
        %3897 = vmatpush1.bf16.xpose.msra.mxu0 %v3892
        %3898 = vmatprep.subr.bf16.mxu0 0
        %3899 = vmatpush1.bf16.xpose.msra.mxu0 0
        %3900 = vmatprep.subr.bf16.mxu0 0
        %3901 = vmatpush1.bf16.xpose.msra.mxu0 0
        %3902 = vmatprep.subr.bf16.mxu0 0
        %3903 = vmatpush1.bf16.xpose.msra.mxu0 0
        %3904 = vmatprep.subr.bf16.mxu0 0
        %3905 = vmatpush1.bf16.xpose.msra.mxu0 0
        %3906 = vmatprep.subr.bf16.mxu0 0
        %3907 = vmatpush1.bf16.xpose.msra.mxu0 0
        %3908 = vmatprep.subr.bf16.mxu0 0
        %3909 = vmatpush1.bf16.xpose.msra.mxu0 0
        %3910 = vmatprep.subr.bf16.mxu0 0
        %3911 = vmatpush1.bf16.xpose.msra.mxu0 0
        %3912 = vmatprep.subr.bf16.mxu0 0
        %3913 = vmatpush1.bf16.xpose.msra.mxu0 0
        %3914 = vmatprep.subr.bf16.mxu0 0
        %3915 = vmatpush1.bf16.xpose.msra.mxu0 0
        %3916 = vmatprep.subr.bf16.mxu0 0
        %3917 = vmatpush1.bf16.xpose.msra.mxu0 0
        %3918 = vmatprep.subr.bf16.mxu0 0
        %3919 = vmatpush1.bf16.xpose.msra.mxu0 0
        %3920 = vmatprep.subr.bf16.mxu0 0
        %3921 = vmatpush1.bf16.xpose.msra.mxu0 0
        %3922 = vmatprep.subr.bf16.mxu0 0
        %3923 = vmatpush1.bf16.xpose.msra.mxu0 0
        %3924 = vmatprep.subr.bf16.mxu0 0
        %3925 = vmatpush1.bf16.xpose.msra.mxu0 0
        %3926 = vmatprep.subr.bf16.mxu0 0
        %3927 = vmatpush1.bf16.xpose.msra.mxu0 0
        %3928 = vmatprep.mubr.bf16.mxu0 0
        %3929 = vmatmul.mubr.bf16.gmra.mrb[0].mxu0 %v3890
        %v3930 = vpop.f32.mrb[0].mxu0
        %v3931 = vadd.f32 0.0, %v3930
        %v3932 = vpop.f32.mrb[0].mxu0
        %v3933 = vpop.f32.mrb[0].mxu0
        %v3934 = vpop.f32.mrb[0].mxu0
        %3935 = vdwg.mxu0
        %3936 = vmatprep.subr.bf16.mxu0 0
        %3937 = vmatpush1.bf16.xpose.msra.mxu0 %v3893
        %3938 = vmatprep.subr.bf16.mxu0 0
        %3939 = vmatpush1.bf16.xpose.msra.mxu0 0
        %3940 = vmatprep.subr.bf16.mxu0 0
        %3941 = vmatpush1.bf16.xpose.msra.mxu0 0
        %3942 = vmatprep.subr.bf16.mxu0 0
        %3943 = vmatpush1.bf16.xpose.msra.mxu0 0
        %3944 = vmatprep.subr.bf16.mxu0 0
        %3945 = vmatpush1.bf16.xpose.msra.mxu0 0
        %3946 = vmatprep.subr.bf16.mxu0 0
        %3947 = vmatpush1.bf16.xpose.msra.mxu0 0
        %3948 = vmatprep.subr.bf16.mxu0 0
        %3949 = vmatpush1.bf16.xpose.msra.mxu0 0
        %3950 = vmatprep.subr.bf16.mxu0 0
        %3951 = vmatpush1.bf16.xpose.msra.mxu0 0
        %3952 = vmatprep.subr.bf16.mxu0 0
        %3953 = vmatpush1.bf16.xpose.msra.mxu0 0
        %3954 = vmatprep.subr.bf16.mxu0 0
        %3955 = vmatpush1.bf16.xpose.msra.mxu0 0
        %3956 = vmatprep.subr.bf16.mxu0 0
        %3957 = vmatpush1.bf16.xpose.msra.mxu0 0
        %3958 = vmatprep.subr.bf16.mxu0 0
        %3959 = vmatpush1.bf16.xpose.msra.mxu0 0
        %3960 = vmatprep.subr.bf16.mxu0 0
        %3961 = vmatpush1.bf16.xpose.msra.mxu0 0
        %3962 = vmatprep.subr.bf16.mxu0 0
        %3963 = vmatpush1.bf16.xpose.msra.mxu0 0
        %3964 = vmatprep.subr.bf16.mxu0 0
        %3965 = vmatpush1.bf16.xpose.msra.mxu0 0
        %3966 = vmatprep.subr.bf16.mxu0 0
        %3967 = vmatpush1.bf16.xpose.msra.mxu0 0
        %3968 = vmatprep.mubr.bf16.mxu0 0
        %3969 = vmatmul.mubr.bf16.gmra.mrb[0].mxu0 %v3891
        %v3970 = vpop.f32.mrb[0].mxu0
        %v3971 = vadd.f32 0.0, %v3970
        %v3972 = vpop.f32.mrb[0].mxu0
        %v3973 = vpop.f32.mrb[0].mxu0
        %v3974 = vpop.f32.mrb[0].mxu0
        %3975 = vdwg.mxu0
        %v3976 = vmul.f32 %v3931, 0.088388346
        %v3977 = vmul.f32 %v3971, 0.088388346
        %vm3978 = vcmask 64512
        %v3979 = vsel %vm3978, %v3976, -inf
        %3980 = vmax.xlane.f32.xlu0 %v3979
        %v3981 = vpop.xlane.xlu0 %3980
        %v3982 = vsel %vm3978, %v3977, -inf
        %3983 = vmax.xlane.f32.xlu0 %v3982
        %v3984 = vpop.xlane.xlu0 %3983
        %v3985 = vsub.f32 %v3976, %v3981
        %v3986 = vsub.f32 %v3977, %v3984
        %v3987 = vmul.f32 %v3985, 1.442695
        %v3988 = vpow.pop %v3987
        %v3989 = vmul.f32 %v3986, 1.442695
        %v3990 = vpow.pop %v3989
        %v3991 = vsel %vm3978, %v3988, 0.0
        %3992 = vadd.xlane.f32.xlu0 %v3991
        %v3993 = vpop.xlane.xlu0 %3992
        %v3994 = vsel %vm3978, %v3990, 0.0
        %3995 = vadd.xlane.f32.xlu0 %v3994
        %v3996 = vpop.xlane.xlu0 %3995
        %v3997 = vpack.c.bf16 %v3988, %v3988
        %v3998 = vpack.c.bf16 %v3990, %v3990
        %v4000 = vsel %vm3978, %v3997, 0
        %vm4002 = vcmask 1043456
        %v4004 = vsel %vm4002, %v3894, 0
        %4006 = vmatprep.subr.bf16.mxu0 0
        %4007 = vmatpush1.bf16.msra.mxu0 %v4004
        %4008 = vmatprep.subr.bf16.mxu0 0
        %4009 = vmatpush1.bf16.msra.mxu0 0
        %4010 = vmatprep.subr.bf16.mxu0 0
        %4011 = vmatpush1.bf16.msra.mxu0 0
        %4012 = vmatprep.subr.bf16.mxu0 0
        %4013 = vmatpush1.bf16.msra.mxu0 0
        %4014 = vmatprep.subr.bf16.mxu0 0
        %4015 = vmatpush1.bf16.msra.mxu0 0
        %4016 = vmatprep.subr.bf16.mxu0 0
        %4017 = vmatpush1.bf16.msra.mxu0 0
        %4018 = vmatprep.subr.bf16.mxu0 0
        %4019 = vmatpush1.bf16.msra.mxu0 0
        %4020 = vmatprep.subr.bf16.mxu0 0
        %4021 = vmatpush1.bf16.msra.mxu0 0
        %4022 = vmatprep.subr.bf16.mxu0 0
        %4023 = vmatpush1.bf16.msra.mxu0 0
        %4024 = vmatprep.subr.bf16.mxu0 0
        %4025 = vmatpush1.bf16.msra.mxu0 0
        %4026 = vmatprep.subr.bf16.mxu0 0
        %4027 = vmatpush1.bf16.msra.mxu0 0
        %4028 = vmatprep.subr.bf16.mxu0 0
        %4029 = vmatpush1.bf16.msra.mxu0 0
        %4030 = vmatprep.subr.bf16.mxu0 0
        %4031 = vmatpush1.bf16.msra.mxu0 0
        %4032 = vmatprep.subr.bf16.mxu0 0
        %4033 = vmatpush1.bf16.msra.mxu0 0
        %4034 = vmatprep.subr.bf16.mxu0 0
        %4035 = vmatpush1.bf16.msra.mxu0 0
        %4036 = vmatprep.subr.bf16.mxu0 0
        %4037 = vmatpush1.bf16.msra.mxu0 0
        %4038 = vmatprep.mubr.bf16.mxu0 0
        %4039 = vmatmul.mubr.bf16.gmra.mrb[0].mxu0 %v4000
        %v4040 = vpop.f32.mrb[0].mxu0
        %v4041 = vadd.f32 0.0, %v4040
        %v4042 = vpop.f32.mrb[0].mxu0
        %v4043 = vpop.f32.mrb[0].mxu0
        %v4044 = vpop.f32.mrb[0].mxu0
        %4045 = vdwg.mxu0
        %v4047 = vsel %vm3978, %v3998, 0
        %v4050 = vsel %vm4002, %v3895, 0
        %4052 = vmatprep.subr.bf16.mxu0 0
        %4053 = vmatpush1.bf16.msra.mxu0 %v4050
        %4054 = vmatprep.subr.bf16.mxu0 0
        %4055 = vmatpush1.bf16.msra.mxu0 0
        %4056 = vmatprep.subr.bf16.mxu0 0
        %4057 = vmatpush1.bf16.msra.mxu0 0
        %4058 = vmatprep.subr.bf16.mxu0 0
        %4059 = vmatpush1.bf16.msra.mxu0 0
        %4060 = vmatprep.subr.bf16.mxu0 0
        %4061 = vmatpush1.bf16.msra.mxu0 0
        %4062 = vmatprep.subr.bf16.mxu0 0
        %4063 = vmatpush1.bf16.msra.mxu0 0
        %4064 = vmatprep.subr.bf16.mxu0 0
        %4065 = vmatpush1.bf16.msra.mxu0 0
        %4066 = vmatprep.subr.bf16.mxu0 0
        %4067 = vmatpush1.bf16.msra.mxu0 0
        %4068 = vmatprep.subr.bf16.mxu0 0
        %4069 = vmatpush1.bf16.msra.mxu0 0
        %4070 = vmatprep.subr.bf16.mxu0 0
        %4071 = vmatpush1.bf16.msra.mxu0 0
        %4072 = vmatprep.subr.bf16.mxu0 0
        %4073 = vmatpush1.bf16.msra.mxu0 0
        %4074 = vmatprep.subr.bf16.mxu0 0
        %4075 = vmatpush1.bf16.msra.mxu0 0
        %4076 = vmatprep.subr.bf16.mxu0 0
        %4077 = vmatpush1.bf16.msra.mxu0 0
        %4078 = vmatprep.subr.bf16.mxu0 0
        %4079 = vmatpush1.bf16.msra.mxu0 0
        %4080 = vmatprep.subr.bf16.mxu0 0
        %4081 = vmatpush1.bf16.msra.mxu0 0
        %4082 = vmatprep.subr.bf16.mxu0 0
        %4083 = vmatpush1.bf16.msra.mxu0 0
        %4084 = vmatprep.mubr.bf16.mxu0 0
        %4085 = vmatmul.mubr.bf16.gmra.mrb[0].mxu0 %v4047
        %v4086 = vpop.f32.mrb[0].mxu0
        %v4087 = vadd.f32 0.0, %v4086
        %v4088 = vpop.f32.mrb[0].mxu0
        %v4089 = vpop.f32.mrb[0].mxu0
        %v4090 = vpop.f32.mrb[0].mxu0
        %4091 = vdwg.mxu0
        %v4092 = vrcp.pop %v3993
        %v4093 = vrcp.pop %v3996
        %v4094 = vmul.f32 %v4041, %v4092
        %v4095 = vmul.f32 %v4087, %v4093
        %v4096 = vpack.c.bf16 %v3454, %v3454
        %v4097 = vpack.c.bf16 %v3458, %v3458
        %v4098 = vpack.c.bf16 %v3626, %v3626
        %v4099 = vpack.c.bf16 %v3630, %v3630
        %v4100 = vpack.c.bf16 %v3798, %v3798
        %v4101 = vpack.c.bf16 %v3802, %v3802
        %4102 = vmatprep.subr.bf16.mxu0 0
        %4103 = vmatpush1.bf16.xpose.msra.mxu0 %v4098
        %4104 = vmatprep.subr.bf16.mxu0 0
        %4105 = vmatpush1.bf16.xpose.msra.mxu0 0
        %4106 = vmatprep.subr.bf16.mxu0 0
        %4107 = vmatpush1.bf16.xpose.msra.mxu0 0
        %4108 = vmatprep.subr.bf16.mxu0 0
        %4109 = vmatpush1.bf16.xpose.msra.mxu0 0
        %4110 = vmatprep.subr.bf16.mxu0 0
        %4111 = vmatpush1.bf16.xpose.msra.mxu0 0
        %4112 = vmatprep.subr.bf16.mxu0 0
        %4113 = vmatpush1.bf16.xpose.msra.mxu0 0
        %4114 = vmatprep.subr.bf16.mxu0 0
        %4115 = vmatpush1.bf16.xpose.msra.mxu0 0
        %4116 = vmatprep.subr.bf16.mxu0 0
        %4117 = vmatpush1.bf16.xpose.msra.mxu0 0
        %4118 = vmatprep.subr.bf16.mxu0 0
        %4119 = vmatpush1.bf16.xpose.msra.mxu0 0
        %4120 = vmatprep.subr.bf16.mxu0 0
        %4121 = vmatpush1.bf16.xpose.msra.mxu0 0
        %4122 = vmatprep.subr.bf16.mxu0 0
        %4123 = vmatpush1.bf16.xpose.msra.mxu0 0
        %4124 = vmatprep.subr.bf16.mxu0 0
        %4125 = vmatpush1.bf16.xpose.msra.mxu0 0
        %4126 = vmatprep.subr.bf16.mxu0 0
        %4127 = vmatpush1.bf16.xpose.msra.mxu0 0
        %4128 = vmatprep.subr.bf16.mxu0 0
        %4129 = vmatpush1.bf16.xpose.msra.mxu0 0
        %4130 = vmatprep.subr.bf16.mxu0 0
        %4131 = vmatpush1.bf16.xpose.msra.mxu0 0
        %4132 = vmatprep.subr.bf16.mxu0 0
        %4133 = vmatpush1.bf16.xpose.msra.mxu0 0
        %4134 = vmatprep.mubr.bf16.mxu0 0
        %4135 = vmatmul.mubr.bf16.gmra.mrb[0].mxu0 %v4096
        %v4136 = vpop.f32.mrb[0].mxu0
        %v4137 = vadd.f32 0.0, %v4136
        %v4138 = vpop.f32.mrb[0].mxu0
        %v4139 = vpop.f32.mrb[0].mxu0
        %v4140 = vpop.f32.mrb[0].mxu0
        %4141 = vdwg.mxu0
        %4142 = vmatprep.subr.bf16.mxu0 0
        %4143 = vmatpush1.bf16.xpose.msra.mxu0 %v4099
        %4144 = vmatprep.subr.bf16.mxu0 0
        %4145 = vmatpush1.bf16.xpose.msra.mxu0 0
        %4146 = vmatprep.subr.bf16.mxu0 0
        %4147 = vmatpush1.bf16.xpose.msra.mxu0 0
        %4148 = vmatprep.subr.bf16.mxu0 0
        %4149 = vmatpush1.bf16.xpose.msra.mxu0 0
        %4150 = vmatprep.subr.bf16.mxu0 0
        %4151 = vmatpush1.bf16.xpose.msra.mxu0 0
        %4152 = vmatprep.subr.bf16.mxu0 0
        %4153 = vmatpush1.bf16.xpose.msra.mxu0 0
        %4154 = vmatprep.subr.bf16.mxu0 0
        %4155 = vmatpush1.bf16.xpose.msra.mxu0 0
        %4156 = vmatprep.subr.bf16.mxu0 0
        %4157 = vmatpush1.bf16.xpose.msra.mxu0 0
        %4158 = vmatprep.subr.bf16.mxu0 0
        %4159 = vmatpush1.bf16.xpose.msra.mxu0 0
        %4160 = vmatprep.subr.bf16.mxu0 0
        %4161 = vmatpush1.bf16.xpose.msra.mxu0 0
        %4162 = vmatprep.subr.bf16.mxu0 0
        %4163 = vmatpush1.bf16.xpose.msra.mxu0 0
        %4164 = vmatprep.subr.bf16.mxu0 0
        %4165 = vmatpush1.bf16.xpose.msra.mxu0 0
        %4166 = vmatprep.subr.bf16.mxu0 0
        %4167 = vmatpush1.bf16.xpose.msra.mxu0 0
        %4168 = vmatprep.subr.bf16.mxu0 0
        %4169 = vmatpush1.bf16.xpose.msra.mxu0 0
        %4170 = vmatprep.subr.bf16.mxu0 0
        %4171 = vmatpush1.bf16.xpose.msra.mxu0 0
        %4172 = vmatprep.subr.bf16.mxu0 0
        %4173 = vmatpush1.bf16.xpose.msra.mxu0 0
        %4174 = vmatprep.mubr.bf16.mxu0 0
        %4175 = vmatmul.mubr.bf16.gmra.mrb[0].mxu0 %v4097
        %v4176 = vpop.f32.mrb[0].mxu0
        %v4177 = vadd.f32 0.0, %v4176
        %v4178 = vpop.f32.mrb[0].mxu0
        %v4179 = vpop.f32.mrb[0].mxu0
        %v4180 = vpop.f32.mrb[0].mxu0
        %4181 = vdwg.mxu0
        %v4182 = vmul.f32 %v4137, 0.088388346
        %v4183 = vmul.f32 %v4177, 0.088388346
        %v4184 = vsel %vm3978, %v4182, -inf
        %4185 = vmax.xlane.f32.xlu0 %v4184
        %v4186 = vpop.xlane.xlu0 %4185
        %v4187 = vsel %vm3978, %v4183, -inf
        %4188 = vmax.xlane.f32.xlu0 %v4187
        %v4189 = vpop.xlane.xlu0 %4188
        %v4190 = vsub.f32 %v4182, %v4186
        %v4191 = vsub.f32 %v4183, %v4189
        %v4192 = vmul.f32 %v4190, 1.442695
        %v4193 = vpow.pop %v4192
        %v4194 = vmul.f32 %v4191, 1.442695
        %v4195 = vpow.pop %v4194
        %v4196 = vsel %vm3978, %v4193, 0.0
        %4197 = vadd.xlane.f32.xlu0 %v4196
        %v4198 = vpop.xlane.xlu0 %4197
        %v4199 = vsel %vm3978, %v4195, 0.0
        %4200 = vadd.xlane.f32.xlu0 %v4199
        %v4201 = vpop.xlane.xlu0 %4200
        %v4202 = vpack.c.bf16 %v4193, %v4193
        %v4203 = vpack.c.bf16 %v4195, %v4195
        %v4205 = vsel %vm3978, %v4202, 0
        %v4208 = vsel %vm4002, %v4100, 0
        %4210 = vmatprep.subr.bf16.mxu0 0
        %4211 = vmatpush1.bf16.msra.mxu0 %v4208
        %4212 = vmatprep.subr.bf16.mxu0 0
        %4213 = vmatpush1.bf16.msra.mxu0 0
        %4214 = vmatprep.subr.bf16.mxu0 0
        %4215 = vmatpush1.bf16.msra.mxu0 0
        %4216 = vmatprep.subr.bf16.mxu0 0
        %4217 = vmatpush1.bf16.msra.mxu0 0
        %4218 = vmatprep.subr.bf16.mxu0 0
        %4219 = vmatpush1.bf16.msra.mxu0 0
        %4220 = vmatprep.subr.bf16.mxu0 0
        %4221 = vmatpush1.bf16.msra.mxu0 0
        %4222 = vmatprep.subr.bf16.mxu0 0
        %4223 = vmatpush1.bf16.msra.mxu0 0
        %4224 = vmatprep.subr.bf16.mxu0 0
        %4225 = vmatpush1.bf16.msra.mxu0 0
        %4226 = vmatprep.subr.bf16.mxu0 0
        %4227 = vmatpush1.bf16.msra.mxu0 0
        %4228 = vmatprep.subr.bf16.mxu0 0
        %4229 = vmatpush1.bf16.msra.mxu0 0
        %4230 = vmatprep.subr.bf16.mxu0 0
        %4231 = vmatpush1.bf16.msra.mxu0 0
        %4232 = vmatprep.subr.bf16.mxu0 0
        %4233 = vmatpush1.bf16.msra.mxu0 0
        %4234 = vmatprep.subr.bf16.mxu0 0
        %4235 = vmatpush1.bf16.msra.mxu0 0
        %4236 = vmatprep.subr.bf16.mxu0 0
        %4237 = vmatpush1.bf16.msra.mxu0 0
        %4238 = vmatprep.subr.bf16.mxu0 0
        %4239 = vmatpush1.bf16.msra.mxu0 0
        %4240 = vmatprep.subr.bf16.mxu0 0
        %4241 = vmatpush1.bf16.msra.mxu0 0
        %4242 = vmatprep.mubr.bf16.mxu0 0
        %4243 = vmatmul.mubr.bf16.gmra.mrb[0].mxu0 %v4205
        %v4244 = vpop.f32.mrb[0].mxu0
        %v4245 = vadd.f32 0.0, %v4244
        %v4246 = vpop.f32.mrb[0].mxu0
        %v4247 = vpop.f32.mrb[0].mxu0
        %v4248 = vpop.f32.mrb[0].mxu0
        %4249 = vdwg.mxu0
        %v4251 = vsel %vm3978, %v4203, 0
        %v4254 = vsel %vm4002, %v4101, 0
        %4256 = vmatprep.subr.bf16.mxu0 0
        %4257 = vmatpush1.bf16.msra.mxu0 %v4254
        %4258 = vmatprep.subr.bf16.mxu0 0
        %4259 = vmatpush1.bf16.msra.mxu0 0
        %4260 = vmatprep.subr.bf16.mxu0 0
        %4261 = vmatpush1.bf16.msra.mxu0 0
        %4262 = vmatprep.subr.bf16.mxu0 0
        %4263 = vmatpush1.bf16.msra.mxu0 0
        %4264 = vmatprep.subr.bf16.mxu0 0
        %4265 = vmatpush1.bf16.msra.mxu0 0
        %4266 = vmatprep.subr.bf16.mxu0 0
        %4267 = vmatpush1.bf16.msra.mxu0 0
        %4268 = vmatprep.subr.bf16.mxu0 0
        %4269 = vmatpush1.bf16.msra.mxu0 0
        %4270 = vmatprep.subr.bf16.mxu0 0
        %4271 = vmatpush1.bf16.msra.mxu0 0
        %4272 = vmatprep.subr.bf16.mxu0 0
        %4273 = vmatpush1.bf16.msra.mxu0 0
        %4274 = vmatprep.subr.bf16.mxu0 0
        %4275 = vmatpush1.bf16.msra.mxu0 0
        %4276 = vmatprep.subr.bf16.mxu0 0
        %4277 = vmatpush1.bf16.msra.mxu0 0
        %4278 = vmatprep.subr.bf16.mxu0 0
        %4279 = vmatpush1.bf16.msra.mxu0 0
        %4280 = vmatprep.subr.bf16.mxu0 0
        %4281 = vmatpush1.bf16.msra.mxu0 0
        %4282 = vmatprep.subr.bf16.mxu0 0
        %4283 = vmatpush1.bf16.msra.mxu0 0
        %4284 = vmatprep.subr.bf16.mxu0 0
        %4285 = vmatpush1.bf16.msra.mxu0 0
        %4286 = vmatprep.subr.bf16.mxu0 0
        %4287 = vmatpush1.bf16.msra.mxu0 0
        %4288 = vmatprep.mubr.bf16.mxu0 0
        %4289 = vmatmul.mubr.bf16.gmra.mrb[0].mxu0 %v4251
        %v4290 = vpop.f32.mrb[0].mxu0
        %v4291 = vadd.f32 0.0, %v4290
        %v4292 = vpop.f32.mrb[0].mxu0
        %v4293 = vpop.f32.mrb[0].mxu0
        %v4294 = vpop.f32.mrb[0].mxu0
        %4295 = vdwg.mxu0
        %v4296 = vrcp.pop %v4198
        %v4297 = vrcp.pop %v4201
        %v4298 = vmul.f32 %v4245, %v4296
        %v4299 = vmul.f32 %v4291, %v4297
        %v4300 = vpack.c.bf16 %v3538, %v3538
        %v4301 = vpack.c.bf16 %v3542, %v3542
        %v4302 = vpack.c.bf16 %v3710, %v3710
        %v4303 = vpack.c.bf16 %v3714, %v3714
        %v4304 = vpack.c.bf16 %v3882, %v3882
        %v4305 = vpack.c.bf16 %v3886, %v3886
        %4306 = vmatprep.subr.bf16.mxu0 0
        %4307 = vmatpush1.bf16.xpose.msra.mxu0 %v4302
        %4308 = vmatprep.subr.bf16.mxu0 0
        %4309 = vmatpush1.bf16.xpose.msra.mxu0 0
        %4310 = vmatprep.subr.bf16.mxu0 0
        %4311 = vmatpush1.bf16.xpose.msra.mxu0 0
        %4312 = vmatprep.subr.bf16.mxu0 0
        %4313 = vmatpush1.bf16.xpose.msra.mxu0 0
        %4314 = vmatprep.subr.bf16.mxu0 0
        %4315 = vmatpush1.bf16.xpose.msra.mxu0 0
        %4316 = vmatprep.subr.bf16.mxu0 0
        %4317 = vmatpush1.bf16.xpose.msra.mxu0 0
        %4318 = vmatprep.subr.bf16.mxu0 0
        %4319 = vmatpush1.bf16.xpose.msra.mxu0 0
        %4320 = vmatprep.subr.bf16.mxu0 0
        %4321 = vmatpush1.bf16.xpose.msra.mxu0 0
        %4322 = vmatprep.subr.bf16.mxu0 0
        %4323 = vmatpush1.bf16.xpose.msra.mxu0 0
        %4324 = vmatprep.subr.bf16.mxu0 0
        %4325 = vmatpush1.bf16.xpose.msra.mxu0 0
        %4326 = vmatprep.subr.bf16.mxu0 0
        %4327 = vmatpush1.bf16.xpose.msra.mxu0 0
        %4328 = vmatprep.subr.bf16.mxu0 0
        %4329 = vmatpush1.bf16.xpose.msra.mxu0 0
        %4330 = vmatprep.subr.bf16.mxu0 0
        %4331 = vmatpush1.bf16.xpose.msra.mxu0 0
        %4332 = vmatprep.subr.bf16.mxu0 0
        %4333 = vmatpush1.bf16.xpose.msra.mxu0 0
        %4334 = vmatprep.subr.bf16.mxu0 0
        %4335 = vmatpush1.bf16.xpose.msra.mxu0 0
        %4336 = vmatprep.subr.bf16.mxu0 0
        %4337 = vmatpush1.bf16.xpose.msra.mxu0 0
        %4338 = vmatprep.mubr.bf16.mxu0 0
        %4339 = vmatmul.mubr.bf16.gmra.mrb[0].mxu0 %v4300
        %v4340 = vpop.f32.mrb[0].mxu0
        %v4341 = vadd.f32 0.0, %v4340
        %v4342 = vpop.f32.mrb[0].mxu0
        %v4343 = vpop.f32.mrb[0].mxu0
        %v4344 = vpop.f32.mrb[0].mxu0
        %4345 = vdwg.mxu0
        %4346 = vmatprep.subr.bf16.mxu0 0
        %4347 = vmatpush1.bf16.xpose.msra.mxu0 %v4303
        %4348 = vmatprep.subr.bf16.mxu0 0
        %4349 = vmatpush1.bf16.xpose.msra.mxu0 0
        %4350 = vmatprep.subr.bf16.mxu0 0
        %4351 = vmatpush1.bf16.xpose.msra.mxu0 0
        %4352 = vmatprep.subr.bf16.mxu0 0
        %4353 = vmatpush1.bf16.xpose.msra.mxu0 0
        %4354 = vmatprep.subr.bf16.mxu0 0
        %4355 = vmatpush1.bf16.xpose.msra.mxu0 0
        %4356 = vmatprep.subr.bf16.mxu0 0
        %4357 = vmatpush1.bf16.xpose.msra.mxu0 0
        %4358 = vmatprep.subr.bf16.mxu0 0
        %4359 = vmatpush1.bf16.xpose.msra.mxu0 0
        %4360 = vmatprep.subr.bf16.mxu0 0
        %4361 = vmatpush1.bf16.xpose.msra.mxu0 0
        %4362 = vmatprep.subr.bf16.mxu0 0
        %4363 = vmatpush1.bf16.xpose.msra.mxu0 0
        %4364 = vmatprep.subr.bf16.mxu0 0
        %4365 = vmatpush1.bf16.xpose.msra.mxu0 0
        %4366 = vmatprep.subr.bf16.mxu0 0
        %4367 = vmatpush1.bf16.xpose.msra.mxu0 0
        %4368 = vmatprep.subr.bf16.mxu0 0
        %4369 = vmatpush1.bf16.xpose.msra.mxu0 0
        %4370 = vmatprep.subr.bf16.mxu0 0
        %4371 = vmatpush1.bf16.xpose.msra.mxu0 0
        %4372 = vmatprep.subr.bf16.mxu0 0
        %4373 = vmatpush1.bf16.xpose.msra.mxu0 0
        %4374 = vmatprep.subr.bf16.mxu0 0
        %4375 = vmatpush1.bf16.xpose.msra.mxu0 0
        %4376 = vmatprep.subr.bf16.mxu0 0
        %4377 = vmatpush1.bf16.xpose.msra.mxu0 0
        %4378 = vmatprep.mubr.bf16.mxu0 0
        %4379 = vmatmul.mubr.bf16.gmra.mrb[0].mxu0 %v4301
        %v4380 = vpop.f32.mrb[0].mxu0
        %v4381 = vadd.f32 0.0, %v4380
        %v4382 = vpop.f32.mrb[0].mxu0
        %v4383 = vpop.f32.mrb[0].mxu0
        %v4384 = vpop.f32.mrb[0].mxu0
        %4385 = vdwg.mxu0
        %v4386 = vmul.f32 %v4341, 0.088388346
        %v4387 = vmul.f32 %v4381, 0.088388346
        %v4388 = vsel %vm3978, %v4386, -inf
        %4389 = vmax.xlane.f32.xlu0 %v4388
        %v4390 = vpop.xlane.xlu0 %4389
        %v4391 = vsel %vm3978, %v4387, -inf
        %4392 = vmax.xlane.f32.xlu0 %v4391
        %v4393 = vpop.xlane.xlu0 %4392
        %v4394 = vsub.f32 %v4386, %v4390
        %v4395 = vsub.f32 %v4387, %v4393
        %v4396 = vmul.f32 %v4394, 1.442695
        %v4397 = vpow.pop %v4396
        %v4398 = vmul.f32 %v4395, 1.442695
        %v4399 = vpow.pop %v4398
        %v4400 = vsel %vm3978, %v4397, 0.0
        %4401 = vadd.xlane.f32.xlu0 %v4400
        %v4402 = vpop.xlane.xlu0 %4401
        %v4403 = vsel %vm3978, %v4399, 0.0
        %4404 = vadd.xlane.f32.xlu0 %v4403
        %v4405 = vpop.xlane.xlu0 %4404
        %v4406 = vpack.c.bf16 %v4397, %v4397
        %v4407 = vpack.c.bf16 %v4399, %v4399
        %v4409 = vsel %vm3978, %v4406, 0
        %v4412 = vsel %vm4002, %v4304, 0
        %4414 = vmatprep.subr.bf16.mxu0 0
        %4415 = vmatpush1.bf16.msra.mxu0 %v4412
        %4416 = vmatprep.subr.bf16.mxu0 0
        %4417 = vmatpush1.bf16.msra.mxu0 0
        %4418 = vmatprep.subr.bf16.mxu0 0
        %4419 = vmatpush1.bf16.msra.mxu0 0
        %4420 = vmatprep.subr.bf16.mxu0 0
        %4421 = vmatpush1.bf16.msra.mxu0 0
        %4422 = vmatprep.subr.bf16.mxu0 0
        %4423 = vmatpush1.bf16.msra.mxu0 0
        %4424 = vmatprep.subr.bf16.mxu0 0
        %4425 = vmatpush1.bf16.msra.mxu0 0
        %4426 = vmatprep.subr.bf16.mxu0 0
        %4427 = vmatpush1.bf16.msra.mxu0 0
        %4428 = vmatprep.subr.bf16.mxu0 0
        %4429 = vmatpush1.bf16.msra.mxu0 0
        %4430 = vmatprep.subr.bf16.mxu0 0
        %4431 = vmatpush1.bf16.msra.mxu0 0
        %4432 = vmatprep.subr.bf16.mxu0 0
        %4433 = vmatpush1.bf16.msra.mxu0 0
        %4434 = vmatprep.subr.bf16.mxu0 0
        %4435 = vmatpush1.bf16.msra.mxu0 0
        %4436 = vmatprep.subr.bf16.mxu0 0
        %4437 = vmatpush1.bf16.msra.mxu0 0
        %4438 = vmatprep.subr.bf16.mxu0 0
        %4439 = vmatpush1.bf16.msra.mxu0 0
        %4440 = vmatprep.subr.bf16.mxu0 0
        %4441 = vmatpush1.bf16.msra.mxu0 0
        %4442 = vmatprep.subr.bf16.mxu0 0
        %4443 = vmatpush1.bf16.msra.mxu0 0
        %4444 = vmatprep.subr.bf16.mxu0 0
        %4445 = vmatpush1.bf16.msra.mxu0 0
        %4446 = vmatprep.mubr.bf16.mxu0 0
        %4447 = vmatmul.mubr.bf16.gmra.mrb[0].mxu0 %v4409
        %v4448 = vpop.f32.mrb[0].mxu0
        %v4449 = vadd.f32 0.0, %v4448
        %v4450 = vpop.f32.mrb[0].mxu0
        %v4451 = vpop.f32.mrb[0].mxu0
        %v4452 = vpop.f32.mrb[0].mxu0
        %4453 = vdwg.mxu0
        %v4455 = vsel %vm3978, %v4407, 0
        %v4458 = vsel %vm4002, %v4305, 0
        %4460 = vmatprep.subr.bf16.mxu0 0
        %4461 = vmatpush1.bf16.msra.mxu0 %v4458
        %4462 = vmatprep.subr.bf16.mxu0 0
        %4463 = vmatpush1.bf16.msra.mxu0 0
        %4464 = vmatprep.subr.bf16.mxu0 0
        %4465 = vmatpush1.bf16.msra.mxu0 0
        %4466 = vmatprep.subr.bf16.mxu0 0
        %4467 = vmatpush1.bf16.msra.mxu0 0
        %4468 = vmatprep.subr.bf16.mxu0 0
        %4469 = vmatpush1.bf16.msra.mxu0 0
        %4470 = vmatprep.subr.bf16.mxu0 0
        %4471 = vmatpush1.bf16.msra.mxu0 0
        %4472 = vmatprep.subr.bf16.mxu0 0
        %4473 = vmatpush1.bf16.msra.mxu0 0
        %4474 = vmatprep.subr.bf16.mxu0 0
        %4475 = vmatpush1.bf16.msra.mxu0 0
        %4476 = vmatprep.subr.bf16.mxu0 0
        %4477 = vmatpush1.bf16.msra.mxu0 0
        %4478 = vmatprep.subr.bf16.mxu0 0
        %4479 = vmatpush1.bf16.msra.mxu0 0
        %4480 = vmatprep.subr.bf16.mxu0 0
        %4481 = vmatpush1.bf16.msra.mxu0 0
        %4482 = vmatprep.subr.bf16.mxu0 0
        %4483 = vmatpush1.bf16.msra.mxu0 0
        %4484 = vmatprep.subr.bf16.mxu0 0
        %4485 = vmatpush1.bf16.msra.mxu0 0
        %4486 = vmatprep.subr.bf16.mxu0 0
        %4487 = vmatpush1.bf16.msra.mxu0 0
        %4488 = vmatprep.subr.bf16.mxu0 0
        %4489 = vmatpush1.bf16.msra.mxu0 0
        %4490 = vmatprep.subr.bf16.mxu0 0
        %4491 = vmatpush1.bf16.msra.mxu0 0
        %4492 = vmatprep.mubr.bf16.mxu0 0
        %4493 = vmatmul.mubr.bf16.gmra.mrb[0].mxu0 %v4455
        %v4494 = vpop.f32.mrb[0].mxu0
        %v4495 = vadd.f32 0.0, %v4494
        %v4496 = vpop.f32.mrb[0].mxu0
        %v4497 = vpop.f32.mrb[0].mxu0
        %v4498 = vpop.f32.mrb[0].mxu0
        %4499 = vdwg.mxu0
        %v4500 = vrcp.pop %v4402
        %v4501 = vrcp.pop %v4405
        %v4502 = vmul.f32 %v4449, %v4500
        %v4503 = vmul.f32 %v4495, %v4501
        %v4504 = vpack.c.bf16 %v3540, %v3540
        %v4505 = vpack.c.bf16 %v3544, %v3544
        %v4506 = vpack.c.bf16 %v3712, %v3712
        %v4507 = vpack.c.bf16 %v3716, %v3716
        %v4508 = vpack.c.bf16 %v3884, %v3884
        %v4509 = vpack.c.bf16 %v3888, %v3888
        %4510 = vmatprep.subr.bf16.mxu0 0
        %4511 = vmatpush1.bf16.xpose.msra.mxu0 %v4506
        %4512 = vmatprep.subr.bf16.mxu0 0
        %4513 = vmatpush1.bf16.xpose.msra.mxu0 0
        %4514 = vmatprep.subr.bf16.mxu0 0
        %4515 = vmatpush1.bf16.xpose.msra.mxu0 0
        %4516 = vmatprep.subr.bf16.mxu0 0
        %4517 = vmatpush1.bf16.xpose.msra.mxu0 0
        %4518 = vmatprep.subr.bf16.mxu0 0
        %4519 = vmatpush1.bf16.xpose.msra.mxu0 0
        %4520 = vmatprep.subr.bf16.mxu0 0
        %4521 = vmatpush1.bf16.xpose.msra.mxu0 0
        %4522 = vmatprep.subr.bf16.mxu0 0
        %4523 = vmatpush1.bf16.xpose.msra.mxu0 0
        %4524 = vmatprep.subr.bf16.mxu0 0
        %4525 = vmatpush1.bf16.xpose.msra.mxu0 0
        %4526 = vmatprep.subr.bf16.mxu0 0
        %4527 = vmatpush1.bf16.xpose.msra.mxu0 0
        %4528 = vmatprep.subr.bf16.mxu0 0
        %4529 = vmatpush1.bf16.xpose.msra.mxu0 0
        %4530 = vmatprep.subr.bf16.mxu0 0
        %4531 = vmatpush1.bf16.xpose.msra.mxu0 0
        %4532 = vmatprep.subr.bf16.mxu0 0
        %4533 = vmatpush1.bf16.xpose.msra.mxu0 0
        %4534 = vmatprep.subr.bf16.mxu0 0
        %4535 = vmatpush1.bf16.xpose.msra.mxu0 0
        %4536 = vmatprep.subr.bf16.mxu0 0
        %4537 = vmatpush1.bf16.xpose.msra.mxu0 0
        %4538 = vmatprep.subr.bf16.mxu0 0
        %4539 = vmatpush1.bf16.xpose.msra.mxu0 0
        %4540 = vmatprep.subr.bf16.mxu0 0
        %4541 = vmatpush1.bf16.xpose.msra.mxu0 0
        %4542 = vmatprep.mubr.bf16.mxu0 0
        %4543 = vmatmul.mubr.bf16.gmra.mrb[0].mxu0 %v4504
        %v4544 = vpop.f32.mrb[0].mxu0
        %v4545 = vadd.f32 0.0, %v4544
        %v4546 = vpop.f32.mrb[0].mxu0
        %v4547 = vpop.f32.mrb[0].mxu0
        %v4548 = vpop.f32.mrb[0].mxu0
        %4549 = vdwg.mxu0
        %4550 = vmatprep.subr.bf16.mxu0 0
        %4551 = vmatpush1.bf16.xpose.msra.mxu0 %v4507
        %4552 = vmatprep.subr.bf16.mxu0 0
        %4553 = vmatpush1.bf16.xpose.msra.mxu0 0
        %4554 = vmatprep.subr.bf16.mxu0 0
        %4555 = vmatpush1.bf16.xpose.msra.mxu0 0
        %4556 = vmatprep.subr.bf16.mxu0 0
        %4557 = vmatpush1.bf16.xpose.msra.mxu0 0
        %4558 = vmatprep.subr.bf16.mxu0 0
        %4559 = vmatpush1.bf16.xpose.msra.mxu0 0
        %4560 = vmatprep.subr.bf16.mxu0 0
        %4561 = vmatpush1.bf16.xpose.msra.mxu0 0
        %4562 = vmatprep.subr.bf16.mxu0 0
        %4563 = vmatpush1.bf16.xpose.msra.mxu0 0
        %4564 = vmatprep.subr.bf16.mxu0 0
        %4565 = vmatpush1.bf16.xpose.msra.mxu0 0
        %4566 = vmatprep.subr.bf16.mxu0 0
        %4567 = vmatpush1.bf16.xpose.msra.mxu0 0
        %4568 = vmatprep.subr.bf16.mxu0 0
        %4569 = vmatpush1.bf16.xpose.msra.mxu0 0
        %4570 = vmatprep.subr.bf16.mxu0 0
        %4571 = vmatpush1.bf16.xpose.msra.mxu0 0
        %4572 = vmatprep.subr.bf16.mxu0 0
        %4573 = vmatpush1.bf16.xpose.msra.mxu0 0
        %4574 = vmatprep.subr.bf16.mxu0 0
        %4575 = vmatpush1.bf16.xpose.msra.mxu0 0
        %4576 = vmatprep.subr.bf16.mxu0 0
        %4577 = vmatpush1.bf16.xpose.msra.mxu0 0
        %4578 = vmatprep.subr.bf16.mxu0 0
        %4579 = vmatpush1.bf16.xpose.msra.mxu0 0
        %4580 = vmatprep.subr.bf16.mxu0 0
        %4581 = vmatpush1.bf16.xpose.msra.mxu0 0
        %4582 = vmatprep.mubr.bf16.mxu0 0
        %4583 = vmatmul.mubr.bf16.gmra.mrb[0].mxu0 %v4505
        %v4584 = vpop.f32.mrb[0].mxu0
        %v4585 = vadd.f32 0.0, %v4584
        %v4586 = vpop.f32.mrb[0].mxu0
        %v4587 = vpop.f32.mrb[0].mxu0
        %v4588 = vpop.f32.mrb[0].mxu0
        %4589 = vdwg.mxu0
        %v4590 = vmul.f32 %v4545, 0.088388346
        %v4591 = vmul.f32 %v4585, 0.088388346
        %v4592 = vsel %vm3978, %v4590, -inf
        %4593 = vmax.xlane.f32.xlu0 %v4592
        %v4594 = vpop.xlane.xlu0 %4593
        %v4595 = vsel %vm3978, %v4591, -inf
        %4596 = vmax.xlane.f32.xlu0 %v4595
        %v4597 = vpop.xlane.xlu0 %4596
        %v4598 = vsub.f32 %v4590, %v4594
        %v4599 = vsub.f32 %v4591, %v4597
        %v4600 = vmul.f32 %v4598, 1.442695
        %v4601 = vpow.pop %v4600
        %v4602 = vmul.f32 %v4599, 1.442695
        %v4603 = vpow.pop %v4602
        %v4604 = vsel %vm3978, %v4601, 0.0
        %4605 = vadd.xlane.f32.xlu0 %v4604
        %v4606 = vpop.xlane.xlu0 %4605
        %v4607 = vsel %vm3978, %v4603, 0.0
        %4608 = vadd.xlane.f32.xlu0 %v4607
        %v4609 = vpop.xlane.xlu0 %4608
        %v4610 = vpack.c.bf16 %v4601, %v4601
        %v4611 = vpack.c.bf16 %v4603, %v4603
        %v4613 = vsel %vm3978, %v4610, 0
        %v4616 = vsel %vm4002, %v4508, 0
        %4618 = vmatprep.subr.bf16.mxu0 0
        %4619 = vmatpush1.bf16.msra.mxu0 %v4616
        %4620 = vmatprep.subr.bf16.mxu0 0
        %4621 = vmatpush1.bf16.msra.mxu0 0
        %4622 = vmatprep.subr.bf16.mxu0 0
        %4623 = vmatpush1.bf16.msra.mxu0 0
        %4624 = vmatprep.subr.bf16.mxu0 0
        %4625 = vmatpush1.bf16.msra.mxu0 0
        %4626 = vmatprep.subr.bf16.mxu0 0
        %4627 = vmatpush1.bf16.msra.mxu0 0
        %4628 = vmatprep.subr.bf16.mxu0 0
        %4629 = vmatpush1.bf16.msra.mxu0 0
        %4630 = vmatprep.subr.bf16.mxu0 0
        %4631 = vmatpush1.bf16.msra.mxu0 0
        %4632 = vmatprep.subr.bf16.mxu0 0
        %4633 = vmatpush1.bf16.msra.mxu0 0
        %4634 = vmatprep.subr.bf16.mxu0 0
        %4635 = vmatpush1.bf16.msra.mxu0 0
        %4636 = vmatprep.subr.bf16.mxu0 0
        %4637 = vmatpush1.bf16.msra.mxu0 0
        %4638 = vmatprep.subr.bf16.mxu0 0
        %4639 = vmatpush1.bf16.msra.mxu0 0
        %4640 = vmatprep.subr.bf16.mxu0 0
        %4641 = vmatpush1.bf16.msra.mxu0 0
        %4642 = vmatprep.subr.bf16.mxu0 0
        %4643 = vmatpush1.bf16.msra.mxu0 0
        %4644 = vmatprep.subr.bf16.mxu0 0
        %4645 = vmatpush1.bf16.msra.mxu0 0
        %4646 = vmatprep.subr.bf16.mxu0 0
        %4647 = vmatpush1.bf16.msra.mxu0 0
        %4648 = vmatprep.subr.bf16.mxu0 0
        %4649 = vmatpush1.bf16.msra.mxu0 0
        %4650 = vmatprep.mubr.bf16.mxu0 0
        %4651 = vmatmul.mubr.bf16.gmra.mrb[0].mxu0 %v4613
        %v4652 = vpop.f32.mrb[0].mxu0
        %v4653 = vadd.f32 0.0, %v4652
        %v4654 = vpop.f32.mrb[0].mxu0
        %v4655 = vpop.f32.mrb[0].mxu0
        %v4656 = vpop.f32.mrb[0].mxu0
        %4657 = vdwg.mxu0
        %v4659 = vsel %vm3978, %v4611, 0
        %v4662 = vsel %vm4002, %v4509, 0
        %4664 = vmatprep.subr.bf16.mxu0 0
        %4665 = vmatpush1.bf16.msra.mxu0 %v4662
        %4666 = vmatprep.subr.bf16.mxu0 0
        %4667 = vmatpush1.bf16.msra.mxu0 0
        %4668 = vmatprep.subr.bf16.mxu0 0
        %4669 = vmatpush1.bf16.msra.mxu0 0
        %4670 = vmatprep.subr.bf16.mxu0 0
        %4671 = vmatpush1.bf16.msra.mxu0 0
        %4672 = vmatprep.subr.bf16.mxu0 0
        %4673 = vmatpush1.bf16.msra.mxu0 0
        %4674 = vmatprep.subr.bf16.mxu0 0
        %4675 = vmatpush1.bf16.msra.mxu0 0
        %4676 = vmatprep.subr.bf16.mxu0 0
        %4677 = vmatpush1.bf16.msra.mxu0 0
        %4678 = vmatprep.subr.bf16.mxu0 0
        %4679 = vmatpush1.bf16.msra.mxu0 0
        %4680 = vmatprep.subr.bf16.mxu0 0
        %4681 = vmatpush1.bf16.msra.mxu0 0
        %4682 = vmatprep.subr.bf16.mxu0 0
        %4683 = vmatpush1.bf16.msra.mxu0 0
        %4684 = vmatprep.subr.bf16.mxu0 0
        %4685 = vmatpush1.bf16.msra.mxu0 0
        %4686 = vmatprep.subr.bf16.mxu0 0
        %4687 = vmatpush1.bf16.msra.mxu0 0
        %4688 = vmatprep.subr.bf16.mxu0 0
        %4689 = vmatpush1.bf16.msra.mxu0 0
        %4690 = vmatprep.subr.bf16.mxu0 0
        %4691 = vmatpush1.bf16.msra.mxu0 0
        %4692 = vmatprep.subr.bf16.mxu0 0
        %4693 = vmatpush1.bf16.msra.mxu0 0
        %4694 = vmatprep.subr.bf16.mxu0 0
        %4695 = vmatpush1.bf16.msra.mxu0 0
        %4696 = vmatprep.mubr.bf16.mxu0 0
        %4697 = vmatmul.mubr.bf16.gmra.mrb[0].mxu0 %v4659
        %v4698 = vpop.f32.mrb[0].mxu0
        %v4699 = vadd.f32 0.0, %v4698
        %v4700 = vpop.f32.mrb[0].mxu0
        %v4701 = vpop.f32.mrb[0].mxu0
        %v4702 = vpop.f32.mrb[0].mxu0
        %4703 = vdwg.mxu0
        %v4704 = vrcp.pop %v4606
        %v4705 = vrcp.pop %v4609
        %v4706 = vmul.f32 %v4653, %v4704
        %v4707 = vmul.f32 %v4699, %v4705
        %v4708 = vpack.c.bf16 %v4095, %v4094
        %v4709 = vpack.c.bf16 %v4299, %v4298
        %v4710 = vpack.c.bf16 %v4503, %v4502
        %v4711 = vpack.c.bf16 %v4707, %v4706
        %v4712 = vld [vmem:[%s777] sm:$0xff]
        %v4713 = vld [vmem:[%s777 + $0x8] sm:$0xff]
        %v4714 = vld [vmem:[%s777 + $0x10] sm:$0xff]
        %v4715 = vld [vmem:[%s777 + $0x18] sm:$0xff]
        %v4716 = vld [vmem:[%s777 + $0x20] sm:$0xff]
        %v4717 = vld [vmem:[%s777 + $0x28] sm:$0xff]
        %v4718 = vld [vmem:[%s777 + $0x30] sm:$0xff]
        %v4719 = vld [vmem:[%s777 + $0x38] sm:$0xff]
        %v4720 = vld [vmem:[%s777 + $0x40] sm:$0xff]
        %v4721 = vld [vmem:[%s777 + $0x48] sm:$0xff]
        %v4722 = vld [vmem:[%s777 + $0x50] sm:$0xff]
        %v4723 = vld [vmem:[%s777 + $0x58] sm:$0xff]
        %v4724 = vld [vmem:[%s777 + $0x60] sm:$0xff]
        %v4725 = vld [vmem:[%s777 + $0x68] sm:$0xff]
        %v4726 = vld [vmem:[%s777 + $0x70] sm:$0xff]
        %v4727 = vld [vmem:[%s777 + $0x78] sm:$0xff]
        %v4728 = vld [vmem:[%s777 + $0x80] sm:$0xff]
        %v4729 = vld [vmem:[%s777 + $0x88] sm:$0xff]
        %v4730 = vld [vmem:[%s777 + $0x90] sm:$0xff]
        %v4731 = vld [vmem:[%s777 + $0x98] sm:$0xff]
        %v4732 = vld [vmem:[%s777 + $0xa0] sm:$0xff]
        %v4733 = vld [vmem:[%s777 + $0xa8] sm:$0xff]
        %v4734 = vld [vmem:[%s777 + $0xb0] sm:$0xff]
        %v4735 = vld [vmem:[%s777 + $0xb8] sm:$0xff]
        %v4736 = vld [vmem:[%s777 + $0xc0] sm:$0xff]
        %v4737 = vld [vmem:[%s777 + $0xc8] sm:$0xff]
        %v4738 = vld [vmem:[%s777 + $0xd0] sm:$0xff]
        %v4739 = vld [vmem:[%s777 + $0xd8] sm:$0xff]
        %v4740 = vld [vmem:[%s777 + $0xe0] sm:$0xff]
        %v4741 = vld [vmem:[%s777 + $0xe8] sm:$0xff]
        %v4742 = vld [vmem:[%s777 + $0xf0] sm:$0xff]
        %v4743 = vld [vmem:[%s777 + $0xf8] sm:$0xff]
        %v4744 = vld [vmem:[%s777 + $0x100] sm:$0xff]
        %v4745 = vld [vmem:[%s777 + $0x108] sm:$0xff]
        %v4746 = vld [vmem:[%s777 + $0x110] sm:$0xff]
        %v4747 = vld [vmem:[%s777 + $0x118] sm:$0xff]
        %v4748 = vld [vmem:[%s777 + $0x120] sm:$0xff]
        %v4749 = vld [vmem:[%s777 + $0x128] sm:$0xff]
        %v4750 = vld [vmem:[%s777 + $0x130] sm:$0xff]
        %v4751 = vld [vmem:[%s777 + $0x138] sm:$0xff]
        %v4752 = vld [vmem:[%s777 + $0x140] sm:$0xff]
        %v4753 = vld [vmem:[%s777 + $0x148] sm:$0xff]
        %v4754 = vld [vmem:[%s777 + $0x150] sm:$0xff]
        %v4755 = vld [vmem:[%s777 + $0x158] sm:$0xff]
        %v4756 = vld [vmem:[%s777 + $0x160] sm:$0xff]
        %v4757 = vld [vmem:[%s777 + $0x168] sm:$0xff]
        %v4758 = vld [vmem:[%s777 + $0x170] sm:$0xff]
        %v4759 = vld [vmem:[%s777 + $0x178] sm:$0xff]
        %v4760 = vld [vmem:[%s777 + $0x180] sm:$0xff]
        %v4761 = vld [vmem:[%s777 + $0x188] sm:$0xff]
        %v4762 = vld [vmem:[%s777 + $0x190] sm:$0xff]
        %v4763 = vld [vmem:[%s777 + $0x198] sm:$0xff]
        %v4764 = vld [vmem:[%s777 + $0x1a0] sm:$0xff]
        %v4765 = vld [vmem:[%s777 + $0x1a8] sm:$0xff]
        %v4766 = vld [vmem:[%s777 + $0x1b0] sm:$0xff]
        %v4767 = vld [vmem:[%s777 + $0x1b8] sm:$0xff]
        %v4768 = vld [vmem:[%s777 + $0x1c0] sm:$0xff]
        %v4769 = vld [vmem:[%s777 + $0x1c8] sm:$0xff]
        %v4770 = vld [vmem:[%s777 + $0x1d0] sm:$0xff]
        %v4771 = vld [vmem:[%s777 + $0x1d8] sm:$0xff]
        %v4772 = vld [vmem:[%s777 + $0x1e0] sm:$0xff]
        %v4773 = vld [vmem:[%s777 + $0x1e8] sm:$0xff]
        %v4774 = vld [vmem:[%s777 + $0x1f0] sm:$0xff]
        %v4775 = vld [vmem:[%s777 + $0x1f8] sm:$0xff]
        %v4776 = vld [vmem:[%s777 + $0x200] sm:$0xff]
        %v4777 = vld [vmem:[%s777 + $0x208] sm:$0xff]
        %v4778 = vld [vmem:[%s777 + $0x210] sm:$0xff]
        %v4779 = vld [vmem:[%s777 + $0x218] sm:$0xff]
        %v4780 = vld [vmem:[%s777 + $0x220] sm:$0xff]
        %v4781 = vld [vmem:[%s777 + $0x228] sm:$0xff]
        %v4782 = vld [vmem:[%s777 + $0x230] sm:$0xff]
        %v4783 = vld [vmem:[%s777 + $0x238] sm:$0xff]
        %v4784 = vld [vmem:[%s777 + $0x240] sm:$0xff]
        %v4785 = vld [vmem:[%s777 + $0x248] sm:$0xff]
        %v4786 = vld [vmem:[%s777 + $0x250] sm:$0xff]
        %v4787 = vld [vmem:[%s777 + $0x258] sm:$0xff]
        %v4788 = vld [vmem:[%s777 + $0x260] sm:$0xff]
        %v4789 = vld [vmem:[%s777 + $0x268] sm:$0xff]
        %v4790 = vld [vmem:[%s777 + $0x270] sm:$0xff]
        %v4791 = vld [vmem:[%s777 + $0x278] sm:$0xff]
        %v4792 = vld [vmem:[%s777 + $0x280] sm:$0xff]
        %v4793 = vld [vmem:[%s777 + $0x288] sm:$0xff]
        %v4794 = vld [vmem:[%s777 + $0x290] sm:$0xff]
        %v4795 = vld [vmem:[%s777 + $0x298] sm:$0xff]
        %v4796 = vld [vmem:[%s777 + $0x2a0] sm:$0xff]
        %v4797 = vld [vmem:[%s777 + $0x2a8] sm:$0xff]
        %v4798 = vld [vmem:[%s777 + $0x2b0] sm:$0xff]
        %v4799 = vld [vmem:[%s777 + $0x2b8] sm:$0xff]
        %v4800 = vld [vmem:[%s777 + $0x2c0] sm:$0xff]
        %v4801 = vld [vmem:[%s777 + $0x2c8] sm:$0xff]
        %v4802 = vld [vmem:[%s777 + $0x2d0] sm:$0xff]
        %v4803 = vld [vmem:[%s777 + $0x2d8] sm:$0xff]
        %v4804 = vld [vmem:[%s777 + $0x2e0] sm:$0xff]
        %v4805 = vld [vmem:[%s777 + $0x2e8] sm:$0xff]
        %v4806 = vld [vmem:[%s777 + $0x2f0] sm:$0xff]
        %v4807 = vld [vmem:[%s777 + $0x2f8] sm:$0xff]
        %v4808 = vld [vmem:[%s777 + $0x300] sm:$0xff]
        %v4809 = vld [vmem:[%s777 + $0x308] sm:$0xff]
        %v4810 = vld [vmem:[%s777 + $0x310] sm:$0xff]
        %v4811 = vld [vmem:[%s777 + $0x318] sm:$0xff]
        %v4812 = vld [vmem:[%s777 + $0x320] sm:$0xff]
        %v4813 = vld [vmem:[%s777 + $0x328] sm:$0xff]
        %v4814 = vld [vmem:[%s777 + $0x330] sm:$0xff]
        %v4815 = vld [vmem:[%s777 + $0x338] sm:$0xff]
        %v4816 = vld [vmem:[%s777 + $0x340] sm:$0xff]
        %v4817 = vld [vmem:[%s777 + $0x348] sm:$0xff]
        %v4818 = vld [vmem:[%s777 + $0x350] sm:$0xff]
        %v4819 = vld [vmem:[%s777 + $0x358] sm:$0xff]
        %v4820 = vld [vmem:[%s777 + $0x360] sm:$0xff]
        %v4821 = vld [vmem:[%s777 + $0x368] sm:$0xff]
        %v4822 = vld [vmem:[%s777 + $0x370] sm:$0xff]
        %v4823 = vld [vmem:[%s777 + $0x378] sm:$0xff]
        %v4824 = vld [vmem:[%s777 + $0x380] sm:$0xff]
        %v4825 = vld [vmem:[%s777 + $0x388] sm:$0xff]
        %v4826 = vld [vmem:[%s777 + $0x390] sm:$0xff]
        %v4827 = vld [vmem:[%s777 + $0x398] sm:$0xff]
        %v4828 = vld [vmem:[%s777 + $0x3a0] sm:$0xff]
        %v4829 = vld [vmem:[%s777 + $0x3a8] sm:$0xff]
        %v4830 = vld [vmem:[%s777 + $0x3b0] sm:$0xff]
        %v4831 = vld [vmem:[%s777 + $0x3b8] sm:$0xff]
        %v4832 = vld [vmem:[%s777 + $0x3c0] sm:$0xff]
        %v4833 = vld [vmem:[%s777 + $0x3c8] sm:$0xff]
        %v4834 = vld [vmem:[%s777 + $0x3d0] sm:$0xff]
        %v4835 = vld [vmem:[%s777 + $0x3d8] sm:$0xff]
        %v4836 = vld [vmem:[%s777 + $0x3e0] sm:$0xff]
        %v4837 = vld [vmem:[%s777 + $0x3e8] sm:$0xff]
        %v4838 = vld [vmem:[%s777 + $0x3f0] sm:$0xff]
        %v4839 = vld [vmem:[%s777 + $0x3f8] sm:$0xff]
        %v4840 = vld [vmem:[%s786] sm:$0xf]
        %v4842 = vlaneseq
        %v4843 = vshrl.u32 %v4842, 7
        %v4844 = vsub.s32 0, %v4843
        %v4845 = vrot.slane %v4840, %v4844
        %v4846 = vlaneseq
        %v4847 = vshrl.u32 %v4846, 7
        %v4848 = vsub.s32 1, %v4847
        %v4849 = vrot.slane %v4840, %v4848
        %v4850 = vlaneseq
        %v4851 = vshrl.u32 %v4850, 7
        %v4852 = vsub.s32 2, %v4851
        %v4853 = vrot.slane %v4840, %v4852
        %v4854 = vlaneseq
        %v4855 = vshrl.u32 %v4854, 7
        %v4856 = vsub.s32 3, %v4855
        %v4857 = vrot.slane %v4840, %v4856
        %v4990 = vunpack.c.l.b16 %v4712
        %v4991 = vunpack.c.h.b16 %v4712
        %v4992 = vunpack.c.l.b16 %v4713
        %v4993 = vunpack.c.h.b16 %v4713
        %v4994 = vunpack.c.l.b16 %v4714
        %v4995 = vunpack.c.h.b16 %v4714
        %v4996 = vunpack.c.l.b16 %v4715
        %v4997 = vunpack.c.h.b16 %v4715
        %v4998 = vunpack.c.l.b16 %v4716
        %v4999 = vunpack.c.h.b16 %v4716
        %v5000 = vunpack.c.l.b16 %v4717
        %v5001 = vunpack.c.h.b16 %v4717
        %v5002 = vunpack.c.l.b16 %v4718
        %v5003 = vunpack.c.h.b16 %v4718
        %v5004 = vunpack.c.l.b16 %v4719
        %v5005 = vunpack.c.h.b16 %v4719
        %v5006 = vunpack.c.l.b16 %v4720
        %v5007 = vunpack.c.h.b16 %v4720
        %v5008 = vunpack.c.l.b16 %v4721
        %v5009 = vunpack.c.h.b16 %v4721
        %v5010 = vunpack.c.l.b16 %v4722
        %v5011 = vunpack.c.h.b16 %v4722
        %v5012 = vunpack.c.l.b16 %v4723
        %v5013 = vunpack.c.h.b16 %v4723
        %v5014 = vunpack.c.l.b16 %v4724
        %v5015 = vunpack.c.h.b16 %v4724
        %v5016 = vunpack.c.l.b16 %v4725
        %v5017 = vunpack.c.h.b16 %v4725
        %v5018 = vunpack.c.l.b16 %v4726
        %v5019 = vunpack.c.h.b16 %v4726
        %v5020 = vunpack.c.l.b16 %v4727
        %v5021 = vunpack.c.h.b16 %v4727
        %v5022 = vunpack.c.l.b16 %v4728
        %v5023 = vunpack.c.h.b16 %v4728
        %v5024 = vunpack.c.l.b16 %v4729
        %v5025 = vunpack.c.h.b16 %v4729
        %v5026 = vunpack.c.l.b16 %v4730
        %v5027 = vunpack.c.h.b16 %v4730
        %v5028 = vunpack.c.l.b16 %v4731
        %v5029 = vunpack.c.h.b16 %v4731
        %v5030 = vunpack.c.l.b16 %v4732
        %v5031 = vunpack.c.h.b16 %v4732
        %v5032 = vunpack.c.l.b16 %v4733
        %v5033 = vunpack.c.h.b16 %v4733
        %v5034 = vunpack.c.l.b16 %v4734
        %v5035 = vunpack.c.h.b16 %v4734
        %v5036 = vunpack.c.l.b16 %v4735
        %v5037 = vunpack.c.h.b16 %v4735
        %v5038 = vunpack.c.l.b16 %v4736
        %v5039 = vunpack.c.h.b16 %v4736
        %v5040 = vunpack.c.l.b16 %v4737
        %v5041 = vunpack.c.h.b16 %v4737
        %v5042 = vunpack.c.l.b16 %v4738
        %v5043 = vunpack.c.h.b16 %v4738
        %v5044 = vunpack.c.l.b16 %v4739
        %v5045 = vunpack.c.h.b16 %v4739
        %v5046 = vunpack.c.l.b16 %v4740
        %v5047 = vunpack.c.h.b16 %v4740
        %v5048 = vunpack.c.l.b16 %v4741
        %v5049 = vunpack.c.h.b16 %v4741
        %v5050 = vunpack.c.l.b16 %v4742
        %v5051 = vunpack.c.h.b16 %v4742
        %v5052 = vunpack.c.l.b16 %v4743
        %v5053 = vunpack.c.h.b16 %v4743
        %v5054 = vunpack.c.l.b16 %v4744
        %v5055 = vunpack.c.h.b16 %v4744
        %v5056 = vunpack.c.l.b16 %v4745
        %v5057 = vunpack.c.h.b16 %v4745
        %v5058 = vunpack.c.l.b16 %v4746
        %v5059 = vunpack.c.h.b16 %v4746
        %v5060 = vunpack.c.l.b16 %v4747
        %v5061 = vunpack.c.h.b16 %v4747
        %v5062 = vunpack.c.l.b16 %v4748
        %v5063 = vunpack.c.h.b16 %v4748
        %v5064 = vunpack.c.l.b16 %v4749
        %v5065 = vunpack.c.h.b16 %v4749
        %v5066 = vunpack.c.l.b16 %v4750
        %v5067 = vunpack.c.h.b16 %v4750
        %v5068 = vunpack.c.l.b16 %v4751
        %v5069 = vunpack.c.h.b16 %v4751
        %v5070 = vunpack.c.l.b16 %v4752
        %v5071 = vunpack.c.h.b16 %v4752
        %v5072 = vunpack.c.l.b16 %v4753
        %v5073 = vunpack.c.h.b16 %v4753
        %v5074 = vunpack.c.l.b16 %v4754
        %v5075 = vunpack.c.h.b16 %v4754
        %v5076 = vunpack.c.l.b16 %v4755
        %v5077 = vunpack.c.h.b16 %v4755
        %v5078 = vunpack.c.l.b16 %v4756
        %v5079 = vunpack.c.h.b16 %v4756
        %v5080 = vunpack.c.l.b16 %v4757
        %v5081 = vunpack.c.h.b16 %v4757
        %v5082 = vunpack.c.l.b16 %v4758
        %v5083 = vunpack.c.h.b16 %v4758
        %v5084 = vunpack.c.l.b16 %v4759
        %v5085 = vunpack.c.h.b16 %v4759
        %v5086 = vunpack.c.l.b16 %v4760
        %v5087 = vunpack.c.h.b16 %v4760
        %v5088 = vunpack.c.l.b16 %v4761
        %v5089 = vunpack.c.h.b16 %v4761
        %v5090 = vunpack.c.l.b16 %v4762
        %v5091 = vunpack.c.h.b16 %v4762
        %v5092 = vunpack.c.l.b16 %v4763
        %v5093 = vunpack.c.h.b16 %v4763
        %v5094 = vunpack.c.l.b16 %v4764
        %v5095 = vunpack.c.h.b16 %v4764
        %v5096 = vunpack.c.l.b16 %v4765
        %v5097 = vunpack.c.h.b16 %v4765
        %v5098 = vunpack.c.l.b16 %v4766
        %v5099 = vunpack.c.h.b16 %v4766
        %v5100 = vunpack.c.l.b16 %v4767
        %v5101 = vunpack.c.h.b16 %v4767
        %v5102 = vunpack.c.l.b16 %v4768
        %v5103 = vunpack.c.h.b16 %v4768
        %v5104 = vunpack.c.l.b16 %v4769
        %v5105 = vunpack.c.h.b16 %v4769
        %v5106 = vunpack.c.l.b16 %v4770
        %v5107 = vunpack.c.h.b16 %v4770
        %v5108 = vunpack.c.l.b16 %v4771
        %v5109 = vunpack.c.h.b16 %v4771
        %v5110 = vunpack.c.l.b16 %v4772
        %v5111 = vunpack.c.h.b16 %v4772
        %v5112 = vunpack.c.l.b16 %v4773
        %v5113 = vunpack.c.h.b16 %v4773
        %v5114 = vunpack.c.l.b16 %v4774
        %v5115 = vunpack.c.h.b16 %v4774
        %v5116 = vunpack.c.l.b16 %v4775
        %v5117 = vunpack.c.h.b16 %v4775
        %v5118 = vunpack.c.l.b16 %v4776
        %v5119 = vunpack.c.h.b16 %v4776
        %v5120 = vunpack.c.l.b16 %v4777
        %v5121 = vunpack.c.h.b16 %v4777
        %v5122 = vunpack.c.l.b16 %v4778
        %v5123 = vunpack.c.h.b16 %v4778
        %v5124 = vunpack.c.l.b16 %v4779
        %v5125 = vunpack.c.h.b16 %v4779
        %v5126 = vunpack.c.l.b16 %v4780
        %v5127 = vunpack.c.h.b16 %v4780
        %v5128 = vunpack.c.l.b16 %v4781
        %v5129 = vunpack.c.h.b16 %v4781
        %v5130 = vunpack.c.l.b16 %v4782
        %v5131 = vunpack.c.h.b16 %v4782
        %v5132 = vunpack.c.l.b16 %v4783
        %v5133 = vunpack.c.h.b16 %v4783
        %v5134 = vunpack.c.l.b16 %v4784
        %v5135 = vunpack.c.h.b16 %v4784
        %v5136 = vunpack.c.l.b16 %v4785
        %v5137 = vunpack.c.h.b16 %v4785
        %v5138 = vunpack.c.l.b16 %v4786
        %v5139 = vunpack.c.h.b16 %v4786
        %v5140 = vunpack.c.l.b16 %v4787
        %v5141 = vunpack.c.h.b16 %v4787
        %v5142 = vunpack.c.l.b16 %v4788
        %v5143 = vunpack.c.h.b16 %v4788
        %v5144 = vunpack.c.l.b16 %v4789
        %v5145 = vunpack.c.h.b16 %v4789
        %v5146 = vunpack.c.l.b16 %v4790
        %v5147 = vunpack.c.h.b16 %v4790
        %v5148 = vunpack.c.l.b16 %v4791
        %v5149 = vunpack.c.h.b16 %v4791
        %v5150 = vunpack.c.l.b16 %v4792
        %v5151 = vunpack.c.h.b16 %v4792
        %v5152 = vunpack.c.l.b16 %v4793
        %v5153 = vunpack.c.h.b16 %v4793
        %v5154 = vunpack.c.l.b16 %v4794
        %v5155 = vunpack.c.h.b16 %v4794
        %v5156 = vunpack.c.l.b16 %v4795
        %v5157 = vunpack.c.h.b16 %v4795
        %v5158 = vunpack.c.l.b16 %v4796
        %v5159 = vunpack.c.h.b16 %v4796
        %v5160 = vunpack.c.l.b16 %v4797
        %v5161 = vunpack.c.h.b16 %v4797
        %v5162 = vunpack.c.l.b16 %v4798
        %v5163 = vunpack.c.h.b16 %v4798
        %v5164 = vunpack.c.l.b16 %v4799
        %v5165 = vunpack.c.h.b16 %v4799
        %v5166 = vunpack.c.l.b16 %v4800
        %v5167 = vunpack.c.h.b16 %v4800
        %v5168 = vunpack.c.l.b16 %v4801
        %v5169 = vunpack.c.h.b16 %v4801
        %v5170 = vunpack.c.l.b16 %v4802
        %v5171 = vunpack.c.h.b16 %v4802
        %v5172 = vunpack.c.l.b16 %v4803
        %v5173 = vunpack.c.h.b16 %v4803
        %v5174 = vunpack.c.l.b16 %v4804
        %v5175 = vunpack.c.h.b16 %v4804
        %v5176 = vunpack.c.l.b16 %v4805
        %v5177 = vunpack.c.h.b16 %v4805
        %v5178 = vunpack.c.l.b16 %v4806
        %v5179 = vunpack.c.h.b16 %v4806
        %v5180 = vunpack.c.l.b16 %v4807
        %v5181 = vunpack.c.h.b16 %v4807
        %v5182 = vunpack.c.l.b16 %v4808
        %v5183 = vunpack.c.h.b16 %v4808
        %v5184 = vunpack.c.l.b16 %v4809
        %v5185 = vunpack.c.h.b16 %v4809
        %v5186 = vunpack.c.l.b16 %v4810
        %v5187 = vunpack.c.h.b16 %v4810
        %v5188 = vunpack.c.l.b16 %v4811
        %v5189 = vunpack.c.h.b16 %v4811
        %v5190 = vunpack.c.l.b16 %v4812
        %v5191 = vunpack.c.h.b16 %v4812
        %v5192 = vunpack.c.l.b16 %v4813
        %v5193 = vunpack.c.h.b16 %v4813
        %v5194 = vunpack.c.l.b16 %v4814
        %v5195 = vunpack.c.h.b16 %v4814
        %v5196 = vunpack.c.l.b16 %v4815
        %v5197 = vunpack.c.h.b16 %v4815
        %v5198 = vunpack.c.l.b16 %v4816
        %v5199 = vunpack.c.h.b16 %v4816
        %v5200 = vunpack.c.l.b16 %v4817
        %v5201 = vunpack.c.h.b16 %v4817
        %v5202 = vunpack.c.l.b16 %v4818
        %v5203 = vunpack.c.h.b16 %v4818
        %v5204 = vunpack.c.l.b16 %v4819
        %v5205 = vunpack.c.h.b16 %v4819
        %v5206 = vunpack.c.l.b16 %v4820
        %v5207 = vunpack.c.h.b16 %v4820
        %v5208 = vunpack.c.l.b16 %v4821
        %v5209 = vunpack.c.h.b16 %v4821
        %v5210 = vunpack.c.l.b16 %v4822
        %v5211 = vunpack.c.h.b16 %v4822
        %v5212 = vunpack.c.l.b16 %v4823
        %v5213 = vunpack.c.h.b16 %v4823
        %v5214 = vunpack.c.l.b16 %v4824
        %v5215 = vunpack.c.h.b16 %v4824
        %v5216 = vunpack.c.l.b16 %v4825
        %v5217 = vunpack.c.h.b16 %v4825
        %v5218 = vunpack.c.l.b16 %v4826
        %v5219 = vunpack.c.h.b16 %v4826
        %v5220 = vunpack.c.l.b16 %v4827
        %v5221 = vunpack.c.h.b16 %v4827
        %v5222 = vunpack.c.l.b16 %v4828
        %v5223 = vunpack.c.h.b16 %v4828
        %v5224 = vunpack.c.l.b16 %v4829
        %v5225 = vunpack.c.h.b16 %v4829
        %v5226 = vunpack.c.l.b16 %v4830
        %v5227 = vunpack.c.h.b16 %v4830
        %v5228 = vunpack.c.l.b16 %v4831
        %v5229 = vunpack.c.h.b16 %v4831
        %v5230 = vunpack.c.l.b16 %v4832
        %v5231 = vunpack.c.h.b16 %v4832
        %v5232 = vunpack.c.l.b16 %v4833
        %v5233 = vunpack.c.h.b16 %v4833
        %v5234 = vunpack.c.l.b16 %v4834
        %v5235 = vunpack.c.h.b16 %v4834
        %v5236 = vunpack.c.l.b16 %v4835
        %v5237 = vunpack.c.h.b16 %v4835
        %v5238 = vunpack.c.l.b16 %v4836
        %v5239 = vunpack.c.h.b16 %v4836
        %v5240 = vunpack.c.l.b16 %v4837
        %v5241 = vunpack.c.h.b16 %v4837
        %v5242 = vunpack.c.l.b16 %v4838
        %v5243 = vunpack.c.h.b16 %v4838
        %v5244 = vunpack.c.l.b16 %v4839
        %v5245 = vunpack.c.h.b16 %v4839
        %v5246 = vpack.c.b16 %v4994, %v4990
        %v5247 = vpack.c.b16 %v4995, %v4991
        %v5248 = vpack.c.b16 %v4996, %v4992
        %v5249 = vpack.c.b16 %v4997, %v4993
        %v5250 = vpack.c.b16 %v5002, %v4998
        %v5251 = vpack.c.b16 %v5003, %v4999
        %v5252 = vpack.c.b16 %v5004, %v5000
        %v5253 = vpack.c.b16 %v5005, %v5001
        %v5254 = vpack.c.b16 %v5010, %v5006
        %v5255 = vpack.c.b16 %v5011, %v5007
        %v5256 = vpack.c.b16 %v5012, %v5008
        %v5257 = vpack.c.b16 %v5013, %v5009
        %v5258 = vpack.c.b16 %v5018, %v5014
        %v5259 = vpack.c.b16 %v5019, %v5015
        %v5260 = vpack.c.b16 %v5020, %v5016
        %v5261 = vpack.c.b16 %v5021, %v5017
        %v5262 = vpack.c.b16 %v5026, %v5022
        %v5263 = vpack.c.b16 %v5027, %v5023
        %v5264 = vpack.c.b16 %v5028, %v5024
        %v5265 = vpack.c.b16 %v5029, %v5025
        %v5266 = vpack.c.b16 %v5034, %v5030
        %v5267 = vpack.c.b16 %v5035, %v5031
        %v5268 = vpack.c.b16 %v5036, %v5032
        %v5269 = vpack.c.b16 %v5037, %v5033
        %v5270 = vpack.c.b16 %v5042, %v5038
        %v5271 = vpack.c.b16 %v5043, %v5039
        %v5272 = vpack.c.b16 %v5044, %v5040
        %v5273 = vpack.c.b16 %v5045, %v5041
        %v5274 = vpack.c.b16 %v5050, %v5046
        %v5275 = vpack.c.b16 %v5051, %v5047
        %v5276 = vpack.c.b16 %v5052, %v5048
        %v5277 = vpack.c.b16 %v5053, %v5049
        %v5278 = vpack.c.b16 %v5058, %v5054
        %v5279 = vpack.c.b16 %v5059, %v5055
        %v5280 = vpack.c.b16 %v5060, %v5056
        %v5281 = vpack.c.b16 %v5061, %v5057
        %v5282 = vpack.c.b16 %v5066, %v5062
        %v5283 = vpack.c.b16 %v5067, %v5063
        %v5284 = vpack.c.b16 %v5068, %v5064
        %v5285 = vpack.c.b16 %v5069, %v5065
        %v5286 = vpack.c.b16 %v5074, %v5070
        %v5287 = vpack.c.b16 %v5075, %v5071
        %v5288 = vpack.c.b16 %v5076, %v5072
        %v5289 = vpack.c.b16 %v5077, %v5073
        %v5290 = vpack.c.b16 %v5082, %v5078
        %v5291 = vpack.c.b16 %v5083, %v5079
        %v5292 = vpack.c.b16 %v5084, %v5080
        %v5293 = vpack.c.b16 %v5085, %v5081
        %v5294 = vpack.c.b16 %v5090, %v5086
        %v5295 = vpack.c.b16 %v5091, %v5087
        %v5296 = vpack.c.b16 %v5092, %v5088
        %v5297 = vpack.c.b16 %v5093, %v5089
        %v5298 = vpack.c.b16 %v5098, %v5094
        %v5299 = vpack.c.b16 %v5099, %v5095
        %v5300 = vpack.c.b16 %v5100, %v5096
        %v5301 = vpack.c.b16 %v5101, %v5097
        %v5302 = vpack.c.b16 %v5106, %v5102
        %v5303 = vpack.c.b16 %v5107, %v5103
        %v5304 = vpack.c.b16 %v5108, %v5104
        %v5305 = vpack.c.b16 %v5109, %v5105
        %v5306 = vpack.c.b16 %v5114, %v5110
        %v5307 = vpack.c.b16 %v5115, %v5111
        %v5308 = vpack.c.b16 %v5116, %v5112
        %v5309 = vpack.c.b16 %v5117, %v5113
        %v5310 = vpack.c.b16 %v5122, %v5118
        %v5311 = vpack.c.b16 %v5123, %v5119
        %v5312 = vpack.c.b16 %v5124, %v5120
        %v5313 = vpack.c.b16 %v5125, %v5121
        %v5314 = vpack.c.b16 %v5130, %v5126
        %v5315 = vpack.c.b16 %v5131, %v5127
        %v5316 = vpack.c.b16 %v5132, %v5128
        %v5317 = vpack.c.b16 %v5133, %v5129
        %v5318 = vpack.c.b16 %v5138, %v5134
        %v5319 = vpack.c.b16 %v5139, %v5135
        %v5320 = vpack.c.b16 %v5140, %v5136
        %v5321 = vpack.c.b16 %v5141, %v5137
        %v5322 = vpack.c.b16 %v5146, %v5142
        %v5323 = vpack.c.b16 %v5147, %v5143
        %v5324 = vpack.c.b16 %v5148, %v5144
        %v5325 = vpack.c.b16 %v5149, %v5145
        %v5326 = vpack.c.b16 %v5154, %v5150
        %v5327 = vpack.c.b16 %v5155, %v5151
        %v5328 = vpack.c.b16 %v5156, %v5152
        %v5329 = vpack.c.b16 %v5157, %v5153
        %v5330 = vpack.c.b16 %v5162, %v5158
        %v5331 = vpack.c.b16 %v5163, %v5159
        %v5332 = vpack.c.b16 %v5164, %v5160
        %v5333 = vpack.c.b16 %v5165, %v5161
        %v5334 = vpack.c.b16 %v5170, %v5166
        %v5335 = vpack.c.b16 %v5171, %v5167
        %v5336 = vpack.c.b16 %v5172, %v5168
        %v5337 = vpack.c.b16 %v5173, %v5169
        %v5338 = vpack.c.b16 %v5178, %v5174
        %v5339 = vpack.c.b16 %v5179, %v5175
        %v5340 = vpack.c.b16 %v5180, %v5176
        %v5341 = vpack.c.b16 %v5181, %v5177
        %v5342 = vpack.c.b16 %v5186, %v5182
        %v5343 = vpack.c.b16 %v5187, %v5183
        %v5344 = vpack.c.b16 %v5188, %v5184
        %v5345 = vpack.c.b16 %v5189, %v5185
        %v5346 = vpack.c.b16 %v5194, %v5190
        %v5347 = vpack.c.b16 %v5195, %v5191
        %v5348 = vpack.c.b16 %v5196, %v5192
        %v5349 = vpack.c.b16 %v5197, %v5193
        %v5350 = vpack.c.b16 %v5202, %v5198
        %v5351 = vpack.c.b16 %v5203, %v5199
        %v5352 = vpack.c.b16 %v5204, %v5200
        %v5353 = vpack.c.b16 %v5205, %v5201
        %v5354 = vpack.c.b16 %v5210, %v5206
        %v5355 = vpack.c.b16 %v5211, %v5207
        %v5356 = vpack.c.b16 %v5212, %v5208
        %v5357 = vpack.c.b16 %v5213, %v5209
        %v5358 = vpack.c.b16 %v5218, %v5214
        %v5359 = vpack.c.b16 %v5219, %v5215
        %v5360 = vpack.c.b16 %v5220, %v5216
        %v5361 = vpack.c.b16 %v5221, %v5217
        %v5362 = vpack.c.b16 %v5226, %v5222
        %v5363 = vpack.c.b16 %v5227, %v5223
        %v5364 = vpack.c.b16 %v5228, %v5224
        %v5365 = vpack.c.b16 %v5229, %v5225
        %v5366 = vpack.c.b16 %v5234, %v5230
        %v5367 = vpack.c.b16 %v5235, %v5231
        %v5368 = vpack.c.b16 %v5236, %v5232
        %v5369 = vpack.c.b16 %v5237, %v5233
        %v5370 = vpack.c.b16 %v5242, %v5238
        %v5371 = vpack.c.b16 %v5243, %v5239
        %v5372 = vpack.c.b16 %v5244, %v5240
        %v5373 = vpack.c.b16 %v5245, %v5241
        %5502 = vmatprep.subr.bf16.mxu0 %v5247
        %5503 = vmatpush1.bf16.msra.mxu0 %v5246
        %5504 = vmatprep.subr.bf16.mxu0 %v5251
        %5505 = vmatpush1.bf16.msra.mxu0 %v5250
        %5506 = vmatprep.subr.bf16.mxu0 %v5255
        %5507 = vmatpush1.bf16.msra.mxu0 %v5254
        %5508 = vmatprep.subr.bf16.mxu0 %v5259
        %5509 = vmatpush1.bf16.msra.mxu0 %v5258
        %5510 = vmatprep.subr.bf16.mxu0 %v5263
        %5511 = vmatpush1.bf16.msra.mxu0 %v5262
        %5512 = vmatprep.subr.bf16.mxu0 %v5267
        %5513 = vmatpush1.bf16.msra.mxu0 %v5266
        %5514 = vmatprep.subr.bf16.mxu0 %v5271
        %5515 = vmatpush1.bf16.msra.mxu0 %v5270
        %5516 = vmatprep.subr.bf16.mxu0 %v5275
        %5517 = vmatpush1.bf16.msra.mxu0 %v5274
        %5518 = vmatprep.subr.bf16.mxu0 %v5279
        %5519 = vmatpush1.bf16.msra.mxu0 %v5278
        %5520 = vmatprep.subr.bf16.mxu0 %v5283
        %5521 = vmatpush1.bf16.msra.mxu0 %v5282
        %5522 = vmatprep.subr.bf16.mxu0 %v5287
        %5523 = vmatpush1.bf16.msra.mxu0 %v5286
        %5524 = vmatprep.subr.bf16.mxu0 %v5291
        %5525 = vmatpush1.bf16.msra.mxu0 %v5290
        %5526 = vmatprep.subr.bf16.mxu0 %v5295
        %5527 = vmatpush1.bf16.msra.mxu0 %v5294
        %5528 = vmatprep.subr.bf16.mxu0 %v5299
        %5529 = vmatpush1.bf16.msra.mxu0 %v5298
        %5530 = vmatprep.subr.bf16.mxu0 %v5303
        %5531 = vmatpush1.bf16.msra.mxu0 %v5302
        %5532 = vmatprep.subr.bf16.mxu0 %v5307
        %5533 = vmatpush1.bf16.msra.mxu0 %v5306
        %5534 = vmatprep.mubr.bf16.mxu0 %v4709
        %5535 = vmatmul.mubr.bf16.gmra.mrb[0].mxu0 %v4708
        %v5536 = vpop.f32.mrb[0].mxu0
        %v5537 = vadd.f32 %v4845, %v5536
        %v5538 = vpop.f32.mrb[0].mxu0
        %v5539 = vadd.f32 %v4849, %v5538
        %v5540 = vpop.f32.mrb[0].mxu0
        %v5541 = vadd.f32 %v4845, %v5540
        %v5542 = vpop.f32.mrb[0].mxu0
        %v5543 = vadd.f32 %v4849, %v5542
        %5544 = vdwg.mxu0
        %5545 = vmatprep.subr.bf16.mxu0 %v5311
        %5546 = vmatpush1.bf16.msra.mxu0 %v5310
        %5547 = vmatprep.subr.bf16.mxu0 %v5315
        %5548 = vmatpush1.bf16.msra.mxu0 %v5314
        %5549 = vmatprep.subr.bf16.mxu0 %v5319
        %5550 = vmatpush1.bf16.msra.mxu0 %v5318
        %5551 = vmatprep.subr.bf16.mxu0 %v5323
        %5552 = vmatpush1.bf16.msra.mxu0 %v5322
        %5553 = vmatprep.subr.bf16.mxu0 %v5327
        %5554 = vmatpush1.bf16.msra.mxu0 %v5326
        %5555 = vmatprep.subr.bf16.mxu0 %v5331
        %5556 = vmatpush1.bf16.msra.mxu0 %v5330
        %5557 = vmatprep.subr.bf16.mxu0 %v5335
        %5558 = vmatpush1.bf16.msra.mxu0 %v5334
        %5559 = vmatprep.subr.bf16.mxu0 %v5339
        %5560 = vmatpush1.bf16.msra.mxu0 %v5338
        %5561 = vmatprep.subr.bf16.mxu0 %v5343
        %5562 = vmatpush1.bf16.msra.mxu0 %v5342
        %5563 = vmatprep.subr.bf16.mxu0 %v5347
        %5564 = vmatpush1.bf16.msra.mxu0 %v5346
        %5565 = vmatprep.subr.bf16.mxu0 %v5351
        %5566 = vmatpush1.bf16.msra.mxu0 %v5350
        %5567 = vmatprep.subr.bf16.mxu0 %v5355
        %5568 = vmatpush1.bf16.msra.mxu0 %v5354
        %5569 = vmatprep.subr.bf16.mxu0 %v5359
        %5570 = vmatpush1.bf16.msra.mxu0 %v5358
        %5571 = vmatprep.subr.bf16.mxu0 %v5363
        %5572 = vmatpush1.bf16.msra.mxu0 %v5362
        %5573 = vmatprep.subr.bf16.mxu0 %v5367
        %5574 = vmatpush1.bf16.msra.mxu0 %v5366
        %5575 = vmatprep.subr.bf16.mxu0 %v5371
        %5576 = vmatpush1.bf16.msra.mxu0 %v5370
        %5577 = vmatprep.mubr.bf16.mxu0 %v4711
        %5578 = vmatmul.mubr.bf16.gmra.mrb[0].mxu0 %v4710
        %v5579 = vpop.f32.mrb[0].mxu0
        %v5580 = vadd.f32 %v5537, %v5579
        %v5581 = vpop.f32.mrb[0].mxu0
        %v5582 = vadd.f32 %v5539, %v5581
        %v5583 = vpop.f32.mrb[0].mxu0
        %v5584 = vadd.f32 %v5541, %v5583
        %v5585 = vpop.f32.mrb[0].mxu0
        %v5586 = vadd.f32 %v5543, %v5585
        %5587 = vdwg.mxu0
        %5588 = vmatprep.subr.bf16.mxu0 %v5249
        %5589 = vmatpush1.bf16.msra.mxu0 %v5248
        %5590 = vmatprep.subr.bf16.mxu0 %v5253
        %5591 = vmatpush1.bf16.msra.mxu0 %v5252
        %5592 = vmatprep.subr.bf16.mxu0 %v5257
        %5593 = vmatpush1.bf16.msra.mxu0 %v5256
        %5594 = vmatprep.subr.bf16.mxu0 %v5261
        %5595 = vmatpush1.bf16.msra.mxu0 %v5260
        %5596 = vmatprep.subr.bf16.mxu0 %v5265
        %5597 = vmatpush1.bf16.msra.mxu0 %v5264
        %5598 = vmatprep.subr.bf16.mxu0 %v5269
        %5599 = vmatpush1.bf16.msra.mxu0 %v5268
        %5600 = vmatprep.subr.bf16.mxu0 %v5273
        %5601 = vmatpush1.bf16.msra.mxu0 %v5272
        %5602 = vmatprep.subr.bf16.mxu0 %v5277
        %5603 = vmatpush1.bf16.msra.mxu0 %v5276
        %5604 = vmatprep.subr.bf16.mxu0 %v5281
        %5605 = vmatpush1.bf16.msra.mxu0 %v5280
        %5606 = vmatprep.subr.bf16.mxu0 %v5285
        %5607 = vmatpush1.bf16.msra.mxu0 %v5284
        %5608 = vmatprep.subr.bf16.mxu0 %v5289
        %5609 = vmatpush1.bf16.msra.mxu0 %v5288
        %5610 = vmatprep.subr.bf16.mxu0 %v5293
        %5611 = vmatpush1.bf16.msra.mxu0 %v5292
        %5612 = vmatprep.subr.bf16.mxu0 %v5297
        %5613 = vmatpush1.bf16.msra.mxu0 %v5296
        %5614 = vmatprep.subr.bf16.mxu0 %v5301
        %5615 = vmatpush1.bf16.msra.mxu0 %v5300
        %5616 = vmatprep.subr.bf16.mxu0 %v5305
        %5617 = vmatpush1.bf16.msra.mxu0 %v5304
        %5618 = vmatprep.subr.bf16.mxu0 %v5309
        %5619 = vmatpush1.bf16.msra.mxu0 %v5308
        %5620 = vmatprep.mubr.bf16.mxu0 %v4709
        %5621 = vmatmul.mubr.bf16.gmra.mrb[0].mxu0 %v4708
        %v5622 = vpop.f32.mrb[0].mxu0
        %v5623 = vadd.f32 %v4853, %v5622
        %v5624 = vpop.f32.mrb[0].mxu0
        %v5625 = vadd.f32 %v4857, %v5624
        %v5626 = vpop.f32.mrb[0].mxu0
        %v5627 = vadd.f32 %v4853, %v5626
        %v5628 = vpop.f32.mrb[0].mxu0
        %v5629 = vadd.f32 %v4857, %v5628
        %5630 = vdwg.mxu0
        %5631 = vmatprep.subr.bf16.mxu0 %v5313
        %5632 = vmatpush1.bf16.msra.mxu0 %v5312
        %5633 = vmatprep.subr.bf16.mxu0 %v5317
        %5634 = vmatpush1.bf16.msra.mxu0 %v5316
        %5635 = vmatprep.subr.bf16.mxu0 %v5321
        %5636 = vmatpush1.bf16.msra.mxu0 %v5320
        %5637 = vmatprep.subr.bf16.mxu0 %v5325
        %5638 = vmatpush1.bf16.msra.mxu0 %v5324
        %5639 = vmatprep.subr.bf16.mxu0 %v5329
        %5640 = vmatpush1.bf16.msra.mxu0 %v5328
        %5641 = vmatprep.subr.bf16.mxu0 %v5333
        %5642 = vmatpush1.bf16.msra.mxu0 %v5332
        %5643 = vmatprep.subr.bf16.mxu0 %v5337
        %5644 = vmatpush1.bf16.msra.mxu0 %v5336
        %5645 = vmatprep.subr.bf16.mxu0 %v5341
        %5646 = vmatpush1.bf16.msra.mxu0 %v5340
        %5647 = vmatprep.subr.bf16.mxu0 %v5345
        %5648 = vmatpush1.bf16.msra.mxu0 %v5344
        %5649 = vmatprep.subr.bf16.mxu0 %v5349
        %5650 = vmatpush1.bf16.msra.mxu0 %v5348
        %5651 = vmatprep.subr.bf16.mxu0 %v5353
        %5652 = vmatpush1.bf16.msra.mxu0 %v5352
        %5653 = vmatprep.subr.bf16.mxu0 %v5357
        %5654 = vmatpush1.bf16.msra.mxu0 %v5356
        %5655 = vmatprep.subr.bf16.mxu0 %v5361
        %5656 = vmatpush1.bf16.msra.mxu0 %v5360
        %5657 = vmatprep.subr.bf16.mxu0 %v5365
        %5658 = vmatpush1.bf16.msra.mxu0 %v5364
        %5659 = vmatprep.subr.bf16.mxu0 %v5369
        %5660 = vmatpush1.bf16.msra.mxu0 %v5368
        %5661 = vmatprep.subr.bf16.mxu0 %v5373
        %5662 = vmatpush1.bf16.msra.mxu0 %v5372
        %5663 = vmatprep.mubr.bf16.mxu0 %v4711
        %5664 = vmatmul.mubr.bf16.gmra.mrb[0].mxu0 %v4710
        %v5665 = vpop.f32.mrb[0].mxu0
        %v5666 = vadd.f32 %v5623, %v5665
        %v5667 = vpop.f32.mrb[0].mxu0
        %v5668 = vadd.f32 %v5625, %v5667
        %v5669 = vpop.f32.mrb[0].mxu0
        %v5670 = vadd.f32 %v5627, %v5669
        %v5671 = vpop.f32.mrb[0].mxu0
        %v5672 = vadd.f32 %v5629, %v5671
        %5673 = vdwg.mxu0
        %v5674 = vadd.f32 %v994, %v5580
        %v5675 = vadd.f32 %v995, %v5582
        %v5676 = vadd.f32 %v996, %v5666
        %v5677 = vadd.f32 %v997, %v5668
        %v5678 = vadd.f32 %v998, %v5584
        %v5679 = vadd.f32 %v999, %v5586
        %v5680 = vadd.f32 %v1000, %v5670
        %v5681 = vadd.f32 %v1001, %v5672
        %v5682 = vadd.f32 %v5674, %v5675
        %v5683 = vadd.f32 %v5682, %v5676
        %v5684 = vadd.f32 %v5683, %v5677
        %5685 = vadd.xlane.f32.xlu0 %v5684
        %v5686 = vpop.xlane.xlu0 %5685
        %v5687 = vadd.f32 %v5678, %v5679
        %v5688 = vadd.f32 %v5687, %v5680
        %v5689 = vadd.f32 %v5688, %v5681
        %5690 = vadd.xlane.f32.xlu0 %v5689
        %v5691 = vpop.xlane.xlu0 %5690
        %v5692 = vrcp.pop 512.0
        %v5693 = vmul.f32 %v5686, %v5692
        %v5694 = vmul.f32 %v5691, %v5692
        %v5695 = vsub.f32 %v5674, %v5693
        %v5696 = vsub.f32 %v5675, %v5693
        %v5697 = vsub.f32 %v5676, %v5693
        %v5698 = vsub.f32 %v5677, %v5693
        %v5699 = vsub.f32 %v5678, %v5694
        %v5700 = vsub.f32 %v5679, %v5694
        %v5701 = vsub.f32 %v5680, %v5694
        %v5702 = vsub.f32 %v5681, %v5694
        %v5703 = vmul.f32 %v5695, %v5695
        %v5704 = vmul.f32 %v5696, %v5696
        %v5705 = vmul.f32 %v5697, %v5697
        %v5706 = vmul.f32 %v5698, %v5698
        %v5707 = vmul.f32 %v5699, %v5699
        %v5708 = vmul.f32 %v5700, %v5700
        %v5709 = vmul.f32 %v5701, %v5701
        %v5710 = vmul.f32 %v5702, %v5702
        %v5711 = vadd.f32 %v5703, %v5704
        %v5712 = vadd.f32 %v5711, %v5705
        %v5713 = vadd.f32 %v5712, %v5706
        %5714 = vadd.xlane.f32.xlu0 %v5713
        %v5715 = vpop.xlane.xlu0 %5714
        %v5716 = vadd.f32 %v5707, %v5708
        %v5717 = vadd.f32 %v5716, %v5709
        %v5718 = vadd.f32 %v5717, %v5710
        %5719 = vadd.xlane.f32.xlu0 %v5718
        %v5720 = vpop.xlane.xlu0 %5719
        %v5721 = vmul.f32 %v5715, %v5692
        %v5722 = vmul.f32 %v5720, %v5692
        %v5723 = vadd.f32 %v5721, 1e-05
        %v5724 = vadd.f32 %v5722, 1e-05
        %v5725 = vrsqrt.pop %v5723
        %v5726 = vrsqrt.pop %v5724
        %v5727 = vmul.f32 %v5695, %v5725
        %v5728 = vmul.f32 %v5696, %v5725
        %v5729 = vmul.f32 %v5697, %v5725
        %v5730 = vmul.f32 %v5698, %v5725
        %v5731 = vmul.f32 %v5699, %v5726
        %v5732 = vmul.f32 %v5700, %v5726
        %v5733 = vmul.f32 %v5701, %v5726
        %v5734 = vmul.f32 %v5702, %v5726
        %v5735 = vld [vmem:[%s795] sm:$0xf]
        %v5737 = vlaneseq
        %v5738 = vshrl.u32 %v5737, 7
        %v5739 = vsub.s32 0, %v5738
        %v5740 = vrot.slane %v5735, %v5739
        %v5741 = vlaneseq
        %v5742 = vshrl.u32 %v5741, 7
        %v5743 = vsub.s32 1, %v5742
        %v5744 = vrot.slane %v5735, %v5743
        %v5745 = vlaneseq
        %v5746 = vshrl.u32 %v5745, 7
        %v5747 = vsub.s32 2, %v5746
        %v5748 = vrot.slane %v5735, %v5747
        %v5749 = vlaneseq
        %v5750 = vshrl.u32 %v5749, 7
        %v5751 = vsub.s32 3, %v5750
        %v5752 = vrot.slane %v5735, %v5751
        %v5757 = vmul.f32 %v5727, %v5740
        %v5758 = vmul.f32 %v5728, %v5744
        %v5759 = vmul.f32 %v5729, %v5748
        %v5760 = vmul.f32 %v5730, %v5752
        %v5761 = vmul.f32 %v5731, %v5740
        %v5762 = vmul.f32 %v5732, %v5744
        %v5763 = vmul.f32 %v5733, %v5748
        %v5764 = vmul.f32 %v5734, %v5752
        %v5765 = vld [vmem:[%s804] sm:$0xf]
        %v5767 = vlaneseq
        %v5768 = vshrl.u32 %v5767, 7
        %v5769 = vsub.s32 0, %v5768
        %v5770 = vrot.slane %v5765, %v5769
        %v5771 = vlaneseq
        %v5772 = vshrl.u32 %v5771, 7
        %v5773 = vsub.s32 1, %v5772
        %v5774 = vrot.slane %v5765, %v5773
        %v5775 = vlaneseq
        %v5776 = vshrl.u32 %v5775, 7
        %v5777 = vsub.s32 2, %v5776
        %v5778 = vrot.slane %v5765, %v5777
        %v5779 = vlaneseq
        %v5780 = vshrl.u32 %v5779, 7
        %v5781 = vsub.s32 3, %v5780
        %v5782 = vrot.slane %v5765, %v5781
        %v5787 = vadd.f32 %v5757, %v5770
        %v5788 = vadd.f32 %v5758, %v5774
        %v5789 = vadd.f32 %v5759, %v5778
        %v5790 = vadd.f32 %v5760, %v5782
        %v5791 = vadd.f32 %v5761, %v5770
        %v5792 = vadd.f32 %v5762, %v5774
        %v5793 = vadd.f32 %v5763, %v5778
        %v5794 = vadd.f32 %v5764, %v5782
        %v5795 = vpack.c.bf16 %v5791, %v5787
        %v5796 = vpack.c.bf16 %v5792, %v5788
        %v5797 = vpack.c.bf16 %v5793, %v5789
        %v5798 = vpack.c.bf16 %v5794, %v5790
        %v5799 = vld [vmem:[%s813] sm:$0xff]
        %v5800 = vld [vmem:[%s813 + $0x8] sm:$0xff]
        %v5801 = vld [vmem:[%s813 + $0x10] sm:$0xff]
        %v5802 = vld [vmem:[%s813 + $0x18] sm:$0xff]
        %v5803 = vld [vmem:[%s813 + $0x20] sm:$0xff]
        %v5804 = vld [vmem:[%s813 + $0x28] sm:$0xff]
        %v5805 = vld [vmem:[%s813 + $0x30] sm:$0xff]
        %v5806 = vld [vmem:[%s813 + $0x38] sm:$0xff]
        %v5807 = vld [vmem:[%s813 + $0x40] sm:$0xff]
        %v5808 = vld [vmem:[%s813 + $0x48] sm:$0xff]
        %v5809 = vld [vmem:[%s813 + $0x50] sm:$0xff]
        %v5810 = vld [vmem:[%s813 + $0x58] sm:$0xff]
        %v5811 = vld [vmem:[%s813 + $0x60] sm:$0xff]
        %v5812 = vld [vmem:[%s813 + $0x68] sm:$0xff]
        %v5813 = vld [vmem:[%s813 + $0x70] sm:$0xff]
        %v5814 = vld [vmem:[%s813 + $0x78] sm:$0xff]
        %v5815 = vld [vmem:[%s813 + $0x80] sm:$0xff]
        %v5816 = vld [vmem:[%s813 + $0x88] sm:$0xff]
        %v5817 = vld [vmem:[%s813 + $0x90] sm:$0xff]
        %v5818 = vld [vmem:[%s813 + $0x98] sm:$0xff]
        %v5819 = vld [vmem:[%s813 + $0xa0] sm:$0xff]
        %v5820 = vld [vmem:[%s813 + $0xa8] sm:$0xff]
        %v5821 = vld [vmem:[%s813 + $0xb0] sm:$0xff]
        %v5822 = vld [vmem:[%s813 + $0xb8] sm:$0xff]
        %v5823 = vld [vmem:[%s813 + $0xc0] sm:$0xff]
        %v5824 = vld [vmem:[%s813 + $0xc8] sm:$0xff]
        %v5825 = vld [vmem:[%s813 + $0xd0] sm:$0xff]
        %v5826 = vld [vmem:[%s813 + $0xd8] sm:$0xff]
        %v5827 = vld [vmem:[%s813 + $0xe0] sm:$0xff]
        %v5828 = vld [vmem:[%s813 + $0xe8] sm:$0xff]
        %v5829 = vld [vmem:[%s813 + $0xf0] sm:$0xff]
        %v5830 = vld [vmem:[%s813 + $0xf8] sm:$0xff]
        %v5831 = vld [vmem:[%s813 + $0x100] sm:$0xff]
        %v5832 = vld [vmem:[%s813 + $0x108] sm:$0xff]
        %v5833 = vld [vmem:[%s813 + $0x110] sm:$0xff]
        %v5834 = vld [vmem:[%s813 + $0x118] sm:$0xff]
        %v5835 = vld [vmem:[%s813 + $0x120] sm:$0xff]
        %v5836 = vld [vmem:[%s813 + $0x128] sm:$0xff]
        %v5837 = vld [vmem:[%s813 + $0x130] sm:$0xff]
        %v5838 = vld [vmem:[%s813 + $0x138] sm:$0xff]
        %v5839 = vld [vmem:[%s813 + $0x140] sm:$0xff]
        %v5840 = vld [vmem:[%s813 + $0x148] sm:$0xff]
        %v5841 = vld [vmem:[%s813 + $0x150] sm:$0xff]
        %v5842 = vld [vmem:[%s813 + $0x158] sm:$0xff]
        %v5843 = vld [vmem:[%s813 + $0x160] sm:$0xff]
        %v5844 = vld [vmem:[%s813 + $0x168] sm:$0xff]
        %v5845 = vld [vmem:[%s813 + $0x170] sm:$0xff]
        %v5846 = vld [vmem:[%s813 + $0x178] sm:$0xff]
        %v5847 = vld [vmem:[%s813 + $0x180] sm:$0xff]
        %v5848 = vld [vmem:[%s813 + $0x188] sm:$0xff]
        %v5849 = vld [vmem:[%s813 + $0x190] sm:$0xff]
        %v5850 = vld [vmem:[%s813 + $0x198] sm:$0xff]
        %v5851 = vld [vmem:[%s813 + $0x1a0] sm:$0xff]
        %v5852 = vld [vmem:[%s813 + $0x1a8] sm:$0xff]
        %v5853 = vld [vmem:[%s813 + $0x1b0] sm:$0xff]
        %v5854 = vld [vmem:[%s813 + $0x1b8] sm:$0xff]
        %v5855 = vld [vmem:[%s813 + $0x1c0] sm:$0xff]
        %v5856 = vld [vmem:[%s813 + $0x1c8] sm:$0xff]
        %v5857 = vld [vmem:[%s813 + $0x1d0] sm:$0xff]
        %v5858 = vld [vmem:[%s813 + $0x1d8] sm:$0xff]
        %v5859 = vld [vmem:[%s813 + $0x1e0] sm:$0xff]
        %v5860 = vld [vmem:[%s813 + $0x1e8] sm:$0xff]
        %v5861 = vld [vmem:[%s813 + $0x1f0] sm:$0xff]
        %v5862 = vld [vmem:[%s813 + $0x1f8] sm:$0xff]
        %v5863 = vld [vmem:[%s813 + $0x200] sm:$0xff]
        %v5864 = vld [vmem:[%s813 + $0x208] sm:$0xff]
        %v5865 = vld [vmem:[%s813 + $0x210] sm:$0xff]
        %v5866 = vld [vmem:[%s813 + $0x218] sm:$0xff]
        %v5867 = vld [vmem:[%s813 + $0x220] sm:$0xff]
        %v5868 = vld [vmem:[%s813 + $0x228] sm:$0xff]
        %v5869 = vld [vmem:[%s813 + $0x230] sm:$0xff]
        %v5870 = vld [vmem:[%s813 + $0x238] sm:$0xff]
        %v5871 = vld [vmem:[%s813 + $0x240] sm:$0xff]
        %v5872 = vld [vmem:[%s813 + $0x248] sm:$0xff]
        %v5873 = vld [vmem:[%s813 + $0x250] sm:$0xff]
        %v5874 = vld [vmem:[%s813 + $0x258] sm:$0xff]
        %v5875 = vld [vmem:[%s813 + $0x260] sm:$0xff]
        %v5876 = vld [vmem:[%s813 + $0x268] sm:$0xff]
        %v5877 = vld [vmem:[%s813 + $0x270] sm:$0xff]
        %v5878 = vld [vmem:[%s813 + $0x278] sm:$0xff]
        %v5879 = vld [vmem:[%s813 + $0x280] sm:$0xff]
        %v5880 = vld [vmem:[%s813 + $0x288] sm:$0xff]
        %v5881 = vld [vmem:[%s813 + $0x290] sm:$0xff]
        %v5882 = vld [vmem:[%s813 + $0x298] sm:$0xff]
        %v5883 = vld [vmem:[%s813 + $0x2a0] sm:$0xff]
        %v5884 = vld [vmem:[%s813 + $0x2a8] sm:$0xff]
        %v5885 = vld [vmem:[%s813 + $0x2b0] sm:$0xff]
        %v5886 = vld [vmem:[%s813 + $0x2b8] sm:$0xff]
        %v5887 = vld [vmem:[%s813 + $0x2c0] sm:$0xff]
        %v5888 = vld [vmem:[%s813 + $0x2c8] sm:$0xff]
        %v5889 = vld [vmem:[%s813 + $0x2d0] sm:$0xff]
        %v5890 = vld [vmem:[%s813 + $0x2d8] sm:$0xff]
        %v5891 = vld [vmem:[%s813 + $0x2e0] sm:$0xff]
        %v5892 = vld [vmem:[%s813 + $0x2e8] sm:$0xff]
        %v5893 = vld [vmem:[%s813 + $0x2f0] sm:$0xff]
        %v5894 = vld [vmem:[%s813 + $0x2f8] sm:$0xff]
        %v5895 = vld [vmem:[%s813 + $0x300] sm:$0xff]
        %v5896 = vld [vmem:[%s813 + $0x308] sm:$0xff]
        %v5897 = vld [vmem:[%s813 + $0x310] sm:$0xff]
        %v5898 = vld [vmem:[%s813 + $0x318] sm:$0xff]
        %v5899 = vld [vmem:[%s813 + $0x320] sm:$0xff]
        %v5900 = vld [vmem:[%s813 + $0x328] sm:$0xff]
        %v5901 = vld [vmem:[%s813 + $0x330] sm:$0xff]
        %v5902 = vld [vmem:[%s813 + $0x338] sm:$0xff]
        %v5903 = vld [vmem:[%s813 + $0x340] sm:$0xff]
        %v5904 = vld [vmem:[%s813 + $0x348] sm:$0xff]
        %v5905 = vld [vmem:[%s813 + $0x350] sm:$0xff]
        %v5906 = vld [vmem:[%s813 + $0x358] sm:$0xff]
        %v5907 = vld [vmem:[%s813 + $0x360] sm:$0xff]
        %v5908 = vld [vmem:[%s813 + $0x368] sm:$0xff]
        %v5909 = vld [vmem:[%s813 + $0x370] sm:$0xff]
        %v5910 = vld [vmem:[%s813 + $0x378] sm:$0xff]
        %v5911 = vld [vmem:[%s813 + $0x380] sm:$0xff]
        %v5912 = vld [vmem:[%s813 + $0x388] sm:$0xff]
        %v5913 = vld [vmem:[%s813 + $0x390] sm:$0xff]
        %v5914 = vld [vmem:[%s813 + $0x398] sm:$0xff]
        %v5915 = vld [vmem:[%s813 + $0x3a0] sm:$0xff]
        %v5916 = vld [vmem:[%s813 + $0x3a8] sm:$0xff]
        %v5917 = vld [vmem:[%s813 + $0x3b0] sm:$0xff]
        %v5918 = vld [vmem:[%s813 + $0x3b8] sm:$0xff]
        %v5919 = vld [vmem:[%s813 + $0x3c0] sm:$0xff]
        %v5920 = vld [vmem:[%s813 + $0x3c8] sm:$0xff]
        %v5921 = vld [vmem:[%s813 + $0x3d0] sm:$0xff]
        %v5922 = vld [vmem:[%s813 + $0x3d8] sm:$0xff]
        %v5923 = vld [vmem:[%s813 + $0x3e0] sm:$0xff]
        %v5924 = vld [vmem:[%s813 + $0x3e8] sm:$0xff]
        %v5925 = vld [vmem:[%s813 + $0x3f0] sm:$0xff]
        %v5926 = vld [vmem:[%s813 + $0x3f8] sm:$0xff]
        %v5927 = vld [vmem:[%s822] sm:$0xf]
        %v5929 = vlaneseq
        %v5930 = vshrl.u32 %v5929, 7
        %v5931 = vsub.s32 0, %v5930
        %v5932 = vrot.slane %v5927, %v5931
        %v5933 = vlaneseq
        %v5934 = vshrl.u32 %v5933, 7
        %v5935 = vsub.s32 1, %v5934
        %v5936 = vrot.slane %v5927, %v5935
        %v5937 = vlaneseq
        %v5938 = vshrl.u32 %v5937, 7
        %v5939 = vsub.s32 2, %v5938
        %v5940 = vrot.slane %v5927, %v5939
        %v5941 = vlaneseq
        %v5942 = vshrl.u32 %v5941, 7
        %v5943 = vsub.s32 3, %v5942
        %v5944 = vrot.slane %v5927, %v5943
        %v6077 = vunpack.c.l.b16 %v5799
        %v6078 = vunpack.c.h.b16 %v5799
        %v6079 = vunpack.c.l.b16 %v5800
        %v6080 = vunpack.c.h.b16 %v5800
        %v6081 = vunpack.c.l.b16 %v5801
        %v6082 = vunpack.c.h.b16 %v5801
        %v6083 = vunpack.c.l.b16 %v5802
        %v6084 = vunpack.c.h.b16 %v5802
        %v6085 = vunpack.c.l.b16 %v5803
        %v6086 = vunpack.c.h.b16 %v5803
        %v6087 = vunpack.c.l.b16 %v5804
        %v6088 = vunpack.c.h.b16 %v5804
        %v6089 = vunpack.c.l.b16 %v5805
        %v6090 = vunpack.c.h.b16 %v5805
        %v6091 = vunpack.c.l.b16 %v5806
        %v6092 = vunpack.c.h.b16 %v5806
        %v6093 = vunpack.c.l.b16 %v5807
        %v6094 = vunpack.c.h.b16 %v5807
        %v6095 = vunpack.c.l.b16 %v5808
        %v6096 = vunpack.c.h.b16 %v5808
        %v6097 = vunpack.c.l.b16 %v5809
        %v6098 = vunpack.c.h.b16 %v5809
        %v6099 = vunpack.c.l.b16 %v5810
        %v6100 = vunpack.c.h.b16 %v5810
        %v6101 = vunpack.c.l.b16 %v5811
        %v6102 = vunpack.c.h.b16 %v5811
        %v6103 = vunpack.c.l.b16 %v5812
        %v6104 = vunpack.c.h.b16 %v5812
        %v6105 = vunpack.c.l.b16 %v5813
        %v6106 = vunpack.c.h.b16 %v5813
        %v6107 = vunpack.c.l.b16 %v5814
        %v6108 = vunpack.c.h.b16 %v5814
        %v6109 = vunpack.c.l.b16 %v5815
        %v6110 = vunpack.c.h.b16 %v5815
        %v6111 = vunpack.c.l.b16 %v5816
        %v6112 = vunpack.c.h.b16 %v5816
        %v6113 = vunpack.c.l.b16 %v5817
        %v6114 = vunpack.c.h.b16 %v5817
        %v6115 = vunpack.c.l.b16 %v5818
        %v6116 = vunpack.c.h.b16 %v5818
        %v6117 = vunpack.c.l.b16 %v5819
        %v6118 = vunpack.c.h.b16 %v5819
        %v6119 = vunpack.c.l.b16 %v5820
        %v6120 = vunpack.c.h.b16 %v5820
        %v6121 = vunpack.c.l.b16 %v5821
        %v6122 = vunpack.c.h.b16 %v5821
        %v6123 = vunpack.c.l.b16 %v5822
        %v6124 = vunpack.c.h.b16 %v5822
        %v6125 = vunpack.c.l.b16 %v5823
        %v6126 = vunpack.c.h.b16 %v5823
        %v6127 = vunpack.c.l.b16 %v5824
        %v6128 = vunpack.c.h.b16 %v5824
        %v6129 = vunpack.c.l.b16 %v5825
        %v6130 = vunpack.c.h.b16 %v5825
        %v6131 = vunpack.c.l.b16 %v5826
        %v6132 = vunpack.c.h.b16 %v5826
        %v6133 = vunpack.c.l.b16 %v5827
        %v6134 = vunpack.c.h.b16 %v5827
        %v6135 = vunpack.c.l.b16 %v5828
        %v6136 = vunpack.c.h.b16 %v5828
        %v6137 = vunpack.c.l.b16 %v5829
        %v6138 = vunpack.c.h.b16 %v5829
        %v6139 = vunpack.c.l.b16 %v5830
        %v6140 = vunpack.c.h.b16 %v5830
        %v6141 = vunpack.c.l.b16 %v5831
        %v6142 = vunpack.c.h.b16 %v5831
        %v6143 = vunpack.c.l.b16 %v5832
        %v6144 = vunpack.c.h.b16 %v5832
        %v6145 = vunpack.c.l.b16 %v5833
        %v6146 = vunpack.c.h.b16 %v5833
        %v6147 = vunpack.c.l.b16 %v5834
        %v6148 = vunpack.c.h.b16 %v5834
        %v6149 = vunpack.c.l.b16 %v5835
        %v6150 = vunpack.c.h.b16 %v5835
        %v6151 = vunpack.c.l.b16 %v5836
        %v6152 = vunpack.c.h.b16 %v5836
        %v6153 = vunpack.c.l.b16 %v5837
        %v6154 = vunpack.c.h.b16 %v5837
        %v6155 = vunpack.c.l.b16 %v5838
        %v6156 = vunpack.c.h.b16 %v5838
        %v6157 = vunpack.c.l.b16 %v5839
        %v6158 = vunpack.c.h.b16 %v5839
        %v6159 = vunpack.c.l.b16 %v5840
        %v6160 = vunpack.c.h.b16 %v5840
        %v6161 = vunpack.c.l.b16 %v5841
        %v6162 = vunpack.c.h.b16 %v5841
        %v6163 = vunpack.c.l.b16 %v5842
        %v6164 = vunpack.c.h.b16 %v5842
        %v6165 = vunpack.c.l.b16 %v5843
        %v6166 = vunpack.c.h.b16 %v5843
        %v6167 = vunpack.c.l.b16 %v5844
        %v6168 = vunpack.c.h.b16 %v5844
        %v6169 = vunpack.c.l.b16 %v5845
        %v6170 = vunpack.c.h.b16 %v5845
        %v6171 = vunpack.c.l.b16 %v5846
        %v6172 = vunpack.c.h.b16 %v5846
        %v6173 = vunpack.c.l.b16 %v5847
        %v6174 = vunpack.c.h.b16 %v5847
        %v6175 = vunpack.c.l.b16 %v5848
        %v6176 = vunpack.c.h.b16 %v5848
        %v6177 = vunpack.c.l.b16 %v5849
        %v6178 = vunpack.c.h.b16 %v5849
        %v6179 = vunpack.c.l.b16 %v5850
        %v6180 = vunpack.c.h.b16 %v5850
        %v6181 = vunpack.c.l.b16 %v5851
        %v6182 = vunpack.c.h.b16 %v5851
        %v6183 = vunpack.c.l.b16 %v5852
        %v6184 = vunpack.c.h.b16 %v5852
        %v6185 = vunpack.c.l.b16 %v5853
        %v6186 = vunpack.c.h.b16 %v5853
        %v6187 = vunpack.c.l.b16 %v5854
        %v6188 = vunpack.c.h.b16 %v5854
        %v6189 = vunpack.c.l.b16 %v5855
        %v6190 = vunpack.c.h.b16 %v5855
        %v6191 = vunpack.c.l.b16 %v5856
        %v6192 = vunpack.c.h.b16 %v5856
        %v6193 = vunpack.c.l.b16 %v5857
        %v6194 = vunpack.c.h.b16 %v5857
        %v6195 = vunpack.c.l.b16 %v5858
        %v6196 = vunpack.c.h.b16 %v5858
        %v6197 = vunpack.c.l.b16 %v5859
        %v6198 = vunpack.c.h.b16 %v5859
        %v6199 = vunpack.c.l.b16 %v5860
        %v6200 = vunpack.c.h.b16 %v5860
        %v6201 = vunpack.c.l.b16 %v5861
        %v6202 = vunpack.c.h.b16 %v5861
        %v6203 = vunpack.c.l.b16 %v5862
        %v6204 = vunpack.c.h.b16 %v5862
        %v6205 = vunpack.c.l.b16 %v5863
        %v6206 = vunpack.c.h.b16 %v5863
        %v6207 = vunpack.c.l.b16 %v5864
        %v6208 = vunpack.c.h.b16 %v5864
        %v6209 = vunpack.c.l.b16 %v5865
        %v6210 = vunpack.c.h.b16 %v5865
        %v6211 = vunpack.c.l.b16 %v5866
        %v6212 = vunpack.c.h.b16 %v5866
        %v6213 = vunpack.c.l.b16 %v5867
        %v6214 = vunpack.c.h.b16 %v5867
        %v6215 = vunpack.c.l.b16 %v5868
        %v6216 = vunpack.c.h.b16 %v5868
        %v6217 = vunpack.c.l.b16 %v5869
        %v6218 = vunpack.c.h.b16 %v5869
        %v6219 = vunpack.c.l.b16 %v5870
        %v6220 = vunpack.c.h.b16 %v5870
        %v6221 = vunpack.c.l.b16 %v5871
        %v6222 = vunpack.c.h.b16 %v5871
        %v6223 = vunpack.c.l.b16 %v5872
        %v6224 = vunpack.c.h.b16 %v5872
        %v6225 = vunpack.c.l.b16 %v5873
        %v6226 = vunpack.c.h.b16 %v5873
        %v6227 = vunpack.c.l.b16 %v5874
        %v6228 = vunpack.c.h.b16 %v5874
        %v6229 = vunpack.c.l.b16 %v5875
        %v6230 = vunpack.c.h.b16 %v5875
        %v6231 = vunpack.c.l.b16 %v5876
        %v6232 = vunpack.c.h.b16 %v5876
        %v6233 = vunpack.c.l.b16 %v5877
        %v6234 = vunpack.c.h.b16 %v5877
        %v6235 = vunpack.c.l.b16 %v5878
        %v6236 = vunpack.c.h.b16 %v5878
        %v6237 = vunpack.c.l.b16 %v5879
        %v6238 = vunpack.c.h.b16 %v5879
        %v6239 = vunpack.c.l.b16 %v5880
        %v6240 = vunpack.c.h.b16 %v5880
        %v6241 = vunpack.c.l.b16 %v5881
        %v6242 = vunpack.c.h.b16 %v5881
        %v6243 = vunpack.c.l.b16 %v5882
        %v6244 = vunpack.c.h.b16 %v5882
        %v6245 = vunpack.c.l.b16 %v5883
        %v6246 = vunpack.c.h.b16 %v5883
        %v6247 = vunpack.c.l.b16 %v5884
        %v6248 = vunpack.c.h.b16 %v5884
        %v6249 = vunpack.c.l.b16 %v5885
        %v6250 = vunpack.c.h.b16 %v5885
        %v6251 = vunpack.c.l.b16 %v5886
        %v6252 = vunpack.c.h.b16 %v5886
        %v6253 = vunpack.c.l.b16 %v5887
        %v6254 = vunpack.c.h.b16 %v5887
        %v6255 = vunpack.c.l.b16 %v5888
        %v6256 = vunpack.c.h.b16 %v5888
        %v6257 = vunpack.c.l.b16 %v5889
        %v6258 = vunpack.c.h.b16 %v5889
        %v6259 = vunpack.c.l.b16 %v5890
        %v6260 = vunpack.c.h.b16 %v5890
        %v6261 = vunpack.c.l.b16 %v5891
        %v6262 = vunpack.c.h.b16 %v5891
        %v6263 = vunpack.c.l.b16 %v5892
        %v6264 = vunpack.c.h.b16 %v5892
        %v6265 = vunpack.c.l.b16 %v5893
        %v6266 = vunpack.c.h.b16 %v5893
        %v6267 = vunpack.c.l.b16 %v5894
        %v6268 = vunpack.c.h.b16 %v5894
        %v6269 = vunpack.c.l.b16 %v5895
        %v6270 = vunpack.c.h.b16 %v5895
        %v6271 = vunpack.c.l.b16 %v5896
        %v6272 = vunpack.c.h.b16 %v5896
        %v6273 = vunpack.c.l.b16 %v5897
        %v6274 = vunpack.c.h.b16 %v5897
        %v6275 = vunpack.c.l.b16 %v5898
        %v6276 = vunpack.c.h.b16 %v5898
        %v6277 = vunpack.c.l.b16 %v5899
        %v6278 = vunpack.c.h.b16 %v5899
        %v6279 = vunpack.c.l.b16 %v5900
        %v6280 = vunpack.c.h.b16 %v5900
        %v6281 = vunpack.c.l.b16 %v5901
        %v6282 = vunpack.c.h.b16 %v5901
        %v6283 = vunpack.c.l.b16 %v5902
        %v6284 = vunpack.c.h.b16 %v5902
        %v6285 = vunpack.c.l.b16 %v5903
        %v6286 = vunpack.c.h.b16 %v5903
        %v6287 = vunpack.c.l.b16 %v5904
        %v6288 = vunpack.c.h.b16 %v5904
        %v6289 = vunpack.c.l.b16 %v5905
        %v6290 = vunpack.c.h.b16 %v5905
        %v6291 = vunpack.c.l.b16 %v5906
        %v6292 = vunpack.c.h.b16 %v5906
        %v6293 = vunpack.c.l.b16 %v5907
        %v6294 = vunpack.c.h.b16 %v5907
        %v6295 = vunpack.c.l.b16 %v5908
        %v6296 = vunpack.c.h.b16 %v5908
        %v6297 = vunpack.c.l.b16 %v5909
        %v6298 = vunpack.c.h.b16 %v5909
        %v6299 = vunpack.c.l.b16 %v5910
        %v6300 = vunpack.c.h.b16 %v5910
        %v6301 = vunpack.c.l.b16 %v5911
        %v6302 = vunpack.c.h.b16 %v5911
        %v6303 = vunpack.c.l.b16 %v5912
        %v6304 = vunpack.c.h.b16 %v5912
        %v6305 = vunpack.c.l.b16 %v5913
        %v6306 = vunpack.c.h.b16 %v5913
        %v6307 = vunpack.c.l.b16 %v5914
        %v6308 = vunpack.c.h.b16 %v5914
        %v6309 = vunpack.c.l.b16 %v5915
        %v6310 = vunpack.c.h.b16 %v5915
        %v6311 = vunpack.c.l.b16 %v5916
        %v6312 = vunpack.c.h.b16 %v5916
        %v6313 = vunpack.c.l.b16 %v5917
        %v6314 = vunpack.c.h.b16 %v5917
        %v6315 = vunpack.c.l.b16 %v5918
        %v6316 = vunpack.c.h.b16 %v5918
        %v6317 = vunpack.c.l.b16 %v5919
        %v6318 = vunpack.c.h.b16 %v5919
        %v6319 = vunpack.c.l.b16 %v5920
        %v6320 = vunpack.c.h.b16 %v5920
        %v6321 = vunpack.c.l.b16 %v5921
        %v6322 = vunpack.c.h.b16 %v5921
        %v6323 = vunpack.c.l.b16 %v5922
        %v6324 = vunpack.c.h.b16 %v5922
        %v6325 = vunpack.c.l.b16 %v5923
        %v6326 = vunpack.c.h.b16 %v5923
        %v6327 = vunpack.c.l.b16 %v5924
        %v6328 = vunpack.c.h.b16 %v5924
        %v6329 = vunpack.c.l.b16 %v5925
        %v6330 = vunpack.c.h.b16 %v5925
        %v6331 = vunpack.c.l.b16 %v5926
        %v6332 = vunpack.c.h.b16 %v5926
        %v6333 = vpack.c.b16 %v6081, %v6077
        %v6334 = vpack.c.b16 %v6082, %v6078
        %v6335 = vpack.c.b16 %v6083, %v6079
        %v6336 = vpack.c.b16 %v6084, %v6080
        %v6337 = vpack.c.b16 %v6089, %v6085
        %v6338 = vpack.c.b16 %v6090, %v6086
        %v6339 = vpack.c.b16 %v6091, %v6087
        %v6340 = vpack.c.b16 %v6092, %v6088
        %v6341 = vpack.c.b16 %v6097, %v6093
        %v6342 = vpack.c.b16 %v6098, %v6094
        %v6343 = vpack.c.b16 %v6099, %v6095
        %v6344 = vpack.c.b16 %v6100, %v6096
        %v6345 = vpack.c.b16 %v6105, %v6101
        %v6346 = vpack.c.b16 %v6106, %v6102
        %v6347 = vpack.c.b16 %v6107, %v6103
        %v6348 = vpack.c.b16 %v6108, %v6104
        %v6349 = vpack.c.b16 %v6113, %v6109
        %v6350 = vpack.c.b16 %v6114, %v6110
        %v6351 = vpack.c.b16 %v6115, %v6111
        %v6352 = vpack.c.b16 %v6116, %v6112
        %v6353 = vpack.c.b16 %v6121, %v6117
        %v6354 = vpack.c.b16 %v6122, %v6118
        %v6355 = vpack.c.b16 %v6123, %v6119
        %v6356 = vpack.c.b16 %v6124, %v6120
        %v6357 = vpack.c.b16 %v6129, %v6125
        %v6358 = vpack.c.b16 %v6130, %v6126
        %v6359 = vpack.c.b16 %v6131, %v6127
        %v6360 = vpack.c.b16 %v6132, %v6128
        %v6361 = vpack.c.b16 %v6137, %v6133
        %v6362 = vpack.c.b16 %v6138, %v6134
        %v6363 = vpack.c.b16 %v6139, %v6135
        %v6364 = vpack.c.b16 %v6140, %v6136
        %v6365 = vpack.c.b16 %v6145, %v6141
        %v6366 = vpack.c.b16 %v6146, %v6142
        %v6367 = vpack.c.b16 %v6147, %v6143
        %v6368 = vpack.c.b16 %v6148, %v6144
        %v6369 = vpack.c.b16 %v6153, %v6149
        %v6370 = vpack.c.b16 %v6154, %v6150
        %v6371 = vpack.c.b16 %v6155, %v6151
        %v6372 = vpack.c.b16 %v6156, %v6152
        %v6373 = vpack.c.b16 %v6161, %v6157
        %v6374 = vpack.c.b16 %v6162, %v6158
        %v6375 = vpack.c.b16 %v6163, %v6159
        %v6376 = vpack.c.b16 %v6164, %v6160
        %v6377 = vpack.c.b16 %v6169, %v6165
        %v6378 = vpack.c.b16 %v6170, %v6166
        %v6379 = vpack.c.b16 %v6171, %v6167
        %v6380 = vpack.c.b16 %v6172, %v6168
        %v6381 = vpack.c.b16 %v6177, %v6173
        %v6382 = vpack.c.b16 %v6178, %v6174
        %v6383 = vpack.c.b16 %v6179, %v6175
        %v6384 = vpack.c.b16 %v6180, %v6176
        %v6385 = vpack.c.b16 %v6185, %v6181
        %v6386 = vpack.c.b16 %v6186, %v6182
        %v6387 = vpack.c.b16 %v6187, %v6183
        %v6388 = vpack.c.b16 %v6188, %v6184
        %v6389 = vpack.c.b16 %v6193, %v6189
        %v6390 = vpack.c.b16 %v6194, %v6190
        %v6391 = vpack.c.b16 %v6195, %v6191
        %v6392 = vpack.c.b16 %v6196, %v6192
        %v6393 = vpack.c.b16 %v6201, %v6197
        %v6394 = vpack.c.b16 %v6202, %v6198
        %v6395 = vpack.c.b16 %v6203, %v6199
        %v6396 = vpack.c.b16 %v6204, %v6200
        %v6397 = vpack.c.b16 %v6209, %v6205
        %v6398 = vpack.c.b16 %v6210, %v6206
        %v6399 = vpack.c.b16 %v6211, %v6207
        %v6400 = vpack.c.b16 %v6212, %v6208
        %v6401 = vpack.c.b16 %v6217, %v6213
        %v6402 = vpack.c.b16 %v6218, %v6214
        %v6403 = vpack.c.b16 %v6219, %v6215
        %v6404 = vpack.c.b16 %v6220, %v6216
        %v6405 = vpack.c.b16 %v6225, %v6221
        %v6406 = vpack.c.b16 %v6226, %v6222
        %v6407 = vpack.c.b16 %v6227, %v6223
        %v6408 = vpack.c.b16 %v6228, %v6224
        %v6409 = vpack.c.b16 %v6233, %v6229
        %v6410 = vpack.c.b16 %v6234, %v6230
        %v6411 = vpack.c.b16 %v6235, %v6231
        %v6412 = vpack.c.b16 %v6236, %v6232
        %v6413 = vpack.c.b16 %v6241, %v6237
        %v6414 = vpack.c.b16 %v6242, %v6238
        %v6415 = vpack.c.b16 %v6243, %v6239
        %v6416 = vpack.c.b16 %v6244, %v6240
        %v6417 = vpack.c.b16 %v6249, %v6245
        %v6418 = vpack.c.b16 %v6250, %v6246
        %v6419 = vpack.c.b16 %v6251, %v6247
        %v6420 = vpack.c.b16 %v6252, %v6248
        %v6421 = vpack.c.b16 %v6257, %v6253
        %v6422 = vpack.c.b16 %v6258, %v6254
        %v6423 = vpack.c.b16 %v6259, %v6255
        %v6424 = vpack.c.b16 %v6260, %v6256
        %v6425 = vpack.c.b16 %v6265, %v6261
        %v6426 = vpack.c.b16 %v6266, %v6262
        %v6427 = vpack.c.b16 %v6267, %v6263
        %v6428 = vpack.c.b16 %v6268, %v6264
        %v6429 = vpack.c.b16 %v6273, %v6269
        %v6430 = vpack.c.b16 %v6274, %v6270
        %v6431 = vpack.c.b16 %v6275, %v6271
        %v6432 = vpack.c.b16 %v6276, %v6272
        %v6433 = vpack.c.b16 %v6281, %v6277
        %v6434 = vpack.c.b16 %v6282, %v6278
        %v6435 = vpack.c.b16 %v6283, %v6279
        %v6436 = vpack.c.b16 %v6284, %v6280
        %v6437 = vpack.c.b16 %v6289, %v6285
        %v6438 = vpack.c.b16 %v6290, %v6286
        %v6439 = vpack.c.b16 %v6291, %v6287
        %v6440 = vpack.c.b16 %v6292, %v6288
        %v6441 = vpack.c.b16 %v6297, %v6293
        %v6442 = vpack.c.b16 %v6298, %v6294
        %v6443 = vpack.c.b16 %v6299, %v6295
        %v6444 = vpack.c.b16 %v6300, %v6296
        %v6445 = vpack.c.b16 %v6305, %v6301
        %v6446 = vpack.c.b16 %v6306, %v6302
        %v6447 = vpack.c.b16 %v6307, %v6303
        %v6448 = vpack.c.b16 %v6308, %v6304
        %v6449 = vpack.c.b16 %v6313, %v6309
        %v6450 = vpack.c.b16 %v6314, %v6310
        %v6451 = vpack.c.b16 %v6315, %v6311
        %v6452 = vpack.c.b16 %v6316, %v6312
        %v6453 = vpack.c.b16 %v6321, %v6317
        %v6454 = vpack.c.b16 %v6322, %v6318
        %v6455 = vpack.c.b16 %v6323, %v6319
        %v6456 = vpack.c.b16 %v6324, %v6320
        %v6457 = vpack.c.b16 %v6329, %v6325
        %v6458 = vpack.c.b16 %v6330, %v6326
        %v6459 = vpack.c.b16 %v6331, %v6327
        %v6460 = vpack.c.b16 %v6332, %v6328
        %6589 = vmatprep.subr.bf16.mxu0 %v6334
        %6590 = vmatpush1.bf16.msra.mxu0 %v6333
        %6591 = vmatprep.subr.bf16.mxu0 %v6338
        %6592 = vmatpush1.bf16.msra.mxu0 %v6337
        %6593 = vmatprep.subr.bf16.mxu0 %v6342
        %6594 = vmatpush1.bf16.msra.mxu0 %v6341
        %6595 = vmatprep.subr.bf16.mxu0 %v6346
        %6596 = vmatpush1.bf16.msra.mxu0 %v6345
        %6597 = vmatprep.subr.bf16.mxu0 %v6350
        %6598 = vmatpush1.bf16.msra.mxu0 %v6349
        %6599 = vmatprep.subr.bf16.mxu0 %v6354
        %6600 = vmatpush1.bf16.msra.mxu0 %v6353
        %6601 = vmatprep.subr.bf16.mxu0 %v6358
        %6602 = vmatpush1.bf16.msra.mxu0 %v6357
        %6603 = vmatprep.subr.bf16.mxu0 %v6362
        %6604 = vmatpush1.bf16.msra.mxu0 %v6361
        %6605 = vmatprep.subr.bf16.mxu0 %v6366
        %6606 = vmatpush1.bf16.msra.mxu0 %v6365
        %6607 = vmatprep.subr.bf16.mxu0 %v6370
        %6608 = vmatpush1.bf16.msra.mxu0 %v6369
        %6609 = vmatprep.subr.bf16.mxu0 %v6374
        %6610 = vmatpush1.bf16.msra.mxu0 %v6373
        %6611 = vmatprep.subr.bf16.mxu0 %v6378
        %6612 = vmatpush1.bf16.msra.mxu0 %v6377
        %6613 = vmatprep.subr.bf16.mxu0 %v6382
        %6614 = vmatpush1.bf16.msra.mxu0 %v6381
        %6615 = vmatprep.subr.bf16.mxu0 %v6386
        %6616 = vmatpush1.bf16.msra.mxu0 %v6385
        %6617 = vmatprep.subr.bf16.mxu0 %v6390
        %6618 = vmatpush1.bf16.msra.mxu0 %v6389
        %6619 = vmatprep.subr.bf16.mxu0 %v6394
        %6620 = vmatpush1.bf16.msra.mxu0 %v6393
        %6621 = vmatprep.mubr.bf16.mxu0 %v5796
        %6622 = vmatmul.mubr.bf16.gmra.mrb[0].mxu0 %v5795
        %v6623 = vpop.f32.mrb[0].mxu0
        %v6624 = vadd.f32 %v5932, %v6623
        %v6625 = vpop.f32.mrb[0].mxu0
        %v6626 = vadd.f32 %v5936, %v6625
        %v6627 = vpop.f32.mrb[0].mxu0
        %v6628 = vadd.f32 %v5932, %v6627
        %v6629 = vpop.f32.mrb[0].mxu0
        %v6630 = vadd.f32 %v5936, %v6629
        %6631 = vdwg.mxu0
        %6632 = vmatprep.subr.bf16.mxu0 %v6398
        %6633 = vmatpush1.bf16.msra.mxu0 %v6397
        %6634 = vmatprep.subr.bf16.mxu0 %v6402
        %6635 = vmatpush1.bf16.msra.mxu0 %v6401
        %6636 = vmatprep.subr.bf16.mxu0 %v6406
        %6637 = vmatpush1.bf16.msra.mxu0 %v6405
        %6638 = vmatprep.subr.bf16.mxu0 %v6410
        %6639 = vmatpush1.bf16.msra.mxu0 %v6409
        %6640 = vmatprep.subr.bf16.mxu0 %v6414
        %6641 = vmatpush1.bf16.msra.mxu0 %v6413
        %6642 = vmatprep.subr.bf16.mxu0 %v6418
        %6643 = vmatpush1.bf16.msra.mxu0 %v6417
        %6644 = vmatprep.subr.bf16.mxu0 %v6422
        %6645 = vmatpush1.bf16.msra.mxu0 %v6421
        %6646 = vmatprep.subr.bf16.mxu0 %v6426
        %6647 = vmatpush1.bf16.msra.mxu0 %v6425
        %6648 = vmatprep.subr.bf16.mxu0 %v6430
        %6649 = vmatpush1.bf16.msra.mxu0 %v6429
        %6650 = vmatprep.subr.bf16.mxu0 %v6434
        %6651 = vmatpush1.bf16.msra.mxu0 %v6433
        %6652 = vmatprep.subr.bf16.mxu0 %v6438
        %6653 = vmatpush1.bf16.msra.mxu0 %v6437
        %6654 = vmatprep.subr.bf16.mxu0 %v6442
        %6655 = vmatpush1.bf16.msra.mxu0 %v6441
        %6656 = vmatprep.subr.bf16.mxu0 %v6446
        %6657 = vmatpush1.bf16.msra.mxu0 %v6445
        %6658 = vmatprep.subr.bf16.mxu0 %v6450
        %6659 = vmatpush1.bf16.msra.mxu0 %v6449
        %6660 = vmatprep.subr.bf16.mxu0 %v6454
        %6661 = vmatpush1.bf16.msra.mxu0 %v6453
        %6662 = vmatprep.subr.bf16.mxu0 %v6458
        %6663 = vmatpush1.bf16.msra.mxu0 %v6457
        %6664 = vmatprep.mubr.bf16.mxu0 %v5798
        %6665 = vmatmul.mubr.bf16.gmra.mrb[0].mxu0 %v5797
        %v6666 = vpop.f32.mrb[0].mxu0
        %v6667 = vadd.f32 %v6624, %v6666
        %v6668 = vpop.f32.mrb[0].mxu0
        %v6669 = vadd.f32 %v6626, %v6668
        %v6670 = vpop.f32.mrb[0].mxu0
        %v6671 = vadd.f32 %v6628, %v6670
        %v6672 = vpop.f32.mrb[0].mxu0
        %v6673 = vadd.f32 %v6630, %v6672
        %6674 = vdwg.mxu0
        %6675 = vmatprep.subr.bf16.mxu0 %v6336
        %6676 = vmatpush1.bf16.msra.mxu0 %v6335
        %6677 = vmatprep.subr.bf16.mxu0 %v6340
        %6678 = vmatpush1.bf16.msra.mxu0 %v6339
        %6679 = vmatprep.subr.bf16.mxu0 %v6344
        %6680 = vmatpush1.bf16.msra.mxu0 %v6343
        %6681 = vmatprep.subr.bf16.mxu0 %v6348
        %6682 = vmatpush1.bf16.msra.mxu0 %v6347
        %6683 = vmatprep.subr.bf16.mxu0 %v6352
        %6684 = vmatpush1.bf16.msra.mxu0 %v6351
        %6685 = vmatprep.subr.bf16.mxu0 %v6356
        %6686 = vmatpush1.bf16.msra.mxu0 %v6355
        %6687 = vmatprep.subr.bf16.mxu0 %v6360
        %6688 = vmatpush1.bf16.msra.mxu0 %v6359
        %6689 = vmatprep.subr.bf16.mxu0 %v6364
        %6690 = vmatpush1.bf16.msra.mxu0 %v6363
        %6691 = vmatprep.subr.bf16.mxu0 %v6368
        %6692 = vmatpush1.bf16.msra.mxu0 %v6367
        %6693 = vmatprep.subr.bf16.mxu0 %v6372
        %6694 = vmatpush1.bf16.msra.mxu0 %v6371
        %6695 = vmatprep.subr.bf16.mxu0 %v6376
        %6696 = vmatpush1.bf16.msra.mxu0 %v6375
        %6697 = vmatprep.subr.bf16.mxu0 %v6380
        %6698 = vmatpush1.bf16.msra.mxu0 %v6379
        %6699 = vmatprep.subr.bf16.mxu0 %v6384
        %6700 = vmatpush1.bf16.msra.mxu0 %v6383
        %6701 = vmatprep.subr.bf16.mxu0 %v6388
        %6702 = vmatpush1.bf16.msra.mxu0 %v6387
        %6703 = vmatprep.subr.bf16.mxu0 %v6392
        %6704 = vmatpush1.bf16.msra.mxu0 %v6391
        %6705 = vmatprep.subr.bf16.mxu0 %v6396
        %6706 = vmatpush1.bf16.msra.mxu0 %v6395
        %6707 = vmatprep.mubr.bf16.mxu0 %v5796
        %6708 = vmatmul.mubr.bf16.gmra.mrb[0].mxu0 %v5795
        %v6709 = vpop.f32.mrb[0].mxu0
        %v6710 = vadd.f32 %v5940, %v6709
        %v6711 = vpop.f32.mrb[0].mxu0
        %v6712 = vadd.f32 %v5944, %v6711
        %v6713 = vpop.f32.mrb[0].mxu0
        %v6714 = vadd.f32 %v5940, %v6713
        %v6715 = vpop.f32.mrb[0].mxu0
        %v6716 = vadd.f32 %v5944, %v6715
        %6717 = vdwg.mxu0
        %6718 = vmatprep.subr.bf16.mxu0 %v6400
        %6719 = vmatpush1.bf16.msra.mxu0 %v6399
        %6720 = vmatprep.subr.bf16.mxu0 %v6404
        %6721 = vmatpush1.bf16.msra.mxu0 %v6403
        %6722 = vmatprep.subr.bf16.mxu0 %v6408
        %6723 = vmatpush1.bf16.msra.mxu0 %v6407
        %6724 = vmatprep.subr.bf16.mxu0 %v6412
        %6725 = vmatpush1.bf16.msra.mxu0 %v6411
        %6726 = vmatprep.subr.bf16.mxu0 %v6416
        %6727 = vmatpush1.bf16.msra.mxu0 %v6415
        %6728 = vmatprep.subr.bf16.mxu0 %v6420
        %6729 = vmatpush1.bf16.msra.mxu0 %v6419
        %6730 = vmatprep.subr.bf16.mxu0 %v6424
        %6731 = vmatpush1.bf16.msra.mxu0 %v6423
        %6732 = vmatprep.subr.bf16.mxu0 %v6428
        %6733 = vmatpush1.bf16.msra.mxu0 %v6427
        %6734 = vmatprep.subr.bf16.mxu0 %v6432
        %6735 = vmatpush1.bf16.msra.mxu0 %v6431
        %6736 = vmatprep.subr.bf16.mxu0 %v6436
        %6737 = vmatpush1.bf16.msra.mxu0 %v6435
        %6738 = vmatprep.subr.bf16.mxu0 %v6440
        %6739 = vmatpush1.bf16.msra.mxu0 %v6439
        %6740 = vmatprep.subr.bf16.mxu0 %v6444
        %6741 = vmatpush1.bf16.msra.mxu0 %v6443
        %6742 = vmatprep.subr.bf16.mxu0 %v6448
        %6743 = vmatpush1.bf16.msra.mxu0 %v6447
        %6744 = vmatprep.subr.bf16.mxu0 %v6452
        %6745 = vmatpush1.bf16.msra.mxu0 %v6451
        %6746 = vmatprep.subr.bf16.mxu0 %v6456
        %6747 = vmatpush1.bf16.msra.mxu0 %v6455
        %6748 = vmatprep.subr.bf16.mxu0 %v6460
        %6749 = vmatpush1.bf16.msra.mxu0 %v6459
        %6750 = vmatprep.mubr.bf16.mxu0 %v5798
        %6751 = vmatmul.mubr.bf16.gmra.mrb[0].mxu0 %v5797
        %v6752 = vpop.f32.mrb[0].mxu0
        %v6753 = vadd.f32 %v6710, %v6752
        %v6754 = vpop.f32.mrb[0].mxu0
        %v6755 = vadd.f32 %v6712, %v6754
        %v6756 = vpop.f32.mrb[0].mxu0
        %v6757 = vadd.f32 %v6714, %v6756
        %v6758 = vpop.f32.mrb[0].mxu0
        %v6759 = vadd.f32 %v6716, %v6758
        %6760 = vdwg.mxu0
        %v6761 = vmax.f32 %v6667, 0.0
        %v6762 = vmax.f32 %v6669, 0.0
        %v6763 = vmax.f32 %v6753, 0.0
        %v6764 = vmax.f32 %v6755, 0.0
        %v6765 = vmax.f32 %v6671, 0.0
        %v6766 = vmax.f32 %v6673, 0.0
        %v6767 = vmax.f32 %v6757, 0.0
        %v6768 = vmax.f32 %v6759, 0.0
        %v6769 = vpack.c.bf16 %v6765, %v6761
        %v6770 = vpack.c.bf16 %v6766, %v6762
        %v6771 = vpack.c.bf16 %v6767, %v6763
        %v6772 = vpack.c.bf16 %v6768, %v6764
        %v6773 = vld [vmem:[%s831] sm:$0xff]
        %v6774 = vld [vmem:[%s831 + $0x8] sm:$0xff]
        %v6775 = vld [vmem:[%s831 + $0x10] sm:$0xff]
        %v6776 = vld [vmem:[%s831 + $0x18] sm:$0xff]
        %v6777 = vld [vmem:[%s831 + $0x20] sm:$0xff]
        %v6778 = vld [vmem:[%s831 + $0x28] sm:$0xff]
        %v6779 = vld [vmem:[%s831 + $0x30] sm:$0xff]
        %v6780 = vld [vmem:[%s831 + $0x38] sm:$0xff]
        %v6781 = vld [vmem:[%s831 + $0x40] sm:$0xff]
        %v6782 = vld [vmem:[%s831 + $0x48] sm:$0xff]
        %v6783 = vld [vmem:[%s831 + $0x50] sm:$0xff]
        %v6784 = vld [vmem:[%s831 + $0x58] sm:$0xff]
        %v6785 = vld [vmem:[%s831 + $0x60] sm:$0xff]
        %v6786 = vld [vmem:[%s831 + $0x68] sm:$0xff]
        %v6787 = vld [vmem:[%s831 + $0x70] sm:$0xff]
        %v6788 = vld [vmem:[%s831 + $0x78] sm:$0xff]
        %v6789 = vld [vmem:[%s831 + $0x80] sm:$0xff]
        %v6790 = vld [vmem:[%s831 + $0x88] sm:$0xff]
        %v6791 = vld [vmem:[%s831 + $0x90] sm:$0xff]
        %v6792 = vld [vmem:[%s831 + $0x98] sm:$0xff]
        %v6793 = vld [vmem:[%s831 + $0xa0] sm:$0xff]
        %v6794 = vld [vmem:[%s831 + $0xa8] sm:$0xff]
        %v6795 = vld [vmem:[%s831 + $0xb0] sm:$0xff]
        %v6796 = vld [vmem:[%s831 + $0xb8] sm:$0xff]
        %v6797 = vld [vmem:[%s831 + $0xc0] sm:$0xff]
        %v6798 = vld [vmem:[%s831 + $0xc8] sm:$0xff]
        %v6799 = vld [vmem:[%s831 + $0xd0] sm:$0xff]
        %v6800 = vld [vmem:[%s831 + $0xd8] sm:$0xff]
        %v6801 = vld [vmem:[%s831 + $0xe0] sm:$0xff]
        %v6802 = vld [vmem:[%s831 + $0xe8] sm:$0xff]
        %v6803 = vld [vmem:[%s831 + $0xf0] sm:$0xff]
        %v6804 = vld [vmem:[%s831 + $0xf8] sm:$0xff]
        %v6805 = vld [vmem:[%s831 + $0x100] sm:$0xff]
        %v6806 = vld [vmem:[%s831 + $0x108] sm:$0xff]
        %v6807 = vld [vmem:[%s831 + $0x110] sm:$0xff]
        %v6808 = vld [vmem:[%s831 + $0x118] sm:$0xff]
        %v6809 = vld [vmem:[%s831 + $0x120] sm:$0xff]
        %v6810 = vld [vmem:[%s831 + $0x128] sm:$0xff]
        %v6811 = vld [vmem:[%s831 + $0x130] sm:$0xff]
        %v6812 = vld [vmem:[%s831 + $0x138] sm:$0xff]
        %v6813 = vld [vmem:[%s831 + $0x140] sm:$0xff]
        %v6814 = vld [vmem:[%s831 + $0x148] sm:$0xff]
        %v6815 = vld [vmem:[%s831 + $0x150] sm:$0xff]
        %v6816 = vld [vmem:[%s831 + $0x158] sm:$0xff]
        %v6817 = vld [vmem:[%s831 + $0x160] sm:$0xff]
        %v6818 = vld [vmem:[%s831 + $0x168] sm:$0xff]
        %v6819 = vld [vmem:[%s831 + $0x170] sm:$0xff]
        %v6820 = vld [vmem:[%s831 + $0x178] sm:$0xff]
        %v6821 = vld [vmem:[%s831 + $0x180] sm:$0xff]
        %v6822 = vld [vmem:[%s831 + $0x188] sm:$0xff]
        %v6823 = vld [vmem:[%s831 + $0x190] sm:$0xff]
        %v6824 = vld [vmem:[%s831 + $0x198] sm:$0xff]
        %v6825 = vld [vmem:[%s831 + $0x1a0] sm:$0xff]
        %v6826 = vld [vmem:[%s831 + $0x1a8] sm:$0xff]
        %v6827 = vld [vmem:[%s831 + $0x1b0] sm:$0xff]
        %v6828 = vld [vmem:[%s831 + $0x1b8] sm:$0xff]
        %v6829 = vld [vmem:[%s831 + $0x1c0] sm:$0xff]
        %v6830 = vld [vmem:[%s831 + $0x1c8] sm:$0xff]
        %v6831 = vld [vmem:[%s831 + $0x1d0] sm:$0xff]
        %v6832 = vld [vmem:[%s831 + $0x1d8] sm:$0xff]
        %v6833 = vld [vmem:[%s831 + $0x1e0] sm:$0xff]
        %v6834 = vld [vmem:[%s831 + $0x1e8] sm:$0xff]
        %v6835 = vld [vmem:[%s831 + $0x1f0] sm:$0xff]
        %v6836 = vld [vmem:[%s831 + $0x1f8] sm:$0xff]
        %v6837 = vld [vmem:[%s831 + $0x200] sm:$0xff]
        %v6838 = vld [vmem:[%s831 + $0x208] sm:$0xff]
        %v6839 = vld [vmem:[%s831 + $0x210] sm:$0xff]
        %v6840 = vld [vmem:[%s831 + $0x218] sm:$0xff]
        %v6841 = vld [vmem:[%s831 + $0x220] sm:$0xff]
        %v6842 = vld [vmem:[%s831 + $0x228] sm:$0xff]
        %v6843 = vld [vmem:[%s831 + $0x230] sm:$0xff]
        %v6844 = vld [vmem:[%s831 + $0x238] sm:$0xff]
        %v6845 = vld [vmem:[%s831 + $0x240] sm:$0xff]
        %v6846 = vld [vmem:[%s831 + $0x248] sm:$0xff]
        %v6847 = vld [vmem:[%s831 + $0x250] sm:$0xff]
        %v6848 = vld [vmem:[%s831 + $0x258] sm:$0xff]
        %v6849 = vld [vmem:[%s831 + $0x260] sm:$0xff]
        %v6850 = vld [vmem:[%s831 + $0x268] sm:$0xff]
        %v6851 = vld [vmem:[%s831 + $0x270] sm:$0xff]
        %v6852 = vld [vmem:[%s831 + $0x278] sm:$0xff]
        %v6853 = vld [vmem:[%s831 + $0x280] sm:$0xff]
        %v6854 = vld [vmem:[%s831 + $0x288] sm:$0xff]
        %v6855 = vld [vmem:[%s831 + $0x290] sm:$0xff]
        %v6856 = vld [vmem:[%s831 + $0x298] sm:$0xff]
        %v6857 = vld [vmem:[%s831 + $0x2a0] sm:$0xff]
        %v6858 = vld [vmem:[%s831 + $0x2a8] sm:$0xff]
        %v6859 = vld [vmem:[%s831 + $0x2b0] sm:$0xff]
        %v6860 = vld [vmem:[%s831 + $0x2b8] sm:$0xff]
        %v6861 = vld [vmem:[%s831 + $0x2c0] sm:$0xff]
        %v6862 = vld [vmem:[%s831 + $0x2c8] sm:$0xff]
        %v6863 = vld [vmem:[%s831 + $0x2d0] sm:$0xff]
        %v6864 = vld [vmem:[%s831 + $0x2d8] sm:$0xff]
        %v6865 = vld [vmem:[%s831 + $0x2e0] sm:$0xff]
        %v6866 = vld [vmem:[%s831 + $0x2e8] sm:$0xff]
        %v6867 = vld [vmem:[%s831 + $0x2f0] sm:$0xff]
        %v6868 = vld [vmem:[%s831 + $0x2f8] sm:$0xff]
        %v6869 = vld [vmem:[%s831 + $0x300] sm:$0xff]
        %v6870 = vld [vmem:[%s831 + $0x308] sm:$0xff]
        %v6871 = vld [vmem:[%s831 + $0x310] sm:$0xff]
        %v6872 = vld [vmem:[%s831 + $0x318] sm:$0xff]
        %v6873 = vld [vmem:[%s831 + $0x320] sm:$0xff]
        %v6874 = vld [vmem:[%s831 + $0x328] sm:$0xff]
        %v6875 = vld [vmem:[%s831 + $0x330] sm:$0xff]
        %v6876 = vld [vmem:[%s831 + $0x338] sm:$0xff]
        %v6877 = vld [vmem:[%s831 + $0x340] sm:$0xff]
        %v6878 = vld [vmem:[%s831 + $0x348] sm:$0xff]
        %v6879 = vld [vmem:[%s831 + $0x350] sm:$0xff]
        %v6880 = vld [vmem:[%s831 + $0x358] sm:$0xff]
        %v6881 = vld [vmem:[%s831 + $0x360] sm:$0xff]
        %v6882 = vld [vmem:[%s831 + $0x368] sm:$0xff]
        %v6883 = vld [vmem:[%s831 + $0x370] sm:$0xff]
        %v6884 = vld [vmem:[%s831 + $0x378] sm:$0xff]
        %v6885 = vld [vmem:[%s831 + $0x380] sm:$0xff]
        %v6886 = vld [vmem:[%s831 + $0x388] sm:$0xff]
        %v6887 = vld [vmem:[%s831 + $0x390] sm:$0xff]
        %v6888 = vld [vmem:[%s831 + $0x398] sm:$0xff]
        %v6889 = vld [vmem:[%s831 + $0x3a0] sm:$0xff]
        %v6890 = vld [vmem:[%s831 + $0x3a8] sm:$0xff]
        %v6891 = vld [vmem:[%s831 + $0x3b0] sm:$0xff]
        %v6892 = vld [vmem:[%s831 + $0x3b8] sm:$0xff]
        %v6893 = vld [vmem:[%s831 + $0x3c0] sm:$0xff]
        %v6894 = vld [vmem:[%s831 + $0x3c8] sm:$0xff]
        %v6895 = vld [vmem:[%s831 + $0x3d0] sm:$0xff]
        %v6896 = vld [vmem:[%s831 + $0x3d8] sm:$0xff]
        %v6897 = vld [vmem:[%s831 + $0x3e0] sm:$0xff]
        %v6898 = vld [vmem:[%s831 + $0x3e8] sm:$0xff]
        %v6899 = vld [vmem:[%s831 + $0x3f0] sm:$0xff]
        %v6900 = vld [vmem:[%s831 + $0x3f8] sm:$0xff]
        %v6901 = vld [vmem:[%s840] sm:$0xf]
        %v6903 = vlaneseq
        %v6904 = vshrl.u32 %v6903, 7
        %v6905 = vsub.s32 0, %v6904
        %v6906 = vrot.slane %v6901, %v6905
        %v6907 = vlaneseq
        %v6908 = vshrl.u32 %v6907, 7
        %v6909 = vsub.s32 1, %v6908
        %v6910 = vrot.slane %v6901, %v6909
        %v6911 = vlaneseq
        %v6912 = vshrl.u32 %v6911, 7
        %v6913 = vsub.s32 2, %v6912
        %v6914 = vrot.slane %v6901, %v6913
        %v6915 = vlaneseq
        %v6916 = vshrl.u32 %v6915, 7
        %v6917 = vsub.s32 3, %v6916
        %v6918 = vrot.slane %v6901, %v6917
        %v7051 = vunpack.c.l.b16 %v6773
        %v7052 = vunpack.c.h.b16 %v6773
        %v7053 = vunpack.c.l.b16 %v6774
        %v7054 = vunpack.c.h.b16 %v6774
        %v7055 = vunpack.c.l.b16 %v6775
        %v7056 = vunpack.c.h.b16 %v6775
        %v7057 = vunpack.c.l.b16 %v6776
        %v7058 = vunpack.c.h.b16 %v6776
        %v7059 = vunpack.c.l.b16 %v6777
        %v7060 = vunpack.c.h.b16 %v6777
        %v7061 = vunpack.c.l.b16 %v6778
        %v7062 = vunpack.c.h.b16 %v6778
        %v7063 = vunpack.c.l.b16 %v6779
        %v7064 = vunpack.c.h.b16 %v6779
        %v7065 = vunpack.c.l.b16 %v6780
        %v7066 = vunpack.c.h.b16 %v6780
        %v7067 = vunpack.c.l.b16 %v6781
        %v7068 = vunpack.c.h.b16 %v6781
        %v7069 = vunpack.c.l.b16 %v6782
        %v7070 = vunpack.c.h.b16 %v6782
        %v7071 = vunpack.c.l.b16 %v6783
        %v7072 = vunpack.c.h.b16 %v6783
        %v7073 = vunpack.c.l.b16 %v6784
        %v7074 = vunpack.c.h.b16 %v6784
        %v7075 = vunpack.c.l.b16 %v6785
        %v7076 = vunpack.c.h.b16 %v6785
        %v7077 = vunpack.c.l.b16 %v6786
        %v7078 = vunpack.c.h.b16 %v6786
        %v7079 = vunpack.c.l.b16 %v6787
        %v7080 = vunpack.c.h.b16 %v6787
        %v7081 = vunpack.c.l.b16 %v6788
        %v7082 = vunpack.c.h.b16 %v6788
        %v7083 = vunpack.c.l.b16 %v6789
        %v7084 = vunpack.c.h.b16 %v6789
        %v7085 = vunpack.c.l.b16 %v6790
        %v7086 = vunpack.c.h.b16 %v6790
        %v7087 = vunpack.c.l.b16 %v6791
        %v7088 = vunpack.c.h.b16 %v6791
        %v7089 = vunpack.c.l.b16 %v6792
        %v7090 = vunpack.c.h.b16 %v6792
        %v7091 = vunpack.c.l.b16 %v6793
        %v7092 = vunpack.c.h.b16 %v6793
        %v7093 = vunpack.c.l.b16 %v6794
        %v7094 = vunpack.c.h.b16 %v6794
        %v7095 = vunpack.c.l.b16 %v6795
        %v7096 = vunpack.c.h.b16 %v6795
        %v7097 = vunpack.c.l.b16 %v6796
        %v7098 = vunpack.c.h.b16 %v6796
        %v7099 = vunpack.c.l.b16 %v6797
        %v7100 = vunpack.c.h.b16 %v6797
        %v7101 = vunpack.c.l.b16 %v6798
        %v7102 = vunpack.c.h.b16 %v6798
        %v7103 = vunpack.c.l.b16 %v6799
        %v7104 = vunpack.c.h.b16 %v6799
        %v7105 = vunpack.c.l.b16 %v6800
        %v7106 = vunpack.c.h.b16 %v6800
        %v7107 = vunpack.c.l.b16 %v6801
        %v7108 = vunpack.c.h.b16 %v6801
        %v7109 = vunpack.c.l.b16 %v6802
        %v7110 = vunpack.c.h.b16 %v6802
        %v7111 = vunpack.c.l.b16 %v6803
        %v7112 = vunpack.c.h.b16 %v6803
        %v7113 = vunpack.c.l.b16 %v6804
        %v7114 = vunpack.c.h.b16 %v6804
        %v7115 = vunpack.c.l.b16 %v6805
        %v7116 = vunpack.c.h.b16 %v6805
        %v7117 = vunpack.c.l.b16 %v6806
        %v7118 = vunpack.c.h.b16 %v6806
        %v7119 = vunpack.c.l.b16 %v6807
        %v7120 = vunpack.c.h.b16 %v6807
        %v7121 = vunpack.c.l.b16 %v6808
        %v7122 = vunpack.c.h.b16 %v6808
        %v7123 = vunpack.c.l.b16 %v6809
        %v7124 = vunpack.c.h.b16 %v6809
        %v7125 = vunpack.c.l.b16 %v6810
        %v7126 = vunpack.c.h.b16 %v6810
        %v7127 = vunpack.c.l.b16 %v6811
        %v7128 = vunpack.c.h.b16 %v6811
        %v7129 = vunpack.c.l.b16 %v6812
        %v7130 = vunpack.c.h.b16 %v6812
        %v7131 = vunpack.c.l.b16 %v6813
        %v7132 = vunpack.c.h.b16 %v6813
        %v7133 = vunpack.c.l.b16 %v6814
        %v7134 = vunpack.c.h.b16 %v6814
        %v7135 = vunpack.c.l.b16 %v6815
        %v7136 = vunpack.c.h.b16 %v6815
        %v7137 = vunpack.c.l.b16 %v6816
        %v7138 = vunpack.c.h.b16 %v6816
        %v7139 = vunpack.c.l.b16 %v6817
        %v7140 = vunpack.c.h.b16 %v6817
        %v7141 = vunpack.c.l.b16 %v6818
        %v7142 = vunpack.c.h.b16 %v6818
        %v7143 = vunpack.c.l.b16 %v6819
        %v7144 = vunpack.c.h.b16 %v6819
        %v7145 = vunpack.c.l.b16 %v6820
        %v7146 = vunpack.c.h.b16 %v6820
        %v7147 = vunpack.c.l.b16 %v6821
        %v7148 = vunpack.c.h.b16 %v6821
        %v7149 = vunpack.c.l.b16 %v6822
        %v7150 = vunpack.c.h.b16 %v6822
        %v7151 = vunpack.c.l.b16 %v6823
        %v7152 = vunpack.c.h.b16 %v6823
        %v7153 = vunpack.c.l.b16 %v6824
        %v7154 = vunpack.c.h.b16 %v6824
        %v7155 = vunpack.c.l.b16 %v6825
        %v7156 = vunpack.c.h.b16 %v6825
        %v7157 = vunpack.c.l.b16 %v6826
        %v7158 = vunpack.c.h.b16 %v6826
        %v7159 = vunpack.c.l.b16 %v6827
        %v7160 = vunpack.c.h.b16 %v6827
        %v7161 = vunpack.c.l.b16 %v6828
        %v7162 = vunpack.c.h.b16 %v6828
        %v7163 = vunpack.c.l.b16 %v6829
        %v7164 = vunpack.c.h.b16 %v6829
        %v7165 = vunpack.c.l.b16 %v6830
        %v7166 = vunpack.c.h.b16 %v6830
        %v7167 = vunpack.c.l.b16 %v6831
        %v7168 = vunpack.c.h.b16 %v6831
        %v7169 = vunpack.c.l.b16 %v6832
        %v7170 = vunpack.c.h.b16 %v6832
        %v7171 = vunpack.c.l.b16 %v6833
        %v7172 = vunpack.c.h.b16 %v6833
        %v7173 = vunpack.c.l.b16 %v6834
        %v7174 = vunpack.c.h.b16 %v6834
        %v7175 = vunpack.c.l.b16 %v6835
        %v7176 = vunpack.c.h.b16 %v6835
        %v7177 = vunpack.c.l.b16 %v6836
        %v7178 = vunpack.c.h.b16 %v6836
        %v7179 = vunpack.c.l.b16 %v6837
        %v7180 = vunpack.c.h.b16 %v6837
        %v7181 = vunpack.c.l.b16 %v6838
        %v7182 = vunpack.c.h.b16 %v6838
        %v7183 = vunpack.c.l.b16 %v6839
        %v7184 = vunpack.c.h.b16 %v6839
        %v7185 = vunpack.c.l.b16 %v6840
        %v7186 = vunpack.c.h.b16 %v6840
        %v7187 = vunpack.c.l.b16 %v6841
        %v7188 = vunpack.c.h.b16 %v6841
        %v7189 = vunpack.c.l.b16 %v6842
        %v7190 = vunpack.c.h.b16 %v6842
        %v7191 = vunpack.c.l.b16 %v6843
        %v7192 = vunpack.c.h.b16 %v6843
        %v7193 = vunpack.c.l.b16 %v6844
        %v7194 = vunpack.c.h.b16 %v6844
        %v7195 = vunpack.c.l.b16 %v6845
        %v7196 = vunpack.c.h.b16 %v6845
        %v7197 = vunpack.c.l.b16 %v6846
        %v7198 = vunpack.c.h.b16 %v6846
        %v7199 = vunpack.c.l.b16 %v6847
        %v7200 = vunpack.c.h.b16 %v6847
        %v7201 = vunpack.c.l.b16 %v6848
        %v7202 = vunpack.c.h.b16 %v6848
        %v7203 = vunpack.c.l.b16 %v6849
        %v7204 = vunpack.c.h.b16 %v6849
        %v7205 = vunpack.c.l.b16 %v6850
        %v7206 = vunpack.c.h.b16 %v6850
        %v7207 = vunpack.c.l.b16 %v6851
        %v7208 = vunpack.c.h.b16 %v6851
        %v7209 = vunpack.c.l.b16 %v6852
        %v7210 = vunpack.c.h.b16 %v6852
        %v7211 = vunpack.c.l.b16 %v6853
        %v7212 = vunpack.c.h.b16 %v6853
        %v7213 = vunpack.c.l.b16 %v6854
        %v7214 = vunpack.c.h.b16 %v6854
        %v7215 = vunpack.c.l.b16 %v6855
        %v7216 = vunpack.c.h.b16 %v6855
        %v7217 = vunpack.c.l.b16 %v6856
        %v7218 = vunpack.c.h.b16 %v6856
        %v7219 = vunpack.c.l.b16 %v6857
        %v7220 = vunpack.c.h.b16 %v6857
        %v7221 = vunpack.c.l.b16 %v6858
        %v7222 = vunpack.c.h.b16 %v6858
        %v7223 = vunpack.c.l.b16 %v6859
        %v7224 = vunpack.c.h.b16 %v6859
        %v7225 = vunpack.c.l.b16 %v6860
        %v7226 = vunpack.c.h.b16 %v6860
        %v7227 = vunpack.c.l.b16 %v6861
        %v7228 = vunpack.c.h.b16 %v6861
        %v7229 = vunpack.c.l.b16 %v6862
        %v7230 = vunpack.c.h.b16 %v6862
        %v7231 = vunpack.c.l.b16 %v6863
        %v7232 = vunpack.c.h.b16 %v6863
        %v7233 = vunpack.c.l.b16 %v6864
        %v7234 = vunpack.c.h.b16 %v6864
        %v7235 = vunpack.c.l.b16 %v6865
        %v7236 = vunpack.c.h.b16 %v6865
        %v7237 = vunpack.c.l.b16 %v6866
        %v7238 = vunpack.c.h.b16 %v6866
        %v7239 = vunpack.c.l.b16 %v6867
        %v7240 = vunpack.c.h.b16 %v6867
        %v7241 = vunpack.c.l.b16 %v6868
        %v7242 = vunpack.c.h.b16 %v6868
        %v7243 = vunpack.c.l.b16 %v6869
        %v7244 = vunpack.c.h.b16 %v6869
        %v7245 = vunpack.c.l.b16 %v6870
        %v7246 = vunpack.c.h.b16 %v6870
        %v7247 = vunpack.c.l.b16 %v6871
        %v7248 = vunpack.c.h.b16 %v6871
        %v7249 = vunpack.c.l.b16 %v6872
        %v7250 = vunpack.c.h.b16 %v6872
        %v7251 = vunpack.c.l.b16 %v6873
        %v7252 = vunpack.c.h.b16 %v6873
        %v7253 = vunpack.c.l.b16 %v6874
        %v7254 = vunpack.c.h.b16 %v6874
        %v7255 = vunpack.c.l.b16 %v6875
        %v7256 = vunpack.c.h.b16 %v6875
        %v7257 = vunpack.c.l.b16 %v6876
        %v7258 = vunpack.c.h.b16 %v6876
        %v7259 = vunpack.c.l.b16 %v6877
        %v7260 = vunpack.c.h.b16 %v6877
        %v7261 = vunpack.c.l.b16 %v6878
        %v7262 = vunpack.c.h.b16 %v6878
        %v7263 = vunpack.c.l.b16 %v6879
        %v7264 = vunpack.c.h.b16 %v6879
        %v7265 = vunpack.c.l.b16 %v6880
        %v7266 = vunpack.c.h.b16 %v6880
        %v7267 = vunpack.c.l.b16 %v6881
        %v7268 = vunpack.c.h.b16 %v6881
        %v7269 = vunpack.c.l.b16 %v6882
        %v7270 = vunpack.c.h.b16 %v6882
        %v7271 = vunpack.c.l.b16 %v6883
        %v7272 = vunpack.c.h.b16 %v6883
        %v7273 = vunpack.c.l.b16 %v6884
        %v7274 = vunpack.c.h.b16 %v6884
        %v7275 = vunpack.c.l.b16 %v6885
        %v7276 = vunpack.c.h.b16 %v6885
        %v7277 = vunpack.c.l.b16 %v6886
        %v7278 = vunpack.c.h.b16 %v6886
        %v7279 = vunpack.c.l.b16 %v6887
        %v7280 = vunpack.c.h.b16 %v6887
        %v7281 = vunpack.c.l.b16 %v6888
        %v7282 = vunpack.c.h.b16 %v6888
        %v7283 = vunpack.c.l.b16 %v6889
        %v7284 = vunpack.c.h.b16 %v6889
        %v7285 = vunpack.c.l.b16 %v6890
        %v7286 = vunpack.c.h.b16 %v6890
        %v7287 = vunpack.c.l.b16 %v6891
        %v7288 = vunpack.c.h.b16 %v6891
        %v7289 = vunpack.c.l.b16 %v6892
        %v7290 = vunpack.c.h.b16 %v6892
        %v7291 = vunpack.c.l.b16 %v6893
        %v7292 = vunpack.c.h.b16 %v6893
        %v7293 = vunpack.c.l.b16 %v6894
        %v7294 = vunpack.c.h.b16 %v6894
        %v7295 = vunpack.c.l.b16 %v6895
        %v7296 = vunpack.c.h.b16 %v6895
        %v7297 = vunpack.c.l.b16 %v6896
        %v7298 = vunpack.c.h.b16 %v6896
        %v7299 = vunpack.c.l.b16 %v6897
        %v7300 = vunpack.c.h.b16 %v6897
        %v7301 = vunpack.c.l.b16 %v6898
        %v7302 = vunpack.c.h.b16 %v6898
        %v7303 = vunpack.c.l.b16 %v6899
        %v7304 = vunpack.c.h.b16 %v6899
        %v7305 = vunpack.c.l.b16 %v6900
        %v7306 = vunpack.c.h.b16 %v6900
        %v7307 = vpack.c.b16 %v7055, %v7051
        %v7308 = vpack.c.b16 %v7056, %v7052
        %v7309 = vpack.c.b16 %v7057, %v7053
        %v7310 = vpack.c.b16 %v7058, %v7054
        %v7311 = vpack.c.b16 %v7063, %v7059
        %v7312 = vpack.c.b16 %v7064, %v7060
        %v7313 = vpack.c.b16 %v7065, %v7061
        %v7314 = vpack.c.b16 %v7066, %v7062
        %v7315 = vpack.c.b16 %v7071, %v7067
        %v7316 = vpack.c.b16 %v7072, %v7068
        %v7317 = vpack.c.b16 %v7073, %v7069
        %v7318 = vpack.c.b16 %v7074, %v7070
        %v7319 = vpack.c.b16 %v7079, %v7075
        %v7320 = vpack.c.b16 %v7080, %v7076
        %v7321 = vpack.c.b16 %v7081, %v7077
        %v7322 = vpack.c.b16 %v7082, %v7078
        %v7323 = vpack.c.b16 %v7087, %v7083
        %v7324 = vpack.c.b16 %v7088, %v7084
        %v7325 = vpack.c.b16 %v7089, %v7085
        %v7326 = vpack.c.b16 %v7090, %v7086
        %v7327 = vpack.c.b16 %v7095, %v7091
        %v7328 = vpack.c.b16 %v7096, %v7092
        %v7329 = vpack.c.b16 %v7097, %v7093
        %v7330 = vpack.c.b16 %v7098, %v7094
        %v7331 = vpack.c.b16 %v7103, %v7099
        %v7332 = vpack.c.b16 %v7104, %v7100
        %v7333 = vpack.c.b16 %v7105, %v7101
        %v7334 = vpack.c.b16 %v7106, %v7102
        %v7335 = vpack.c.b16 %v7111, %v7107
        %v7336 = vpack.c.b16 %v7112, %v7108
        %v7337 = vpack.c.b16 %v7113, %v7109
        %v7338 = vpack.c.b16 %v7114, %v7110
        %v7339 = vpack.c.b16 %v7119, %v7115
        %v7340 = vpack.c.b16 %v7120, %v7116
        %v7341 = vpack.c.b16 %v7121, %v7117
        %v7342 = vpack.c.b16 %v7122, %v7118
        %v7343 = vpack.c.b16 %v7127, %v7123
        %v7344 = vpack.c.b16 %v7128, %v7124
        %v7345 = vpack.c.b16 %v7129, %v7125
        %v7346 = vpack.c.b16 %v7130, %v7126
        %v7347 = vpack.c.b16 %v7135, %v7131
        %v7348 = vpack.c.b16 %v7136, %v7132
        %v7349 = vpack.c.b16 %v7137, %v7133
        %v7350 = vpack.c.b16 %v7138, %v7134
        %v7351 = vpack.c.b16 %v7143, %v7139
        %v7352 = vpack.c.b16 %v7144, %v7140
        %v7353 = vpack.c.b16 %v7145, %v7141
        %v7354 = vpack.c.b16 %v7146, %v7142
        %v7355 = vpack.c.b16 %v7151, %v7147
        %v7356 = vpack.c.b16 %v7152, %v7148
        %v7357 = vpack.c.b16 %v7153, %v7149
        %v7358 = vpack.c.b16 %v7154, %v7150
        %v7359 = vpack.c.b16 %v7159, %v7155
        %v7360 = vpack.c.b16 %v7160, %v7156
        %v7361 = vpack.c.b16 %v7161, %v7157
        %v7362 = vpack.c.b16 %v7162, %v7158
        %v7363 = vpack.c.b16 %v7167, %v7163
        %v7364 = vpack.c.b16 %v7168, %v7164
        %v7365 = vpack.c.b16 %v7169, %v7165
        %v7366 = vpack.c.b16 %v7170, %v7166
        %v7367 = vpack.c.b16 %v7175, %v7171
        %v7368 = vpack.c.b16 %v7176, %v7172
        %v7369 = vpack.c.b16 %v7177, %v7173
        %v7370 = vpack.c.b16 %v7178, %v7174
        %v7371 = vpack.c.b16 %v7183, %v7179
        %v7372 = vpack.c.b16 %v7184, %v7180
        %v7373 = vpack.c.b16 %v7185, %v7181
        %v7374 = vpack.c.b16 %v7186, %v7182
        %v7375 = vpack.c.b16 %v7191, %v7187
        %v7376 = vpack.c.b16 %v7192, %v7188
        %v7377 = vpack.c.b16 %v7193, %v7189
        %v7378 = vpack.c.b16 %v7194, %v7190
        %v7379 = vpack.c.b16 %v7199, %v7195
        %v7380 = vpack.c.b16 %v7200, %v7196
        %v7381 = vpack.c.b16 %v7201, %v7197
        %v7382 = vpack.c.b16 %v7202, %v7198
        %v7383 = vpack.c.b16 %v7207, %v7203
        %v7384 = vpack.c.b16 %v7208, %v7204
        %v7385 = vpack.c.b16 %v7209, %v7205
        %v7386 = vpack.c.b16 %v7210, %v7206
        %v7387 = vpack.c.b16 %v7215, %v7211
        %v7388 = vpack.c.b16 %v7216, %v7212
        %v7389 = vpack.c.b16 %v7217, %v7213
        %v7390 = vpack.c.b16 %v7218, %v7214
        %v7391 = vpack.c.b16 %v7223, %v7219
        %v7392 = vpack.c.b16 %v7224, %v7220
        %v7393 = vpack.c.b16 %v7225, %v7221
        %v7394 = vpack.c.b16 %v7226, %v7222
        %v7395 = vpack.c.b16 %v7231, %v7227
        %v7396 = vpack.c.b16 %v7232, %v7228
        %v7397 = vpack.c.b16 %v7233, %v7229
        %v7398 = vpack.c.b16 %v7234, %v7230
        %v7399 = vpack.c.b16 %v7239, %v7235
        %v7400 = vpack.c.b16 %v7240, %v7236
        %v7401 = vpack.c.b16 %v7241, %v7237
        %v7402 = vpack.c.b16 %v7242, %v7238
        %v7403 = vpack.c.b16 %v7247, %v7243
        %v7404 = vpack.c.b16 %v7248, %v7244
        %v7405 = vpack.c.b16 %v7249, %v7245
        %v7406 = vpack.c.b16 %v7250, %v7246
        %v7407 = vpack.c.b16 %v7255, %v7251
        %v7408 = vpack.c.b16 %v7256, %v7252
        %v7409 = vpack.c.b16 %v7257, %v7253
        %v7410 = vpack.c.b16 %v7258, %v7254
        %v7411 = vpack.c.b16 %v7263, %v7259
        %v7412 = vpack.c.b16 %v7264, %v7260
        %v7413 = vpack.c.b16 %v7265, %v7261
        %v7414 = vpack.c.b16 %v7266, %v7262
        %v7415 = vpack.c.b16 %v7271, %v7267
        %v7416 = vpack.c.b16 %v7272, %v7268
        %v7417 = vpack.c.b16 %v7273, %v7269
        %v7418 = vpack.c.b16 %v7274, %v7270
        %v7419 = vpack.c.b16 %v7279, %v7275
        %v7420 = vpack.c.b16 %v7280, %v7276
        %v7421 = vpack.c.b16 %v7281, %v7277
        %v7422 = vpack.c.b16 %v7282, %v7278
        %v7423 = vpack.c.b16 %v7287, %v7283
        %v7424 = vpack.c.b16 %v7288, %v7284
        %v7425 = vpack.c.b16 %v7289, %v7285
        %v7426 = vpack.c.b16 %v7290, %v7286
        %v7427 = vpack.c.b16 %v7295, %v7291
        %v7428 = vpack.c.b16 %v7296, %v7292
        %v7429 = vpack.c.b16 %v7297, %v7293
        %v7430 = vpack.c.b16 %v7298, %v7294
        %v7431 = vpack.c.b16 %v7303, %v7299
        %v7432 = vpack.c.b16 %v7304, %v7300
        %v7433 = vpack.c.b16 %v7305, %v7301
        %v7434 = vpack.c.b16 %v7306, %v7302
        %7563 = vmatprep.subr.bf16.mxu0 %v7308
        %7564 = vmatpush1.bf16.msra.mxu0 %v7307
        %7565 = vmatprep.subr.bf16.mxu0 %v7312
        %7566 = vmatpush1.bf16.msra.mxu0 %v7311
        %7567 = vmatprep.subr.bf16.mxu0 %v7316
        %7568 = vmatpush1.bf16.msra.mxu0 %v7315
        %7569 = vmatprep.subr.bf16.mxu0 %v7320
        %7570 = vmatpush1.bf16.msra.mxu0 %v7319
        %7571 = vmatprep.subr.bf16.mxu0 %v7324
        %7572 = vmatpush1.bf16.msra.mxu0 %v7323
        %7573 = vmatprep.subr.bf16.mxu0 %v7328
        %7574 = vmatpush1.bf16.msra.mxu0 %v7327
        %7575 = vmatprep.subr.bf16.mxu0 %v7332
        %7576 = vmatpush1.bf16.msra.mxu0 %v7331
        %7577 = vmatprep.subr.bf16.mxu0 %v7336
        %7578 = vmatpush1.bf16.msra.mxu0 %v7335
        %7579 = vmatprep.subr.bf16.mxu0 %v7340
        %7580 = vmatpush1.bf16.msra.mxu0 %v7339
        %7581 = vmatprep.subr.bf16.mxu0 %v7344
        %7582 = vmatpush1.bf16.msra.mxu0 %v7343
        %7583 = vmatprep.subr.bf16.mxu0 %v7348
        %7584 = vmatpush1.bf16.msra.mxu0 %v7347
        %7585 = vmatprep.subr.bf16.mxu0 %v7352
        %7586 = vmatpush1.bf16.msra.mxu0 %v7351
        %7587 = vmatprep.subr.bf16.mxu0 %v7356
        %7588 = vmatpush1.bf16.msra.mxu0 %v7355
        %7589 = vmatprep.subr.bf16.mxu0 %v7360
        %7590 = vmatpush1.bf16.msra.mxu0 %v7359
        %7591 = vmatprep.subr.bf16.mxu0 %v7364
        %7592 = vmatpush1.bf16.msra.mxu0 %v7363
        %7593 = vmatprep.subr.bf16.mxu0 %v7368
        %7594 = vmatpush1.bf16.msra.mxu0 %v7367
        %7595 = vmatprep.mubr.bf16.mxu0 %v6770
        %7596 = vmatmul.mubr.bf16.gmra.mrb[0].mxu0 %v6769
        %v7597 = vpop.f32.mrb[0].mxu0
        %v7598 = vadd.f32 %v6906, %v7597
        %v7599 = vpop.f32.mrb[0].mxu0
        %v7600 = vadd.f32 %v6910, %v7599
        %v7601 = vpop.f32.mrb[0].mxu0
        %v7602 = vadd.f32 %v6906, %v7601
        %v7603 = vpop.f32.mrb[0].mxu0
        %v7604 = vadd.f32 %v6910, %v7603
        %7605 = vdwg.mxu0
        %7606 = vmatprep.subr.bf16.mxu0 %v7372
        %7607 = vmatpush1.bf16.msra.mxu0 %v7371
        %7608 = vmatprep.subr.bf16.mxu0 %v7376
        %7609 = vmatpush1.bf16.msra.mxu0 %v7375
        %7610 = vmatprep.subr.bf16.mxu0 %v7380
        %7611 = vmatpush1.bf16.msra.mxu0 %v7379
        %7612 = vmatprep.subr.bf16.mxu0 %v7384
        %7613 = vmatpush1.bf16.msra.mxu0 %v7383
        %7614 = vmatprep.subr.bf16.mxu0 %v7388
        %7615 = vmatpush1.bf16.msra.mxu0 %v7387
        %7616 = vmatprep.subr.bf16.mxu0 %v7392
        %7617 = vmatpush1.bf16.msra.mxu0 %v7391
        %7618 = vmatprep.subr.bf16.mxu0 %v7396
        %7619 = vmatpush1.bf16.msra.mxu0 %v7395
        %7620 = vmatprep.subr.bf16.mxu0 %v7400
        %7621 = vmatpush1.bf16.msra.mxu0 %v7399
        %7622 = vmatprep.subr.bf16.mxu0 %v7404
        %7623 = vmatpush1.bf16.msra.mxu0 %v7403
        %7624 = vmatprep.subr.bf16.mxu0 %v7408
        %7625 = vmatpush1.bf16.msra.mxu0 %v7407
        %7626 = vmatprep.subr.bf16.mxu0 %v7412
        %7627 = vmatpush1.bf16.msra.mxu0 %v7411
        %7628 = vmatprep.subr.bf16.mxu0 %v7416
        %7629 = vmatpush1.bf16.msra.mxu0 %v7415
        %7630 = vmatprep.subr.bf16.mxu0 %v7420
        %7631 = vmatpush1.bf16.msra.mxu0 %v7419
        %7632 = vmatprep.subr.bf16.mxu0 %v7424
        %7633 = vmatpush1.bf16.msra.mxu0 %v7423
        %7634 = vmatprep.subr.bf16.mxu0 %v7428
        %7635 = vmatpush1.bf16.msra.mxu0 %v7427
        %7636 = vmatprep.subr.bf16.mxu0 %v7432
        %7637 = vmatpush1.bf16.msra.mxu0 %v7431
        %7638 = vmatprep.mubr.bf16.mxu0 %v6772
        %7639 = vmatmul.mubr.bf16.gmra.mrb[0].mxu0 %v6771
        %v7640 = vpop.f32.mrb[0].mxu0
        %v7641 = vadd.f32 %v7598, %v7640
        %v7642 = vpop.f32.mrb[0].mxu0
        %v7643 = vadd.f32 %v7600, %v7642
        %v7644 = vpop.f32.mrb[0].mxu0
        %v7645 = vadd.f32 %v7602, %v7644
        %v7646 = vpop.f32.mrb[0].mxu0
        %v7647 = vadd.f32 %v7604, %v7646
        %7648 = vdwg.mxu0
        %7649 = vmatprep.subr.bf16.mxu0 %v7310
        %7650 = vmatpush1.bf16.msra.mxu0 %v7309
        %7651 = vmatprep.subr.bf16.mxu0 %v7314
        %7652 = vmatpush1.bf16.msra.mxu0 %v7313
        %7653 = vmatprep.subr.bf16.mxu0 %v7318
        %7654 = vmatpush1.bf16.msra.mxu0 %v7317
        %7655 = vmatprep.subr.bf16.mxu0 %v7322
        %7656 = vmatpush1.bf16.msra.mxu0 %v7321
        %7657 = vmatprep.subr.bf16.mxu0 %v7326
        %7658 = vmatpush1.bf16.msra.mxu0 %v7325
        %7659 = vmatprep.subr.bf16.mxu0 %v7330
        %7660 = vmatpush1.bf16.msra.mxu0 %v7329
        %7661 = vmatprep.subr.bf16.mxu0 %v7334
        %7662 = vmatpush1.bf16.msra.mxu0 %v7333
        %7663 = vmatprep.subr.bf16.mxu0 %v7338
        %7664 = vmatpush1.bf16.msra.mxu0 %v7337
        %7665 = vmatprep.subr.bf16.mxu0 %v7342
        %7666 = vmatpush1.bf16.msra.mxu0 %v7341
        %7667 = vmatprep.subr.bf16.mxu0 %v7346
        %7668 = vmatpush1.bf16.msra.mxu0 %v7345
        %7669 = vmatprep.subr.bf16.mxu0 %v7350
        %7670 = vmatpush1.bf16.msra.mxu0 %v7349
        %7671 = vmatprep.subr.bf16.mxu0 %v7354
        %7672 = vmatpush1.bf16.msra.mxu0 %v7353
        %7673 = vmatprep.subr.bf16.mxu0 %v7358
        %7674 = vmatpush1.bf16.msra.mxu0 %v7357
        %7675 = vmatprep.subr.bf16.mxu0 %v7362
        %7676 = vmatpush1.bf16.msra.mxu0 %v7361
        %7677 = vmatprep.subr.bf16.mxu0 %v7366
        %7678 = vmatpush1.bf16.msra.mxu0 %v7365
        %7679 = vmatprep.subr.bf16.mxu0 %v7370
        %7680 = vmatpush1.bf16.msra.mxu0 %v7369
        %7681 = vmatprep.mubr.bf16.mxu0 %v6770
        %7682 = vmatmul.mubr.bf16.gmra.mrb[0].mxu0 %v6769
        %v7683 = vpop.f32.mrb[0].mxu0
        %v7684 = vadd.f32 %v6914, %v7683
        %v7685 = vpop.f32.mrb[0].mxu0
        %v7686 = vadd.f32 %v6918, %v7685
        %v7687 = vpop.f32.mrb[0].mxu0
        %v7688 = vadd.f32 %v6914, %v7687
        %v7689 = vpop.f32.mrb[0].mxu0
        %v7690 = vadd.f32 %v6918, %v7689
        %7691 = vdwg.mxu0
        %7692 = vmatprep.subr.bf16.mxu0 %v7374
        %7693 = vmatpush1.bf16.msra.mxu0 %v7373
        %7694 = vmatprep.subr.bf16.mxu0 %v7378
        %7695 = vmatpush1.bf16.msra.mxu0 %v7377
        %7696 = vmatprep.subr.bf16.mxu0 %v7382
        %7697 = vmatpush1.bf16.msra.mxu0 %v7381
        %7698 = vmatprep.subr.bf16.mxu0 %v7386
        %7699 = vmatpush1.bf16.msra.mxu0 %v7385
        %7700 = vmatprep.subr.bf16.mxu0 %v7390
        %7701 = vmatpush1.bf16.msra.mxu0 %v7389
        %7702 = vmatprep.subr.bf16.mxu0 %v7394
        %7703 = vmatpush1.bf16.msra.mxu0 %v7393
        %7704 = vmatprep.subr.bf16.mxu0 %v7398
        %7705 = vmatpush1.bf16.msra.mxu0 %v7397
        %7706 = vmatprep.subr.bf16.mxu0 %v7402
        %7707 = vmatpush1.bf16.msra.mxu0 %v7401
        %7708 = vmatprep.subr.bf16.mxu0 %v7406
        %7709 = vmatpush1.bf16.msra.mxu0 %v7405
        %7710 = vmatprep.subr.bf16.mxu0 %v7410
        %7711 = vmatpush1.bf16.msra.mxu0 %v7409
        %7712 = vmatprep.subr.bf16.mxu0 %v7414
        %7713 = vmatpush1.bf16.msra.mxu0 %v7413
        %7714 = vmatprep.subr.bf16.mxu0 %v7418
        %7715 = vmatpush1.bf16.msra.mxu0 %v7417
        %7716 = vmatprep.subr.bf16.mxu0 %v7422
        %7717 = vmatpush1.bf16.msra.mxu0 %v7421
        %7718 = vmatprep.subr.bf16.mxu0 %v7426
        %7719 = vmatpush1.bf16.msra.mxu0 %v7425
        %7720 = vmatprep.subr.bf16.mxu0 %v7430
        %7721 = vmatpush1.bf16.msra.mxu0 %v7429
        %7722 = vmatprep.subr.bf16.mxu0 %v7434
        %7723 = vmatpush1.bf16.msra.mxu0 %v7433
        %7724 = vmatprep.mubr.bf16.mxu0 %v6772
        %7725 = vmatmul.mubr.bf16.gmra.mrb[0].mxu0 %v6771
        %v7726 = vpop.f32.mrb[0].mxu0
        %v7727 = vadd.f32 %v7684, %v7726
        %v7728 = vpop.f32.mrb[0].mxu0
        %v7729 = vadd.f32 %v7686, %v7728
        %v7730 = vpop.f32.mrb[0].mxu0
        %v7731 = vadd.f32 %v7688, %v7730
        %v7732 = vpop.f32.mrb[0].mxu0
        %v7733 = vadd.f32 %v7690, %v7732
        %7734 = vdwg.mxu0
        %v7735 = vadd.f32 %v5787, %v7641
        %v7736 = vadd.f32 %v5788, %v7643
        %v7737 = vadd.f32 %v5789, %v7727
        %v7738 = vadd.f32 %v5790, %v7729
        %v7739 = vadd.f32 %v5791, %v7645
        %v7740 = vadd.f32 %v5792, %v7647
        %v7741 = vadd.f32 %v5793, %v7731
        %v7742 = vadd.f32 %v5794, %v7733
        %v7743 = vadd.f32 %v7735, %v7736
        %v7744 = vadd.f32 %v7743, %v7737
        %v7745 = vadd.f32 %v7744, %v7738
        %7746 = vadd.xlane.f32.xlu0 %v7745
        %v7747 = vpop.xlane.xlu0 %7746
        %v7748 = vadd.f32 %v7739, %v7740
        %v7749 = vadd.f32 %v7748, %v7741
        %v7750 = vadd.f32 %v7749, %v7742
        %7751 = vadd.xlane.f32.xlu0 %v7750
        %v7752 = vpop.xlane.xlu0 %7751
        %v7753 = vmul.f32 %v7747, %v5692
        %v7754 = vmul.f32 %v7752, %v5692
        %v7755 = vsub.f32 %v7735, %v7753
        %v7756 = vsub.f32 %v7736, %v7753
        %v7757 = vsub.f32 %v7737, %v7753
        %v7758 = vsub.f32 %v7738, %v7753
        %v7759 = vsub.f32 %v7739, %v7754
        %v7760 = vsub.f32 %v7740, %v7754
        %v7761 = vsub.f32 %v7741, %v7754
        %v7762 = vsub.f32 %v7742, %v7754
        %v7763 = vmul.f32 %v7755, %v7755
        %v7764 = vmul.f32 %v7756, %v7756
        %v7765 = vmul.f32 %v7757, %v7757
        %v7766 = vmul.f32 %v7758, %v7758
        %v7767 = vmul.f32 %v7759, %v7759
        %v7768 = vmul.f32 %v7760, %v7760
        %v7769 = vmul.f32 %v7761, %v7761
        %v7770 = vmul.f32 %v7762, %v7762
        %v7771 = vadd.f32 %v7763, %v7764
        %v7772 = vadd.f32 %v7771, %v7765
        %v7773 = vadd.f32 %v7772, %v7766
        %7774 = vadd.xlane.f32.xlu0 %v7773
        %v7775 = vpop.xlane.xlu0 %7774
        %v7776 = vadd.f32 %v7767, %v7768
        %v7777 = vadd.f32 %v7776, %v7769
        %v7778 = vadd.f32 %v7777, %v7770
        %7779 = vadd.xlane.f32.xlu0 %v7778
        %v7780 = vpop.xlane.xlu0 %7779
        %v7781 = vmul.f32 %v7775, %v5692
        %v7782 = vmul.f32 %v7780, %v5692
        %v7783 = vadd.f32 %v7781, 1e-05
        %v7784 = vadd.f32 %v7782, 1e-05
        %v7785 = vrsqrt.pop %v7783
        %v7786 = vrsqrt.pop %v7784
        %v7787 = vmul.f32 %v7755, %v7785
        %v7788 = vmul.f32 %v7756, %v7785
        %v7789 = vmul.f32 %v7757, %v7785
        %v7790 = vmul.f32 %v7758, %v7785
        %v7791 = vmul.f32 %v7759, %v7786
        %v7792 = vmul.f32 %v7760, %v7786
        %v7793 = vmul.f32 %v7761, %v7786
        %v7794 = vmul.f32 %v7762, %v7786
        %v7795 = vld [vmem:[%s849] sm:$0xf]
        %v7797 = vlaneseq
        %v7798 = vshrl.u32 %v7797, 7
        %v7799 = vsub.s32 0, %v7798
        %v7800 = vrot.slane %v7795, %v7799
        %v7801 = vlaneseq
        %v7802 = vshrl.u32 %v7801, 7
        %v7803 = vsub.s32 1, %v7802
        %v7804 = vrot.slane %v7795, %v7803
        %v7805 = vlaneseq
        %v7806 = vshrl.u32 %v7805, 7
        %v7807 = vsub.s32 2, %v7806
        %v7808 = vrot.slane %v7795, %v7807
        %v7809 = vlaneseq
        %v7810 = vshrl.u32 %v7809, 7
        %v7811 = vsub.s32 3, %v7810
        %v7812 = vrot.slane %v7795, %v7811
        %v7817 = vmul.f32 %v7787, %v7800
        %v7818 = vmul.f32 %v7788, %v7804
        %v7819 = vmul.f32 %v7789, %v7808
        %v7820 = vmul.f32 %v7790, %v7812
        %v7821 = vmul.f32 %v7791, %v7800
        %v7822 = vmul.f32 %v7792, %v7804
        %v7823 = vmul.f32 %v7793, %v7808
        %v7824 = vmul.f32 %v7794, %v7812
        %v7825 = vld [vmem:[%s858] sm:$0xf]
        %v7827 = vlaneseq
        %v7828 = vshrl.u32 %v7827, 7
        %v7829 = vsub.s32 0, %v7828
        %v7830 = vrot.slane %v7825, %v7829
        %v7831 = vlaneseq
        %v7832 = vshrl.u32 %v7831, 7
        %v7833 = vsub.s32 1, %v7832
        %v7834 = vrot.slane %v7825, %v7833
        %v7835 = vlaneseq
        %v7836 = vshrl.u32 %v7835, 7
        %v7837 = vsub.s32 2, %v7836
        %v7838 = vrot.slane %v7825, %v7837
        %v7839 = vlaneseq
        %v7840 = vshrl.u32 %v7839, 7
        %v7841 = vsub.s32 3, %v7840
        %v7842 = vrot.slane %v7825, %v7841
        %v7847 = vadd.f32 %v7817, %v7830
        %v7848 = vadd.f32 %v7818, %v7834
        %v7849 = vadd.f32 %v7819, %v7838
        %v7850 = vadd.f32 %v7820, %v7842
        %v7851 = vadd.f32 %v7821, %v7830
        %v7852 = vadd.f32 %v7822, %v7834
        %v7853 = vadd.f32 %v7823, %v7838
        %v7854 = vadd.f32 %v7824, %v7842
        %7855 = vst [vmem:[#allocation2] sm:$0xff] %v7847
        %7856 = vst [vmem:[#allocation2 + $0x8] sm:$0xff] %v7848
        %7857 = vst [vmem:[#allocation2 + $0x10] sm:$0xff] %v7849
        %7858 = vst [vmem:[#allocation2 + $0x18] sm:$0xff] %v7850
        %7859 = vst [vmem:[#allocation2 + $0x20] sm:$0xff] %v7851
        %7860 = vst [vmem:[#allocation2 + $0x28] sm:$0xff] %v7852
        %7861 = vst [vmem:[#allocation2 + $0x30] sm:$0xff] %v7853
        %7862 = vst [vmem:[#allocation2 + $0x38] sm:$0xff] %v7854
        %p7863 = scmp.eq.s32.totalorder %s49, 3
        // Predicated region
        $region145: #{transformer_classifier.1} parent=83 // pred_check
          %p7864 = pneg %p7863
        $region146: #{transformer_classifier.1} parent=83 // pred_check_branch
          %7866 = sbr.rel (%p7864) target = $region148
        $region147: #{transformer_classifier.1} parent=83 // pred_region
          %v7867 = vrot.slane %v7847, 4
          %v7868 = vadd.f32 %v7847, %v7867
          %v7869 = vrot.slane %v7868, 2
          %v7870 = vadd.f32 %v7868, %v7869
          %v7871 = vrot.slane %v7870, 1
          %v7872 = vadd.f32 %v7870, %v7871
          %v7873 = vrot.slane %v7848, 4
          %v7874 = vadd.f32 %v7848, %v7873
          %v7875 = vrot.slane %v7874, 2
          %v7876 = vadd.f32 %v7874, %v7875
          %v7877 = vrot.slane %v7876, 1
          %v7878 = vadd.f32 %v7876, %v7877
          %v7879 = vrot.slane %v7849, 4
          %v7880 = vadd.f32 %v7849, %v7879
          %v7881 = vrot.slane %v7880, 2
          %v7882 = vadd.f32 %v7880, %v7881
          %v7883 = vrot.slane %v7882, 1
          %v7884 = vadd.f32 %v7882, %v7883
          %v7885 = vrot.slane %v7850, 4
          %v7886 = vadd.f32 %v7850, %v7885
          %v7887 = vrot.slane %v7886, 2
          %v7888 = vadd.f32 %v7886, %v7887
          %v7889 = vrot.slane %v7888, 1
          %v7890 = vadd.f32 %v7888, %v7889
          %v7891 = vrot.slane %v7851, 4
          %v7892 = vadd.f32 %v7851, %v7891
          %v7893 = vrot.slane %v7892, 2
          %v7894 = vadd.f32 %v7892, %v7893
          %v7895 = vrot.slane %v7894, 1
          %v7896 = vadd.f32 %v7894, %v7895
          %v7897 = vrot.slane %v7852, 4
          %v7898 = vadd.f32 %v7852, %v7897
          %v7899 = vrot.slane %v7898, 2
          %v7900 = vadd.f32 %v7898, %v7899
          %v7901 = vrot.slane %v7900, 1
          %v7902 = vadd.f32 %v7900, %v7901
          %v7903 = vrot.slane %v7853, 4
          %v7904 = vadd.f32 %v7853, %v7903
          %v7905 = vrot.slane %v7904, 2
          %v7906 = vadd.f32 %v7904, %v7905
          %v7907 = vrot.slane %v7906, 1
          %v7908 = vadd.f32 %v7906, %v7907
          %v7909 = vrot.slane %v7854, 4
          %v7910 = vadd.f32 %v7854, %v7909
          %v7911 = vrot.slane %v7910, 2
          %v7912 = vadd.f32 %v7910, %v7911
          %v7913 = vrot.slane %v7912, 1
          %v7914 = vadd.f32 %v7912, %v7913
          %v7915 = vrcp.pop 8.0
          %v7916 = vmul.f32 %v7872, %v7915
          %v7917 = vmul.f32 %v7878, %v7915
          %v7918 = vmul.f32 %v7884, %v7915
          %v7919 = vmul.f32 %v7890, %v7915
          %v7920 = vmul.f32 %v7896, %v7915
          %v7921 = vmul.f32 %v7902, %v7915
          %v7922 = vmul.f32 %v7908, %v7915
          %v7923 = vmul.f32 %v7914, %v7915
          %v7924 = vld [vmem:[#allocation24] sm:$0xf]
          %v7926 = vlaneseq
          %v7927 = vshrl.u32 %v7926, 7
          %v7928 = vsub.s32 0, %v7927
          %v7929 = vrot.slane %v7924, %v7928
          %v7930 = vlaneseq
          %v7931 = vshrl.u32 %v7930, 7
          %v7932 = vsub.s32 1, %v7931
          %v7933 = vrot.slane %v7924, %v7932
          %v7934 = vlaneseq
          %v7935 = vshrl.u32 %v7934, 7
          %v7936 = vsub.s32 2, %v7935
          %v7937 = vrot.slane %v7924, %v7936
          %v7938 = vlaneseq
          %v7939 = vshrl.u32 %v7938, 7
          %v7940 = vsub.s32 3, %v7939
          %v7941 = vrot.slane %v7924, %v7940
          %v7946 = vmul.f32 %v7916, %v7929
          %v7947 = vmul.f32 %v7917, %v7933
          %v7948 = vmul.f32 %v7918, %v7937
          %v7949 = vmul.f32 %v7919, %v7941
          %v7950 = vmul.f32 %v7920, %v7929
          %v7951 = vmul.f32 %v7921, %v7933
          %v7952 = vmul.f32 %v7922, %v7937
          %v7953 = vmul.f32 %v7923, %v7941
          %v7962 = vrot.slane %v7950, 7
          %vm7963 = vcmask 1041409
          %v7964 = vsel %vm7963, %v7962, %v7946
          %v7965 = vrot.slane %v7951, 7
          %v7966 = vsel %vm7963, %v7965, %v7947
          %v7967 = vrot.slane %v7952, 7
          %v7968 = vsel %vm7963, %v7967, %v7948
          %v7969 = vrot.slane %v7953, 7
          %v7970 = vsel %vm7963, %v7969, %v7949
          %vm7975 = vcmask 1041408
          %v7976 = vsel %vm7975, %v7964, 0.0
          %v7977 = vsel %vm7975, %v7966, 0.0
          %v7978 = vadd.f32 %v7976, %v7977
          %v7979 = vsel %vm7975, %v7968, 0.0
          %v7980 = vadd.f32 %v7978, %v7979
          %v7981 = vsel %vm7975, %v7970, 0.0
          %v7982 = vadd.f32 %v7980, %v7981
          %7983 = vadd.xlane.f32.xlu0 %v7982
          %v7984 = vpop.xlane.xlu0 %7983
          %v7985 = vld [vmem:[#allocation3] sm:$0x1]
          %v7987 = vlaneseq
          %v7988 = vshrl.u32 %v7987, 7
          %v7989 = vsub.s32 0, %v7988
          %v7990 = vrot.slane %v7985, %v7989
          %v7992 = vadd.f32 %v7984, %v7990
          %vm7993 = vcmask 1024
          %7994 = vst.msk [vmem:[%s16] sm:$0x3] %vm7993, %v7992
        $region148: #{transformer_classifier.1} parent=83 // pred_fallthru
          _
        // Predicated region
        $region149: #{transformer_classifier.1} parent=83 // pred_check
          %p7995 = pneg %p458
        $region150: #{transformer_classifier.1} parent=83 // pred_check_branch
          %7997 = sbr.rel (%p7995) target = $region152
        $region151: #{transformer_classifier.1} parent=83 // pred_region
          _
        $region152: #{transformer_classifier.1} parent=83 // pred_fallthru
          _
        // Predicated region
        $region153: #{transformer_classifier.1} parent=83 // pred_check
          %p7998 = pneg %p458
        $region154: #{transformer_classifier.1} parent=83 // pred_check_branch
          %8000 = sbr.rel (%p7998) target = $region156
        $region155: #{transformer_classifier.1} parent=83 // pred_region
          _
        $region156: #{transformer_classifier.1} parent=83 // pred_fallthru
          _
      $region84: #{transformer_classifier.1} parent=5 // pred_fallthru
        _
      %p8001 = scmp.le.s32.totalorder 2, %s44
      // Predicated region
      $region157: #{transformer_classifier.1} parent=5 // pred_check
        %p8002 = pneg %p8001
      $region158: #{transformer_classifier.1} parent=5 // pred_check_branch
        %8004 = sbr.rel (%p8002) target = $region160
      $region159: #{transformer_classifier.1} parent=5 // pred_region
        %s8005 = ssub.s32 %s44, 2
      $region160: #{transformer_classifier.1} parent=5 // pred_fallthru
        _
    $region6: #{transformer_classifier.1} parent=1 // loop_footer
      %s48 = sadd.s32 1, %s44
    $region7: #{transformer_classifier.1} parent=1 // loop_footer_branch
      %43 = sbr.rel target = $region3
    $region8: #{transformer_classifier.1} parent=1 // loop_exit
      _
    %8006 = vsyncpa [#allocation5], 1
    %s8007 = scalar_lea.sflag [#allocation5], 1
    %8008 = vsyncpa %s8007, 1
    %8009 = vsyncpa [#allocation7], 1
    %s8010 = scalar_lea.sflag [#allocation7], 1
    %8011 = vsyncpa %s8010, 1
    %8012 = vsyncpa [#allocation10], 1
    %s8013 = scalar_lea.sflag [#allocation10], 1
    %8014 = vsyncpa %s8013, 1
    %8015 = vsyncpa [#allocation13], 1
    %s8016 = scalar_lea.sflag [#allocation13], 1
    %8017 = vsyncpa %s8016, 1
    %8018 = vsyncpa [#allocation16], 1
    %s8019 = scalar_lea.sflag [#allocation16], 1
    %8020 = vsyncpa %s8019, 1
    %8021 = vsyncpa [#allocation19], 1
    %s8022 = scalar_lea.sflag [#allocation19], 1
    %8023 = vsyncpa %s8022, 1
    %8024 = vsyncpa [#allocation22], 1
    %s8025 = scalar_lea.sflag [#allocation22], 1
    %8026 = vsyncpa %s8025, 1
    %8027 = vsyncpa [#allocation25], 1

</llo_original>
